<compile_context>
chip_gen: v7x
topology: tpu7x:2x2x1
jax: 0.10.0
libtpu: 0.0.40
codegen_flags: <defaults>
</compile_context>

<pallas_src>
import jax
import jax.numpy as jnp
from jax.experimental import pallas as pl
from jax.experimental.pallas import tpu as pltpu

INPUT_SIZE = 34
HIDDEN = 64
NUM_LAYERS = 3
OUT_FEATURES = 56
OUT_PAD = 128          # lane-dense padded Linear output width (sliced to 56 outside)
IN_PAD = 128           # layer-0 contraction dim padded 34 -> 128
GATE_ORDER = ("i", "f", "o", "g")   # our lane order; PyTorch stores [i, f, g, o]


# ------------------------------ fused kernel ---------------------------------
def _fused_rnn_kernel(x_ref,
                      wih0_ref, whh0_ref, b0_ref,
                      wih1_ref, whh1_ref, b1_ref,
                      wih2_ref, whh2_ref, b2_ref,
                      wout_ref, bout_ref,
                      out_ref):
    """Whole network in one kernel (all operands f32, VMEM-resident).

    Layouts (H = 64):
      x_ref    : (T*Bp, IN_PAD)   time-major input, row = t*Bp + b, zero-padded
      wih{l}   : (Din_l, 8H)      gate tiles [I|F|O|G], each tile [fwd(64)|rev(64)]
      whh{l}   : (2H, 8H)         block-diag: rows 0:H drive fwd cols, H:2H rev cols
      b{l}     : (1, 8H)          (b_ih + b_hh), same column layout
      wout     : (2H, OUT_PAD)    pre-transposed, zero-padded Linear weight
      bout     : (1, OUT_PAD)
      out_ref  : (Bp, OUT_PAD)
    State (traced values, vreg-resident): h, c : (Bp, 2H) = [fwd(64) | rev(64)].
    """
    Bp = out_ref.shape[0]
    T = x_ref.shape[0] // Bp
    H = HIDDEN
    G2, G4, G6, G8 = 2 * H, 4 * H, 6 * H, 8 * H

    # Static whole-vreg lane masks (each gate tile is [fwd(64) | rev(64)]).
    lane8 = jax.lax.broadcasted_iota(jnp.int32, (Bp, G8), 1)
    fwd_gate_mask = jnp.bitwise_and(lane8, G2 - 1) < H       # fwd half of each gate tile
    lane2 = jax.lax.broadcasted_iota(jnp.int32, (Bp, G2), 1)
    fwd_h_mask = lane2 < H                                   # fwd half of [h_f | h_r]

    layer_weights = ((wih0_ref, whh0_ref, b0_ref),
                     (wih1_ref, whh1_ref, b1_ref),
                     (wih2_ref, whh2_ref, b2_ref))

    layer_in = x_ref[...]                                    # (T*Bp, Din)
    last_h = None
    for layer in range(NUM_LAYERS):
        wih_ref, whh_ref, b_ref = layer_weights[layer]

        # Input projection for every timestep & both directions: one MXU matmul.
        proj = jnp.dot(layer_in, wih_ref[...],
                       preferred_element_type=jnp.float32) + b_ref[...]   # (T*Bp, 8H)

        # Recurrence: h/c stay in vregs; one (Bp,2H)x(2H,8H) matmul per step.
        h = jnp.zeros((Bp, G2), jnp.float32)
        c = jnp.zeros((Bp, G2), jnp.float32)
        h_steps = []
        for s in range(T):
            # fwd direction consumes t=s, rev consumes t=T-1-s (whole-vreg select,
            # independent of h/c so it sits off the serial chain).
            p_s = jnp.where(fwd_gate_mask,
                            proj[s * Bp:(s + 1) * Bp, :],
                            proj[(T - 1 - s) * Bp:(T - s) * Bp, :])
            gates = jnp.dot(h, whh_ref[...],
                            preferred_element_type=jnp.float32) + p_s      # (Bp, 8H)
            sg = jax.nn.sigmoid(gates[:, 0:G6])      # [I | F | O]  (3 aligned tiles)
            gt = jnp.tanh(gates[:, G6:G8])           # [G]          (1 aligned tile)
            i = sg[:, 0:G2]
            f = sg[:, G2:G4]
            o = sg[:, G4:G6]
            c = f * c + i * gt                       # whole-vreg, both directions
            h = o * jnp.tanh(c)
            h_steps.append(h)

        # Layer output at actual time t = [h_fwd(t) | h_rev(t)] (rev computed at
        # loop step T-1-t); reassembled as traced values — no scratch writes.
        last_h = jnp.where(fwd_h_mask, h_steps[T - 1], h_steps[0])
        if layer + 1 < NUM_LAYERS:
            rows = [jnp.where(fwd_h_mask, h_steps[t], h_steps[T - 1 - t])
                    for t in range(T - 1)]
            rows.append(last_h)
            layer_in = jnp.concatenate(rows, axis=0)          # (T*Bp, 2H)

    # Fused final Linear on the last timestep (== r_out[:, -1, :]).
    out_ref[...] = (jnp.dot(last_h, wout_ref[...],
                            preferred_element_type=jnp.float32)
                    + bout_ref[...]).astype(out_ref.dtype)


# --------------------------- one-time weight packing --------------------------
def _pt_gates(a):
    """Split the trailing 4H axis (PyTorch order [i, f, g, o]) into gate slabs."""
    H = HIDDEN
    return {"i": a[..., 0:H], "f": a[..., H:2 * H],
            "g": a[..., 2 * H:3 * H], "o": a[..., 3 * H:4 * H]}


def _pack_input_weight(w_ih_f, w_ih_r, din_pad):
    """PyTorch (4H, Din) weights -> (din_pad, 8H), gate tiles [I|F|O|G], [fwd|rev]."""
    H = HIDDEN
    din = w_ih_f.shape[1]
    gf = _pt_gates(jnp.transpose(w_ih_f).astype(jnp.float32))
    gr = _pt_gates(jnp.transpose(w_ih_r).astype(jnp.float32))
    out = jnp.zeros((din_pad, 8 * H), jnp.float32)
    for q, name in enumerate(GATE_ORDER):
        out = out.at[:din, 2 * H * q:2 * H * q + H].set(gf[name])
        out = out.at[:din, 2 * H * q + H:2 * H * (q + 1)].set(gr[name])
    return out


def _pack_recurrent_weight(w_hh_f, w_hh_r):
    """PyTorch (4H, H) weights -> block-diagonal (2H, 8H) acting on [h_fwd | h_rev]."""
    H = HIDDEN
    gf = _pt_gates(jnp.transpose(w_hh_f).astype(jnp.float32))
    gr = _pt_gates(jnp.transpose(w_hh_r).astype(jnp.float32))
    out = jnp.zeros((2 * H, 8 * H), jnp.float32)
    for q, name in enumerate(GATE_ORDER):
        out = out.at[0:H, 2 * H * q:2 * H * q + H].set(gf[name])
        out = out.at[H:2 * H, 2 * H * q + H:2 * H * (q + 1)].set(gr[name])
    return out


def _pack_bias(p):
    H = HIDDEN
    bf = _pt_gates((p["fwd"][2] + p["fwd"][3]).astype(jnp.float32))
    br = _pt_gates((p["rev"][2] + p["rev"][3]).astype(jnp.float32))
    out = jnp.zeros((1, 8 * H), jnp.float32)
    for q, name in enumerate(GATE_ORDER):
        out = out.at[0, 2 * H * q:2 * H * q + H].set(bf[name])
        out = out.at[0, 2 * H * q + H:2 * H * (q + 1)].set(br[name])
    return out


def pack_params(params):
    """Pack PyTorch-layout params into kernel operands (call once, outside jit)."""
    packed = []
    for layer in range(NUM_LAYERS):
        p = params["lstm"][layer]
        din_pad = IN_PAD if layer == 0 else 2 * HIDDEN
        packed.append(_pack_input_weight(p["fwd"][0], p["rev"][0], din_pad))
        packed.append(_pack_recurrent_weight(p["fwd"][1], p["rev"][1]))
        packed.append(_pack_bias(p))
    w_out, b_out = params["out"]
    wout = jnp.zeros((2 * HIDDEN, OUT_PAD), jnp.float32).at[:, :OUT_FEATURES].set(
        jnp.transpose(w_out).astype(jnp.float32))
    bout = jnp.zeros((1, OUT_PAD), jnp.float32).at[0, :OUT_FEATURES].set(
        b_out.astype(jnp.float32))
    packed.extend([wout, bout])
    return tuple(packed)


# --------------------------------- forward ------------------------------------
def rnn_forward(x, packed):
    """x: (B, T, 34) float32 -> (B, 56) float32 (matches PyTorch RNN.forward)."""
    B, T, Din = x.shape
    assert Din == INPUT_SIZE
    Bp = ((max(B, 1) + 7) // 8) * 8          # sublane-dense batch padding

    # Time-major, batch padded to Bp sublanes, features padded to 128 lanes.
    x_tm = jnp.transpose(x, (1, 0, 2)).astype(jnp.float32)          # (T, B, Din)
    x_pad = jnp.zeros((T, Bp, IN_PAD), jnp.float32).at[:, :B, :Din].set(x_tm)
    x2d = x_pad.reshape(T * Bp, IN_PAD)

    vmem = pl.BlockSpec(memory_space=pltpu.MemorySpace.VMEM)
    flops = (2 * NUM_LAYERS * T * Bp * IN_PAD * 8 * HIDDEN          # input projections
             + 2 * NUM_LAYERS * T * Bp * 2 * HIDDEN * 8 * HIDDEN    # recurrence
             + 2 * Bp * 2 * HIDDEN * OUT_PAD)                       # final linear
    cost = pl.CostEstimate(
        flops=int(flops),
        transcendentals=int(NUM_LAYERS * T * Bp * 10 * HIDDEN),
        bytes_accessed=int(4 * (x2d.size + sum(int(p.size) for p in packed)
                                + Bp * OUT_PAD)))

    out_pad = pl.pallas_call(
        _fused_rnn_kernel,
        out_shape=jax.ShapeDtypeStruct((Bp, OUT_PAD), jnp.float32),
        in_specs=[vmem] * (1 + len(packed)),
        out_specs=vmem,
        cost_estimate=cost,
    )(x2d, *packed)
    return out_pad[:B, :OUT_FEATURES]


# ----------------------------- pure-JAX reference -----------------------------
_HI = jax.lax.Precision.HIGHEST


def _lstm_ref_dir(x_tm, w_ih, w_hh, b_ih, b_hh, reverse):
    T, B, _ = x_tm.shape
    H = w_hh.shape[1]
    h = jnp.zeros((B, H), jnp.float32)
    c = jnp.zeros((B, H), jnp.float32)
    outs = [None] * T
    steps = range(T - 1, -1, -1) if reverse else range(T)
    for t in steps:
        g = (jnp.dot(x_tm[t], w_ih.T, precision=_HI)
             + jnp.dot(h, w_hh.T, precision=_HI) + b_ih + b_hh)
        i = jax.nn.sigmoid(g[:, 0:H])
        f = jax.nn.sigmoid(g[:, H:2 * H])
        gg = jnp.tanh(g[:, 2 * H:3 * H])
        o = jax.nn.sigmoid(g[:, 3 * H:4 * H])
        c = f * c + i * gg
        h = o * jnp.tanh(c)
        outs[t] = h
    return jnp.stack(outs, axis=0)


def rnn_reference(x, params):
    h = jnp.transpose(x, (1, 0, 2)).astype(jnp.float32)
    for layer in range(NUM_LAYERS):
        p = params["lstm"][layer]
        fwd = _lstm_ref_dir(h, *p["fwd"], reverse=False)
        rev = _lstm_ref_dir(h, *p["rev"], reverse=True)
        h = jnp.concatenate([fwd, rev], axis=-1)
    w_out, b_out = params["out"]
    return jnp.dot(h[-1], w_out.T, precision=_HI) + b_out


# ----------------------------- parameter creation ------------------------------
def init_params(key):
    params = {"lstm": []}
    k = 1.0 / float(jnp.sqrt(jnp.float32(HIDDEN)))
    keys = jax.random.split(key, NUM_LAYERS * 2 * 4 + 2)
    idx = 0
    for layer in range(NUM_LAYERS):
        din = INPUT_SIZE if layer == 0 else 2 * HIDDEN
        layer_p = {}
        for dname in ("fwd", "rev"):
            w_ih = jax.random.uniform(keys[idx], (4 * HIDDEN, din),
                                      minval=-k, maxval=k); idx += 1
            w_hh = jax.random.uniform(keys[idx], (4 * HIDDEN, HIDDEN),
                                      minval=-k, maxval=k); idx += 1
            b_ih = jax.random.uniform(keys[idx], (4 * HIDDEN,),
                                      minval=-k, maxval=k); idx += 1
            b_hh = jax.random.uniform(keys[idx], (4 * HIDDEN,),
                                      minval=-k, maxval=k); idx += 1
            layer_p[dname] = (w_ih, w_hh, b_ih, b_hh)
        params["lstm"].append(layer_p)
    kk = 1.0 / float(jnp.sqrt(jnp.float32(2 * HIDDEN)))
    w_out = jax.random.uniform(keys[idx], (OUT_FEATURES, 2 * HIDDEN),
                               minval=-kk, maxval=kk); idx += 1
    b_out = jax.random.uniform(keys[idx], (OUT_FEATURES,),
                               minval=-kk, maxval=kk)
    params["out"] = (w_out, b_out)
    return params


if __name__ == "__main__":
    key = jax.random.PRNGKey(0)
    pkey, xkey = jax.random.split(key)
    params = init_params(pkey)
    packed = pack_params(params)          # one-time packing, outside the jitted forward

    B, T = 2, 8
    x = jax.random.normal(xkey, (B, T, INPUT_SIZE), dtype=jnp.float32)

    fwd = jax.jit(rnn_forward)
    out = jax.block_until_ready(fwd(x, packed))

    assert out.shape == (B, OUT_FEATURES), out.shape
    assert out.dtype == jnp.float32
    assert bool(jnp.all(jnp.isfinite(out)))

    ref = jax.block_until_ready(jax.jit(rnn_reference)(x, params))
    max_err = float(jnp.max(jnp.abs(out - ref)))
    assert max_err < 1e-4, f"mismatch vs pure-JAX reference: {max_err}"

    print("KERNEL_OK")
</pallas_src>

<mosaic_0001>
module attributes {stable_mosaic.version = 11 : i64} {
  func.func @_fused_rnn_kernel(%arg0: memref<64x128xf32, #tpu.memory_space<vmem>>, %arg1: memref<128x512xf32, #tpu.memory_space<vmem>>, %arg2: memref<128x512xf32, #tpu.memory_space<vmem>>, %arg3: memref<1x512xf32, #tpu.memory_space<vmem>>, %arg4: memref<128x512xf32, #tpu.memory_space<vmem>>, %arg5: memref<128x512xf32, #tpu.memory_space<vmem>>, %arg6: memref<1x512xf32, #tpu.memory_space<vmem>>, %arg7: memref<128x512xf32, #tpu.memory_space<vmem>>, %arg8: memref<128x512xf32, #tpu.memory_space<vmem>>, %arg9: memref<1x512xf32, #tpu.memory_space<vmem>>, %arg10: memref<128x128xf32, #tpu.memory_space<vmem>>, %arg11: memref<1x128xf32, #tpu.memory_space<vmem>>, %arg12: memref<8x128xf32, #tpu.memory_space<vmem>>) attributes {dimension_semantics = [], scalar_prefetch = 0 : i64, scratch_operands = 0 : i64, tpu.core_type = #tpu.core_type<tc>} {
    %0 = tpu.iota {dimensions = array<i32: 1>} : vector<8x512xi32>
    %c127_i32 = arith.constant 127 : i32
    %1 = vector.broadcast %c127_i32 : i32 to vector<8x512xi32>
    %2 = arith.andi %0, %1 : vector<8x512xi32>
    %c64_i32 = arith.constant 64 : i32
    %3 = vector.broadcast %c64_i32 : i32 to vector<8x512xi32>
    %4 = arith.cmpi slt, %2, %3 : vector<8x512xi32>
    %5 = tpu.iota {dimensions = array<i32: 1>} : vector<8x128xi32>
    %c64_i32_0 = arith.constant 64 : i32
    %6 = vector.broadcast %c64_i32_0 : i32 to vector<8x128xi32>
    %7 = arith.cmpi slt, %5, %6 : vector<8x128xi32>
    %c0 = arith.constant 0 : index
    %c0_1 = arith.constant 0 : index
    %8 = vector.load %arg0[%c0, %c0_1] : memref<64x128xf32, #tpu.memory_space<vmem>>, vector<64x128xf32>
    %c0_2 = arith.constant 0 : index
    %c0_3 = arith.constant 0 : index
    %9 = vector.load %arg1[%c0_2, %c0_3] : memref<128x512xf32, #tpu.memory_space<vmem>>, vector<128x512xf32>
    %cst = arith.constant dense<0.000000e+00> : vector<64x512xf32>
    %10 = tpu.matmul %8, %9, %cst {dimension_numbers = #tpu.dot_dimension_numbers<[1], [0], [0], [1], [0, 0, 1, 1], [], []>} : vector<64x128xf32>, vector<128x512xf32>, vector<64x512xf32> -> vector<64x512xf32>
    %c0_4 = arith.constant 0 : index
    %c0_5 = arith.constant 0 : index
    %11 = vector.load %arg3[%c0_4, %c0_5] : memref<1x512xf32, #tpu.memory_space<vmem>>, vector<1x512xf32>
    %12 = vector.broadcast %11 : vector<1x512xf32> to vector<64x512xf32>
    %13 = arith.addf %10, %12 : vector<64x512xf32>
    %cst_6 = arith.constant 0.000000e+00 : f32
    %14 = vector.broadcast %cst_6 : f32 to vector<8x128xf32>
    %cst_7 = arith.constant 0.000000e+00 : f32
    %15 = vector.broadcast %cst_7 : f32 to vector<8x128xf32>
    %16 = vector.extract_strided_slice %13 {offsets = [0, 0], sizes = [8, 512], strides = [1, 1]} : vector<64x512xf32> to vector<8x512xf32>
    %17 = vector.extract_strided_slice %13 {offsets = [56, 0], sizes = [8, 512], strides = [1, 1]} : vector<64x512xf32> to vector<8x512xf32>
    %18 = arith.select %4, %16, %17 : vector<8x512xi1>, vector<8x512xf32>
    %c0_8 = arith.constant 0 : index
    %c0_9 = arith.constant 0 : index
    %19 = vector.load %arg2[%c0_8, %c0_9] : memref<128x512xf32, #tpu.memory_space<vmem>>, vector<128x512xf32>
    %cst_10 = arith.constant dense<0.000000e+00> : vector<8x512xf32>
    %20 = tpu.matmul %14, %19, %cst_10 {dimension_numbers = #tpu.dot_dimension_numbers<[1], [0], [0], [1], [0, 0, 1, 1], [], []>} : vector<8x128xf32>, vector<128x512xf32>, vector<8x512xf32> -> vector<8x512xf32>
    %21 = arith.addf %20, %18 : vector<8x512xf32>
    %22 = vector.extract_strided_slice %21 {offsets = [0, 0], sizes = [8, 384], strides = [1, 1]} : vector<8x512xf32> to vector<8x384xf32>
    %23 = arith.negf %22 : vector<8x384xf32>
    %24 = math.exp %23 : vector<8x384xf32>
    %cst_11 = arith.constant 1.000000e+00 : f32
    %25 = vector.broadcast %cst_11 : f32 to vector<8x384xf32>
    %26 = arith.addf %25, %24 : vector<8x384xf32>
    %27 = arith.divf %25, %26 : vector<8x384xf32>
    %28 = vector.extract_strided_slice %21 {offsets = [0, 384], sizes = [8, 128], strides = [1, 1]} : vector<8x512xf32> to vector<8x128xf32>
    %29 = math.tanh %28 : vector<8x128xf32>
    %30 = vector.extract_strided_slice %27 {offsets = [0, 0], sizes = [8, 128], strides = [1, 1]} : vector<8x384xf32> to vector<8x128xf32>
    %31 = vector.extract_strided_slice %27 {offsets = [0, 128], sizes = [8, 128], strides = [1, 1]} : vector<8x384xf32> to vector<8x128xf32>
    %32 = vector.extract_strided_slice %27 {offsets = [0, 256], sizes = [8, 128], strides = [1, 1]} : vector<8x384xf32> to vector<8x128xf32>
    %33 = arith.mulf %31, %15 : vector<8x128xf32>
    %34 = arith.mulf %30, %29 : vector<8x128xf32>
    %35 = arith.addf %33, %34 : vector<8x128xf32>
    %36 = math.tanh %35 : vector<8x128xf32>
    %37 = arith.mulf %32, %36 : vector<8x128xf32>
    %38 = vector.extract_strided_slice %13 {offsets = [8, 0], sizes = [8, 512], strides = [1, 1]} : vector<64x512xf32> to vector<8x512xf32>
    %39 = vector.extract_strided_slice %13 {offsets = [48, 0], sizes = [8, 512], strides = [1, 1]} : vector<64x512xf32> to vector<8x512xf32>
    %40 = arith.select %4, %38, %39 : vector<8x512xi1>, vector<8x512xf32>
    %c0_12 = arith.constant 0 : index
    %c0_13 = arith.constant 0 : index
    %41 = vector.load %arg2[%c0_12, %c0_13] : memref<128x512xf32, #tpu.memory_space<vmem>>, vector<128x512xf32>
    %cst_14 = arith.constant dense<0.000000e+00> : vector<8x512xf32>
    %42 = tpu.matmul %37, %41, %cst_14 {dimension_numbers = #tpu.dot_dimension_numbers<[1], [0], [0], [1], [0, 0, 1, 1], [], []>} : vector<8x128xf32>, vector<128x512xf32>, vector<8x512xf32> -> vector<8x512xf32>
    %43 = arith.addf %42, %40 : vector<8x512xf32>
    %44 = vector.extract_strided_slice %43 {offsets = [0, 0], sizes = [8, 384], strides = [1, 1]} : vector<8x512xf32> to vector<8x384xf32>
    %45 = arith.negf %44 : vector<8x384xf32>
    %46 = math.exp %45 : vector<8x384xf32>
    %cst_15 = arith.constant 1.000000e+00 : f32
    %47 = vector.broadcast %cst_15 : f32 to vector<8x384xf32>
    %48 = arith.addf %47, %46 : vector<8x384xf32>
    %49 = arith.divf %47, %48 : vector<8x384xf32>
    %50 = vector.extract_strided_slice %43 {offsets = [0, 384], sizes = [8, 128], strides = [1, 1]} : vector<8x512xf32> to vector<8x128xf32>
    %51 = math.tanh %50 : vector<8x128xf32>
    %52 = vector.extract_strided_slice %49 {offsets = [0, 0], sizes = [8, 128], strides = [1, 1]} : vector<8x384xf32> to vector<8x128xf32>
    %53 = vector.extract_strided_slice %49 {offsets = [0, 128], sizes = [8, 128], strides = [1, 1]} : vector<8x384xf32> to vector<8x128xf32>
    %54 = vector.extract_strided_slice %49 {offsets = [0, 256], sizes = [8, 128], strides = [1, 1]} : vector<8x384xf32> to vector<8x128xf32>
    %55 = arith.mulf %53, %35 : vector<8x128xf32>
    %56 = arith.mulf %52, %51 : vector<8x128xf32>
    %57 = arith.addf %55, %56 : vector<8x128xf32>
    %58 = math.tanh %57 : vector<8x128xf32>
    %59 = arith.mulf %54, %58 : vector<8x128xf32>
    %60 = vector.extract_strided_slice %13 {offsets = [16, 0], sizes = [8, 512], strides = [1, 1]} : vector<64x512xf32> to vector<8x512xf32>
    %61 = vector.extract_strided_slice %13 {offsets = [40, 0], sizes = [8, 512], strides = [1, 1]} : vector<64x512xf32> to vector<8x512xf32>
    %62 = arith.select %4, %60, %61 : vector<8x512xi1>, vector<8x512xf32>
    %c0_16 = arith.constant 0 : index
    %c0_17 = arith.constant 0 : index
    %63 = vector.load %arg2[%c0_16, %c0_17] : memref<128x512xf32, #tpu.memory_space<vmem>>, vector<128x512xf32>
    %cst_18 = arith.constant dense<0.000000e+00> : vector<8x512xf32>
    %64 = tpu.matmul %59, %63, %cst_18 {dimension_numbers = #tpu.dot_dimension_numbers<[1], [0], [0], [1], [0, 0, 1, 1], [], []>} : vector<8x128xf32>, vector<128x512xf32>, vector<8x512xf32> -> vector<8x512xf32>
    %65 = arith.addf %64, %62 : vector<8x512xf32>
    %66 = vector.extract_strided_slice %65 {offsets = [0, 0], sizes = [8, 384], strides = [1, 1]} : vector<8x512xf32> to vector<8x384xf32>
    %67 = arith.negf %66 : vector<8x384xf32>
    %68 = math.exp %67 : vector<8x384xf32>
    %cst_19 = arith.constant 1.000000e+00 : f32
    %69 = vector.broadcast %cst_19 : f32 to vector<8x384xf32>
    %70 = arith.addf %69, %68 : vector<8x384xf32>
    %71 = arith.divf %69, %70 : vector<8x384xf32>
    %72 = vector.extract_strided_slice %65 {offsets = [0, 384], sizes = [8, 128], strides = [1, 1]} : vector<8x512xf32> to vector<8x128xf32>
    %73 = math.tanh %72 : vector<8x128xf32>
    %74 = vector.extract_strided_slice %71 {offsets = [0, 0], sizes = [8, 128], strides = [1, 1]} : vector<8x384xf32> to vector<8x128xf32>
    %75 = vector.extract_strided_slice %71 {offsets = [0, 128], sizes = [8, 128], strides = [1, 1]} : vector<8x384xf32> to vector<8x128xf32>
    %76 = vector.extract_strided_slice %71 {offsets = [0, 256], sizes = [8, 128], strides = [1, 1]} : vector<8x384xf32> to vector<8x128xf32>
    %77 = arith.mulf %75, %57 : vector<8x128xf32>
    %78 = arith.mulf %74, %73 : vector<8x128xf32>
    %79 = arith.addf %77, %78 : vector<8x128xf32>
    %80 = math.tanh %79 : vector<8x128xf32>
    %81 = arith.mulf %76, %80 : vector<8x128xf32>
    %82 = vector.extract_strided_slice %13 {offsets = [24, 0], sizes = [8, 512], strides = [1, 1]} : vector<64x512xf32> to vector<8x512xf32>
    %83 = vector.extract_strided_slice %13 {offsets = [32, 0], sizes = [8, 512], strides = [1, 1]} : vector<64x512xf32> to vector<8x512xf32>
    %84 = arith.select %4, %82, %83 : vector<8x512xi1>, vector<8x512xf32>
    %c0_20 = arith.constant 0 : index
    %c0_21 = arith.constant 0 : index
    %85 = vector.load %arg2[%c0_20, %c0_21] : memref<128x512xf32, #tpu.memory_space<vmem>>, vector<128x512xf32>
    %cst_22 = arith.constant dense<0.000000e+00> : vector<8x512xf32>
    %86 = tpu.matmul %81, %85, %cst_22 {dimension_numbers = #tpu.dot_dimension_numbers<[1], [0], [0], [1], [0, 0, 1, 1], [], []>} : vector<8x128xf32>, vector<128x512xf32>, vector<8x512xf32> -> vector<8x512xf32>
    %87 = arith.addf %86, %84 : vector<8x512xf32>
    %88 = vector.extract_strided_slice %87 {offsets = [0, 0], sizes = [8, 384], strides = [1, 1]} : vector<8x512xf32> to vector<8x384xf32>
    %89 = arith.negf %88 : vector<8x384xf32>
    %90 = math.exp %89 : vector<8x384xf32>
    %cst_23 = arith.constant 1.000000e+00 : f32
    %91 = vector.broadcast %cst_23 : f32 to vector<8x384xf32>
    %92 = arith.addf %91, %90 : vector<8x384xf32>
    %93 = arith.divf %91, %92 : vector<8x384xf32>
    %94 = vector.extract_strided_slice %87 {offsets = [0, 384], sizes = [8, 128], strides = [1, 1]} : vector<8x512xf32> to vector<8x128xf32>
    %95 = math.tanh %94 : vector<8x128xf32>
    %96 = vector.extract_strided_slice %93 {offsets = [0, 0], sizes = [8, 128], strides = [1, 1]} : vector<8x384xf32> to vector<8x128xf32>
    %97 = vector.extract_strided_slice %93 {offsets = [0, 128], sizes = [8, 128], strides = [1, 1]} : vector<8x384xf32> to vector<8x128xf32>
    %98 = vector.extract_strided_slice %93 {offsets = [0, 256], sizes = [8, 128], strides = [1, 1]} : vector<8x384xf32> to vector<8x128xf32>
    %99 = arith.mulf %97, %79 : vector<8x128xf32>
    %100 = arith.mulf %96, %95 : vector<8x128xf32>
    %101 = arith.addf %99, %100 : vector<8x128xf32>
    %102 = math.tanh %101 : vector<8x128xf32>
    %103 = arith.mulf %98, %102 : vector<8x128xf32>
    %104 = vector.extract_strided_slice %13 {offsets = [32, 0], sizes = [8, 512], strides = [1, 1]} : vector<64x512xf32> to vector<8x512xf32>
    %105 = vector.extract_strided_slice %13 {offsets = [24, 0], sizes = [8, 512], strides = [1, 1]} : vector<64x512xf32> to vector<8x512xf32>
    %106 = arith.select %4, %104, %105 : vector<8x512xi1>, vector<8x512xf32>
    %c0_24 = arith.constant 0 : index
    %c0_25 = arith.constant 0 : index
    %107 = vector.load %arg2[%c0_24, %c0_25] : memref<128x512xf32, #tpu.memory_space<vmem>>, vector<128x512xf32>
    %cst_26 = arith.constant dense<0.000000e+00> : vector<8x512xf32>
    %108 = tpu.matmul %103, %107, %cst_26 {dimension_numbers = #tpu.dot_dimension_numbers<[1], [0], [0], [1], [0, 0, 1, 1], [], []>} : vector<8x128xf32>, vector<128x512xf32>, vector<8x512xf32> -> vector<8x512xf32>
    %109 = arith.addf %108, %106 : vector<8x512xf32>
    %110 = vector.extract_strided_slice %109 {offsets = [0, 0], sizes = [8, 384], strides = [1, 1]} : vector<8x512xf32> to vector<8x384xf32>
    %111 = arith.negf %110 : vector<8x384xf32>
    %112 = math.exp %111 : vector<8x384xf32>
    %cst_27 = arith.constant 1.000000e+00 : f32
    %113 = vector.broadcast %cst_27 : f32 to vector<8x384xf32>
    %114 = arith.addf %113, %112 : vector<8x384xf32>
    %115 = arith.divf %113, %114 : vector<8x384xf32>
    %116 = vector.extract_strided_slice %109 {offsets = [0, 384], sizes = [8, 128], strides = [1, 1]} : vector<8x512xf32> to vector<8x128xf32>
    %117 = math.tanh %116 : vector<8x128xf32>
    %118 = vector.extract_strided_slice %115 {offsets = [0, 0], sizes = [8, 128], strides = [1, 1]} : vector<8x384xf32> to vector<8x128xf32>
    %119 = vector.extract_strided_slice %115 {offsets = [0, 128], sizes = [8, 128], strides = [1, 1]} : vector<8x384xf32> to vector<8x128xf32>
    %120 = vector.extract_strided_slice %115 {offsets = [0, 256], sizes = [8, 128], strides = [1, 1]} : vector<8x384xf32> to vector<8x128xf32>
    %121 = arith.mulf %119, %101 : vector<8x128xf32>
    %122 = arith.mulf %118, %117 : vector<8x128xf32>
    %123 = arith.addf %121, %122 : vector<8x128xf32>
    %124 = math.tanh %123 : vector<8x128xf32>
    %125 = arith.mulf %120, %124 : vector<8x128xf32>
    %126 = vector.extract_strided_slice %13 {offsets = [40, 0], sizes = [8, 512], strides = [1, 1]} : vector<64x512xf32> to vector<8x512xf32>
    %127 = vector.extract_strided_slice %13 {offsets = [16, 0], sizes = [8, 512], strides = [1, 1]} : vector<64x512xf32> to vector<8x512xf32>
    %128 = arith.select %4, %126, %127 : vector<8x512xi1>, vector<8x512xf32>
    %c0_28 = arith.constant 0 : index
    %c0_29 = arith.constant 0 : index
    %129 = vector.load %arg2[%c0_28, %c0_29] : memref<128x512xf32, #tpu.memory_space<vmem>>, vector<128x512xf32>
    %cst_30 = arith.constant dense<0.000000e+00> : vector<8x512xf32>
    %130 = tpu.matmul %125, %129, %cst_30 {dimension_numbers = #tpu.dot_dimension_numbers<[1], [0], [0], [1], [0, 0, 1, 1], [], []>} : vector<8x128xf32>, vector<128x512xf32>, vector<8x512xf32> -> vector<8x512xf32>
    %131 = arith.addf %130, %128 : vector<8x512xf32>
    %132 = vector.extract_strided_slice %131 {offsets = [0, 0], sizes = [8, 384], strides = [1, 1]} : vector<8x512xf32> to vector<8x384xf32>
    %133 = arith.negf %132 : vector<8x384xf32>
    %134 = math.exp %133 : vector<8x384xf32>
    %cst_31 = arith.constant 1.000000e+00 : f32
    %135 = vector.broadcast %cst_31 : f32 to vector<8x384xf32>
    %136 = arith.addf %135, %134 : vector<8x384xf32>
    %137 = arith.divf %135, %136 : vector<8x384xf32>
    %138 = vector.extract_strided_slice %131 {offsets = [0, 384], sizes = [8, 128], strides = [1, 1]} : vector<8x512xf32> to vector<8x128xf32>
    %139 = math.tanh %138 : vector<8x128xf32>
    %140 = vector.extract_strided_slice %137 {offsets = [0, 0], sizes = [8, 128], strides = [1, 1]} : vector<8x384xf32> to vector<8x128xf32>
    %141 = vector.extract_strided_slice %137 {offsets = [0, 128], sizes = [8, 128], strides = [1, 1]} : vector<8x384xf32> to vector<8x128xf32>
    %142 = vector.extract_strided_slice %137 {offsets = [0, 256], sizes = [8, 128], strides = [1, 1]} : vector<8x384xf32> to vector<8x128xf32>
    %143 = arith.mulf %141, %123 : vector<8x128xf32>
    %144 = arith.mulf %140, %139 : vector<8x128xf32>
    %145 = arith.addf %143, %144 : vector<8x128xf32>
    %146 = math.tanh %145 : vector<8x128xf32>
    %147 = arith.mulf %142, %146 : vector<8x128xf32>
    %148 = vector.extract_strided_slice %13 {offsets = [48, 0], sizes = [8, 512], strides = [1, 1]} : vector<64x512xf32> to vector<8x512xf32>
    %149 = vector.extract_strided_slice %13 {offsets = [8, 0], sizes = [8, 512], strides = [1, 1]} : vector<64x512xf32> to vector<8x512xf32>
    %150 = arith.select %4, %148, %149 : vector<8x512xi1>, vector<8x512xf32>
    %c0_32 = arith.constant 0 : index
    %c0_33 = arith.constant 0 : index
    %151 = vector.load %arg2[%c0_32, %c0_33] : memref<128x512xf32, #tpu.memory_space<vmem>>, vector<128x512xf32>
    %cst_34 = arith.constant dense<0.000000e+00> : vector<8x512xf32>
    %152 = tpu.matmul %147, %151, %cst_34 {dimension_numbers = #tpu.dot_dimension_numbers<[1], [0], [0], [1], [0, 0, 1, 1], [], []>} : vector<8x128xf32>, vector<128x512xf32>, vector<8x512xf32> -> vector<8x512xf32>
    %153 = arith.addf %152, %150 : vector<8x512xf32>
    %154 = vector.extract_strided_slice %153 {offsets = [0, 0], sizes = [8, 384], strides = [1, 1]} : vector<8x512xf32> to vector<8x384xf32>
    %155 = arith.negf %154 : vector<8x384xf32>
    %156 = math.exp %155 : vector<8x384xf32>
    %cst_35 = arith.constant 1.000000e+00 : f32
    %157 = vector.broadcast %cst_35 : f32 to vector<8x384xf32>
    %158 = arith.addf %157, %156 : vector<8x384xf32>
    %159 = arith.divf %157, %158 : vector<8x384xf32>
    %160 = vector.extract_strided_slice %153 {offsets = [0, 384], sizes = [8, 128], strides = [1, 1]} : vector<8x512xf32> to vector<8x128xf32>
    %161 = math.tanh %160 : vector<8x128xf32>
    %162 = vector.extract_strided_slice %159 {offsets = [0, 0], sizes = [8, 128], strides = [1, 1]} : vector<8x384xf32> to vector<8x128xf32>
    %163 = vector.extract_strided_slice %159 {offsets = [0, 128], sizes = [8, 128], strides = [1, 1]} : vector<8x384xf32> to vector<8x128xf32>
    %164 = vector.extract_strided_slice %159 {offsets = [0, 256], sizes = [8, 128], strides = [1, 1]} : vector<8x384xf32> to vector<8x128xf32>
    %165 = arith.mulf %163, %145 : vector<8x128xf32>
    %166 = arith.mulf %162, %161 : vector<8x128xf32>
    %167 = arith.addf %165, %166 : vector<8x128xf32>
    %168 = math.tanh %167 : vector<8x128xf32>
    %169 = arith.mulf %164, %168 : vector<8x128xf32>
    %170 = vector.extract_strided_slice %13 {offsets = [56, 0], sizes = [8, 512], strides = [1, 1]} : vector<64x512xf32> to vector<8x512xf32>
    %171 = vector.extract_strided_slice %13 {offsets = [0, 0], sizes = [8, 512], strides = [1, 1]} : vector<64x512xf32> to vector<8x512xf32>
    %172 = arith.select %4, %170, %171 : vector<8x512xi1>, vector<8x512xf32>
    %c0_36 = arith.constant 0 : index
    %c0_37 = arith.constant 0 : index
    %173 = vector.load %arg2[%c0_36, %c0_37] : memref<128x512xf32, #tpu.memory_space<vmem>>, vector<128x512xf32>
    %cst_38 = arith.constant dense<0.000000e+00> : vector<8x512xf32>
    %174 = tpu.matmul %169, %173, %cst_38 {dimension_numbers = #tpu.dot_dimension_numbers<[1], [0], [0], [1], [0, 0, 1, 1], [], []>} : vector<8x128xf32>, vector<128x512xf32>, vector<8x512xf32> -> vector<8x512xf32>
    %175 = arith.addf %174, %172 : vector<8x512xf32>
    %176 = vector.extract_strided_slice %175 {offsets = [0, 0], sizes = [8, 384], strides = [1, 1]} : vector<8x512xf32> to vector<8x384xf32>
    %177 = arith.negf %176 : vector<8x384xf32>
    %178 = math.exp %177 : vector<8x384xf32>
    %cst_39 = arith.constant 1.000000e+00 : f32
    %179 = vector.broadcast %cst_39 : f32 to vector<8x384xf32>
    %180 = arith.addf %179, %178 : vector<8x384xf32>
    %181 = arith.divf %179, %180 : vector<8x384xf32>
    %182 = vector.extract_strided_slice %175 {offsets = [0, 384], sizes = [8, 128], strides = [1, 1]} : vector<8x512xf32> to vector<8x128xf32>
    %183 = math.tanh %182 : vector<8x128xf32>
    %184 = vector.extract_strided_slice %181 {offsets = [0, 0], sizes = [8, 128], strides = [1, 1]} : vector<8x384xf32> to vector<8x128xf32>
    %185 = vector.extract_strided_slice %181 {offsets = [0, 128], sizes = [8, 128], strides = [1, 1]} : vector<8x384xf32> to vector<8x128xf32>
    %186 = vector.extract_strided_slice %181 {offsets = [0, 256], sizes = [8, 128], strides = [1, 1]} : vector<8x384xf32> to vector<8x128xf32>
    %187 = arith.mulf %185, %167 : vector<8x128xf32>
    %188 = arith.mulf %184, %183 : vector<8x128xf32>
    %189 = arith.addf %187, %188 : vector<8x128xf32>
    %190 = math.tanh %189 : vector<8x128xf32>
    %191 = arith.mulf %186, %190 : vector<8x128xf32>
    %192 = arith.select %7, %191, %37 : vector<8x128xi1>, vector<8x128xf32>
    %193 = arith.select %7, %37, %191 : vector<8x128xi1>, vector<8x128xf32>
    %194 = arith.select %7, %59, %169 : vector<8x128xi1>, vector<8x128xf32>
    %195 = arith.select %7, %81, %147 : vector<8x128xi1>, vector<8x128xf32>
    %196 = arith.select %7, %103, %125 : vector<8x128xi1>, vector<8x128xf32>
    %197 = arith.select %7, %125, %103 : vector<8x128xi1>, vector<8x128xf32>
    %198 = arith.select %7, %147, %81 : vector<8x128xi1>, vector<8x128xf32>
    %199 = arith.select %7, %169, %59 : vector<8x128xi1>, vector<8x128xf32>
    %200 = tpu.concatenate %193, %194, %195, %196, %197, %198, %199, %192 in 0 : vector<8x128xf32>, vector<8x128xf32>, vector<8x128xf32>, vector<8x128xf32>, vector<8x128xf32>, vector<8x128xf32>, vector<8x128xf32>, vector<8x128xf32> -> vector<64x128xf32>
    %c0_40 = arith.constant 0 : index
    %c0_41 = arith.constant 0 : index
    %201 = vector.load %arg4[%c0_40, %c0_41] : memref<128x512xf32, #tpu.memory_space<vmem>>, vector<128x512xf32>
    %cst_42 = arith.constant dense<0.000000e+00> : vector<64x512xf32>
    %202 = tpu.matmul %200, %201, %cst_42 {dimension_numbers = #tpu.dot_dimension_numbers<[1], [0], [0], [1], [0, 0, 1, 1], [], []>} : vector<64x128xf32>, vector<128x512xf32>, vector<64x512xf32> -> vector<64x512xf32>
    %c0_43 = arith.constant 0 : index
    %c0_44 = arith.constant 0 : index
    %203 = vector.load %arg6[%c0_43, %c0_44] : memref<1x512xf32, #tpu.memory_space<vmem>>, vector<1x512xf32>
    %204 = vector.broadcast %203 : vector<1x512xf32> to vector<64x512xf32>
    %205 = arith.addf %202, %204 : vector<64x512xf32>
    %cst_45 = arith.constant 0.000000e+00 : f32
    %206 = vector.broadcast %cst_45 : f32 to vector<8x128xf32>
    %cst_46 = arith.constant 0.000000e+00 : f32
    %207 = vector.broadcast %cst_46 : f32 to vector<8x128xf32>
    %208 = vector.extract_strided_slice %205 {offsets = [0, 0], sizes = [8, 512], strides = [1, 1]} : vector<64x512xf32> to vector<8x512xf32>
    %209 = vector.extract_strided_slice %205 {offsets = [56, 0], sizes = [8, 512], strides = [1, 1]} : vector<64x512xf32> to vector<8x512xf32>
    %210 = arith.select %4, %208, %209 : vector<8x512xi1>, vector<8x512xf32>
    %c0_47 = arith.constant 0 : index
    %c0_48 = arith.constant 0 : index
    %211 = vector.load %arg5[%c0_47, %c0_48] : memref<128x512xf32, #tpu.memory_space<vmem>>, vector<128x512xf32>
    %cst_49 = arith.constant dense<0.000000e+00> : vector<8x512xf32>
    %212 = tpu.matmul %206, %211, %cst_49 {dimension_numbers = #tpu.dot_dimension_numbers<[1], [0], [0], [1], [0, 0, 1, 1], [], []>} : vector<8x128xf32>, vector<128x512xf32>, vector<8x512xf32> -> vector<8x512xf32>
    %213 = arith.addf %212, %210 : vector<8x512xf32>
    %214 = vector.extract_strided_slice %213 {offsets = [0, 0], sizes = [8, 384], strides = [1, 1]} : vector<8x512xf32> to vector<8x384xf32>
    %215 = arith.negf %214 : vector<8x384xf32>
    %216 = math.exp %215 : vector<8x384xf32>
    %cst_50 = arith.constant 1.000000e+00 : f32
    %217 = vector.broadcast %cst_50 : f32 to vector<8x384xf32>
    %218 = arith.addf %217, %216 : vector<8x384xf32>
    %219 = arith.divf %217, %218 : vector<8x384xf32>
    %220 = vector.extract_strided_slice %213 {offsets = [0, 384], sizes = [8, 128], strides = [1, 1]} : vector<8x512xf32> to vector<8x128xf32>
    %221 = math.tanh %220 : vector<8x128xf32>
    %222 = vector.extract_strided_slice %219 {offsets = [0, 0], sizes = [8, 128], strides = [1, 1]} : vector<8x384xf32> to vector<8x128xf32>
    %223 = vector.extract_strided_slice %219 {offsets = [0, 128], sizes = [8, 128], strides = [1, 1]} : vector<8x384xf32> to vector<8x128xf32>
    %224 = vector.extract_strided_slice %219 {offsets = [0, 256], sizes = [8, 128], strides = [1, 1]} : vector<8x384xf32> to vector<8x128xf32>
    %225 = arith.mulf %223, %207 : vector<8x128xf32>
    %226 = arith.mulf %222, %221 : vector<8x128xf32>
    %227 = arith.addf %225, %226 : vector<8x128xf32>
    %228 = math.tanh %227 : vector<8x128xf32>
    %229 = arith.mulf %224, %228 : vector<8x128xf32>
    %230 = vector.extract_strided_slice %205 {offsets = [8, 0], sizes = [8, 512], strides = [1, 1]} : vector<64x512xf32> to vector<8x512xf32>
    %231 = vector.extract_strided_slice %205 {offsets = [48, 0], sizes = [8, 512], strides = [1, 1]} : vector<64x512xf32> to vector<8x512xf32>
    %232 = arith.select %4, %230, %231 : vector<8x512xi1>, vector<8x512xf32>
    %c0_51 = arith.constant 0 : index
    %c0_52 = arith.constant 0 : index
    %233 = vector.load %arg5[%c0_51, %c0_52] : memref<128x512xf32, #tpu.memory_space<vmem>>, vector<128x512xf32>
    %cst_53 = arith.constant dense<0.000000e+00> : vector<8x512xf32>
    %234 = tpu.matmul %229, %233, %cst_53 {dimension_numbers = #tpu.dot_dimension_numbers<[1], [0], [0], [1], [0, 0, 1, 1], [], []>} : vector<8x128xf32>, vector<128x512xf32>, vector<8x512xf32> -> vector<8x512xf32>
    %235 = arith.addf %234, %232 : vector<8x512xf32>
    %236 = vector.extract_strided_slice %235 {offsets = [0, 0], sizes = [8, 384], strides = [1, 1]} : vector<8x512xf32> to vector<8x384xf32>
    %237 = arith.negf %236 : vector<8x384xf32>
    %238 = math.exp %237 : vector<8x384xf32>
    %cst_54 = arith.constant 1.000000e+00 : f32
    %239 = vector.broadcast %cst_54 : f32 to vector<8x384xf32>
    %240 = arith.addf %239, %238 : vector<8x384xf32>
    %241 = arith.divf %239, %240 : vector<8x384xf32>
    %242 = vector.extract_strided_slice %235 {offsets = [0, 384], sizes = [8, 128], strides = [1, 1]} : vector<8x512xf32> to vector<8x128xf32>
    %243 = math.tanh %242 : vector<8x128xf32>
    %244 = vector.extract_strided_slice %241 {offsets = [0, 0], sizes = [8, 128], strides = [1, 1]} : vector<8x384xf32> to vector<8x128xf32>
    %245 = vector.extract_strided_slice %241 {offsets = [0, 128], sizes = [8, 128], strides = [1, 1]} : vector<8x384xf32> to vector<8x128xf32>
    %246 = vector.extract_strided_slice %241 {offsets = [0, 256], sizes = [8, 128], strides = [1, 1]} : vector<8x384xf32> to vector<8x128xf32>
    %247 = arith.mulf %245, %227 : vector<8x128xf32>
    %248 = arith.mulf %244, %243 : vector<8x128xf32>
    %249 = arith.addf %247, %248 : vector<8x128xf32>
    %250 = math.tanh %249 : vector<8x128xf32>
    %251 = arith.mulf %246, %250 : vector<8x128xf32>
    %252 = vector.extract_strided_slice %205 {offsets = [16, 0], sizes = [8, 512], strides = [1, 1]} : vector<64x512xf32> to vector<8x512xf32>
    %253 = vector.extract_strided_slice %205 {offsets = [40, 0], sizes = [8, 512], strides = [1, 1]} : vector<64x512xf32> to vector<8x512xf32>
    %254 = arith.select %4, %252, %253 : vector<8x512xi1>, vector<8x512xf32>
    %c0_55 = arith.constant 0 : index
    %c0_56 = arith.constant 0 : index
    %255 = vector.load %arg5[%c0_55, %c0_56] : memref<128x512xf32, #tpu.memory_space<vmem>>, vector<128x512xf32>
    %cst_57 = arith.constant dense<0.000000e+00> : vector<8x512xf32>
    %256 = tpu.matmul %251, %255, %cst_57 {dimension_numbers = #tpu.dot_dimension_numbers<[1], [0], [0], [1], [0, 0, 1, 1], [], []>} : vector<8x128xf32>, vector<128x512xf32>, vector<8x512xf32> -> vector<8x512xf32>
    %257 = arith.addf %256, %254 : vector<8x512xf32>
    %258 = vector.extract_strided_slice %257 {offsets = [0, 0], sizes = [8, 384], strides = [1, 1]} : vector<8x512xf32> to vector<8x384xf32>
    %259 = arith.negf %258 : vector<8x384xf32>
    %260 = math.exp %259 : vector<8x384xf32>
    %cst_58 = arith.constant 1.000000e+00 : f32
    %261 = vector.broadcast %cst_58 : f32 to vector<8x384xf32>
    %262 = arith.addf %261, %260 : vector<8x384xf32>
    %263 = arith.divf %261, %262 : vector<8x384xf32>
    %264 = vector.extract_strided_slice %257 {offsets = [0, 384], sizes = [8, 128], strides = [1, 1]} : vector<8x512xf32> to vector<8x128xf32>
    %265 = math.tanh %264 : vector<8x128xf32>
    %266 = vector.extract_strided_slice %263 {offsets = [0, 0], sizes = [8, 128], strides = [1, 1]} : vector<8x384xf32> to vector<8x128xf32>
    %267 = vector.extract_strided_slice %263 {offsets = [0, 128], sizes = [8, 128], strides = [1, 1]} : vector<8x384xf32> to vector<8x128xf32>
    %268 = vector.extract_strided_slice %263 {offsets = [0, 256], sizes = [8, 128], strides = [1, 1]} : vector<8x384xf32> to vector<8x128xf32>
    %269 = arith.mulf %267, %249 : vector<8x128xf32>
    %270 = arith.mulf %266, %265 : vector<8x128xf32>
    %271 = arith.addf %269, %270 : vector<8x128xf32>
    %272 = math.tanh %271 : vector<8x128xf32>
    %273 = arith.mulf %268, %272 : vector<8x128xf32>
    %274 = vector.extract_strided_slice %205 {offsets = [24, 0], sizes = [8, 512], strides = [1, 1]} : vector<64x512xf32> to vector<8x512xf32>
    %275 = vector.extract_strided_slice %205 {offsets = [32, 0], sizes = [8, 512], strides = [1, 1]} : vector<64x512xf32> to vector<8x512xf32>
    %276 = arith.select %4, %274, %275 : vector<8x512xi1>, vector<8x512xf32>
    %c0_59 = arith.constant 0 : index
    %c0_60 = arith.constant 0 : index
    %277 = vector.load %arg5[%c0_59, %c0_60] : memref<128x512xf32, #tpu.memory_space<vmem>>, vector<128x512xf32>
    %cst_61 = arith.constant dense<0.000000e+00> : vector<8x512xf32>
    %278 = tpu.matmul %273, %277, %cst_61 {dimension_numbers = #tpu.dot_dimension_numbers<[1], [0], [0], [1], [0, 0, 1, 1], [], []>} : vector<8x128xf32>, vector<128x512xf32>, vector<8x512xf32> -> vector<8x512xf32>
    %279 = arith.addf %278, %276 : vector<8x512xf32>
    %280 = vector.extract_strided_slice %279 {offsets = [0, 0], sizes = [8, 384], strides = [1, 1]} : vector<8x512xf32> to vector<8x384xf32>
    %281 = arith.negf %280 : vector<8x384xf32>
    %282 = math.exp %281 : vector<8x384xf32>
    %cst_62 = arith.constant 1.000000e+00 : f32
    %283 = vector.broadcast %cst_62 : f32 to vector<8x384xf32>
    %284 = arith.addf %283, %282 : vector<8x384xf32>
    %285 = arith.divf %283, %284 : vector<8x384xf32>
    %286 = vector.extract_strided_slice %279 {offsets = [0, 384], sizes = [8, 128], strides = [1, 1]} : vector<8x512xf32> to vector<8x128xf32>
    %287 = math.tanh %286 : vector<8x128xf32>
    %288 = vector.extract_strided_slice %285 {offsets = [0, 0], sizes = [8, 128], strides = [1, 1]} : vector<8x384xf32> to vector<8x128xf32>
    %289 = vector.extract_strided_slice %285 {offsets = [0, 128], sizes = [8, 128], strides = [1, 1]} : vector<8x384xf32> to vector<8x128xf32>
    %290 = vector.extract_strided_slice %285 {offsets = [0, 256], sizes = [8, 128], strides = [1, 1]} : vector<8x384xf32> to vector<8x128xf32>
    %291 = arith.mulf %289, %271 : vector<8x128xf32>
    %292 = arith.mulf %288, %287 : vector<8x128xf32>
    %293 = arith.addf %291, %292 : vector<8x128xf32>
    %294 = math.tanh %293 : vector<8x128xf32>
    %295 = arith.mulf %290, %294 : vector<8x128xf32>
    %296 = vector.extract_strided_slice %205 {offsets = [32, 0], sizes = [8, 512], strides = [1, 1]} : vector<64x512xf32> to vector<8x512xf32>
    %297 = vector.extract_strided_slice %205 {offsets = [24, 0], sizes = [8, 512], strides = [1, 1]} : vector<64x512xf32> to vector<8x512xf32>
    %298 = arith.select %4, %296, %297 : vector<8x512xi1>, vector<8x512xf32>
    %c0_63 = arith.constant 0 : index
    %c0_64 = arith.constant 0 : index
    %299 = vector.load %arg5[%c0_63, %c0_64] : memref<128x512xf32, #tpu.memory_space<vmem>>, vector<128x512xf32>
    %cst_65 = arith.constant dense<0.000000e+00> : vector<8x512xf32>
    %300 = tpu.matmul %295, %299, %cst_65 {dimension_numbers = #tpu.dot_dimension_numbers<[1], [0], [0], [1], [0, 0, 1, 1], [], []>} : vector<8x128xf32>, vector<128x512xf32>, vector<8x512xf32> -> vector<8x512xf32>
    %301 = arith.addf %300, %298 : vector<8x512xf32>
    %302 = vector.extract_strided_slice %301 {offsets = [0, 0], sizes = [8, 384], strides = [1, 1]} : vector<8x512xf32> to vector<8x384xf32>
    %303 = arith.negf %302 : vector<8x384xf32>
    %304 = math.exp %303 : vector<8x384xf32>
    %cst_66 = arith.constant 1.000000e+00 : f32
    %305 = vector.broadcast %cst_66 : f32 to vector<8x384xf32>
    %306 = arith.addf %305, %304 : vector<8x384xf32>
    %307 = arith.divf %305, %306 : vector<8x384xf32>
    %308 = vector.extract_strided_slice %301 {offsets = [0, 384], sizes = [8, 128], strides = [1, 1]} : vector<8x512xf32> to vector<8x128xf32>
    %309 = math.tanh %308 : vector<8x128xf32>
    %310 = vector.extract_strided_slice %307 {offsets = [0, 0], sizes = [8, 128], strides = [1, 1]} : vector<8x384xf32> to vector<8x128xf32>
    %311 = vector.extract_strided_slice %307 {offsets = [0, 128], sizes = [8, 128], strides = [1, 1]} : vector<8x384xf32> to vector<8x128xf32>
    %312 = vector.extract_strided_slice %307 {offsets = [0, 256], sizes = [8, 128], strides = [1, 1]} : vector<8x384xf32> to vector<8x128xf32>
    %313 = arith.mulf %311, %293 : vector<8x128xf32>
    %314 = arith.mulf %310, %309 : vector<8x128xf32>
    %315 = arith.addf %313, %314 : vector<8x128xf32>
    %316 = math.tanh %315 : vector<8x128xf32>
    %317 = arith.mulf %312, %316 : vector<8x128xf32>
    %318 = vector.extract_strided_slice %205 {offsets = [40, 0], sizes = [8, 512], strides = [1, 1]} : vector<64x512xf32> to vector<8x512xf32>
    %319 = vector.extract_strided_slice %205 {offsets = [16, 0], sizes = [8, 512], strides = [1, 1]} : vector<64x512xf32> to vector<8x512xf32>
    %320 = arith.select %4, %318, %319 : vector<8x512xi1>, vector<8x512xf32>
    %c0_67 = arith.constant 0 : index
    %c0_68 = arith.constant 0 : index
    %321 = vector.load %arg5[%c0_67, %c0_68] : memref<128x512xf32, #tpu.memory_space<vmem>>, vector<128x512xf32>
    %cst_69 = arith.constant dense<0.000000e+00> : vector<8x512xf32>
    %322 = tpu.matmul %317, %321, %cst_69 {dimension_numbers = #tpu.dot_dimension_numbers<[1], [0], [0], [1], [0, 0, 1, 1], [], []>} : vector<8x128xf32>, vector<128x512xf32>, vector<8x512xf32> -> vector<8x512xf32>
    %323 = arith.addf %322, %320 : vector<8x512xf32>
    %324 = vector.extract_strided_slice %323 {offsets = [0, 0], sizes = [8, 384], strides = [1, 1]} : vector<8x512xf32> to vector<8x384xf32>
    %325 = arith.negf %324 : vector<8x384xf32>
    %326 = math.exp %325 : vector<8x384xf32>
    %cst_70 = arith.constant 1.000000e+00 : f32
    %327 = vector.broadcast %cst_70 : f32 to vector<8x384xf32>
    %328 = arith.addf %327, %326 : vector<8x384xf32>
    %329 = arith.divf %327, %328 : vector<8x384xf32>
    %330 = vector.extract_strided_slice %323 {offsets = [0, 384], sizes = [8, 128], strides = [1, 1]} : vector<8x512xf32> to vector<8x128xf32>
    %331 = math.tanh %330 : vector<8x128xf32>
    %332 = vector.extract_strided_slice %329 {offsets = [0, 0], sizes = [8, 128], strides = [1, 1]} : vector<8x384xf32> to vector<8x128xf32>
    %333 = vector.extract_strided_slice %329 {offsets = [0, 128], sizes = [8, 128], strides = [1, 1]} : vector<8x384xf32> to vector<8x128xf32>
    %334 = vector.extract_strided_slice %329 {offsets = [0, 256], sizes = [8, 128], strides = [1, 1]} : vector<8x384xf32> to vector<8x128xf32>
    %335 = arith.mulf %333, %315 : vector<8x128xf32>
    %336 = arith.mulf %332, %331 : vector<8x128xf32>
    %337 = arith.addf %335, %336 : vector<8x128xf32>
    %338 = math.tanh %337 : vector<8x128xf32>
    %339 = arith.mulf %334, %338 : vector<8x128xf32>
    %340 = vector.extract_strided_slice %205 {offsets = [48, 0], sizes = [8, 512], strides = [1, 1]} : vector<64x512xf32> to vector<8x512xf32>
    %341 = vector.extract_strided_slice %205 {offsets = [8, 0], sizes = [8, 512], strides = [1, 1]} : vector<64x512xf32> to vector<8x512xf32>
    %342 = arith.select %4, %340, %341 : vector<8x512xi1>, vector<8x512xf32>
    %c0_71 = arith.constant 0 : index
    %c0_72 = arith.constant 0 : index
    %343 = vector.load %arg5[%c0_71, %c0_72] : memref<128x512xf32, #tpu.memory_space<vmem>>, vector<128x512xf32>
    %cst_73 = arith.constant dense<0.000000e+00> : vector<8x512xf32>
    %344 = tpu.matmul %339, %343, %cst_73 {dimension_numbers = #tpu.dot_dimension_numbers<[1], [0], [0], [1], [0, 0, 1, 1], [], []>} : vector<8x128xf32>, vector<128x512xf32>, vector<8x512xf32> -> vector<8x512xf32>
    %345 = arith.addf %344, %342 : vector<8x512xf32>
    %346 = vector.extract_strided_slice %345 {offsets = [0, 0], sizes = [8, 384], strides = [1, 1]} : vector<8x512xf32> to vector<8x384xf32>
    %347 = arith.negf %346 : vector<8x384xf32>
    %348 = math.exp %347 : vector<8x384xf32>
    %cst_74 = arith.constant 1.000000e+00 : f32
    %349 = vector.broadcast %cst_74 : f32 to vector<8x384xf32>
    %350 = arith.addf %349, %348 : vector<8x384xf32>
    %351 = arith.divf %349, %350 : vector<8x384xf32>
    %352 = vector.extract_strided_slice %345 {offsets = [0, 384], sizes = [8, 128], strides = [1, 1]} : vector<8x512xf32> to vector<8x128xf32>
    %353 = math.tanh %352 : vector<8x128xf32>
    %354 = vector.extract_strided_slice %351 {offsets = [0, 0], sizes = [8, 128], strides = [1, 1]} : vector<8x384xf32> to vector<8x128xf32>
    %355 = vector.extract_strided_slice %351 {offsets = [0, 128], sizes = [8, 128], strides = [1, 1]} : vector<8x384xf32> to vector<8x128xf32>
    %356 = vector.extract_strided_slice %351 {offsets = [0, 256], sizes = [8, 128], strides = [1, 1]} : vector<8x384xf32> to vector<8x128xf32>
    %357 = arith.mulf %355, %337 : vector<8x128xf32>
    %358 = arith.mulf %354, %353 : vector<8x128xf32>
    %359 = arith.addf %357, %358 : vector<8x128xf32>
    %360 = math.tanh %359 : vector<8x128xf32>
    %361 = arith.mulf %356, %360 : vector<8x128xf32>
    %362 = vector.extract_strided_slice %205 {offsets = [56, 0], sizes = [8, 512], strides = [1, 1]} : vector<64x512xf32> to vector<8x512xf32>
    %363 = vector.extract_strided_slice %205 {offsets = [0, 0], sizes = [8, 512], strides = [1, 1]} : vector<64x512xf32> to vector<8x512xf32>
    %364 = arith.select %4, %362, %363 : vector<8x512xi1>, vector<8x512xf32>
    %c0_75 = arith.constant 0 : index
    %c0_76 = arith.constant 0 : index
    %365 = vector.load %arg5[%c0_75, %c0_76] : memref<128x512xf32, #tpu.memory_space<vmem>>, vector<128x512xf32>
    %cst_77 = arith.constant dense<0.000000e+00> : vector<8x512xf32>
    %366 = tpu.matmul %361, %365, %cst_77 {dimension_numbers = #tpu.dot_dimension_numbers<[1], [0], [0], [1], [0, 0, 1, 1], [], []>} : vector<8x128xf32>, vector<128x512xf32>, vector<8x512xf32> -> vector<8x512xf32>
    %367 = arith.addf %366, %364 : vector<8x512xf32>
    %368 = vector.extract_strided_slice %367 {offsets = [0, 0], sizes = [8, 384], strides = [1, 1]} : vector<8x512xf32> to vector<8x384xf32>
    %369 = arith.negf %368 : vector<8x384xf32>
    %370 = math.exp %369 : vector<8x384xf32>
    %cst_78 = arith.constant 1.000000e+00 : f32
    %371 = vector.broadcast %cst_78 : f32 to vector<8x384xf32>
    %372 = arith.addf %371, %370 : vector<8x384xf32>
    %373 = arith.divf %371, %372 : vector<8x384xf32>
    %374 = vector.extract_strided_slice %367 {offsets = [0, 384], sizes = [8, 128], strides = [1, 1]} : vector<8x512xf32> to vector<8x128xf32>
    %375 = math.tanh %374 : vector<8x128xf32>
    %376 = vector.extract_strided_slice %373 {offsets = [0, 0], sizes = [8, 128], strides = [1, 1]} : vector<8x384xf32> to vector<8x128xf32>
    %377 = vector.extract_strided_slice %373 {offsets = [0, 128], sizes = [8, 128], strides = [1, 1]} : vector<8x384xf32> to vector<8x128xf32>
    %378 = vector.extract_strided_slice %373 {offsets = [0, 256], sizes = [8, 128], strides = [1, 1]} : vector<8x384xf32> to vector<8x128xf32>
    %379 = arith.mulf %377, %359 : vector<8x128xf32>
    %380 = arith.mulf %376, %375 : vector<8x128xf32>
    %381 = arith.addf %379, %380 : vector<8x128xf32>
    %382 = math.tanh %381 : vector<8x128xf32>
    %383 = arith.mulf %378, %382 : vector<8x128xf32>
    %384 = arith.select %7, %383, %229 : vector<8x128xi1>, vector<8x128xf32>
    %385 = arith.select %7, %229, %383 : vector<8x128xi1>, vector<8x128xf32>
    %386 = arith.select %7, %251, %361 : vector<8x128xi1>, vector<8x128xf32>
    %387 = arith.select %7, %273, %339 : vector<8x128xi1>, vector<8x128xf32>
    %388 = arith.select %7, %295, %317 : vector<8x128xi1>, vector<8x128xf32>
    %389 = arith.select %7, %317, %295 : vector<8x128xi1>, vector<8x128xf32>
    %390 = arith.select %7, %339, %273 : vector<8x128xi1>, vector<8x128xf32>
    %391 = arith.select %7, %361, %251 : vector<8x128xi1>, vector<8x128xf32>
    %392 = tpu.concatenate %385, %386, %387, %388, %389, %390, %391, %384 in 0 : vector<8x128xf32>, vector<8x128xf32>, vector<8x128xf32>, vector<8x128xf32>, vector<8x128xf32>, vector<8x128xf32>, vector<8x128xf32>, vector<8x128xf32> -> vector<64x128xf32>
    %c0_79 = arith.constant 0 : index
    %c0_80 = arith.constant 0 : index
    %393 = vector.load %arg7[%c0_79, %c0_80] : memref<128x512xf32, #tpu.memory_space<vmem>>, vector<128x512xf32>
    %cst_81 = arith.constant dense<0.000000e+00> : vector<64x512xf32>
    %394 = tpu.matmul %392, %393, %cst_81 {dimension_numbers = #tpu.dot_dimension_numbers<[1], [0], [0], [1], [0, 0, 1, 1], [], []>} : vector<64x128xf32>, vector<128x512xf32>, vector<64x512xf32> -> vector<64x512xf32>
    %c0_82 = arith.constant 0 : index
    %c0_83 = arith.constant 0 : index
    %395 = vector.load %arg9[%c0_82, %c0_83] : memref<1x512xf32, #tpu.memory_space<vmem>>, vector<1x512xf32>
    %396 = vector.broadcast %395 : vector<1x512xf32> to vector<64x512xf32>
    %397 = arith.addf %394, %396 : vector<64x512xf32>
    %cst_84 = arith.constant 0.000000e+00 : f32
    %398 = vector.broadcast %cst_84 : f32 to vector<8x128xf32>
    %cst_85 = arith.constant 0.000000e+00 : f32
    %399 = vector.broadcast %cst_85 : f32 to vector<8x128xf32>
    %400 = vector.extract_strided_slice %397 {offsets = [0, 0], sizes = [8, 512], strides = [1, 1]} : vector<64x512xf32> to vector<8x512xf32>
    %401 = vector.extract_strided_slice %397 {offsets = [56, 0], sizes = [8, 512], strides = [1, 1]} : vector<64x512xf32> to vector<8x512xf32>
    %402 = arith.select %4, %400, %401 : vector<8x512xi1>, vector<8x512xf32>
    %c0_86 = arith.constant 0 : index
    %c0_87 = arith.constant 0 : index
    %403 = vector.load %arg8[%c0_86, %c0_87] : memref<128x512xf32, #tpu.memory_space<vmem>>, vector<128x512xf32>
    %cst_88 = arith.constant dense<0.000000e+00> : vector<8x512xf32>
    %404 = tpu.matmul %398, %403, %cst_88 {dimension_numbers = #tpu.dot_dimension_numbers<[1], [0], [0], [1], [0, 0, 1, 1], [], []>} : vector<8x128xf32>, vector<128x512xf32>, vector<8x512xf32> -> vector<8x512xf32>
    %405 = arith.addf %404, %402 : vector<8x512xf32>
    %406 = vector.extract_strided_slice %405 {offsets = [0, 0], sizes = [8, 384], strides = [1, 1]} : vector<8x512xf32> to vector<8x384xf32>
    %407 = arith.negf %406 : vector<8x384xf32>
    %408 = math.exp %407 : vector<8x384xf32>
    %cst_89 = arith.constant 1.000000e+00 : f32
    %409 = vector.broadcast %cst_89 : f32 to vector<8x384xf32>
    %410 = arith.addf %409, %408 : vector<8x384xf32>
    %411 = arith.divf %409, %410 : vector<8x384xf32>
    %412 = vector.extract_strided_slice %405 {offsets = [0, 384], sizes = [8, 128], strides = [1, 1]} : vector<8x512xf32> to vector<8x128xf32>
    %413 = math.tanh %412 : vector<8x128xf32>
    %414 = vector.extract_strided_slice %411 {offsets = [0, 0], sizes = [8, 128], strides = [1, 1]} : vector<8x384xf32> to vector<8x128xf32>
    %415 = vector.extract_strided_slice %411 {offsets = [0, 128], sizes = [8, 128], strides = [1, 1]} : vector<8x384xf32> to vector<8x128xf32>
    %416 = vector.extract_strided_slice %411 {offsets = [0, 256], sizes = [8, 128], strides = [1, 1]} : vector<8x384xf32> to vector<8x128xf32>
    %417 = arith.mulf %415, %399 : vector<8x128xf32>
    %418 = arith.mulf %414, %413 : vector<8x128xf32>
    %419 = arith.addf %417, %418 : vector<8x128xf32>
    %420 = math.tanh %419 : vector<8x128xf32>
    %421 = arith.mulf %416, %420 : vector<8x128xf32>
    %422 = vector.extract_strided_slice %397 {offsets = [8, 0], sizes = [8, 512], strides = [1, 1]} : vector<64x512xf32> to vector<8x512xf32>
    %423 = vector.extract_strided_slice %397 {offsets = [48, 0], sizes = [8, 512], strides = [1, 1]} : vector<64x512xf32> to vector<8x512xf32>
    %424 = arith.select %4, %422, %423 : vector<8x512xi1>, vector<8x512xf32>
    %c0_90 = arith.constant 0 : index
    %c0_91 = arith.constant 0 : index
    %425 = vector.load %arg8[%c0_90, %c0_91] : memref<128x512xf32, #tpu.memory_space<vmem>>, vector<128x512xf32>
    %cst_92 = arith.constant dense<0.000000e+00> : vector<8x512xf32>
    %426 = tpu.matmul %421, %425, %cst_92 {dimension_numbers = #tpu.dot_dimension_numbers<[1], [0], [0], [1], [0, 0, 1, 1], [], []>} : vector<8x128xf32>, vector<128x512xf32>, vector<8x512xf32> -> vector<8x512xf32>
    %427 = arith.addf %426, %424 : vector<8x512xf32>
    %428 = vector.extract_strided_slice %427 {offsets = [0, 0], sizes = [8, 384], strides = [1, 1]} : vector<8x512xf32> to vector<8x384xf32>
    %429 = arith.negf %428 : vector<8x384xf32>
    %430 = math.exp %429 : vector<8x384xf32>
    %cst_93 = arith.constant 1.000000e+00 : f32
    %431 = vector.broadcast %cst_93 : f32 to vector<8x384xf32>
    %432 = arith.addf %431, %430 : vector<8x384xf32>
    %433 = arith.divf %431, %432 : vector<8x384xf32>
    %434 = vector.extract_strided_slice %427 {offsets = [0, 384], sizes = [8, 128], strides = [1, 1]} : vector<8x512xf32> to vector<8x128xf32>
    %435 = math.tanh %434 : vector<8x128xf32>
    %436 = vector.extract_strided_slice %433 {offsets = [0, 0], sizes = [8, 128], strides = [1, 1]} : vector<8x384xf32> to vector<8x128xf32>
    %437 = vector.extract_strided_slice %433 {offsets = [0, 128], sizes = [8, 128], strides = [1, 1]} : vector<8x384xf32> to vector<8x128xf32>
    %438 = vector.extract_strided_slice %433 {offsets = [0, 256], sizes = [8, 128], strides = [1, 1]} : vector<8x384xf32> to vector<8x128xf32>
    %439 = arith.mulf %437, %419 : vector<8x128xf32>
    %440 = arith.mulf %436, %435 : vector<8x128xf32>
    %441 = arith.addf %439, %440 : vector<8x128xf32>
    %442 = math.tanh %441 : vector<8x128xf32>
    %443 = arith.mulf %438, %442 : vector<8x128xf32>
    %444 = vector.extract_strided_slice %397 {offsets = [16, 0], sizes = [8, 512], strides = [1, 1]} : vector<64x512xf32> to vector<8x512xf32>
    %445 = vector.extract_strided_slice %397 {offsets = [40, 0], sizes = [8, 512], strides = [1, 1]} : vector<64x512xf32> to vector<8x512xf32>
    %446 = arith.select %4, %444, %445 : vector<8x512xi1>, vector<8x512xf32>
    %c0_94 = arith.constant 0 : index
    %c0_95 = arith.constant 0 : index
    %447 = vector.load %arg8[%c0_94, %c0_95] : memref<128x512xf32, #tpu.memory_space<vmem>>, vector<128x512xf32>
    %cst_96 = arith.constant dense<0.000000e+00> : vector<8x512xf32>
    %448 = tpu.matmul %443, %447, %cst_96 {dimension_numbers = #tpu.dot_dimension_numbers<[1], [0], [0], [1], [0, 0, 1, 1], [], []>} : vector<8x128xf32>, vector<128x512xf32>, vector<8x512xf32> -> vector<8x512xf32>
    %449 = arith.addf %448, %446 : vector<8x512xf32>
    %450 = vector.extract_strided_slice %449 {offsets = [0, 0], sizes = [8, 384], strides = [1, 1]} : vector<8x512xf32> to vector<8x384xf32>
    %451 = arith.negf %450 : vector<8x384xf32>
    %452 = math.exp %451 : vector<8x384xf32>
    %cst_97 = arith.constant 1.000000e+00 : f32
    %453 = vector.broadcast %cst_97 : f32 to vector<8x384xf32>
    %454 = arith.addf %453, %452 : vector<8x384xf32>
    %455 = arith.divf %453, %454 : vector<8x384xf32>
    %456 = vector.extract_strided_slice %449 {offsets = [0, 384], sizes = [8, 128], strides = [1, 1]} : vector<8x512xf32> to vector<8x128xf32>
    %457 = math.tanh %456 : vector<8x128xf32>
    %458 = vector.extract_strided_slice %455 {offsets = [0, 0], sizes = [8, 128], strides = [1, 1]} : vector<8x384xf32> to vector<8x128xf32>
    %459 = vector.extract_strided_slice %455 {offsets = [0, 128], sizes = [8, 128], strides = [1, 1]} : vector<8x384xf32> to vector<8x128xf32>
    %460 = vector.extract_strided_slice %455 {offsets = [0, 256], sizes = [8, 128], strides = [1, 1]} : vector<8x384xf32> to vector<8x128xf32>
    %461 = arith.mulf %459, %441 : vector<8x128xf32>
    %462 = arith.mulf %458, %457 : vector<8x128xf32>
    %463 = arith.addf %461, %462 : vector<8x128xf32>
    %464 = math.tanh %463 : vector<8x128xf32>
    %465 = arith.mulf %460, %464 : vector<8x128xf32>
    %466 = vector.extract_strided_slice %397 {offsets = [24, 0], sizes = [8, 512], strides = [1, 1]} : vector<64x512xf32> to vector<8x512xf32>
    %467 = vector.extract_strided_slice %397 {offsets = [32, 0], sizes = [8, 512], strides = [1, 1]} : vector<64x512xf32> to vector<8x512xf32>
    %468 = arith.select %4, %466, %467 : vector<8x512xi1>, vector<8x512xf32>
    %c0_98 = arith.constant 0 : index
    %c0_99 = arith.constant 0 : index
    %469 = vector.load %arg8[%c0_98, %c0_99] : memref<128x512xf32, #tpu.memory_space<vmem>>, vector<128x512xf32>
    %cst_100 = arith.constant dense<0.000000e+00> : vector<8x512xf32>
    %470 = tpu.matmul %465, %469, %cst_100 {dimension_numbers = #tpu.dot_dimension_numbers<[1], [0], [0], [1], [0, 0, 1, 1], [], []>} : vector<8x128xf32>, vector<128x512xf32>, vector<8x512xf32> -> vector<8x512xf32>
    %471 = arith.addf %470, %468 : vector<8x512xf32>
    %472 = vector.extract_strided_slice %471 {offsets = [0, 0], sizes = [8, 384], strides = [1, 1]} : vector<8x512xf32> to vector<8x384xf32>
    %473 = arith.negf %472 : vector<8x384xf32>
    %474 = math.exp %473 : vector<8x384xf32>
    %cst_101 = arith.constant 1.000000e+00 : f32
    %475 = vector.broadcast %cst_101 : f32 to vector<8x384xf32>
    %476 = arith.addf %475, %474 : vector<8x384xf32>
    %477 = arith.divf %475, %476 : vector<8x384xf32>
    %478 = vector.extract_strided_slice %471 {offsets = [0, 384], sizes = [8, 128], strides = [1, 1]} : vector<8x512xf32> to vector<8x128xf32>
    %479 = math.tanh %478 : vector<8x128xf32>
    %480 = vector.extract_strided_slice %477 {offsets = [0, 0], sizes = [8, 128], strides = [1, 1]} : vector<8x384xf32> to vector<8x128xf32>
    %481 = vector.extract_strided_slice %477 {offsets = [0, 128], sizes = [8, 128], strides = [1, 1]} : vector<8x384xf32> to vector<8x128xf32>
    %482 = vector.extract_strided_slice %477 {offsets = [0, 256], sizes = [8, 128], strides = [1, 1]} : vector<8x384xf32> to vector<8x128xf32>
    %483 = arith.mulf %481, %463 : vector<8x128xf32>
    %484 = arith.mulf %480, %479 : vector<8x128xf32>
    %485 = arith.addf %483, %484 : vector<8x128xf32>
    %486 = math.tanh %485 : vector<8x128xf32>
    %487 = arith.mulf %482, %486 : vector<8x128xf32>
    %488 = vector.extract_strided_slice %397 {offsets = [32, 0], sizes = [8, 512], strides = [1, 1]} : vector<64x512xf32> to vector<8x512xf32>
    %489 = vector.extract_strided_slice %397 {offsets = [24, 0], sizes = [8, 512], strides = [1, 1]} : vector<64x512xf32> to vector<8x512xf32>
    %490 = arith.select %4, %488, %489 : vector<8x512xi1>, vector<8x512xf32>
    %c0_102 = arith.constant 0 : index
    %c0_103 = arith.constant 0 : index
    %491 = vector.load %arg8[%c0_102, %c0_103] : memref<128x512xf32, #tpu.memory_space<vmem>>, vector<128x512xf32>
    %cst_104 = arith.constant dense<0.000000e+00> : vector<8x512xf32>
    %492 = tpu.matmul %487, %491, %cst_104 {dimension_numbers = #tpu.dot_dimension_numbers<[1], [0], [0], [1], [0, 0, 1, 1], [], []>} : vector<8x128xf32>, vector<128x512xf32>, vector<8x512xf32> -> vector<8x512xf32>
    %493 = arith.addf %492, %490 : vector<8x512xf32>
    %494 = vector.extract_strided_slice %493 {offsets = [0, 0], sizes = [8, 384], strides = [1, 1]} : vector<8x512xf32> to vector<8x384xf32>
    %495 = arith.negf %494 : vector<8x384xf32>
    %496 = math.exp %495 : vector<8x384xf32>
    %cst_105 = arith.constant 1.000000e+00 : f32
    %497 = vector.broadcast %cst_105 : f32 to vector<8x384xf32>
    %498 = arith.addf %497, %496 : vector<8x384xf32>
    %499 = arith.divf %497, %498 : vector<8x384xf32>
    %500 = vector.extract_strided_slice %493 {offsets = [0, 384], sizes = [8, 128], strides = [1, 1]} : vector<8x512xf32> to vector<8x128xf32>
    %501 = math.tanh %500 : vector<8x128xf32>
    %502 = vector.extract_strided_slice %499 {offsets = [0, 0], sizes = [8, 128], strides = [1, 1]} : vector<8x384xf32> to vector<8x128xf32>
    %503 = vector.extract_strided_slice %499 {offsets = [0, 128], sizes = [8, 128], strides = [1, 1]} : vector<8x384xf32> to vector<8x128xf32>
    %504 = vector.extract_strided_slice %499 {offsets = [0, 256], sizes = [8, 128], strides = [1, 1]} : vector<8x384xf32> to vector<8x128xf32>
    %505 = arith.mulf %503, %485 : vector<8x128xf32>
    %506 = arith.mulf %502, %501 : vector<8x128xf32>
    %507 = arith.addf %505, %506 : vector<8x128xf32>
    %508 = math.tanh %507 : vector<8x128xf32>
    %509 = arith.mulf %504, %508 : vector<8x128xf32>
    %510 = vector.extract_strided_slice %397 {offsets = [40, 0], sizes = [8, 512], strides = [1, 1]} : vector<64x512xf32> to vector<8x512xf32>
    %511 = vector.extract_strided_slice %397 {offsets = [16, 0], sizes = [8, 512], strides = [1, 1]} : vector<64x512xf32> to vector<8x512xf32>
    %512 = arith.select %4, %510, %511 : vector<8x512xi1>, vector<8x512xf32>
    %c0_106 = arith.constant 0 : index
    %c0_107 = arith.constant 0 : index
    %513 = vector.load %arg8[%c0_106, %c0_107] : memref<128x512xf32, #tpu.memory_space<vmem>>, vector<128x512xf32>
    %cst_108 = arith.constant dense<0.000000e+00> : vector<8x512xf32>
    %514 = tpu.matmul %509, %513, %cst_108 {dimension_numbers = #tpu.dot_dimension_numbers<[1], [0], [0], [1], [0, 0, 1, 1], [], []>} : vector<8x128xf32>, vector<128x512xf32>, vector<8x512xf32> -> vector<8x512xf32>
    %515 = arith.addf %514, %512 : vector<8x512xf32>
    %516 = vector.extract_strided_slice %515 {offsets = [0, 0], sizes = [8, 384], strides = [1, 1]} : vector<8x512xf32> to vector<8x384xf32>
    %517 = arith.negf %516 : vector<8x384xf32>
    %518 = math.exp %517 : vector<8x384xf32>
    %cst_109 = arith.constant 1.000000e+00 : f32
    %519 = vector.broadcast %cst_109 : f32 to vector<8x384xf32>
    %520 = arith.addf %519, %518 : vector<8x384xf32>
    %521 = arith.divf %519, %520 : vector<8x384xf32>
    %522 = vector.extract_strided_slice %515 {offsets = [0, 384], sizes = [8, 128], strides = [1, 1]} : vector<8x512xf32> to vector<8x128xf32>
    %523 = math.tanh %522 : vector<8x128xf32>
    %524 = vector.extract_strided_slice %521 {offsets = [0, 0], sizes = [8, 128], strides = [1, 1]} : vector<8x384xf32> to vector<8x128xf32>
    %525 = vector.extract_strided_slice %521 {offsets = [0, 128], sizes = [8, 128], strides = [1, 1]} : vector<8x384xf32> to vector<8x128xf32>
    %526 = vector.extract_strided_slice %521 {offsets = [0, 256], sizes = [8, 128], strides = [1, 1]} : vector<8x384xf32> to vector<8x128xf32>
    %527 = arith.mulf %525, %507 : vector<8x128xf32>
    %528 = arith.mulf %524, %523 : vector<8x128xf32>
    %529 = arith.addf %527, %528 : vector<8x128xf32>
    %530 = math.tanh %529 : vector<8x128xf32>
    %531 = arith.mulf %526, %530 : vector<8x128xf32>
    %532 = vector.extract_strided_slice %397 {offsets = [48, 0], sizes = [8, 512], strides = [1, 1]} : vector<64x512xf32> to vector<8x512xf32>
    %533 = vector.extract_strided_slice %397 {offsets = [8, 0], sizes = [8, 512], strides = [1, 1]} : vector<64x512xf32> to vector<8x512xf32>
    %534 = arith.select %4, %532, %533 : vector<8x512xi1>, vector<8x512xf32>
    %c0_110 = arith.constant 0 : index
    %c0_111 = arith.constant 0 : index
    %535 = vector.load %arg8[%c0_110, %c0_111] : memref<128x512xf32, #tpu.memory_space<vmem>>, vector<128x512xf32>
    %cst_112 = arith.constant dense<0.000000e+00> : vector<8x512xf32>
    %536 = tpu.matmul %531, %535, %cst_112 {dimension_numbers = #tpu.dot_dimension_numbers<[1], [0], [0], [1], [0, 0, 1, 1], [], []>} : vector<8x128xf32>, vector<128x512xf32>, vector<8x512xf32> -> vector<8x512xf32>
    %537 = arith.addf %536, %534 : vector<8x512xf32>
    %538 = vector.extract_strided_slice %537 {offsets = [0, 0], sizes = [8, 384], strides = [1, 1]} : vector<8x512xf32> to vector<8x384xf32>
    %539 = arith.negf %538 : vector<8x384xf32>
    %540 = math.exp %539 : vector<8x384xf32>
    %cst_113 = arith.constant 1.000000e+00 : f32
    %541 = vector.broadcast %cst_113 : f32 to vector<8x384xf32>
    %542 = arith.addf %541, %540 : vector<8x384xf32>
    %543 = arith.divf %541, %542 : vector<8x384xf32>
    %544 = vector.extract_strided_slice %537 {offsets = [0, 384], sizes = [8, 128], strides = [1, 1]} : vector<8x512xf32> to vector<8x128xf32>
    %545 = math.tanh %544 : vector<8x128xf32>
    %546 = vector.extract_strided_slice %543 {offsets = [0, 0], sizes = [8, 128], strides = [1, 1]} : vector<8x384xf32> to vector<8x128xf32>
    %547 = vector.extract_strided_slice %543 {offsets = [0, 128], sizes = [8, 128], strides = [1, 1]} : vector<8x384xf32> to vector<8x128xf32>
    %548 = vector.extract_strided_slice %543 {offsets = [0, 256], sizes = [8, 128], strides = [1, 1]} : vector<8x384xf32> to vector<8x128xf32>
    %549 = arith.mulf %547, %529 : vector<8x128xf32>
    %550 = arith.mulf %546, %545 : vector<8x128xf32>
    %551 = arith.addf %549, %550 : vector<8x128xf32>
    %552 = math.tanh %551 : vector<8x128xf32>
    %553 = arith.mulf %548, %552 : vector<8x128xf32>
    %554 = vector.extract_strided_slice %397 {offsets = [56, 0], sizes = [8, 512], strides = [1, 1]} : vector<64x512xf32> to vector<8x512xf32>
    %555 = vector.extract_strided_slice %397 {offsets = [0, 0], sizes = [8, 512], strides = [1, 1]} : vector<64x512xf32> to vector<8x512xf32>
    %556 = arith.select %4, %554, %555 : vector<8x512xi1>, vector<8x512xf32>
    %c0_114 = arith.constant 0 : index
    %c0_115 = arith.constant 0 : index
    %557 = vector.load %arg8[%c0_114, %c0_115] : memref<128x512xf32, #tpu.memory_space<vmem>>, vector<128x512xf32>
    %cst_116 = arith.constant dense<0.000000e+00> : vector<8x512xf32>
    %558 = tpu.matmul %553, %557, %cst_116 {dimension_numbers = #tpu.dot_dimension_numbers<[1], [0], [0], [1], [0, 0, 1, 1], [], []>} : vector<8x128xf32>, vector<128x512xf32>, vector<8x512xf32> -> vector<8x512xf32>
    %559 = arith.addf %558, %556 : vector<8x512xf32>
    %560 = vector.extract_strided_slice %559 {offsets = [0, 0], sizes = [8, 384], strides = [1, 1]} : vector<8x512xf32> to vector<8x384xf32>
    %561 = arith.negf %560 : vector<8x384xf32>
    %562 = math.exp %561 : vector<8x384xf32>
    %cst_117 = arith.constant 1.000000e+00 : f32
    %563 = vector.broadcast %cst_117 : f32 to vector<8x384xf32>
    %564 = arith.addf %563, %562 : vector<8x384xf32>
    %565 = arith.divf %563, %564 : vector<8x384xf32>
    %566 = vector.extract_strided_slice %559 {offsets = [0, 384], sizes = [8, 128], strides = [1, 1]} : vector<8x512xf32> to vector<8x128xf32>
    %567 = math.tanh %566 : vector<8x128xf32>
    %568 = vector.extract_strided_slice %565 {offsets = [0, 0], sizes = [8, 128], strides = [1, 1]} : vector<8x384xf32> to vector<8x128xf32>
    %569 = vector.extract_strided_slice %565 {offsets = [0, 128], sizes = [8, 128], strides = [1, 1]} : vector<8x384xf32> to vector<8x128xf32>
    %570 = vector.extract_strided_slice %565 {offsets = [0, 256], sizes = [8, 128], strides = [1, 1]} : vector<8x384xf32> to vector<8x128xf32>
    %571 = arith.mulf %569, %551 : vector<8x128xf32>
    %572 = arith.mulf %568, %567 : vector<8x128xf32>
    %573 = arith.addf %571, %572 : vector<8x128xf32>
    %574 = math.tanh %573 : vector<8x128xf32>
    %575 = arith.mulf %570, %574 : vector<8x128xf32>
    %576 = arith.select %7, %575, %421 : vector<8x128xi1>, vector<8x128xf32>
    %c0_118 = arith.constant 0 : index
    %c0_119 = arith.constant 0 : index
    %577 = vector.load %arg10[%c0_118, %c0_119] : memref<128x128xf32, #tpu.memory_space<vmem>>, vector<128x128xf32>
    %cst_120 = arith.constant dense<0.000000e+00> : vector<8x128xf32>
    %578 = tpu.matmul %576, %577, %cst_120 {dimension_numbers = #tpu.dot_dimension_numbers<[1], [0], [0], [1], [0, 0, 1, 1], [], []>} : vector<8x128xf32>, vector<128x128xf32>, vector<8x128xf32> -> vector<8x128xf32>
    %c0_121 = arith.constant 0 : index
    %c0_122 = arith.constant 0 : index
    %579 = vector.load %arg11[%c0_121, %c0_122] : memref<1x128xf32, #tpu.memory_space<vmem>>, vector<1x128xf32>
    %580 = vector.broadcast %579 : vector<1x128xf32> to vector<8x128xf32>
    %581 = arith.addf %578, %580 : vector<8x128xf32>
    %c0_123 = arith.constant 0 : index
    %c0_124 = arith.constant 0 : index
    %582 = vector.load %arg12[%c0_123, %c0_124] : memref<8x128xf32, #tpu.memory_space<vmem>>, vector<8x128xf32>
    tpu.vector_store %arg12[%c0_123, %c0_124], %581 {strides = array<i32>} : memref<8x128xf32, #tpu.memory_space<vmem>>, vector<8x128xf32>,
    return
  }
}

</mosaic_0001>

<llo_original>
// kernel: rnn_forward.1
$region0: #{rnn_forward.1}
  #allocation0 [shape = 'u32[]', space=smem, size = 0x4, offset = 0x4, fixed_abs, tag = 'smem constant byte address 0x4 - core index']
  #allocation1 [shape = 'u32[144,128]{1,0:T(1,128)}', space=vmem, size = 0x12000, scoped, tag = 'internal scratch']
  %s0 = inlined_call_operand.vmem [shape: f32[64,128], index: 0, kind: input, shape index: {}]
  %s1 = inlined_call_operand.hbm [shape: f32[128,512], index: 1, kind: input, shape index: {}]
  %s2 = inlined_call_operand.hbm [shape: f32[128,512], index: 2, kind: input, shape index: {}]
  %s3 = inlined_call_operand.vmem [shape: f32[1,512], index: 3, kind: input, shape index: {}]
  %s4 = inlined_call_operand.hbm [shape: f32[128,512], index: 4, kind: input, shape index: {}]
  %s5 = inlined_call_operand.hbm [shape: f32[128,512], index: 5, kind: input, shape index: {}]
  %s6 = inlined_call_operand.vmem [shape: f32[1,512], index: 6, kind: input, shape index: {}]
  %s7 = inlined_call_operand.hbm [shape: f32[128,512], index: 7, kind: input, shape index: {}]
  %s8 = inlined_call_operand.hbm [shape: f32[128,512], index: 8, kind: input, shape index: {}]
  %s9 = inlined_call_operand.vmem [shape: f32[1,512], index: 9, kind: input, shape index: {}]
  %s10 = inlined_call_operand.vmem [shape: f32[128,128], index: 10, kind: input, shape index: {}]
  %s11 = inlined_call_operand.vmem [shape: f32[1,128], index: 11, kind: input, shape index: {}]
  %s12 = inlined_call_operand.vmem [shape: f32[8,128], index: 12, kind: output, shape index: {}]
  %s13 = sld [smem:[#allocation0]]
  $region82: #{rnn_forward.1} parent=0
    _
  %s15 = ssub.s32 1, %s13
  %s16 = scalar_select 0, %s15, %s13
  $region1: #{rnn_forward.1} parent=0
    #allocation2 [shape = 'u8[262144]{0}', space=vmem, size = 0x40000, scoped, tag = 'input window, operand 1, single buffered']
    #allocation3 [shape = 's32[1]{0}', space=sflag, size = 0x4, scoped, tag = 'scoped memory for rnn_forward.1']
    #allocation4 [shape = 'u8[262144]{0}', space=vmem, size = 0x40000, scoped, tag = 'input window, operand 2, single buffered']
    #allocation5 [shape = 's32[1]{0}', space=sflag, size = 0x4, scoped, tag = 'scoped memory for rnn_forward.1']
    #allocation6 [shape = 'u8[262144]{0}', space=vmem, size = 0x40000, scoped, tag = 'input window, operand 4, single buffered']
    #allocation7 [shape = 'u8[262144]{0}', space=vmem, size = 0x40000, scoped, tag = 'input window, operand 5, single buffered']
    #allocation8 [shape = 's32[1]{0}', space=sflag, size = 0x4, scoped, tag = 'scoped memory for rnn_forward.1']
    #allocation9 [shape = 'u8[262144]{0}', space=vmem, size = 0x40000, scoped, tag = 'input window, operand 7, single buffered']
    #allocation10 [shape = 'u8[262144]{0}', space=vmem, size = 0x40000, scoped, tag = 'input window, operand 8, single buffered']
    #allocation11 [shape = 's32[1]{0}', space=sflag, size = 0x4, scoped, tag = 'scoped memory for rnn_forward.1']
    %17 = vsyncpa [#allocation3], 0
    %18 = vsyncpa [#allocation5], 0
    %19 = vsyncpa [#allocation8], 0
    %20 = vsyncpa [#allocation11], 0
    // Predicated region
    $region2: #{rnn_forward.1} parent=1 // pred_check
      _
    $region3: #{rnn_forward.1} parent=1 // pred_check_branch
      %22 = sbr.rel (0) target = $region5
    $region4: #{rnn_forward.1} parent=1 // pred_region
      _
    $region5: #{rnn_forward.1} parent=1 // pred_fallthru
      _
    // Predicated region
    $region6: #{rnn_forward.1} parent=1 // pred_check
      _
    $region7: #{rnn_forward.1} parent=1 // pred_check_branch
      %24 = sbr.rel (0) target = $region9
    $region8: #{rnn_forward.1} parent=1 // pred_region
      %s26 = ssub.s32 8192, 8192
      %27 = vsyncadd [#allocation3], %s26
      %s28 = sshll.u32 [#allocation2], 4
      %s29 = int_to_ptr.vmem [resolvable:$true] %s28
      %34 = dma.hbm_to_vmem [thread:$0]  %s1, 8192, %s29, [#allocation3], 512, 512, 32
    $region9: #{rnn_forward.1} parent=1 // pred_fallthru
      _
    // Predicated region
    $region10: #{rnn_forward.1} parent=1 // pred_check
      _
    $region11: #{rnn_forward.1} parent=1 // pred_check_branch
      %36 = sbr.rel (0) target = $region13
    $region12: #{rnn_forward.1} parent=1 // pred_region
      %s38 = ssub.s32 8192, 8192
      %39 = vsyncadd [#allocation5], %s38
      %s40 = sshll.u32 [#allocation4], 4
      %s41 = int_to_ptr.vmem [resolvable:$true] %s40
      %46 = dma.hbm_to_vmem [thread:$0]  %s2, 8192, %s41, [#allocation5], 512, 512, 32
    $region13: #{rnn_forward.1} parent=1 // pred_fallthru
      _
    // Predicated region
    $region14: #{rnn_forward.1} parent=1 // pred_check
      _
    $region15: #{rnn_forward.1} parent=1 // pred_check_branch
      %48 = sbr.rel (0) target = $region17
    $region16: #{rnn_forward.1} parent=1 // pred_region
      _
    $region17: #{rnn_forward.1} parent=1 // pred_fallthru
      _
    // Predicated region
    $region18: #{rnn_forward.1} parent=1 // pred_check
      _
    $region19: #{rnn_forward.1} parent=1 // pred_check_branch
      %50 = sbr.rel (0) target = $region21
    $region20: #{rnn_forward.1} parent=1 // pred_region
      %s52 = ssub.s32 8192, 8192
      %53 = vsyncadd [#allocation5], %s52
      %s54 = sshll.u32 [#allocation6], 4
      %s55 = int_to_ptr.vmem [resolvable:$true] %s54
      %60 = dma.hbm_to_vmem [thread:$0]  %s4, 8192, %s55, [#allocation5], 512, 512, 32
    $region21: #{rnn_forward.1} parent=1 // pred_fallthru
      _
    // Predicated region
    $region22: #{rnn_forward.1} parent=1 // pred_check
      _
    $region23: #{rnn_forward.1} parent=1 // pred_check_branch
      %62 = sbr.rel (0) target = $region25
    $region24: #{rnn_forward.1} parent=1 // pred_region
      %s64 = ssub.s32 8192, 8192
      %65 = vsyncadd [#allocation8], %s64
      %s66 = sshll.u32 [#allocation7], 4
      %s67 = int_to_ptr.vmem [resolvable:$true] %s66
      %72 = dma.hbm_to_vmem [thread:$0]  %s5, 8192, %s67, [#allocation8], 512, 512, 32
    $region25: #{rnn_forward.1} parent=1 // pred_fallthru
      _
    // Predicated region
    $region26: #{rnn_forward.1} parent=1 // pred_check
      _
    $region27: #{rnn_forward.1} parent=1 // pred_check_branch
      %74 = sbr.rel (0) target = $region29
    $region28: #{rnn_forward.1} parent=1 // pred_region
      _
    $region29: #{rnn_forward.1} parent=1 // pred_fallthru
      _
    // Predicated region
    $region30: #{rnn_forward.1} parent=1 // pred_check
      _
    $region31: #{rnn_forward.1} parent=1 // pred_check_branch
      %76 = sbr.rel (0) target = $region33
    $region32: #{rnn_forward.1} parent=1 // pred_region
      %s78 = ssub.s32 8192, 8192
      %79 = vsyncadd [#allocation8], %s78
      %s80 = sshll.u32 [#allocation9], 4
      %s81 = int_to_ptr.vmem [resolvable:$true] %s80
      %86 = dma.hbm_to_vmem [thread:$0]  %s7, 8192, %s81, [#allocation8], 512, 512, 32
    $region33: #{rnn_forward.1} parent=1 // pred_fallthru
      _
    // Predicated region
    $region34: #{rnn_forward.1} parent=1 // pred_check
      _
    $region35: #{rnn_forward.1} parent=1 // pred_check_branch
      %88 = sbr.rel (0) target = $region37
    $region36: #{rnn_forward.1} parent=1 // pred_region
      %s90 = ssub.s32 8192, 8192
      %91 = vsyncadd [#allocation11], %s90
      %s92 = sshll.u32 [#allocation10], 4
      %s93 = int_to_ptr.vmem [resolvable:$true] %s92
      %98 = dma.hbm_to_vmem [thread:$0]  %s8, 8192, %s93, [#allocation11], 512, 512, 32
    $region37: #{rnn_forward.1} parent=1 // pred_fallthru
      _
    // Predicated region
    $region38: #{rnn_forward.1} parent=1 // pred_check
      _
    $region39: #{rnn_forward.1} parent=1 // pred_check_branch
      %100 = sbr.rel (0) target = $region41
    $region40: #{rnn_forward.1} parent=1 // pred_region
      _
    $region41: #{rnn_forward.1} parent=1 // pred_fallthru
      _
    // Predicated region
    $region42: #{rnn_forward.1} parent=1 // pred_check
      _
    $region43: #{rnn_forward.1} parent=1 // pred_check_branch
      %102 = sbr.rel (0) target = $region45
    $region44: #{rnn_forward.1} parent=1 // pred_region
      _
    $region45: #{rnn_forward.1} parent=1 // pred_fallthru
      _
    // Predicated region
    $region46: #{rnn_forward.1} parent=1 // pred_check
      _
    $region47: #{rnn_forward.1} parent=1 // pred_check_branch
      %104 = sbr.rel (0) target = $region49
    $region48: #{rnn_forward.1} parent=1 // pred_region
      _
    $region49: #{rnn_forward.1} parent=1 // pred_fallthru
      _
    // Predicated region
    $region50: #{rnn_forward.1} parent=1 // pred_check
      _
    $region51: #{rnn_forward.1} parent=1 // pred_check_branch
      %106 = sbr.rel (0) target = $region53
    $region52: #{rnn_forward.1} parent=1 // pred_region
      %107 = dma.done [#allocation3], 8192
    $region53: #{rnn_forward.1} parent=1 // pred_fallthru
      _
    // Predicated region
    $region54: #{rnn_forward.1} parent=1 // pred_check
      _
    $region55: #{rnn_forward.1} parent=1 // pred_check_branch
      %109 = sbr.rel (0) target = $region57
    $region56: #{rnn_forward.1} parent=1 // pred_region
      %110 = dma.done [#allocation5], 8192
    $region57: #{rnn_forward.1} parent=1 // pred_fallthru
      _
    // Predicated region
    $region58: #{rnn_forward.1} parent=1 // pred_check
      _
    $region59: #{rnn_forward.1} parent=1 // pred_check_branch
      %112 = sbr.rel (0) target = $region61
    $region60: #{rnn_forward.1} parent=1 // pred_region
      %113 = dma.done [#allocation5], 8192
    $region61: #{rnn_forward.1} parent=1 // pred_fallthru
      _
    // Predicated region
    $region62: #{rnn_forward.1} parent=1 // pred_check
      _
    $region63: #{rnn_forward.1} parent=1 // pred_check_branch
      %115 = sbr.rel (0) target = $region65
    $region64: #{rnn_forward.1} parent=1 // pred_region
      %116 = dma.done [#allocation8], 8192
    $region65: #{rnn_forward.1} parent=1 // pred_fallthru
      _
    // Predicated region
    $region66: #{rnn_forward.1} parent=1 // pred_check
      _
    $region67: #{rnn_forward.1} parent=1 // pred_check_branch
      %118 = sbr.rel (0) target = $region69
    $region68: #{rnn_forward.1} parent=1 // pred_region
      %119 = dma.done [#allocation8], 8192
    $region69: #{rnn_forward.1} parent=1 // pred_fallthru
      _
    // Predicated region
    $region70: #{rnn_forward.1} parent=1 // pred_check
      _
    $region71: #{rnn_forward.1} parent=1 // pred_check_branch
      %121 = sbr.rel (0) target = $region73
    $region72: #{rnn_forward.1} parent=1 // pred_region
      %122 = dma.done [#allocation11], 8192
    $region73: #{rnn_forward.1} parent=1 // pred_fallthru
      _
    %v123 = vlaneseq
    %v124 = vand.u32 %v123, 127
    %v125 = vadd.s32 %v124, 128
    %v126 = vadd.s32 %v124, 256
    %v127 = vadd.s32 %v124, 384
    %v128 = vand.u32 %v124, 127
    %v129 = vand.u32 %v125, 127
    %v130 = vand.u32 %v126, 127
    %v131 = vand.u32 %v127, 127
    %vm132 = vcmp.lt.s32.totalorder %v128, 64
    %vm133 = vcmp.lt.s32.totalorder %v129, 64
    %vm134 = vcmp.lt.s32.totalorder %v130, 64
    %vm135 = vcmp.lt.s32.totalorder %v131, 64
    %vm136 = vcmp.lt.s32.totalorder %v124, 64
    %v137 = vld [vmem:[%s0] sm:$0xff]
    %v138 = vld [vmem:[%s0 + $0x8] sm:$0xff]
    %v139 = vld [vmem:[%s0 + $0x10] sm:$0xff]
    %v140 = vld [vmem:[%s0 + $0x18] sm:$0xff]
    %v141 = vld [vmem:[%s0 + $0x20] sm:$0xff]
    %v142 = vld [vmem:[%s0 + $0x28] sm:$0xff]
    %v143 = vld [vmem:[%s0 + $0x30] sm:$0xff]
    %v144 = vld [vmem:[%s0 + $0x38] sm:$0xff]
    %v145 = vld [vmem:[#allocation2] sm:$0xff]
    %v146 = vld [vmem:[#allocation2 + $0x8] sm:$0xff]
    %v147 = vld [vmem:[#allocation2 + $0x10] sm:$0xff]
    %v148 = vld [vmem:[#allocation2 + $0x18] sm:$0xff]
    %v149 = vld [vmem:[#allocation2 + $0x20] sm:$0xff]
    %v150 = vld [vmem:[#allocation2 + $0x28] sm:$0xff]
    %v151 = vld [vmem:[#allocation2 + $0x30] sm:$0xff]
    %v152 = vld [vmem:[#allocation2 + $0x38] sm:$0xff]
    %v153 = vld [vmem:[#allocation2 + $0x40] sm:$0xff]
    %v154 = vld [vmem:[#allocation2 + $0x48] sm:$0xff]
    %v155 = vld [vmem:[#allocation2 + $0x50] sm:$0xff]
    %v156 = vld [vmem:[#allocation2 + $0x58] sm:$0xff]
    %v157 = vld [vmem:[#allocation2 + $0x60] sm:$0xff]
    %v158 = vld [vmem:[#allocation2 + $0x68] sm:$0xff]
    %v159 = vld [vmem:[#allocation2 + $0x70] sm:$0xff]
    %v160 = vld [vmem:[#allocation2 + $0x78] sm:$0xff]
    %v161 = vld [vmem:[#allocation2 + $0x80] sm:$0xff]
    %v162 = vld [vmem:[#allocation2 + $0x88] sm:$0xff]
    %v163 = vld [vmem:[#allocation2 + $0x90] sm:$0xff]
    %v164 = vld [vmem:[#allocation2 + $0x98] sm:$0xff]
    %v165 = vld [vmem:[#allocation2 + $0xa0] sm:$0xff]
    %v166 = vld [vmem:[#allocation2 + $0xa8] sm:$0xff]
    %v167 = vld [vmem:[#allocation2 + $0xb0] sm:$0xff]
    %v168 = vld [vmem:[#allocation2 + $0xb8] sm:$0xff]
    %v169 = vld [vmem:[#allocation2 + $0xc0] sm:$0xff]
    %v170 = vld [vmem:[#allocation2 + $0xc8] sm:$0xff]
    %v171 = vld [vmem:[#allocation2 + $0xd0] sm:$0xff]
    %v172 = vld [vmem:[#allocation2 + $0xd8] sm:$0xff]
    %v173 = vld [vmem:[#allocation2 + $0xe0] sm:$0xff]
    %v174 = vld [vmem:[#allocation2 + $0xe8] sm:$0xff]
    %v175 = vld [vmem:[#allocation2 + $0xf0] sm:$0xff]
    %v176 = vld [vmem:[#allocation2 + $0xf8] sm:$0xff]
    %v177 = vld [vmem:[#allocation2 + $0x100] sm:$0xff]
    %v178 = vld [vmem:[#allocation2 + $0x108] sm:$0xff]
    %v179 = vld [vmem:[#allocation2 + $0x110] sm:$0xff]
    %v180 = vld [vmem:[#allocation2 + $0x118] sm:$0xff]
    %v181 = vld [vmem:[#allocation2 + $0x120] sm:$0xff]
    %v182 = vld [vmem:[#allocation2 + $0x128] sm:$0xff]
    %v183 = vld [vmem:[#allocation2 + $0x130] sm:$0xff]
    %v184 = vld [vmem:[#allocation2 + $0x138] sm:$0xff]
    %v185 = vld [vmem:[#allocation2 + $0x140] sm:$0xff]
    %v186 = vld [vmem:[#allocation2 + $0x148] sm:$0xff]
    %v187 = vld [vmem:[#allocation2 + $0x150] sm:$0xff]
    %v188 = vld [vmem:[#allocation2 + $0x158] sm:$0xff]
    %v189 = vld [vmem:[#allocation2 + $0x160] sm:$0xff]
    %v190 = vld [vmem:[#allocation2 + $0x168] sm:$0xff]
    %v191 = vld [vmem:[#allocation2 + $0x170] sm:$0xff]
    %v192 = vld [vmem:[#allocation2 + $0x178] sm:$0xff]
    %v193 = vld [vmem:[#allocation2 + $0x180] sm:$0xff]
    %v194 = vld [vmem:[#allocation2 + $0x188] sm:$0xff]
    %v195 = vld [vmem:[#allocation2 + $0x190] sm:$0xff]
    %v196 = vld [vmem:[#allocation2 + $0x198] sm:$0xff]
    %v197 = vld [vmem:[#allocation2 + $0x1a0] sm:$0xff]
    %v198 = vld [vmem:[#allocation2 + $0x1a8] sm:$0xff]
    %v199 = vld [vmem:[#allocation2 + $0x1b0] sm:$0xff]
    %v200 = vld [vmem:[#allocation2 + $0x1b8] sm:$0xff]
    %v201 = vld [vmem:[#allocation2 + $0x1c0] sm:$0xff]
    %v202 = vld [vmem:[#allocation2 + $0x1c8] sm:$0xff]
    %v203 = vld [vmem:[#allocation2 + $0x1d0] sm:$0xff]
    %v204 = vld [vmem:[#allocation2 + $0x1d8] sm:$0xff]
    %v205 = vld [vmem:[#allocation2 + $0x1e0] sm:$0xff]
    %v206 = vld [vmem:[#allocation2 + $0x1e8] sm:$0xff]
    %v207 = vld [vmem:[#allocation2 + $0x1f0] sm:$0xff]
    %v208 = vld [vmem:[#allocation2 + $0x1f8] sm:$0xff]
    %v209 = vld [vmem:[%s3] sm:$0xf]
    %v211 = vlaneseq
    %v212 = vshrl.u32 %v211, 7
    %v213 = vsub.s32 0, %v212
    %v214 = vrot.slane %v209, %v213
    %v215 = vlaneseq
    %v216 = vshrl.u32 %v215, 7
    %v217 = vsub.s32 1, %v216
    %v218 = vrot.slane %v209, %v217
    %v219 = vlaneseq
    %v220 = vshrl.u32 %v219, 7
    %v221 = vsub.s32 2, %v220
    %v222 = vrot.slane %v209, %v221
    %v223 = vlaneseq
    %v224 = vshrl.u32 %v223, 7
    %v225 = vsub.s32 3, %v224
    %v226 = vrot.slane %v209, %v225
    %231 = vmatprep.subr.mxu0 %v146
    %232 = vmatpush1.msra.mxu0 %v145
    %233 = vmatprep.subr.mxu0 %v150
    %234 = vmatpush1.msra.mxu0 %v149
    %235 = vmatprep.subr.mxu0 %v154
    %236 = vmatpush1.msra.mxu0 %v153
    %237 = vmatprep.subr.mxu0 %v158
    %238 = vmatpush1.msra.mxu0 %v157
    %239 = vmatprep.subr.mxu0 %v162
    %240 = vmatpush1.msra.mxu0 %v161
    %241 = vmatprep.subr.mxu0 %v166
    %242 = vmatpush1.msra.mxu0 %v165
    %243 = vmatprep.subr.mxu0 %v170
    %244 = vmatpush1.msra.mxu0 %v169
    %245 = vmatprep.subr.mxu0 %v174
    %246 = vmatpush1.msra.mxu0 %v173
    %247 = vmatprep.subr.mxu0 %v178
    %248 = vmatpush1.msra.mxu0 %v177
    %249 = vmatprep.subr.mxu0 %v182
    %250 = vmatpush1.msra.mxu0 %v181
    %251 = vmatprep.subr.mxu0 %v186
    %252 = vmatpush1.msra.mxu0 %v185
    %253 = vmatprep.subr.mxu0 %v190
    %254 = vmatpush1.msra.mxu0 %v189
    %255 = vmatprep.subr.mxu0 %v194
    %256 = vmatpush1.msra.mxu0 %v193
    %257 = vmatprep.subr.mxu0 %v198
    %258 = vmatpush1.msra.mxu0 %v197
    %259 = vmatprep.subr.mxu0 %v202
    %260 = vmatpush1.msra.mxu0 %v201
    %261 = vmatprep.subr.mxu0 %v206
    %262 = vmatpush1.msra.mxu0 %v205
    %263 = vmatprep.subr.mxu0 0.0
    %264 = vmatpush1.msra.mxu0 0.0
    %265 = vmatprep.subr.mxu0 0.0
    %266 = vmatpush1.msra.mxu0 0.0
    %267 = vmatprep.subr.mxu0 0.0
    %268 = vmatpush1.msra.mxu0 0.0
    %269 = vmatprep.subr.mxu0 0.0
    %270 = vmatpush1.msra.mxu0 0.0
    %271 = vmatprep.subr.mxu0 0.0
    %272 = vmatpush1.msra.mxu0 0.0
    %273 = vmatprep.subr.mxu0 0.0
    %274 = vmatpush1.msra.mxu0 0.0
    %275 = vmatprep.subr.mxu0 0.0
    %276 = vmatpush1.msra.mxu0 0.0
    %277 = vmatprep.subr.mxu0 0.0
    %278 = vmatpush1.msra.mxu0 0.0
    %279 = vmatprep.subr.mxu0 0.0
    %280 = vmatpush1.msra.mxu0 0.0
    %281 = vmatprep.subr.mxu0 0.0
    %282 = vmatpush1.msra.mxu0 0.0
    %283 = vmatprep.subr.mxu0 0.0
    %284 = vmatpush1.msra.mxu0 0.0
    %285 = vmatprep.subr.mxu0 0.0
    %286 = vmatpush1.msra.mxu0 0.0
    %287 = vmatprep.subr.mxu0 0.0
    %288 = vmatpush1.msra.mxu0 0.0
    %289 = vmatprep.subr.mxu0 0.0
    %290 = vmatpush1.msra.mxu0 0.0
    %291 = vmatprep.subr.mxu0 0.0
    %292 = vmatpush1.msra.mxu0 0.0
    %293 = vmatprep.subr.mxu0 0.0
    %294 = vmatpush1.msra.mxu0 0.0
    %295 = vmatprep.mubr.f32.mxu0 0.0
    %296 = vmatmul.mubr.f32.gmra.mrb[0].mxu0 %v137
    %v297 = vpop.f32.mrb[0].mxu0
    %v298 = vadd.f32 %v214, %v297
    %v299 = vpop.f32.mrb[0].mxu0
    %v300 = vadd.f32 %v218, %v299
    %301 = vmatprep.mubr.f32.mxu0 0.0
    %302 = vmatmul.mubr.f32.gmra.mrb[0].mxu0 %v138
    %v303 = vpop.f32.mrb[0].mxu0
    %v304 = vadd.f32 %v214, %v303
    %v305 = vpop.f32.mrb[0].mxu0
    %v306 = vadd.f32 %v218, %v305
    %307 = vmatprep.mubr.f32.mxu0 0.0
    %308 = vmatmul.mubr.f32.gmra.mrb[0].mxu0 %v139
    %v309 = vpop.f32.mrb[0].mxu0
    %v310 = vadd.f32 %v214, %v309
    %v311 = vpop.f32.mrb[0].mxu0
    %v312 = vadd.f32 %v218, %v311
    %313 = vmatprep.mubr.f32.mxu0 0.0
    %314 = vmatmul.mubr.f32.gmra.mrb[0].mxu0 %v140
    %v315 = vpop.f32.mrb[0].mxu0
    %v316 = vadd.f32 %v214, %v315
    %v317 = vpop.f32.mrb[0].mxu0
    %v318 = vadd.f32 %v218, %v317
    %319 = vmatprep.mubr.f32.mxu0 0.0
    %320 = vmatmul.mubr.f32.gmra.mrb[0].mxu0 %v141
    %v321 = vpop.f32.mrb[0].mxu0
    %v322 = vadd.f32 %v214, %v321
    %v323 = vpop.f32.mrb[0].mxu0
    %v324 = vadd.f32 %v218, %v323
    %325 = vmatprep.mubr.f32.mxu0 0.0
    %326 = vmatmul.mubr.f32.gmra.mrb[0].mxu0 %v142
    %v327 = vpop.f32.mrb[0].mxu0
    %v328 = vadd.f32 %v214, %v327
    %v329 = vpop.f32.mrb[0].mxu0
    %v330 = vadd.f32 %v218, %v329
    %331 = vmatprep.mubr.f32.mxu0 0.0
    %332 = vmatmul.mubr.f32.gmra.mrb[0].mxu0 %v143
    %v333 = vpop.f32.mrb[0].mxu0
    %v334 = vadd.f32 %v214, %v333
    %v335 = vpop.f32.mrb[0].mxu0
    %v336 = vadd.f32 %v218, %v335
    %337 = vmatprep.mubr.f32.mxu0 0.0
    %338 = vmatmul.mubr.f32.gmra.mrb[0].mxu0 %v144
    %v339 = vpop.f32.mrb[0].mxu0
    %v340 = vadd.f32 %v214, %v339
    %v341 = vpop.f32.mrb[0].mxu0
    %v342 = vadd.f32 %v218, %v341
    %343 = vdwg.mxu0
    %344 = vmatprep.subr.mxu0 %v148
    %345 = vmatpush1.msra.mxu0 %v147
    %346 = vmatprep.subr.mxu0 %v152
    %347 = vmatpush1.msra.mxu0 %v151
    %348 = vmatprep.subr.mxu0 %v156
    %349 = vmatpush1.msra.mxu0 %v155
    %350 = vmatprep.subr.mxu0 %v160
    %351 = vmatpush1.msra.mxu0 %v159
    %352 = vmatprep.subr.mxu0 %v164
    %353 = vmatpush1.msra.mxu0 %v163
    %354 = vmatprep.subr.mxu0 %v168
    %355 = vmatpush1.msra.mxu0 %v167
    %356 = vmatprep.subr.mxu0 %v172
    %357 = vmatpush1.msra.mxu0 %v171
    %358 = vmatprep.subr.mxu0 %v176
    %359 = vmatpush1.msra.mxu0 %v175
    %360 = vmatprep.subr.mxu0 %v180
    %361 = vmatpush1.msra.mxu0 %v179
    %362 = vmatprep.subr.mxu0 %v184
    %363 = vmatpush1.msra.mxu0 %v183
    %364 = vmatprep.subr.mxu0 %v188
    %365 = vmatpush1.msra.mxu0 %v187
    %366 = vmatprep.subr.mxu0 %v192
    %367 = vmatpush1.msra.mxu0 %v191
    %368 = vmatprep.subr.mxu0 %v196
    %369 = vmatpush1.msra.mxu0 %v195
    %370 = vmatprep.subr.mxu0 %v200
    %371 = vmatpush1.msra.mxu0 %v199
    %372 = vmatprep.subr.mxu0 %v204
    %373 = vmatpush1.msra.mxu0 %v203
    %374 = vmatprep.subr.mxu0 %v208
    %375 = vmatpush1.msra.mxu0 %v207
    %376 = vmatprep.subr.mxu0 0.0
    %377 = vmatpush1.msra.mxu0 0.0
    %378 = vmatprep.subr.mxu0 0.0
    %379 = vmatpush1.msra.mxu0 0.0
    %380 = vmatprep.subr.mxu0 0.0
    %381 = vmatpush1.msra.mxu0 0.0
    %382 = vmatprep.subr.mxu0 0.0
    %383 = vmatpush1.msra.mxu0 0.0
    %384 = vmatprep.subr.mxu0 0.0
    %385 = vmatpush1.msra.mxu0 0.0
    %386 = vmatprep.subr.mxu0 0.0
    %387 = vmatpush1.msra.mxu0 0.0
    %388 = vmatprep.subr.mxu0 0.0
    %389 = vmatpush1.msra.mxu0 0.0
    %390 = vmatprep.subr.mxu0 0.0
    %391 = vmatpush1.msra.mxu0 0.0
    %392 = vmatprep.subr.mxu0 0.0
    %393 = vmatpush1.msra.mxu0 0.0
    %394 = vmatprep.subr.mxu0 0.0
    %395 = vmatpush1.msra.mxu0 0.0
    %396 = vmatprep.subr.mxu0 0.0
    %397 = vmatpush1.msra.mxu0 0.0
    %398 = vmatprep.subr.mxu0 0.0
    %399 = vmatpush1.msra.mxu0 0.0
    %400 = vmatprep.subr.mxu0 0.0
    %401 = vmatpush1.msra.mxu0 0.0
    %402 = vmatprep.subr.mxu0 0.0
    %403 = vmatpush1.msra.mxu0 0.0
    %404 = vmatprep.subr.mxu0 0.0
    %405 = vmatpush1.msra.mxu0 0.0
    %406 = vmatprep.subr.mxu0 0.0
    %407 = vmatpush1.msra.mxu0 0.0
    %408 = vmatprep.mubr.f32.mxu0 0.0
    %409 = vmatmul.mubr.f32.gmra.mrb[0].mxu0 %v137
    %v410 = vpop.f32.mrb[0].mxu0
    %v411 = vadd.f32 %v222, %v410
    %v412 = vpop.f32.mrb[0].mxu0
    %v413 = vadd.f32 %v226, %v412
    %414 = vmatprep.mubr.f32.mxu0 0.0
    %415 = vmatmul.mubr.f32.gmra.mrb[0].mxu0 %v138
    %v416 = vpop.f32.mrb[0].mxu0
    %v417 = vadd.f32 %v222, %v416
    %v418 = vpop.f32.mrb[0].mxu0
    %v419 = vadd.f32 %v226, %v418
    %420 = vmatprep.mubr.f32.mxu0 0.0
    %421 = vmatmul.mubr.f32.gmra.mrb[0].mxu0 %v139
    %v422 = vpop.f32.mrb[0].mxu0
    %v423 = vadd.f32 %v222, %v422
    %v424 = vpop.f32.mrb[0].mxu0
    %v425 = vadd.f32 %v226, %v424
    %426 = vmatprep.mubr.f32.mxu0 0.0
    %427 = vmatmul.mubr.f32.gmra.mrb[0].mxu0 %v140
    %v428 = vpop.f32.mrb[0].mxu0
    %v429 = vadd.f32 %v222, %v428
    %v430 = vpop.f32.mrb[0].mxu0
    %v431 = vadd.f32 %v226, %v430
    %432 = vmatprep.mubr.f32.mxu0 0.0
    %433 = vmatmul.mubr.f32.gmra.mrb[0].mxu0 %v141
    %v434 = vpop.f32.mrb[0].mxu0
    %v435 = vadd.f32 %v222, %v434
    %v436 = vpop.f32.mrb[0].mxu0
    %v437 = vadd.f32 %v226, %v436
    %438 = vmatprep.mubr.f32.mxu0 0.0
    %439 = vmatmul.mubr.f32.gmra.mrb[0].mxu0 %v142
    %v440 = vpop.f32.mrb[0].mxu0
    %v441 = vadd.f32 %v222, %v440
    %v442 = vpop.f32.mrb[0].mxu0
    %v443 = vadd.f32 %v226, %v442
    %444 = vmatprep.mubr.f32.mxu0 0.0
    %445 = vmatmul.mubr.f32.gmra.mrb[0].mxu0 %v143
    %v446 = vpop.f32.mrb[0].mxu0
    %v447 = vadd.f32 %v222, %v446
    %v448 = vpop.f32.mrb[0].mxu0
    %v449 = vadd.f32 %v226, %v448
    %450 = vmatprep.mubr.f32.mxu0 0.0
    %451 = vmatmul.mubr.f32.gmra.mrb[0].mxu0 %v144
    %v452 = vpop.f32.mrb[0].mxu0
    %v453 = vadd.f32 %v222, %v452
    %v454 = vpop.f32.mrb[0].mxu0
    %v455 = vadd.f32 %v226, %v454
    %456 = vdwg.mxu0
    %v457 = vsel %vm132, %v298, %v340
    %v458 = vsel %vm133, %v300, %v342
    %v459 = vsel %vm134, %v411, %v453
    %v460 = vsel %vm135, %v413, %v455
    %v461 = vld [vmem:[#allocation4] sm:$0xff]
    %v462 = vld [vmem:[#allocation4 + $0x8] sm:$0xff]
    %v463 = vld [vmem:[#allocation4 + $0x10] sm:$0xff]
    %v464 = vld [vmem:[#allocation4 + $0x18] sm:$0xff]
    %v465 = vld [vmem:[#allocation4 + $0x20] sm:$0xff]
    %v466 = vld [vmem:[#allocation4 + $0x28] sm:$0xff]
    %v467 = vld [vmem:[#allocation4 + $0x30] sm:$0xff]
    %v468 = vld [vmem:[#allocation4 + $0x38] sm:$0xff]
    %v469 = vld [vmem:[#allocation4 + $0x40] sm:$0xff]
    %v470 = vld [vmem:[#allocation4 + $0x48] sm:$0xff]
    %v471 = vld [vmem:[#allocation4 + $0x50] sm:$0xff]
    %v472 = vld [vmem:[#allocation4 + $0x58] sm:$0xff]
    %v473 = vld [vmem:[#allocation4 + $0x60] sm:$0xff]
    %v474 = vld [vmem:[#allocation4 + $0x68] sm:$0xff]
    %v475 = vld [vmem:[#allocation4 + $0x70] sm:$0xff]
    %v476 = vld [vmem:[#allocation4 + $0x78] sm:$0xff]
    %v477 = vld [vmem:[#allocation4 + $0x80] sm:$0xff]
    %v478 = vld [vmem:[#allocation4 + $0x88] sm:$0xff]
    %v479 = vld [vmem:[#allocation4 + $0x90] sm:$0xff]
    %v480 = vld [vmem:[#allocation4 + $0x98] sm:$0xff]
    %v481 = vld [vmem:[#allocation4 + $0xa0] sm:$0xff]
    %v482 = vld [vmem:[#allocation4 + $0xa8] sm:$0xff]
    %v483 = vld [vmem:[#allocation4 + $0xb0] sm:$0xff]
    %v484 = vld [vmem:[#allocation4 + $0xb8] sm:$0xff]
    %v485 = vld [vmem:[#allocation4 + $0xc0] sm:$0xff]
    %v486 = vld [vmem:[#allocation4 + $0xc8] sm:$0xff]
    %v487 = vld [vmem:[#allocation4 + $0xd0] sm:$0xff]
    %v488 = vld [vmem:[#allocation4 + $0xd8] sm:$0xff]
    %v489 = vld [vmem:[#allocation4 + $0xe0] sm:$0xff]
    %v490 = vld [vmem:[#allocation4 + $0xe8] sm:$0xff]
    %v491 = vld [vmem:[#allocation4 + $0xf0] sm:$0xff]
    %v492 = vld [vmem:[#allocation4 + $0xf8] sm:$0xff]
    %v493 = vld [vmem:[#allocation4 + $0x100] sm:$0xff]
    %v494 = vld [vmem:[#allocation4 + $0x108] sm:$0xff]
    %v495 = vld [vmem:[#allocation4 + $0x110] sm:$0xff]
    %v496 = vld [vmem:[#allocation4 + $0x118] sm:$0xff]
    %v497 = vld [vmem:[#allocation4 + $0x120] sm:$0xff]
    %v498 = vld [vmem:[#allocation4 + $0x128] sm:$0xff]
    %v499 = vld [vmem:[#allocation4 + $0x130] sm:$0xff]
    %v500 = vld [vmem:[#allocation4 + $0x138] sm:$0xff]
    %v501 = vld [vmem:[#allocation4 + $0x140] sm:$0xff]
    %v502 = vld [vmem:[#allocation4 + $0x148] sm:$0xff]
    %v503 = vld [vmem:[#allocation4 + $0x150] sm:$0xff]
    %v504 = vld [vmem:[#allocation4 + $0x158] sm:$0xff]
    %v505 = vld [vmem:[#allocation4 + $0x160] sm:$0xff]
    %v506 = vld [vmem:[#allocation4 + $0x168] sm:$0xff]
    %v507 = vld [vmem:[#allocation4 + $0x170] sm:$0xff]
    %v508 = vld [vmem:[#allocation4 + $0x178] sm:$0xff]
    %v509 = vld [vmem:[#allocation4 + $0x180] sm:$0xff]
    %v510 = vld [vmem:[#allocation4 + $0x188] sm:$0xff]
    %v511 = vld [vmem:[#allocation4 + $0x190] sm:$0xff]
    %v512 = vld [vmem:[#allocation4 + $0x198] sm:$0xff]
    %v513 = vld [vmem:[#allocation4 + $0x1a0] sm:$0xff]
    %v514 = vld [vmem:[#allocation4 + $0x1a8] sm:$0xff]
    %v515 = vld [vmem:[#allocation4 + $0x1b0] sm:$0xff]
    %v516 = vld [vmem:[#allocation4 + $0x1b8] sm:$0xff]
    %v517 = vld [vmem:[#allocation4 + $0x1c0] sm:$0xff]
    %v518 = vld [vmem:[#allocation4 + $0x1c8] sm:$0xff]
    %v519 = vld [vmem:[#allocation4 + $0x1d0] sm:$0xff]
    %v520 = vld [vmem:[#allocation4 + $0x1d8] sm:$0xff]
    %v521 = vld [vmem:[#allocation4 + $0x1e0] sm:$0xff]
    %v522 = vld [vmem:[#allocation4 + $0x1e8] sm:$0xff]
    %v523 = vld [vmem:[#allocation4 + $0x1f0] sm:$0xff]
    %v524 = vld [vmem:[#allocation4 + $0x1f8] sm:$0xff]
    %525 = vmatprep.subr.mxu0 %v462
    %526 = vmatpush1.msra.mxu0 %v461
    %527 = vmatprep.subr.mxu0 %v466
    %528 = vmatpush1.msra.mxu0 %v465
    %529 = vmatprep.subr.mxu0 %v470
    %530 = vmatpush1.msra.mxu0 %v469
    %531 = vmatprep.subr.mxu0 %v474
    %532 = vmatpush1.msra.mxu0 %v473
    %533 = vmatprep.subr.mxu0 %v478
    %534 = vmatpush1.msra.mxu0 %v477
    %535 = vmatprep.subr.mxu0 %v482
    %536 = vmatpush1.msra.mxu0 %v481
    %537 = vmatprep.subr.mxu0 %v486
    %538 = vmatpush1.msra.mxu0 %v485
    %539 = vmatprep.subr.mxu0 %v490
    %540 = vmatpush1.msra.mxu0 %v489
    %541 = vmatprep.subr.mxu0 %v494
    %542 = vmatpush1.msra.mxu0 %v493
    %543 = vmatprep.subr.mxu0 %v498
    %544 = vmatpush1.msra.mxu0 %v497
    %545 = vmatprep.subr.mxu0 %v502
    %546 = vmatpush1.msra.mxu0 %v501
    %547 = vmatprep.subr.mxu0 %v506
    %548 = vmatpush1.msra.mxu0 %v505
    %549 = vmatprep.subr.mxu0 %v510
    %550 = vmatpush1.msra.mxu0 %v509
    %551 = vmatprep.subr.mxu0 %v514
    %552 = vmatpush1.msra.mxu0 %v513
    %553 = vmatprep.subr.mxu0 %v518
    %554 = vmatpush1.msra.mxu0 %v517
    %555 = vmatprep.subr.mxu0 %v522
    %556 = vmatpush1.msra.mxu0 %v521
    %557 = vmatprep.subr.mxu0 0.0
    %558 = vmatpush1.msra.mxu0 0.0
    %559 = vmatprep.subr.mxu0 0.0
    %560 = vmatpush1.msra.mxu0 0.0
    %561 = vmatprep.subr.mxu0 0.0
    %562 = vmatpush1.msra.mxu0 0.0
    %563 = vmatprep.subr.mxu0 0.0
    %564 = vmatpush1.msra.mxu0 0.0
    %565 = vmatprep.subr.mxu0 0.0
    %566 = vmatpush1.msra.mxu0 0.0
    %567 = vmatprep.subr.mxu0 0.0
    %568 = vmatpush1.msra.mxu0 0.0
    %569 = vmatprep.subr.mxu0 0.0
    %570 = vmatpush1.msra.mxu0 0.0
    %571 = vmatprep.subr.mxu0 0.0
    %572 = vmatpush1.msra.mxu0 0.0
    %573 = vmatprep.subr.mxu0 0.0
    %574 = vmatpush1.msra.mxu0 0.0
    %575 = vmatprep.subr.mxu0 0.0
    %576 = vmatpush1.msra.mxu0 0.0
    %577 = vmatprep.subr.mxu0 0.0
    %578 = vmatpush1.msra.mxu0 0.0
    %579 = vmatprep.subr.mxu0 0.0
    %580 = vmatpush1.msra.mxu0 0.0
    %581 = vmatprep.subr.mxu0 0.0
    %582 = vmatpush1.msra.mxu0 0.0
    %583 = vmatprep.subr.mxu0 0.0
    %584 = vmatpush1.msra.mxu0 0.0
    %585 = vmatprep.subr.mxu0 0.0
    %586 = vmatpush1.msra.mxu0 0.0
    %587 = vmatprep.subr.mxu0 0.0
    %588 = vmatpush1.msra.mxu0 0.0
    %589 = vmatprep.mubr.f32.mxu0 0.0
    %590 = vmatmul.mubr.f32.gmra.mrb[0].mxu0 0.0
    %v591 = vpop.f32.mrb[0].mxu0
    %v592 = vadd.f32 %v457, %v591
    %v593 = vpop.f32.mrb[0].mxu0
    %v594 = vadd.f32 %v458, %v593
    %595 = vdwg.mxu0
    %596 = vmatprep.subr.mxu0 %v464
    %597 = vmatpush1.msra.mxu0 %v463
    %598 = vmatprep.subr.mxu0 %v468
    %599 = vmatpush1.msra.mxu0 %v467
    %600 = vmatprep.subr.mxu0 %v472
    %601 = vmatpush1.msra.mxu0 %v471
    %602 = vmatprep.subr.mxu0 %v476
    %603 = vmatpush1.msra.mxu0 %v475
    %604 = vmatprep.subr.mxu0 %v480
    %605 = vmatpush1.msra.mxu0 %v479
    %606 = vmatprep.subr.mxu0 %v484
    %607 = vmatpush1.msra.mxu0 %v483
    %608 = vmatprep.subr.mxu0 %v488
    %609 = vmatpush1.msra.mxu0 %v487
    %610 = vmatprep.subr.mxu0 %v492
    %611 = vmatpush1.msra.mxu0 %v491
    %612 = vmatprep.subr.mxu0 %v496
    %613 = vmatpush1.msra.mxu0 %v495
    %614 = vmatprep.subr.mxu0 %v500
    %615 = vmatpush1.msra.mxu0 %v499
    %616 = vmatprep.subr.mxu0 %v504
    %617 = vmatpush1.msra.mxu0 %v503
    %618 = vmatprep.subr.mxu0 %v508
    %619 = vmatpush1.msra.mxu0 %v507
    %620 = vmatprep.subr.mxu0 %v512
    %621 = vmatpush1.msra.mxu0 %v511
    %622 = vmatprep.subr.mxu0 %v516
    %623 = vmatpush1.msra.mxu0 %v515
    %624 = vmatprep.subr.mxu0 %v520
    %625 = vmatpush1.msra.mxu0 %v519
    %626 = vmatprep.subr.mxu0 %v524
    %627 = vmatpush1.msra.mxu0 %v523
    %628 = vmatprep.subr.mxu0 0.0
    %629 = vmatpush1.msra.mxu0 0.0
    %630 = vmatprep.subr.mxu0 0.0
    %631 = vmatpush1.msra.mxu0 0.0
    %632 = vmatprep.subr.mxu0 0.0
    %633 = vmatpush1.msra.mxu0 0.0
    %634 = vmatprep.subr.mxu0 0.0
    %635 = vmatpush1.msra.mxu0 0.0
    %636 = vmatprep.subr.mxu0 0.0
    %637 = vmatpush1.msra.mxu0 0.0
    %638 = vmatprep.subr.mxu0 0.0
    %639 = vmatpush1.msra.mxu0 0.0
    %640 = vmatprep.subr.mxu0 0.0
    %641 = vmatpush1.msra.mxu0 0.0
    %642 = vmatprep.subr.mxu0 0.0
    %643 = vmatpush1.msra.mxu0 0.0
    %644 = vmatprep.subr.mxu0 0.0
    %645 = vmatpush1.msra.mxu0 0.0
    %646 = vmatprep.subr.mxu0 0.0
    %647 = vmatpush1.msra.mxu0 0.0
    %648 = vmatprep.subr.mxu0 0.0
    %649 = vmatpush1.msra.mxu0 0.0
    %650 = vmatprep.subr.mxu0 0.0
    %651 = vmatpush1.msra.mxu0 0.0
    %652 = vmatprep.subr.mxu0 0.0
    %653 = vmatpush1.msra.mxu0 0.0
    %654 = vmatprep.subr.mxu0 0.0
    %655 = vmatpush1.msra.mxu0 0.0
    %656 = vmatprep.subr.mxu0 0.0
    %657 = vmatpush1.msra.mxu0 0.0
    %658 = vmatprep.subr.mxu0 0.0
    %659 = vmatpush1.msra.mxu0 0.0
    %660 = vmatprep.mubr.f32.mxu0 0.0
    %661 = vmatmul.mubr.f32.gmra.mrb[0].mxu0 0.0
    %v662 = vpop.f32.mrb[0].mxu0
    %v663 = vadd.f32 %v459, %v662
    %v664 = vpop.f32.mrb[0].mxu0
    %v665 = vadd.f32 %v460, %v664
    %666 = vdwg.mxu0
    %v667 = vxor.u32 %v592, 2147483648
    %v668 = vxor.u32 %v594, 2147483648
    %v669 = vxor.u32 %v663, 2147483648
    %v670 = vmul.f32 %v667, 1.442695
    %v671 = vpow.pop %v670
    %v672 = vmul.f32 %v668, 1.442695
    %v673 = vpow.pop %v672
    %v674 = vmul.f32 %v669, 1.442695
    %v675 = vpow.pop %v674
    %v676 = vadd.f32 %v671, 1.0
    %v677 = vadd.f32 %v673, 1.0
    %v678 = vadd.f32 %v675, 1.0
    %v679 = vrcp.pop %v676
    %v680 = vmul.f32 1.0, %v679
    %v681 = vrcp.pop %v677
    %v682 = vmul.f32 1.0, %v681
    %v683 = vrcp.pop %v678
    %v684 = vmul.f32 1.0, %v683
    %v685 = vtanh.pop %v665
    %v686 = vmul.f32 %v682, 0.0
    %v687 = vmul.f32 %v680, %v685
    %v688 = vadd.f32 %v686, %v687
    %v689 = vtanh.pop %v688
    %v690 = vmul.f32 %v684, %v689
    %v691 = vsel %vm132, %v304, %v334
    %v692 = vsel %vm133, %v306, %v336
    %v693 = vsel %vm134, %v417, %v447
    %v694 = vsel %vm135, %v419, %v449
    %695 = vmatprep.subr.mxu0 %v462
    %696 = vmatpush1.msra.mxu0 %v461
    %697 = vmatprep.subr.mxu0 %v466
    %698 = vmatpush1.msra.mxu0 %v465
    %699 = vmatprep.subr.mxu0 %v470
    %700 = vmatpush1.msra.mxu0 %v469
    %701 = vmatprep.subr.mxu0 %v474
    %702 = vmatpush1.msra.mxu0 %v473
    %703 = vmatprep.subr.mxu0 %v478
    %704 = vmatpush1.msra.mxu0 %v477
    %705 = vmatprep.subr.mxu0 %v482
    %706 = vmatpush1.msra.mxu0 %v481
    %707 = vmatprep.subr.mxu0 %v486
    %708 = vmatpush1.msra.mxu0 %v485
    %709 = vmatprep.subr.mxu0 %v490
    %710 = vmatpush1.msra.mxu0 %v489
    %711 = vmatprep.subr.mxu0 %v494
    %712 = vmatpush1.msra.mxu0 %v493
    %713 = vmatprep.subr.mxu0 %v498
    %714 = vmatpush1.msra.mxu0 %v497
    %715 = vmatprep.subr.mxu0 %v502
    %716 = vmatpush1.msra.mxu0 %v501
    %717 = vmatprep.subr.mxu0 %v506
    %718 = vmatpush1.msra.mxu0 %v505
    %719 = vmatprep.subr.mxu0 %v510
    %720 = vmatpush1.msra.mxu0 %v509
    %721 = vmatprep.subr.mxu0 %v514
    %722 = vmatpush1.msra.mxu0 %v513
    %723 = vmatprep.subr.mxu0 %v518
    %724 = vmatpush1.msra.mxu0 %v517
    %725 = vmatprep.subr.mxu0 %v522
    %726 = vmatpush1.msra.mxu0 %v521
    %727 = vmatprep.subr.mxu0 0.0
    %728 = vmatpush1.msra.mxu0 0.0
    %729 = vmatprep.subr.mxu0 0.0
    %730 = vmatpush1.msra.mxu0 0.0
    %731 = vmatprep.subr.mxu0 0.0
    %732 = vmatpush1.msra.mxu0 0.0
    %733 = vmatprep.subr.mxu0 0.0
    %734 = vmatpush1.msra.mxu0 0.0
    %735 = vmatprep.subr.mxu0 0.0
    %736 = vmatpush1.msra.mxu0 0.0
    %737 = vmatprep.subr.mxu0 0.0
    %738 = vmatpush1.msra.mxu0 0.0
    %739 = vmatprep.subr.mxu0 0.0
    %740 = vmatpush1.msra.mxu0 0.0
    %741 = vmatprep.subr.mxu0 0.0
    %742 = vmatpush1.msra.mxu0 0.0
    %743 = vmatprep.subr.mxu0 0.0
    %744 = vmatpush1.msra.mxu0 0.0
    %745 = vmatprep.subr.mxu0 0.0
    %746 = vmatpush1.msra.mxu0 0.0
    %747 = vmatprep.subr.mxu0 0.0
    %748 = vmatpush1.msra.mxu0 0.0
    %749 = vmatprep.subr.mxu0 0.0
    %750 = vmatpush1.msra.mxu0 0.0
    %751 = vmatprep.subr.mxu0 0.0
    %752 = vmatpush1.msra.mxu0 0.0
    %753 = vmatprep.subr.mxu0 0.0
    %754 = vmatpush1.msra.mxu0 0.0
    %755 = vmatprep.subr.mxu0 0.0
    %756 = vmatpush1.msra.mxu0 0.0
    %757 = vmatprep.subr.mxu0 0.0
    %758 = vmatpush1.msra.mxu0 0.0
    %759 = vmatprep.mubr.f32.mxu0 0.0
    %760 = vmatmul.mubr.f32.gmra.mrb[0].mxu0 %v690
    %v761 = vpop.f32.mrb[0].mxu0
    %v762 = vadd.f32 %v691, %v761
    %v763 = vpop.f32.mrb[0].mxu0
    %v764 = vadd.f32 %v692, %v763
    %765 = vdwg.mxu0
    %766 = vmatprep.subr.mxu0 %v464
    %767 = vmatpush1.msra.mxu0 %v463
    %768 = vmatprep.subr.mxu0 %v468
    %769 = vmatpush1.msra.mxu0 %v467
    %770 = vmatprep.subr.mxu0 %v472
    %771 = vmatpush1.msra.mxu0 %v471
    %772 = vmatprep.subr.mxu0 %v476
    %773 = vmatpush1.msra.mxu0 %v475
    %774 = vmatprep.subr.mxu0 %v480
    %775 = vmatpush1.msra.mxu0 %v479
    %776 = vmatprep.subr.mxu0 %v484
    %777 = vmatpush1.msra.mxu0 %v483
    %778 = vmatprep.subr.mxu0 %v488
    %779 = vmatpush1.msra.mxu0 %v487
    %780 = vmatprep.subr.mxu0 %v492
    %781 = vmatpush1.msra.mxu0 %v491
    %782 = vmatprep.subr.mxu0 %v496
    %783 = vmatpush1.msra.mxu0 %v495
    %784 = vmatprep.subr.mxu0 %v500
    %785 = vmatpush1.msra.mxu0 %v499
    %786 = vmatprep.subr.mxu0 %v504
    %787 = vmatpush1.msra.mxu0 %v503
    %788 = vmatprep.subr.mxu0 %v508
    %789 = vmatpush1.msra.mxu0 %v507
    %790 = vmatprep.subr.mxu0 %v512
    %791 = vmatpush1.msra.mxu0 %v511
    %792 = vmatprep.subr.mxu0 %v516
    %793 = vmatpush1.msra.mxu0 %v515
    %794 = vmatprep.subr.mxu0 %v520
    %795 = vmatpush1.msra.mxu0 %v519
    %796 = vmatprep.subr.mxu0 %v524
    %797 = vmatpush1.msra.mxu0 %v523
    %798 = vmatprep.subr.mxu0 0.0
    %799 = vmatpush1.msra.mxu0 0.0
    %800 = vmatprep.subr.mxu0 0.0
    %801 = vmatpush1.msra.mxu0 0.0
    %802 = vmatprep.subr.mxu0 0.0
    %803 = vmatpush1.msra.mxu0 0.0
    %804 = vmatprep.subr.mxu0 0.0
    %805 = vmatpush1.msra.mxu0 0.0
    %806 = vmatprep.subr.mxu0 0.0
    %807 = vmatpush1.msra.mxu0 0.0
    %808 = vmatprep.subr.mxu0 0.0
    %809 = vmatpush1.msra.mxu0 0.0
    %810 = vmatprep.subr.mxu0 0.0
    %811 = vmatpush1.msra.mxu0 0.0
    %812 = vmatprep.subr.mxu0 0.0
    %813 = vmatpush1.msra.mxu0 0.0
    %814 = vmatprep.subr.mxu0 0.0
    %815 = vmatpush1.msra.mxu0 0.0
    %816 = vmatprep.subr.mxu0 0.0
    %817 = vmatpush1.msra.mxu0 0.0
    %818 = vmatprep.subr.mxu0 0.0
    %819 = vmatpush1.msra.mxu0 0.0
    %820 = vmatprep.subr.mxu0 0.0
    %821 = vmatpush1.msra.mxu0 0.0
    %822 = vmatprep.subr.mxu0 0.0
    %823 = vmatpush1.msra.mxu0 0.0
    %824 = vmatprep.subr.mxu0 0.0
    %825 = vmatpush1.msra.mxu0 0.0
    %826 = vmatprep.subr.mxu0 0.0
    %827 = vmatpush1.msra.mxu0 0.0
    %828 = vmatprep.subr.mxu0 0.0
    %829 = vmatpush1.msra.mxu0 0.0
    %830 = vmatprep.mubr.f32.mxu0 0.0
    %831 = vmatmul.mubr.f32.gmra.mrb[0].mxu0 %v690
    %v832 = vpop.f32.mrb[0].mxu0
    %v833 = vadd.f32 %v693, %v832
    %v834 = vpop.f32.mrb[0].mxu0
    %v835 = vadd.f32 %v694, %v834
    %836 = vdwg.mxu0
    %v837 = vxor.u32 %v762, 2147483648
    %v838 = vxor.u32 %v764, 2147483648
    %v839 = vxor.u32 %v833, 2147483648
    %v840 = vmul.f32 %v837, 1.442695
    %v841 = vpow.pop %v840
    %v842 = vmul.f32 %v838, 1.442695
    %v843 = vpow.pop %v842
    %v844 = vmul.f32 %v839, 1.442695
    %v845 = vpow.pop %v844
    %v846 = vadd.f32 %v841, 1.0
    %v847 = vadd.f32 %v843, 1.0
    %v848 = vadd.f32 %v845, 1.0
    %v849 = vrcp.pop %v846
    %v850 = vmul.f32 1.0, %v849
    %v851 = vrcp.pop %v847
    %v852 = vmul.f32 1.0, %v851
    %v853 = vrcp.pop %v848
    %v854 = vmul.f32 1.0, %v853
    %v855 = vtanh.pop %v835
    %v856 = vmul.f32 %v852, %v688
    %v857 = vmul.f32 %v850, %v855
    %v858 = vadd.f32 %v856, %v857
    %v859 = vtanh.pop %v858
    %v860 = vmul.f32 %v854, %v859
    %v861 = vsel %vm132, %v310, %v328
    %v862 = vsel %vm133, %v312, %v330
    %v863 = vsel %vm134, %v423, %v441
    %v864 = vsel %vm135, %v425, %v443
    %865 = vmatprep.subr.mxu0 %v462
    %866 = vmatpush1.msra.mxu0 %v461
    %867 = vmatprep.subr.mxu0 %v466
    %868 = vmatpush1.msra.mxu0 %v465
    %869 = vmatprep.subr.mxu0 %v470
    %870 = vmatpush1.msra.mxu0 %v469
    %871 = vmatprep.subr.mxu0 %v474
    %872 = vmatpush1.msra.mxu0 %v473
    %873 = vmatprep.subr.mxu0 %v478
    %874 = vmatpush1.msra.mxu0 %v477
    %875 = vmatprep.subr.mxu0 %v482
    %876 = vmatpush1.msra.mxu0 %v481
    %877 = vmatprep.subr.mxu0 %v486
    %878 = vmatpush1.msra.mxu0 %v485
    %879 = vmatprep.subr.mxu0 %v490
    %880 = vmatpush1.msra.mxu0 %v489
    %881 = vmatprep.subr.mxu0 %v494
    %882 = vmatpush1.msra.mxu0 %v493
    %883 = vmatprep.subr.mxu0 %v498
    %884 = vmatpush1.msra.mxu0 %v497
    %885 = vmatprep.subr.mxu0 %v502
    %886 = vmatpush1.msra.mxu0 %v501
    %887 = vmatprep.subr.mxu0 %v506
    %888 = vmatpush1.msra.mxu0 %v505
    %889 = vmatprep.subr.mxu0 %v510
    %890 = vmatpush1.msra.mxu0 %v509
    %891 = vmatprep.subr.mxu0 %v514
    %892 = vmatpush1.msra.mxu0 %v513
    %893 = vmatprep.subr.mxu0 %v518
    %894 = vmatpush1.msra.mxu0 %v517
    %895 = vmatprep.subr.mxu0 %v522
    %896 = vmatpush1.msra.mxu0 %v521
    %897 = vmatprep.subr.mxu0 0.0
    %898 = vmatpush1.msra.mxu0 0.0
    %899 = vmatprep.subr.mxu0 0.0
    %900 = vmatpush1.msra.mxu0 0.0
    %901 = vmatprep.subr.mxu0 0.0
    %902 = vmatpush1.msra.mxu0 0.0
    %903 = vmatprep.subr.mxu0 0.0
    %904 = vmatpush1.msra.mxu0 0.0
    %905 = vmatprep.subr.mxu0 0.0
    %906 = vmatpush1.msra.mxu0 0.0
    %907 = vmatprep.subr.mxu0 0.0
    %908 = vmatpush1.msra.mxu0 0.0
    %909 = vmatprep.subr.mxu0 0.0
    %910 = vmatpush1.msra.mxu0 0.0
    %911 = vmatprep.subr.mxu0 0.0
    %912 = vmatpush1.msra.mxu0 0.0
    %913 = vmatprep.subr.mxu0 0.0
    %914 = vmatpush1.msra.mxu0 0.0
    %915 = vmatprep.subr.mxu0 0.0
    %916 = vmatpush1.msra.mxu0 0.0
    %917 = vmatprep.subr.mxu0 0.0
    %918 = vmatpush1.msra.mxu0 0.0
    %919 = vmatprep.subr.mxu0 0.0
    %920 = vmatpush1.msra.mxu0 0.0
    %921 = vmatprep.subr.mxu0 0.0
    %922 = vmatpush1.msra.mxu0 0.0
    %923 = vmatprep.subr.mxu0 0.0
    %924 = vmatpush1.msra.mxu0 0.0
    %925 = vmatprep.subr.mxu0 0.0
    %926 = vmatpush1.msra.mxu0 0.0
    %927 = vmatprep.subr.mxu0 0.0
    %928 = vmatpush1.msra.mxu0 0.0
    %929 = vmatprep.mubr.f32.mxu0 0.0
    %930 = vmatmul.mubr.f32.gmra.mrb[0].mxu0 %v860
    %v931 = vpop.f32.mrb[0].mxu0
    %v932 = vadd.f32 %v861, %v931
    %v933 = vpop.f32.mrb[0].mxu0
    %v934 = vadd.f32 %v862, %v933
    %935 = vdwg.mxu0
    %936 = vmatprep.subr.mxu0 %v464
    %937 = vmatpush1.msra.mxu0 %v463
    %938 = vmatprep.subr.mxu0 %v468
    %939 = vmatpush1.msra.mxu0 %v467
    %940 = vmatprep.subr.mxu0 %v472
    %941 = vmatpush1.msra.mxu0 %v471
    %942 = vmatprep.subr.mxu0 %v476
    %943 = vmatpush1.msra.mxu0 %v475
    %944 = vmatprep.subr.mxu0 %v480
    %945 = vmatpush1.msra.mxu0 %v479
    %946 = vmatprep.subr.mxu0 %v484
    %947 = vmatpush1.msra.mxu0 %v483
    %948 = vmatprep.subr.mxu0 %v488
    %949 = vmatpush1.msra.mxu0 %v487
    %950 = vmatprep.subr.mxu0 %v492
    %951 = vmatpush1.msra.mxu0 %v491
    %952 = vmatprep.subr.mxu0 %v496
    %953 = vmatpush1.msra.mxu0 %v495
    %954 = vmatprep.subr.mxu0 %v500
    %955 = vmatpush1.msra.mxu0 %v499
    %956 = vmatprep.subr.mxu0 %v504
    %957 = vmatpush1.msra.mxu0 %v503
    %958 = vmatprep.subr.mxu0 %v508
    %959 = vmatpush1.msra.mxu0 %v507
    %960 = vmatprep.subr.mxu0 %v512
    %961 = vmatpush1.msra.mxu0 %v511
    %962 = vmatprep.subr.mxu0 %v516
    %963 = vmatpush1.msra.mxu0 %v515
    %964 = vmatprep.subr.mxu0 %v520
    %965 = vmatpush1.msra.mxu0 %v519
    %966 = vmatprep.subr.mxu0 %v524
    %967 = vmatpush1.msra.mxu0 %v523
    %968 = vmatprep.subr.mxu0 0.0
    %969 = vmatpush1.msra.mxu0 0.0
    %970 = vmatprep.subr.mxu0 0.0
    %971 = vmatpush1.msra.mxu0 0.0
    %972 = vmatprep.subr.mxu0 0.0
    %973 = vmatpush1.msra.mxu0 0.0
    %974 = vmatprep.subr.mxu0 0.0
    %975 = vmatpush1.msra.mxu0 0.0
    %976 = vmatprep.subr.mxu0 0.0
    %977 = vmatpush1.msra.mxu0 0.0
    %978 = vmatprep.subr.mxu0 0.0
    %979 = vmatpush1.msra.mxu0 0.0
    %980 = vmatprep.subr.mxu0 0.0
    %981 = vmatpush1.msra.mxu0 0.0
    %982 = vmatprep.subr.mxu0 0.0
    %983 = vmatpush1.msra.mxu0 0.0
    %984 = vmatprep.subr.mxu0 0.0
    %985 = vmatpush1.msra.mxu0 0.0
    %986 = vmatprep.subr.mxu0 0.0
    %987 = vmatpush1.msra.mxu0 0.0
    %988 = vmatprep.subr.mxu0 0.0
    %989 = vmatpush1.msra.mxu0 0.0
    %990 = vmatprep.subr.mxu0 0.0
    %991 = vmatpush1.msra.mxu0 0.0
    %992 = vmatprep.subr.mxu0 0.0
    %993 = vmatpush1.msra.mxu0 0.0
    %994 = vmatprep.subr.mxu0 0.0
    %995 = vmatpush1.msra.mxu0 0.0
    %996 = vmatprep.subr.mxu0 0.0
    %997 = vmatpush1.msra.mxu0 0.0
    %998 = vmatprep.subr.mxu0 0.0
    %999 = vmatpush1.msra.mxu0 0.0
    %1000 = vmatprep.mubr.f32.mxu0 0.0
    %1001 = vmatmul.mubr.f32.gmra.mrb[0].mxu0 %v860
    %v1002 = vpop.f32.mrb[0].mxu0
    %v1003 = vadd.f32 %v863, %v1002
    %v1004 = vpop.f32.mrb[0].mxu0
    %v1005 = vadd.f32 %v864, %v1004
    %1006 = vdwg.mxu0
    %v1007 = vxor.u32 %v932, 2147483648
    %v1008 = vxor.u32 %v934, 2147483648
    %v1009 = vxor.u32 %v1003, 2147483648
    %v1010 = vmul.f32 %v1007, 1.442695
    %v1011 = vpow.pop %v1010
    %v1012 = vmul.f32 %v1008, 1.442695
    %v1013 = vpow.pop %v1012
    %v1014 = vmul.f32 %v1009, 1.442695
    %v1015 = vpow.pop %v1014
    %v1016 = vadd.f32 %v1011, 1.0
    %v1017 = vadd.f32 %v1013, 1.0
    %v1018 = vadd.f32 %v1015, 1.0
    %v1019 = vrcp.pop %v1016
    %v1020 = vmul.f32 1.0, %v1019
    %v1021 = vrcp.pop %v1017
    %v1022 = vmul.f32 1.0, %v1021
    %v1023 = vrcp.pop %v1018
    %v1024 = vmul.f32 1.0, %v1023
    %v1025 = vtanh.pop %v1005
    %v1026 = vmul.f32 %v1022, %v858
    %v1027 = vmul.f32 %v1020, %v1025
    %v1028 = vadd.f32 %v1026, %v1027
    %v1029 = vtanh.pop %v1028
    %v1030 = vmul.f32 %v1024, %v1029
    %v1031 = vsel %vm132, %v316, %v322
    %v1032 = vsel %vm133, %v318, %v324
    %v1033 = vsel %vm134, %v429, %v435
    %v1034 = vsel %vm135, %v431, %v437
    %1035 = vmatprep.subr.mxu0 %v462
    %1036 = vmatpush1.msra.mxu0 %v461
    %1037 = vmatprep.subr.mxu0 %v466
    %1038 = vmatpush1.msra.mxu0 %v465
    %1039 = vmatprep.subr.mxu0 %v470
    %1040 = vmatpush1.msra.mxu0 %v469
    %1041 = vmatprep.subr.mxu0 %v474
    %1042 = vmatpush1.msra.mxu0 %v473
    %1043 = vmatprep.subr.mxu0 %v478
    %1044 = vmatpush1.msra.mxu0 %v477
    %1045 = vmatprep.subr.mxu0 %v482
    %1046 = vmatpush1.msra.mxu0 %v481
    %1047 = vmatprep.subr.mxu0 %v486
    %1048 = vmatpush1.msra.mxu0 %v485
    %1049 = vmatprep.subr.mxu0 %v490
    %1050 = vmatpush1.msra.mxu0 %v489
    %1051 = vmatprep.subr.mxu0 %v494
    %1052 = vmatpush1.msra.mxu0 %v493
    %1053 = vmatprep.subr.mxu0 %v498
    %1054 = vmatpush1.msra.mxu0 %v497
    %1055 = vmatprep.subr.mxu0 %v502
    %1056 = vmatpush1.msra.mxu0 %v501
    %1057 = vmatprep.subr.mxu0 %v506
    %1058 = vmatpush1.msra.mxu0 %v505
    %1059 = vmatprep.subr.mxu0 %v510
    %1060 = vmatpush1.msra.mxu0 %v509
    %1061 = vmatprep.subr.mxu0 %v514
    %1062 = vmatpush1.msra.mxu0 %v513
    %1063 = vmatprep.subr.mxu0 %v518
    %1064 = vmatpush1.msra.mxu0 %v517
    %1065 = vmatprep.subr.mxu0 %v522
    %1066 = vmatpush1.msra.mxu0 %v521
    %1067 = vmatprep.subr.mxu0 0.0
    %1068 = vmatpush1.msra.mxu0 0.0
    %1069 = vmatprep.subr.mxu0 0.0
    %1070 = vmatpush1.msra.mxu0 0.0
    %1071 = vmatprep.subr.mxu0 0.0
    %1072 = vmatpush1.msra.mxu0 0.0
    %1073 = vmatprep.subr.mxu0 0.0
    %1074 = vmatpush1.msra.mxu0 0.0
    %1075 = vmatprep.subr.mxu0 0.0
    %1076 = vmatpush1.msra.mxu0 0.0
    %1077 = vmatprep.subr.mxu0 0.0
    %1078 = vmatpush1.msra.mxu0 0.0
    %1079 = vmatprep.subr.mxu0 0.0
    %1080 = vmatpush1.msra.mxu0 0.0
    %1081 = vmatprep.subr.mxu0 0.0
    %1082 = vmatpush1.msra.mxu0 0.0
    %1083 = vmatprep.subr.mxu0 0.0
    %1084 = vmatpush1.msra.mxu0 0.0
    %1085 = vmatprep.subr.mxu0 0.0
    %1086 = vmatpush1.msra.mxu0 0.0
    %1087 = vmatprep.subr.mxu0 0.0
    %1088 = vmatpush1.msra.mxu0 0.0
    %1089 = vmatprep.subr.mxu0 0.0
    %1090 = vmatpush1.msra.mxu0 0.0
    %1091 = vmatprep.subr.mxu0 0.0
    %1092 = vmatpush1.msra.mxu0 0.0
    %1093 = vmatprep.subr.mxu0 0.0
    %1094 = vmatpush1.msra.mxu0 0.0
    %1095 = vmatprep.subr.mxu0 0.0
    %1096 = vmatpush1.msra.mxu0 0.0
    %1097 = vmatprep.subr.mxu0 0.0
    %1098 = vmatpush1.msra.mxu0 0.0
    %1099 = vmatprep.mubr.f32.mxu0 0.0
    %1100 = vmatmul.mubr.f32.gmra.mrb[0].mxu0 %v1030
    %v1101 = vpop.f32.mrb[0].mxu0
    %v1102 = vadd.f32 %v1031, %v1101
    %v1103 = vpop.f32.mrb[0].mxu0
    %v1104 = vadd.f32 %v1032, %v1103
    %1105 = vdwg.mxu0
    %1106 = vmatprep.subr.mxu0 %v464
    %1107 = vmatpush1.msra.mxu0 %v463
    %1108 = vmatprep.subr.mxu0 %v468
    %1109 = vmatpush1.msra.mxu0 %v467
    %1110 = vmatprep.subr.mxu0 %v472
    %1111 = vmatpush1.msra.mxu0 %v471
    %1112 = vmatprep.subr.mxu0 %v476
    %1113 = vmatpush1.msra.mxu0 %v475
    %1114 = vmatprep.subr.mxu0 %v480
    %1115 = vmatpush1.msra.mxu0 %v479
    %1116 = vmatprep.subr.mxu0 %v484
    %1117 = vmatpush1.msra.mxu0 %v483
    %1118 = vmatprep.subr.mxu0 %v488
    %1119 = vmatpush1.msra.mxu0 %v487
    %1120 = vmatprep.subr.mxu0 %v492
    %1121 = vmatpush1.msra.mxu0 %v491
    %1122 = vmatprep.subr.mxu0 %v496
    %1123 = vmatpush1.msra.mxu0 %v495
    %1124 = vmatprep.subr.mxu0 %v500
    %1125 = vmatpush1.msra.mxu0 %v499
    %1126 = vmatprep.subr.mxu0 %v504
    %1127 = vmatpush1.msra.mxu0 %v503
    %1128 = vmatprep.subr.mxu0 %v508
    %1129 = vmatpush1.msra.mxu0 %v507
    %1130 = vmatprep.subr.mxu0 %v512
    %1131 = vmatpush1.msra.mxu0 %v511
    %1132 = vmatprep.subr.mxu0 %v516
    %1133 = vmatpush1.msra.mxu0 %v515
    %1134 = vmatprep.subr.mxu0 %v520
    %1135 = vmatpush1.msra.mxu0 %v519
    %1136 = vmatprep.subr.mxu0 %v524
    %1137 = vmatpush1.msra.mxu0 %v523
    %1138 = vmatprep.subr.mxu0 0.0
    %1139 = vmatpush1.msra.mxu0 0.0
    %1140 = vmatprep.subr.mxu0 0.0
    %1141 = vmatpush1.msra.mxu0 0.0
    %1142 = vmatprep.subr.mxu0 0.0
    %1143 = vmatpush1.msra.mxu0 0.0
    %1144 = vmatprep.subr.mxu0 0.0
    %1145 = vmatpush1.msra.mxu0 0.0
    %1146 = vmatprep.subr.mxu0 0.0
    %1147 = vmatpush1.msra.mxu0 0.0
    %1148 = vmatprep.subr.mxu0 0.0
    %1149 = vmatpush1.msra.mxu0 0.0
    %1150 = vmatprep.subr.mxu0 0.0
    %1151 = vmatpush1.msra.mxu0 0.0
    %1152 = vmatprep.subr.mxu0 0.0
    %1153 = vmatpush1.msra.mxu0 0.0
    %1154 = vmatprep.subr.mxu0 0.0
    %1155 = vmatpush1.msra.mxu0 0.0
    %1156 = vmatprep.subr.mxu0 0.0
    %1157 = vmatpush1.msra.mxu0 0.0
    %1158 = vmatprep.subr.mxu0 0.0
    %1159 = vmatpush1.msra.mxu0 0.0
    %1160 = vmatprep.subr.mxu0 0.0
    %1161 = vmatpush1.msra.mxu0 0.0
    %1162 = vmatprep.subr.mxu0 0.0
    %1163 = vmatpush1.msra.mxu0 0.0
    %1164 = vmatprep.subr.mxu0 0.0
    %1165 = vmatpush1.msra.mxu0 0.0
    %1166 = vmatprep.subr.mxu0 0.0
    %1167 = vmatpush1.msra.mxu0 0.0
    %1168 = vmatprep.subr.mxu0 0.0
    %1169 = vmatpush1.msra.mxu0 0.0
    %1170 = vmatprep.mubr.f32.mxu0 0.0
    %1171 = vmatmul.mubr.f32.gmra.mrb[0].mxu0 %v1030
    %v1172 = vpop.f32.mrb[0].mxu0
    %v1173 = vadd.f32 %v1033, %v1172
    %v1174 = vpop.f32.mrb[0].mxu0
    %v1175 = vadd.f32 %v1034, %v1174
    %1176 = vdwg.mxu0
    %v1177 = vxor.u32 %v1102, 2147483648
    %v1178 = vxor.u32 %v1104, 2147483648
    %v1179 = vxor.u32 %v1173, 2147483648
    %v1180 = vmul.f32 %v1177, 1.442695
    %v1181 = vpow.pop %v1180
    %v1182 = vmul.f32 %v1178, 1.442695
    %v1183 = vpow.pop %v1182
    %v1184 = vmul.f32 %v1179, 1.442695
    %v1185 = vpow.pop %v1184
    %v1186 = vadd.f32 %v1181, 1.0
    %v1187 = vadd.f32 %v1183, 1.0
    %v1188 = vadd.f32 %v1185, 1.0
    %v1189 = vrcp.pop %v1186
    %v1190 = vmul.f32 1.0, %v1189
    %v1191 = vrcp.pop %v1187
    %v1192 = vmul.f32 1.0, %v1191
    %v1193 = vrcp.pop %v1188
    %v1194 = vmul.f32 1.0, %v1193
    %v1195 = vtanh.pop %v1175
    %v1196 = vmul.f32 %v1192, %v1028
    %v1197 = vmul.f32 %v1190, %v1195
    %v1198 = vadd.f32 %v1196, %v1197
    %v1199 = vtanh.pop %v1198
    %v1200 = vmul.f32 %v1194, %v1199
    %v1201 = vsel %vm132, %v322, %v316
    %v1202 = vsel %vm133, %v324, %v318
    %v1203 = vsel %vm134, %v435, %v429
    %v1204 = vsel %vm135, %v437, %v431
    %1205 = vmatprep.subr.mxu0 %v462
    %1206 = vmatpush1.msra.mxu0 %v461
    %1207 = vmatprep.subr.mxu0 %v466
    %1208 = vmatpush1.msra.mxu0 %v465
    %1209 = vmatprep.subr.mxu0 %v470
    %1210 = vmatpush1.msra.mxu0 %v469
    %1211 = vmatprep.subr.mxu0 %v474
    %1212 = vmatpush1.msra.mxu0 %v473
    %1213 = vmatprep.subr.mxu0 %v478
    %1214 = vmatpush1.msra.mxu0 %v477
    %1215 = vmatprep.subr.mxu0 %v482
    %1216 = vmatpush1.msra.mxu0 %v481
    %1217 = vmatprep.subr.mxu0 %v486
    %1218 = vmatpush1.msra.mxu0 %v485
    %1219 = vmatprep.subr.mxu0 %v490
    %1220 = vmatpush1.msra.mxu0 %v489
    %1221 = vmatprep.subr.mxu0 %v494
    %1222 = vmatpush1.msra.mxu0 %v493
    %1223 = vmatprep.subr.mxu0 %v498
    %1224 = vmatpush1.msra.mxu0 %v497
    %1225 = vmatprep.subr.mxu0 %v502
    %1226 = vmatpush1.msra.mxu0 %v501
    %1227 = vmatprep.subr.mxu0 %v506
    %1228 = vmatpush1.msra.mxu0 %v505
    %1229 = vmatprep.subr.mxu0 %v510
    %1230 = vmatpush1.msra.mxu0 %v509
    %1231 = vmatprep.subr.mxu0 %v514
    %1232 = vmatpush1.msra.mxu0 %v513
    %1233 = vmatprep.subr.mxu0 %v518
    %1234 = vmatpush1.msra.mxu0 %v517
    %1235 = vmatprep.subr.mxu0 %v522
    %1236 = vmatpush1.msra.mxu0 %v521
    %1237 = vmatprep.subr.mxu0 0.0
    %1238 = vmatpush1.msra.mxu0 0.0
    %1239 = vmatprep.subr.mxu0 0.0
    %1240 = vmatpush1.msra.mxu0 0.0
    %1241 = vmatprep.subr.mxu0 0.0
    %1242 = vmatpush1.msra.mxu0 0.0
    %1243 = vmatprep.subr.mxu0 0.0
    %1244 = vmatpush1.msra.mxu0 0.0
    %1245 = vmatprep.subr.mxu0 0.0
    %1246 = vmatpush1.msra.mxu0 0.0
    %1247 = vmatprep.subr.mxu0 0.0
    %1248 = vmatpush1.msra.mxu0 0.0
    %1249 = vmatprep.subr.mxu0 0.0
    %1250 = vmatpush1.msra.mxu0 0.0
    %1251 = vmatprep.subr.mxu0 0.0
    %1252 = vmatpush1.msra.mxu0 0.0
    %1253 = vmatprep.subr.mxu0 0.0
    %1254 = vmatpush1.msra.mxu0 0.0
    %1255 = vmatprep.subr.mxu0 0.0
    %1256 = vmatpush1.msra.mxu0 0.0
    %1257 = vmatprep.subr.mxu0 0.0
    %1258 = vmatpush1.msra.mxu0 0.0
    %1259 = vmatprep.subr.mxu0 0.0
    %1260 = vmatpush1.msra.mxu0 0.0
    %1261 = vmatprep.subr.mxu0 0.0
    %1262 = vmatpush1.msra.mxu0 0.0
    %1263 = vmatprep.subr.mxu0 0.0
    %1264 = vmatpush1.msra.mxu0 0.0
    %1265 = vmatprep.subr.mxu0 0.0
    %1266 = vmatpush1.msra.mxu0 0.0
    %1267 = vmatprep.subr.mxu0 0.0
    %1268 = vmatpush1.msra.mxu0 0.0
    %1269 = vmatprep.mubr.f32.mxu0 0.0
    %1270 = vmatmul.mubr.f32.gmra.mrb[0].mxu0 %v1200
    %v1271 = vpop.f32.mrb[0].mxu0
    %v1272 = vadd.f32 %v1201, %v1271
    %v1273 = vpop.f32.mrb[0].mxu0
    %v1274 = vadd.f32 %v1202, %v1273
    %1275 = vdwg.mxu0
    %1276 = vmatprep.subr.mxu0 %v464
    %1277 = vmatpush1.msra.mxu0 %v463
    %1278 = vmatprep.subr.mxu0 %v468
    %1279 = vmatpush1.msra.mxu0 %v467
    %1280 = vmatprep.subr.mxu0 %v472
    %1281 = vmatpush1.msra.mxu0 %v471
    %1282 = vmatprep.subr.mxu0 %v476
    %1283 = vmatpush1.msra.mxu0 %v475
    %1284 = vmatprep.subr.mxu0 %v480
    %1285 = vmatpush1.msra.mxu0 %v479
    %1286 = vmatprep.subr.mxu0 %v484
    %1287 = vmatpush1.msra.mxu0 %v483
    %1288 = vmatprep.subr.mxu0 %v488
    %1289 = vmatpush1.msra.mxu0 %v487
    %1290 = vmatprep.subr.mxu0 %v492
    %1291 = vmatpush1.msra.mxu0 %v491
    %1292 = vmatprep.subr.mxu0 %v496
    %1293 = vmatpush1.msra.mxu0 %v495
    %1294 = vmatprep.subr.mxu0 %v500
    %1295 = vmatpush1.msra.mxu0 %v499
    %1296 = vmatprep.subr.mxu0 %v504
    %1297 = vmatpush1.msra.mxu0 %v503
    %1298 = vmatprep.subr.mxu0 %v508
    %1299 = vmatpush1.msra.mxu0 %v507
    %1300 = vmatprep.subr.mxu0 %v512
    %1301 = vmatpush1.msra.mxu0 %v511
    %1302 = vmatprep.subr.mxu0 %v516
    %1303 = vmatpush1.msra.mxu0 %v515
    %1304 = vmatprep.subr.mxu0 %v520
    %1305 = vmatpush1.msra.mxu0 %v519
    %1306 = vmatprep.subr.mxu0 %v524
    %1307 = vmatpush1.msra.mxu0 %v523
    %1308 = vmatprep.subr.mxu0 0.0
    %1309 = vmatpush1.msra.mxu0 0.0
    %1310 = vmatprep.subr.mxu0 0.0
    %1311 = vmatpush1.msra.mxu0 0.0
    %1312 = vmatprep.subr.mxu0 0.0
    %1313 = vmatpush1.msra.mxu0 0.0
    %1314 = vmatprep.subr.mxu0 0.0
    %1315 = vmatpush1.msra.mxu0 0.0
    %1316 = vmatprep.subr.mxu0 0.0
    %1317 = vmatpush1.msra.mxu0 0.0
    %1318 = vmatprep.subr.mxu0 0.0
    %1319 = vmatpush1.msra.mxu0 0.0
    %1320 = vmatprep.subr.mxu0 0.0
    %1321 = vmatpush1.msra.mxu0 0.0
    %1322 = vmatprep.subr.mxu0 0.0
    %1323 = vmatpush1.msra.mxu0 0.0
    %1324 = vmatprep.subr.mxu0 0.0
    %1325 = vmatpush1.msra.mxu0 0.0
    %1326 = vmatprep.subr.mxu0 0.0
    %1327 = vmatpush1.msra.mxu0 0.0
    %1328 = vmatprep.subr.mxu0 0.0
    %1329 = vmatpush1.msra.mxu0 0.0
    %1330 = vmatprep.subr.mxu0 0.0
    %1331 = vmatpush1.msra.mxu0 0.0
    %1332 = vmatprep.subr.mxu0 0.0
    %1333 = vmatpush1.msra.mxu0 0.0
    %1334 = vmatprep.subr.mxu0 0.0
    %1335 = vmatpush1.msra.mxu0 0.0
    %1336 = vmatprep.subr.mxu0 0.0
    %1337 = vmatpush1.msra.mxu0 0.0
    %1338 = vmatprep.subr.mxu0 0.0
    %1339 = vmatpush1.msra.mxu0 0.0
    %1340 = vmatprep.mubr.f32.mxu0 0.0
    %1341 = vmatmul.mubr.f32.gmra.mrb[0].mxu0 %v1200
    %v1342 = vpop.f32.mrb[0].mxu0
    %v1343 = vadd.f32 %v1203, %v1342
    %v1344 = vpop.f32.mrb[0].mxu0
    %v1345 = vadd.f32 %v1204, %v1344
    %1346 = vdwg.mxu0
    %v1347 = vxor.u32 %v1272, 2147483648
    %v1348 = vxor.u32 %v1274, 2147483648
    %v1349 = vxor.u32 %v1343, 2147483648
    %v1350 = vmul.f32 %v1347, 1.442695
    %v1351 = vpow.pop %v1350
    %v1352 = vmul.f32 %v1348, 1.442695
    %v1353 = vpow.pop %v1352
    %v1354 = vmul.f32 %v1349, 1.442695
    %v1355 = vpow.pop %v1354
    %v1356 = vadd.f32 %v1351, 1.0
    %v1357 = vadd.f32 %v1353, 1.0
    %v1358 = vadd.f32 %v1355, 1.0
    %v1359 = vrcp.pop %v1356
    %v1360 = vmul.f32 1.0, %v1359
    %v1361 = vrcp.pop %v1357
    %v1362 = vmul.f32 1.0, %v1361
    %v1363 = vrcp.pop %v1358
    %v1364 = vmul.f32 1.0, %v1363
    %v1365 = vtanh.pop %v1345
    %v1366 = vmul.f32 %v1362, %v1198
    %v1367 = vmul.f32 %v1360, %v1365
    %v1368 = vadd.f32 %v1366, %v1367
    %v1369 = vtanh.pop %v1368
    %v1370 = vmul.f32 %v1364, %v1369
    %v1371 = vsel %vm132, %v328, %v310
    %v1372 = vsel %vm133, %v330, %v312
    %v1373 = vsel %vm134, %v441, %v423
    %v1374 = vsel %vm135, %v443, %v425
    %1375 = vmatprep.subr.mxu0 %v462
    %1376 = vmatpush1.msra.mxu0 %v461
    %1377 = vmatprep.subr.mxu0 %v466
    %1378 = vmatpush1.msra.mxu0 %v465
    %1379 = vmatprep.subr.mxu0 %v470
    %1380 = vmatpush1.msra.mxu0 %v469
    %1381 = vmatprep.subr.mxu0 %v474
    %1382 = vmatpush1.msra.mxu0 %v473
    %1383 = vmatprep.subr.mxu0 %v478
    %1384 = vmatpush1.msra.mxu0 %v477
    %1385 = vmatprep.subr.mxu0 %v482
    %1386 = vmatpush1.msra.mxu0 %v481
    %1387 = vmatprep.subr.mxu0 %v486
    %1388 = vmatpush1.msra.mxu0 %v485
    %1389 = vmatprep.subr.mxu0 %v490
    %1390 = vmatpush1.msra.mxu0 %v489
    %1391 = vmatprep.subr.mxu0 %v494
    %1392 = vmatpush1.msra.mxu0 %v493
    %1393 = vmatprep.subr.mxu0 %v498
    %1394 = vmatpush1.msra.mxu0 %v497
    %1395 = vmatprep.subr.mxu0 %v502
    %1396 = vmatpush1.msra.mxu0 %v501
    %1397 = vmatprep.subr.mxu0 %v506
    %1398 = vmatpush1.msra.mxu0 %v505
    %1399 = vmatprep.subr.mxu0 %v510
    %1400 = vmatpush1.msra.mxu0 %v509
    %1401 = vmatprep.subr.mxu0 %v514
    %1402 = vmatpush1.msra.mxu0 %v513
    %1403 = vmatprep.subr.mxu0 %v518
    %1404 = vmatpush1.msra.mxu0 %v517
    %1405 = vmatprep.subr.mxu0 %v522
    %1406 = vmatpush1.msra.mxu0 %v521
    %1407 = vmatprep.subr.mxu0 0.0
    %1408 = vmatpush1.msra.mxu0 0.0
    %1409 = vmatprep.subr.mxu0 0.0
    %1410 = vmatpush1.msra.mxu0 0.0
    %1411 = vmatprep.subr.mxu0 0.0
    %1412 = vmatpush1.msra.mxu0 0.0
    %1413 = vmatprep.subr.mxu0 0.0
    %1414 = vmatpush1.msra.mxu0 0.0
    %1415 = vmatprep.subr.mxu0 0.0
    %1416 = vmatpush1.msra.mxu0 0.0
    %1417 = vmatprep.subr.mxu0 0.0
    %1418 = vmatpush1.msra.mxu0 0.0
    %1419 = vmatprep.subr.mxu0 0.0
    %1420 = vmatpush1.msra.mxu0 0.0
    %1421 = vmatprep.subr.mxu0 0.0
    %1422 = vmatpush1.msra.mxu0 0.0
    %1423 = vmatprep.subr.mxu0 0.0
    %1424 = vmatpush1.msra.mxu0 0.0
    %1425 = vmatprep.subr.mxu0 0.0
    %1426 = vmatpush1.msra.mxu0 0.0
    %1427 = vmatprep.subr.mxu0 0.0
    %1428 = vmatpush1.msra.mxu0 0.0
    %1429 = vmatprep.subr.mxu0 0.0
    %1430 = vmatpush1.msra.mxu0 0.0
    %1431 = vmatprep.subr.mxu0 0.0
    %1432 = vmatpush1.msra.mxu0 0.0
    %1433 = vmatprep.subr.mxu0 0.0
    %1434 = vmatpush1.msra.mxu0 0.0
    %1435 = vmatprep.subr.mxu0 0.0
    %1436 = vmatpush1.msra.mxu0 0.0
    %1437 = vmatprep.subr.mxu0 0.0
    %1438 = vmatpush1.msra.mxu0 0.0
    %1439 = vmatprep.mubr.f32.mxu0 0.0
    %1440 = vmatmul.mubr.f32.gmra.mrb[0].mxu0 %v1370
    %v1441 = vpop.f32.mrb[0].mxu0
    %v1442 = vadd.f32 %v1371, %v1441
    %v1443 = vpop.f32.mrb[0].mxu0
    %v1444 = vadd.f32 %v1372, %v1443
    %1445 = vdwg.mxu0
    %1446 = vmatprep.subr.mxu0 %v464
    %1447 = vmatpush1.msra.mxu0 %v463
    %1448 = vmatprep.subr.mxu0 %v468
    %1449 = vmatpush1.msra.mxu0 %v467
    %1450 = vmatprep.subr.mxu0 %v472
    %1451 = vmatpush1.msra.mxu0 %v471
    %1452 = vmatprep.subr.mxu0 %v476
    %1453 = vmatpush1.msra.mxu0 %v475
    %1454 = vmatprep.subr.mxu0 %v480
    %1455 = vmatpush1.msra.mxu0 %v479
    %1456 = vmatprep.subr.mxu0 %v484
    %1457 = vmatpush1.msra.mxu0 %v483
    %1458 = vmatprep.subr.mxu0 %v488
    %1459 = vmatpush1.msra.mxu0 %v487
    %1460 = vmatprep.subr.mxu0 %v492
    %1461 = vmatpush1.msra.mxu0 %v491
    %1462 = vmatprep.subr.mxu0 %v496
    %1463 = vmatpush1.msra.mxu0 %v495
    %1464 = vmatprep.subr.mxu0 %v500
    %1465 = vmatpush1.msra.mxu0 %v499
    %1466 = vmatprep.subr.mxu0 %v504
    %1467 = vmatpush1.msra.mxu0 %v503
    %1468 = vmatprep.subr.mxu0 %v508
    %1469 = vmatpush1.msra.mxu0 %v507
    %1470 = vmatprep.subr.mxu0 %v512
    %1471 = vmatpush1.msra.mxu0 %v511
    %1472 = vmatprep.subr.mxu0 %v516
    %1473 = vmatpush1.msra.mxu0 %v515
    %1474 = vmatprep.subr.mxu0 %v520
    %1475 = vmatpush1.msra.mxu0 %v519
    %1476 = vmatprep.subr.mxu0 %v524
    %1477 = vmatpush1.msra.mxu0 %v523
    %1478 = vmatprep.subr.mxu0 0.0
    %1479 = vmatpush1.msra.mxu0 0.0
    %1480 = vmatprep.subr.mxu0 0.0
    %1481 = vmatpush1.msra.mxu0 0.0
    %1482 = vmatprep.subr.mxu0 0.0
    %1483 = vmatpush1.msra.mxu0 0.0
    %1484 = vmatprep.subr.mxu0 0.0
    %1485 = vmatpush1.msra.mxu0 0.0
    %1486 = vmatprep.subr.mxu0 0.0
    %1487 = vmatpush1.msra.mxu0 0.0
    %1488 = vmatprep.subr.mxu0 0.0
    %1489 = vmatpush1.msra.mxu0 0.0
    %1490 = vmatprep.subr.mxu0 0.0
    %1491 = vmatpush1.msra.mxu0 0.0
    %1492 = vmatprep.subr.mxu0 0.0
    %1493 = vmatpush1.msra.mxu0 0.0
    %1494 = vmatprep.subr.mxu0 0.0
    %1495 = vmatpush1.msra.mxu0 0.0
    %1496 = vmatprep.subr.mxu0 0.0
    %1497 = vmatpush1.msra.mxu0 0.0
    %1498 = vmatprep.subr.mxu0 0.0
    %1499 = vmatpush1.msra.mxu0 0.0
    %1500 = vmatprep.subr.mxu0 0.0
    %1501 = vmatpush1.msra.mxu0 0.0
    %1502 = vmatprep.subr.mxu0 0.0
    %1503 = vmatpush1.msra.mxu0 0.0
    %1504 = vmatprep.subr.mxu0 0.0
    %1505 = vmatpush1.msra.mxu0 0.0
    %1506 = vmatprep.subr.mxu0 0.0
    %1507 = vmatpush1.msra.mxu0 0.0
    %1508 = vmatprep.subr.mxu0 0.0
    %1509 = vmatpush1.msra.mxu0 0.0
    %1510 = vmatprep.mubr.f32.mxu0 0.0
    %1511 = vmatmul.mubr.f32.gmra.mrb[0].mxu0 %v1370
    %v1512 = vpop.f32.mrb[0].mxu0
    %v1513 = vadd.f32 %v1373, %v1512
    %v1514 = vpop.f32.mrb[0].mxu0
    %v1515 = vadd.f32 %v1374, %v1514
    %1516 = vdwg.mxu0
    %v1517 = vxor.u32 %v1442, 2147483648
    %v1518 = vxor.u32 %v1444, 2147483648
    %v1519 = vxor.u32 %v1513, 2147483648
    %v1520 = vmul.f32 %v1517, 1.442695
    %v1521 = vpow.pop %v1520
    %v1522 = vmul.f32 %v1518, 1.442695
    %v1523 = vpow.pop %v1522
    %v1524 = vmul.f32 %v1519, 1.442695
    %v1525 = vpow.pop %v1524
    %v1526 = vadd.f32 %v1521, 1.0
    %v1527 = vadd.f32 %v1523, 1.0
    %v1528 = vadd.f32 %v1525, 1.0
    %v1529 = vrcp.pop %v1526
    %v1530 = vmul.f32 1.0, %v1529
    %v1531 = vrcp.pop %v1527
    %v1532 = vmul.f32 1.0, %v1531
    %v1533 = vrcp.pop %v1528
    %v1534 = vmul.f32 1.0, %v1533
    %v1535 = vtanh.pop %v1515
    %v1536 = vmul.f32 %v1532, %v1368
    %v1537 = vmul.f32 %v1530, %v1535
    %v1538 = vadd.f32 %v1536, %v1537
    %v1539 = vtanh.pop %v1538
    %v1540 = vmul.f32 %v1534, %v1539
    %v1541 = vsel %vm132, %v334, %v304
    %v1542 = vsel %vm133, %v336, %v306
    %v1543 = vsel %vm134, %v447, %v417
    %v1544 = vsel %vm135, %v449, %v419
    %1545 = vmatprep.subr.mxu0 %v462
    %1546 = vmatpush1.msra.mxu0 %v461
    %1547 = vmatprep.subr.mxu0 %v466
    %1548 = vmatpush1.msra.mxu0 %v465
    %1549 = vmatprep.subr.mxu0 %v470
    %1550 = vmatpush1.msra.mxu0 %v469
    %1551 = vmatprep.subr.mxu0 %v474
    %1552 = vmatpush1.msra.mxu0 %v473
    %1553 = vmatprep.subr.mxu0 %v478
    %1554 = vmatpush1.msra.mxu0 %v477
    %1555 = vmatprep.subr.mxu0 %v482
    %1556 = vmatpush1.msra.mxu0 %v481
    %1557 = vmatprep.subr.mxu0 %v486
    %1558 = vmatpush1.msra.mxu0 %v485
    %1559 = vmatprep.subr.mxu0 %v490
    %1560 = vmatpush1.msra.mxu0 %v489
    %1561 = vmatprep.subr.mxu0 %v494
    %1562 = vmatpush1.msra.mxu0 %v493
    %1563 = vmatprep.subr.mxu0 %v498
    %1564 = vmatpush1.msra.mxu0 %v497
    %1565 = vmatprep.subr.mxu0 %v502
    %1566 = vmatpush1.msra.mxu0 %v501
    %1567 = vmatprep.subr.mxu0 %v506
    %1568 = vmatpush1.msra.mxu0 %v505
    %1569 = vmatprep.subr.mxu0 %v510
    %1570 = vmatpush1.msra.mxu0 %v509
    %1571 = vmatprep.subr.mxu0 %v514
    %1572 = vmatpush1.msra.mxu0 %v513
    %1573 = vmatprep.subr.mxu0 %v518
    %1574 = vmatpush1.msra.mxu0 %v517
    %1575 = vmatprep.subr.mxu0 %v522
    %1576 = vmatpush1.msra.mxu0 %v521
    %1577 = vmatprep.subr.mxu0 0.0
    %1578 = vmatpush1.msra.mxu0 0.0
    %1579 = vmatprep.subr.mxu0 0.0
    %1580 = vmatpush1.msra.mxu0 0.0
    %1581 = vmatprep.subr.mxu0 0.0
    %1582 = vmatpush1.msra.mxu0 0.0
    %1583 = vmatprep.subr.mxu0 0.0
    %1584 = vmatpush1.msra.mxu0 0.0
    %1585 = vmatprep.subr.mxu0 0.0
    %1586 = vmatpush1.msra.mxu0 0.0
    %1587 = vmatprep.subr.mxu0 0.0
    %1588 = vmatpush1.msra.mxu0 0.0
    %1589 = vmatprep.subr.mxu0 0.0
    %1590 = vmatpush1.msra.mxu0 0.0
    %1591 = vmatprep.subr.mxu0 0.0
    %1592 = vmatpush1.msra.mxu0 0.0
    %1593 = vmatprep.subr.mxu0 0.0
    %1594 = vmatpush1.msra.mxu0 0.0
    %1595 = vmatprep.subr.mxu0 0.0
    %1596 = vmatpush1.msra.mxu0 0.0
    %1597 = vmatprep.subr.mxu0 0.0
    %1598 = vmatpush1.msra.mxu0 0.0
    %1599 = vmatprep.subr.mxu0 0.0
    %1600 = vmatpush1.msra.mxu0 0.0
    %1601 = vmatprep.subr.mxu0 0.0
    %1602 = vmatpush1.msra.mxu0 0.0
    %1603 = vmatprep.subr.mxu0 0.0
    %1604 = vmatpush1.msra.mxu0 0.0
    %1605 = vmatprep.subr.mxu0 0.0
    %1606 = vmatpush1.msra.mxu0 0.0
    %1607 = vmatprep.subr.mxu0 0.0
    %1608 = vmatpush1.msra.mxu0 0.0
    %1609 = vmatprep.mubr.f32.mxu0 0.0
    %1610 = vmatmul.mubr.f32.gmra.mrb[0].mxu0 %v1540
    %v1611 = vpop.f32.mrb[0].mxu0
    %v1612 = vadd.f32 %v1541, %v1611
    %v1613 = vpop.f32.mrb[0].mxu0
    %v1614 = vadd.f32 %v1542, %v1613
    %1615 = vdwg.mxu0
    %1616 = vmatprep.subr.mxu0 %v464
    %1617 = vmatpush1.msra.mxu0 %v463
    %1618 = vmatprep.subr.mxu0 %v468
    %1619 = vmatpush1.msra.mxu0 %v467
    %1620 = vmatprep.subr.mxu0 %v472
    %1621 = vmatpush1.msra.mxu0 %v471
    %1622 = vmatprep.subr.mxu0 %v476
    %1623 = vmatpush1.msra.mxu0 %v475
    %1624 = vmatprep.subr.mxu0 %v480
    %1625 = vmatpush1.msra.mxu0 %v479
    %1626 = vmatprep.subr.mxu0 %v484
    %1627 = vmatpush1.msra.mxu0 %v483
    %1628 = vmatprep.subr.mxu0 %v488
    %1629 = vmatpush1.msra.mxu0 %v487
    %1630 = vmatprep.subr.mxu0 %v492
    %1631 = vmatpush1.msra.mxu0 %v491
    %1632 = vmatprep.subr.mxu0 %v496
    %1633 = vmatpush1.msra.mxu0 %v495
    %1634 = vmatprep.subr.mxu0 %v500
    %1635 = vmatpush1.msra.mxu0 %v499
    %1636 = vmatprep.subr.mxu0 %v504
    %1637 = vmatpush1.msra.mxu0 %v503
    %1638 = vmatprep.subr.mxu0 %v508
    %1639 = vmatpush1.msra.mxu0 %v507
    %1640 = vmatprep.subr.mxu0 %v512
    %1641 = vmatpush1.msra.mxu0 %v511
    %1642 = vmatprep.subr.mxu0 %v516
    %1643 = vmatpush1.msra.mxu0 %v515
    %1644 = vmatprep.subr.mxu0 %v520
    %1645 = vmatpush1.msra.mxu0 %v519
    %1646 = vmatprep.subr.mxu0 %v524
    %1647 = vmatpush1.msra.mxu0 %v523
    %1648 = vmatprep.subr.mxu0 0.0
    %1649 = vmatpush1.msra.mxu0 0.0
    %1650 = vmatprep.subr.mxu0 0.0
    %1651 = vmatpush1.msra.mxu0 0.0
    %1652 = vmatprep.subr.mxu0 0.0
    %1653 = vmatpush1.msra.mxu0 0.0
    %1654 = vmatprep.subr.mxu0 0.0
    %1655 = vmatpush1.msra.mxu0 0.0
    %1656 = vmatprep.subr.mxu0 0.0
    %1657 = vmatpush1.msra.mxu0 0.0
    %1658 = vmatprep.subr.mxu0 0.0
    %1659 = vmatpush1.msra.mxu0 0.0
    %1660 = vmatprep.subr.mxu0 0.0
    %1661 = vmatpush1.msra.mxu0 0.0
    %1662 = vmatprep.subr.mxu0 0.0
    %1663 = vmatpush1.msra.mxu0 0.0
    %1664 = vmatprep.subr.mxu0 0.0
    %1665 = vmatpush1.msra.mxu0 0.0
    %1666 = vmatprep.subr.mxu0 0.0
    %1667 = vmatpush1.msra.mxu0 0.0
    %1668 = vmatprep.subr.mxu0 0.0
    %1669 = vmatpush1.msra.mxu0 0.0
    %1670 = vmatprep.subr.mxu0 0.0
    %1671 = vmatpush1.msra.mxu0 0.0
    %1672 = vmatprep.subr.mxu0 0.0
    %1673 = vmatpush1.msra.mxu0 0.0
    %1674 = vmatprep.subr.mxu0 0.0
    %1675 = vmatpush1.msra.mxu0 0.0
    %1676 = vmatprep.subr.mxu0 0.0
    %1677 = vmatpush1.msra.mxu0 0.0
    %1678 = vmatprep.subr.mxu0 0.0
    %1679 = vmatpush1.msra.mxu0 0.0
    %1680 = vmatprep.mubr.f32.mxu0 0.0
    %1681 = vmatmul.mubr.f32.gmra.mrb[0].mxu0 %v1540
    %v1682 = vpop.f32.mrb[0].mxu0
    %v1683 = vadd.f32 %v1543, %v1682
    %v1684 = vpop.f32.mrb[0].mxu0
    %v1685 = vadd.f32 %v1544, %v1684
    %1686 = vdwg.mxu0
    %v1687 = vxor.u32 %v1612, 2147483648
    %v1688 = vxor.u32 %v1614, 2147483648
    %v1689 = vxor.u32 %v1683, 2147483648
    %v1690 = vmul.f32 %v1687, 1.442695
    %v1691 = vpow.pop %v1690
    %v1692 = vmul.f32 %v1688, 1.442695
    %v1693 = vpow.pop %v1692
    %v1694 = vmul.f32 %v1689, 1.442695
    %v1695 = vpow.pop %v1694
    %v1696 = vadd.f32 %v1691, 1.0
    %v1697 = vadd.f32 %v1693, 1.0
    %v1698 = vadd.f32 %v1695, 1.0
    %v1699 = vrcp.pop %v1696
    %v1700 = vmul.f32 1.0, %v1699
    %v1701 = vrcp.pop %v1697
    %v1702 = vmul.f32 1.0, %v1701
    %v1703 = vrcp.pop %v1698
    %v1704 = vmul.f32 1.0, %v1703
    %v1705 = vtanh.pop %v1685
    %v1706 = vmul.f32 %v1702, %v1538
    %v1707 = vmul.f32 %v1700, %v1705
    %v1708 = vadd.f32 %v1706, %v1707
    %v1709 = vtanh.pop %v1708
    %v1710 = vmul.f32 %v1704, %v1709
    %v1711 = vsel %vm132, %v340, %v298
    %v1712 = vsel %vm133, %v342, %v300
    %v1713 = vsel %vm134, %v453, %v411
    %v1714 = vsel %vm135, %v455, %v413
    %1715 = vmatprep.subr.mxu0 %v462
    %1716 = vmatpush1.msra.mxu0 %v461
    %1717 = vmatprep.subr.mxu0 %v466
    %1718 = vmatpush1.msra.mxu0 %v465
    %1719 = vmatprep.subr.mxu0 %v470
    %1720 = vmatpush1.msra.mxu0 %v469
    %1721 = vmatprep.subr.mxu0 %v474
    %1722 = vmatpush1.msra.mxu0 %v473
    %1723 = vmatprep.subr.mxu0 %v478
    %1724 = vmatpush1.msra.mxu0 %v477
    %1725 = vmatprep.subr.mxu0 %v482
    %1726 = vmatpush1.msra.mxu0 %v481
    %1727 = vmatprep.subr.mxu0 %v486
    %1728 = vmatpush1.msra.mxu0 %v485
    %1729 = vmatprep.subr.mxu0 %v490
    %1730 = vmatpush1.msra.mxu0 %v489
    %1731 = vmatprep.subr.mxu0 %v494
    %1732 = vmatpush1.msra.mxu0 %v493
    %1733 = vmatprep.subr.mxu0 %v498
    %1734 = vmatpush1.msra.mxu0 %v497
    %1735 = vmatprep.subr.mxu0 %v502
    %1736 = vmatpush1.msra.mxu0 %v501
    %1737 = vmatprep.subr.mxu0 %v506
    %1738 = vmatpush1.msra.mxu0 %v505
    %1739 = vmatprep.subr.mxu0 %v510
    %1740 = vmatpush1.msra.mxu0 %v509
    %1741 = vmatprep.subr.mxu0 %v514
    %1742 = vmatpush1.msra.mxu0 %v513
    %1743 = vmatprep.subr.mxu0 %v518
    %1744 = vmatpush1.msra.mxu0 %v517
    %1745 = vmatprep.subr.mxu0 %v522
    %1746 = vmatpush1.msra.mxu0 %v521
    %1747 = vmatprep.subr.mxu0 0.0
    %1748 = vmatpush1.msra.mxu0 0.0
    %1749 = vmatprep.subr.mxu0 0.0
    %1750 = vmatpush1.msra.mxu0 0.0
    %1751 = vmatprep.subr.mxu0 0.0
    %1752 = vmatpush1.msra.mxu0 0.0
    %1753 = vmatprep.subr.mxu0 0.0
    %1754 = vmatpush1.msra.mxu0 0.0
    %1755 = vmatprep.subr.mxu0 0.0
    %1756 = vmatpush1.msra.mxu0 0.0
    %1757 = vmatprep.subr.mxu0 0.0
    %1758 = vmatpush1.msra.mxu0 0.0
    %1759 = vmatprep.subr.mxu0 0.0
    %1760 = vmatpush1.msra.mxu0 0.0
    %1761 = vmatprep.subr.mxu0 0.0
    %1762 = vmatpush1.msra.mxu0 0.0
    %1763 = vmatprep.subr.mxu0 0.0
    %1764 = vmatpush1.msra.mxu0 0.0
    %1765 = vmatprep.subr.mxu0 0.0
    %1766 = vmatpush1.msra.mxu0 0.0
    %1767 = vmatprep.subr.mxu0 0.0
    %1768 = vmatpush1.msra.mxu0 0.0
    %1769 = vmatprep.subr.mxu0 0.0
    %1770 = vmatpush1.msra.mxu0 0.0
    %1771 = vmatprep.subr.mxu0 0.0
    %1772 = vmatpush1.msra.mxu0 0.0
    %1773 = vmatprep.subr.mxu0 0.0
    %1774 = vmatpush1.msra.mxu0 0.0
    %1775 = vmatprep.subr.mxu0 0.0
    %1776 = vmatpush1.msra.mxu0 0.0
    %1777 = vmatprep.subr.mxu0 0.0
    %1778 = vmatpush1.msra.mxu0 0.0
    %1779 = vmatprep.mubr.f32.mxu0 0.0
    %1780 = vmatmul.mubr.f32.gmra.mrb[0].mxu0 %v1710
    %v1781 = vpop.f32.mrb[0].mxu0
    %v1782 = vadd.f32 %v1711, %v1781
    %v1783 = vpop.f32.mrb[0].mxu0
    %v1784 = vadd.f32 %v1712, %v1783
    %1785 = vdwg.mxu0
    %1786 = vmatprep.subr.mxu0 %v464
    %1787 = vmatpush1.msra.mxu0 %v463
    %1788 = vmatprep.subr.mxu0 %v468
    %1789 = vmatpush1.msra.mxu0 %v467
    %1790 = vmatprep.subr.mxu0 %v472
    %1791 = vmatpush1.msra.mxu0 %v471
    %1792 = vmatprep.subr.mxu0 %v476
    %1793 = vmatpush1.msra.mxu0 %v475
    %1794 = vmatprep.subr.mxu0 %v480
    %1795 = vmatpush1.msra.mxu0 %v479
    %1796 = vmatprep.subr.mxu0 %v484
    %1797 = vmatpush1.msra.mxu0 %v483
    %1798 = vmatprep.subr.mxu0 %v488
    %1799 = vmatpush1.msra.mxu0 %v487
    %1800 = vmatprep.subr.mxu0 %v492
    %1801 = vmatpush1.msra.mxu0 %v491
    %1802 = vmatprep.subr.mxu0 %v496
    %1803 = vmatpush1.msra.mxu0 %v495
    %1804 = vmatprep.subr.mxu0 %v500
    %1805 = vmatpush1.msra.mxu0 %v499
    %1806 = vmatprep.subr.mxu0 %v504
    %1807 = vmatpush1.msra.mxu0 %v503
    %1808 = vmatprep.subr.mxu0 %v508
    %1809 = vmatpush1.msra.mxu0 %v507
    %1810 = vmatprep.subr.mxu0 %v512
    %1811 = vmatpush1.msra.mxu0 %v511
    %1812 = vmatprep.subr.mxu0 %v516
    %1813 = vmatpush1.msra.mxu0 %v515
    %1814 = vmatprep.subr.mxu0 %v520
    %1815 = vmatpush1.msra.mxu0 %v519
    %1816 = vmatprep.subr.mxu0 %v524
    %1817 = vmatpush1.msra.mxu0 %v523
    %1818 = vmatprep.subr.mxu0 0.0
    %1819 = vmatpush1.msra.mxu0 0.0
    %1820 = vmatprep.subr.mxu0 0.0
    %1821 = vmatpush1.msra.mxu0 0.0
    %1822 = vmatprep.subr.mxu0 0.0
    %1823 = vmatpush1.msra.mxu0 0.0
    %1824 = vmatprep.subr.mxu0 0.0
    %1825 = vmatpush1.msra.mxu0 0.0
    %1826 = vmatprep.subr.mxu0 0.0
    %1827 = vmatpush1.msra.mxu0 0.0
    %1828 = vmatprep.subr.mxu0 0.0
    %1829 = vmatpush1.msra.mxu0 0.0
    %1830 = vmatprep.subr.mxu0 0.0
    %1831 = vmatpush1.msra.mxu0 0.0
    %1832 = vmatprep.subr.mxu0 0.0
    %1833 = vmatpush1.msra.mxu0 0.0
    %1834 = vmatprep.subr.mxu0 0.0
    %1835 = vmatpush1.msra.mxu0 0.0
    %1836 = vmatprep.subr.mxu0 0.0
    %1837 = vmatpush1.msra.mxu0 0.0
    %1838 = vmatprep.subr.mxu0 0.0
    %1839 = vmatpush1.msra.mxu0 0.0
    %1840 = vmatprep.subr.mxu0 0.0
    %1841 = vmatpush1.msra.mxu0 0.0
    %1842 = vmatprep.subr.mxu0 0.0
    %1843 = vmatpush1.msra.mxu0 0.0
    %1844 = vmatprep.subr.mxu0 0.0
    %1845 = vmatpush1.msra.mxu0 0.0
    %1846 = vmatprep.subr.mxu0 0.0
    %1847 = vmatpush1.msra.mxu0 0.0
    %1848 = vmatprep.subr.mxu0 0.0
    %1849 = vmatpush1.msra.mxu0 0.0
    %1850 = vmatprep.mubr.f32.mxu0 0.0
    %1851 = vmatmul.mubr.f32.gmra.mrb[0].mxu0 %v1710
    %v1852 = vpop.f32.mrb[0].mxu0
    %v1853 = vadd.f32 %v1713, %v1852
    %v1854 = vpop.f32.mrb[0].mxu0
    %v1855 = vadd.f32 %v1714, %v1854
    %1856 = vdwg.mxu0
    %v1857 = vxor.u32 %v1782, 2147483648
    %v1858 = vxor.u32 %v1784, 2147483648
    %v1859 = vxor.u32 %v1853, 2147483648
    %v1860 = vmul.f32 %v1857, 1.442695
    %v1861 = vpow.pop %v1860
    %v1862 = vmul.f32 %v1858, 1.442695
    %v1863 = vpow.pop %v1862
    %v1864 = vmul.f32 %v1859, 1.442695
    %v1865 = vpow.pop %v1864
    %v1866 = vadd.f32 %v1861, 1.0
    %v1867 = vadd.f32 %v1863, 1.0
    %v1868 = vadd.f32 %v1865, 1.0
    %v1869 = vrcp.pop %v1866
    %v1870 = vmul.f32 1.0, %v1869
    %v1871 = vrcp.pop %v1867
    %v1872 = vmul.f32 1.0, %v1871
    %v1873 = vrcp.pop %v1868
    %v1874 = vmul.f32 1.0, %v1873
    %v1875 = vtanh.pop %v1855
    %v1876 = vmul.f32 %v1872, %v1708
    %v1877 = vmul.f32 %v1870, %v1875
    %v1878 = vadd.f32 %v1876, %v1877
    %v1879 = vtanh.pop %v1878
    %v1880 = vmul.f32 %v1874, %v1879
    %v1881 = vsel %vm136, %v1880, %v690
    %v1882 = vsel %vm136, %v690, %v1880
    %v1883 = vsel %vm136, %v860, %v1710
    %v1884 = vsel %vm136, %v1030, %v1540
    %v1885 = vsel %vm136, %v1200, %v1370
    %v1886 = vsel %vm136, %v1370, %v1200
    %v1887 = vsel %vm136, %v1540, %v1030
    %v1888 = vsel %vm136, %v1710, %v860
    %v1889 = vld [vmem:[#allocation6] sm:$0xff]
    %v1890 = vld [vmem:[#allocation6 + $0x8] sm:$0xff]
    %v1891 = vld [vmem:[#allocation6 + $0x10] sm:$0xff]
    %v1892 = vld [vmem:[#allocation6 + $0x18] sm:$0xff]
    %v1893 = vld [vmem:[#allocation6 + $0x20] sm:$0xff]
    %v1894 = vld [vmem:[#allocation6 + $0x28] sm:$0xff]
    %v1895 = vld [vmem:[#allocation6 + $0x30] sm:$0xff]
    %v1896 = vld [vmem:[#allocation6 + $0x38] sm:$0xff]
    %v1897 = vld [vmem:[#allocation6 + $0x40] sm:$0xff]
    %v1898 = vld [vmem:[#allocation6 + $0x48] sm:$0xff]
    %v1899 = vld [vmem:[#allocation6 + $0x50] sm:$0xff]
    %v1900 = vld [vmem:[#allocation6 + $0x58] sm:$0xff]
    %v1901 = vld [vmem:[#allocation6 + $0x60] sm:$0xff]
    %v1902 = vld [vmem:[#allocation6 + $0x68] sm:$0xff]
    %v1903 = vld [vmem:[#allocation6 + $0x70] sm:$0xff]
    %v1904 = vld [vmem:[#allocation6 + $0x78] sm:$0xff]
    %v1905 = vld [vmem:[#allocation6 + $0x80] sm:$0xff]
    %v1906 = vld [vmem:[#allocation6 + $0x88] sm:$0xff]
    %v1907 = vld [vmem:[#allocation6 + $0x90] sm:$0xff]
    %v1908 = vld [vmem:[#allocation6 + $0x98] sm:$0xff]
    %v1909 = vld [vmem:[#allocation6 + $0xa0] sm:$0xff]
    %v1910 = vld [vmem:[#allocation6 + $0xa8] sm:$0xff]
    %v1911 = vld [vmem:[#allocation6 + $0xb0] sm:$0xff]
    %v1912 = vld [vmem:[#allocation6 + $0xb8] sm:$0xff]
    %v1913 = vld [vmem:[#allocation6 + $0xc0] sm:$0xff]
    %v1914 = vld [vmem:[#allocation6 + $0xc8] sm:$0xff]
    %v1915 = vld [vmem:[#allocation6 + $0xd0] sm:$0xff]
    %v1916 = vld [vmem:[#allocation6 + $0xd8] sm:$0xff]
    %v1917 = vld [vmem:[#allocation6 + $0xe0] sm:$0xff]
    %v1918 = vld [vmem:[#allocation6 + $0xe8] sm:$0xff]
    %v1919 = vld [vmem:[#allocation6 + $0xf0] sm:$0xff]
    %v1920 = vld [vmem:[#allocation6 + $0xf8] sm:$0xff]
    %v1921 = vld [vmem:[#allocation6 + $0x100] sm:$0xff]
    %v1922 = vld [vmem:[#allocation6 + $0x108] sm:$0xff]
    %v1923 = vld [vmem:[#allocation6 + $0x110] sm:$0xff]
    %v1924 = vld [vmem:[#allocation6 + $0x118] sm:$0xff]
    %v1925 = vld [vmem:[#allocation6 + $0x120] sm:$0xff]
    %v1926 = vld [vmem:[#allocation6 + $0x128] sm:$0xff]
    %v1927 = vld [vmem:[#allocation6 + $0x130] sm:$0xff]
    %v1928 = vld [vmem:[#allocation6 + $0x138] sm:$0xff]
    %v1929 = vld [vmem:[#allocation6 + $0x140] sm:$0xff]
    %v1930 = vld [vmem:[#allocation6 + $0x148] sm:$0xff]
    %v1931 = vld [vmem:[#allocation6 + $0x150] sm:$0xff]
    %v1932 = vld [vmem:[#allocation6 + $0x158] sm:$0xff]
    %v1933 = vld [vmem:[#allocation6 + $0x160] sm:$0xff]
    %v1934 = vld [vmem:[#allocation6 + $0x168] sm:$0xff]
    %v1935 = vld [vmem:[#allocation6 + $0x170] sm:$0xff]
    %v1936 = vld [vmem:[#allocation6 + $0x178] sm:$0xff]
    %v1937 = vld [vmem:[#allocation6 + $0x180] sm:$0xff]
    %v1938 = vld [vmem:[#allocation6 + $0x188] sm:$0xff]
    %v1939 = vld [vmem:[#allocation6 + $0x190] sm:$0xff]
    %v1940 = vld [vmem:[#allocation6 + $0x198] sm:$0xff]
    %v1941 = vld [vmem:[#allocation6 + $0x1a0] sm:$0xff]
    %v1942 = vld [vmem:[#allocation6 + $0x1a8] sm:$0xff]
    %v1943 = vld [vmem:[#allocation6 + $0x1b0] sm:$0xff]
    %v1944 = vld [vmem:[#allocation6 + $0x1b8] sm:$0xff]
    %v1945 = vld [vmem:[#allocation6 + $0x1c0] sm:$0xff]
    %v1946 = vld [vmem:[#allocation6 + $0x1c8] sm:$0xff]
    %v1947 = vld [vmem:[#allocation6 + $0x1d0] sm:$0xff]
    %v1948 = vld [vmem:[#allocation6 + $0x1d8] sm:$0xff]
    %v1949 = vld [vmem:[#allocation6 + $0x1e0] sm:$0xff]
    %v1950 = vld [vmem:[#allocation6 + $0x1e8] sm:$0xff]
    %v1951 = vld [vmem:[#allocation6 + $0x1f0] sm:$0xff]
    %v1952 = vld [vmem:[#allocation6 + $0x1f8] sm:$0xff]
    %v1953 = vld [vmem:[%s6] sm:$0xf]
    %v1955 = vlaneseq
    %v1956 = vshrl.u32 %v1955, 7
    %v1957 = vsub.s32 0, %v1956
    %v1958 = vrot.slane %v1953, %v1957
    %v1959 = vlaneseq
    %v1960 = vshrl.u32 %v1959, 7
    %v1961 = vsub.s32 1, %v1960
    %v1962 = vrot.slane %v1953, %v1961
    %v1963 = vlaneseq
    %v1964 = vshrl.u32 %v1963, 7
    %v1965 = vsub.s32 2, %v1964
    %v1966 = vrot.slane %v1953, %v1965
    %v1967 = vlaneseq
    %v1968 = vshrl.u32 %v1967, 7
    %v1969 = vsub.s32 3, %v1968
    %v1970 = vrot.slane %v1953, %v1969
    %1975 = vmatprep.subr.mxu0 %v1890
    %1976 = vmatpush1.msra.mxu0 %v1889
    %1977 = vmatprep.subr.mxu0 %v1894
    %1978 = vmatpush1.msra.mxu0 %v1893
    %1979 = vmatprep.subr.mxu0 %v1898
    %1980 = vmatpush1.msra.mxu0 %v1897
    %1981 = vmatprep.subr.mxu0 %v1902
    %1982 = vmatpush1.msra.mxu0 %v1901
    %1983 = vmatprep.subr.mxu0 %v1906
    %1984 = vmatpush1.msra.mxu0 %v1905
    %1985 = vmatprep.subr.mxu0 %v1910
    %1986 = vmatpush1.msra.mxu0 %v1909
    %1987 = vmatprep.subr.mxu0 %v1914
    %1988 = vmatpush1.msra.mxu0 %v1913
    %1989 = vmatprep.subr.mxu0 %v1918
    %1990 = vmatpush1.msra.mxu0 %v1917
    %1991 = vmatprep.subr.mxu0 %v1922
    %1992 = vmatpush1.msra.mxu0 %v1921
    %1993 = vmatprep.subr.mxu0 %v1926
    %1994 = vmatpush1.msra.mxu0 %v1925
    %1995 = vmatprep.subr.mxu0 %v1930
    %1996 = vmatpush1.msra.mxu0 %v1929
    %1997 = vmatprep.subr.mxu0 %v1934
    %1998 = vmatpush1.msra.mxu0 %v1933
    %1999 = vmatprep.subr.mxu0 %v1938
    %2000 = vmatpush1.msra.mxu0 %v1937
    %2001 = vmatprep.subr.mxu0 %v1942
    %2002 = vmatpush1.msra.mxu0 %v1941
    %2003 = vmatprep.subr.mxu0 %v1946
    %2004 = vmatpush1.msra.mxu0 %v1945
    %2005 = vmatprep.subr.mxu0 %v1950
    %2006 = vmatpush1.msra.mxu0 %v1949
    %2007 = vmatprep.subr.mxu0 0.0
    %2008 = vmatpush1.msra.mxu0 0.0
    %2009 = vmatprep.subr.mxu0 0.0
    %2010 = vmatpush1.msra.mxu0 0.0
    %2011 = vmatprep.subr.mxu0 0.0
    %2012 = vmatpush1.msra.mxu0 0.0
    %2013 = vmatprep.subr.mxu0 0.0
    %2014 = vmatpush1.msra.mxu0 0.0
    %2015 = vmatprep.subr.mxu0 0.0
    %2016 = vmatpush1.msra.mxu0 0.0
    %2017 = vmatprep.subr.mxu0 0.0
    %2018 = vmatpush1.msra.mxu0 0.0
    %2019 = vmatprep.subr.mxu0 0.0
    %2020 = vmatpush1.msra.mxu0 0.0
    %2021 = vmatprep.subr.mxu0 0.0
    %2022 = vmatpush1.msra.mxu0 0.0
    %2023 = vmatprep.subr.mxu0 0.0
    %2024 = vmatpush1.msra.mxu0 0.0
    %2025 = vmatprep.subr.mxu0 0.0
    %2026 = vmatpush1.msra.mxu0 0.0
    %2027 = vmatprep.subr.mxu0 0.0
    %2028 = vmatpush1.msra.mxu0 0.0
    %2029 = vmatprep.subr.mxu0 0.0
    %2030 = vmatpush1.msra.mxu0 0.0
    %2031 = vmatprep.subr.mxu0 0.0
    %2032 = vmatpush1.msra.mxu0 0.0
    %2033 = vmatprep.subr.mxu0 0.0
    %2034 = vmatpush1.msra.mxu0 0.0
    %2035 = vmatprep.subr.mxu0 0.0
    %2036 = vmatpush1.msra.mxu0 0.0
    %2037 = vmatprep.subr.mxu0 0.0
    %2038 = vmatpush1.msra.mxu0 0.0
    %2039 = vmatprep.mubr.f32.mxu0 0.0
    %2040 = vmatmul.mubr.f32.gmra.mrb[0].mxu0 %v1882
    %v2041 = vpop.f32.mrb[0].mxu0
    %v2042 = vadd.f32 %v1958, %v2041
    %v2043 = vpop.f32.mrb[0].mxu0
    %v2044 = vadd.f32 %v1962, %v2043
    %2045 = vmatprep.mubr.f32.mxu0 0.0
    %2046 = vmatmul.mubr.f32.gmra.mrb[0].mxu0 %v1883
    %v2047 = vpop.f32.mrb[0].mxu0
    %v2048 = vadd.f32 %v1958, %v2047
    %v2049 = vpop.f32.mrb[0].mxu0
    %v2050 = vadd.f32 %v1962, %v2049
    %2051 = vmatprep.mubr.f32.mxu0 0.0
    %2052 = vmatmul.mubr.f32.gmra.mrb[0].mxu0 %v1884
    %v2053 = vpop.f32.mrb[0].mxu0
    %v2054 = vadd.f32 %v1958, %v2053
    %v2055 = vpop.f32.mrb[0].mxu0
    %v2056 = vadd.f32 %v1962, %v2055
    %2057 = vmatprep.mubr.f32.mxu0 0.0
    %2058 = vmatmul.mubr.f32.gmra.mrb[0].mxu0 %v1885
    %v2059 = vpop.f32.mrb[0].mxu0
    %v2060 = vadd.f32 %v1958, %v2059
    %v2061 = vpop.f32.mrb[0].mxu0
    %v2062 = vadd.f32 %v1962, %v2061
    %2063 = vmatprep.mubr.f32.mxu0 0.0
    %2064 = vmatmul.mubr.f32.gmra.mrb[0].mxu0 %v1886
    %v2065 = vpop.f32.mrb[0].mxu0
    %v2066 = vadd.f32 %v1958, %v2065
    %v2067 = vpop.f32.mrb[0].mxu0
    %v2068 = vadd.f32 %v1962, %v2067
    %2069 = vmatprep.mubr.f32.mxu0 0.0
    %2070 = vmatmul.mubr.f32.gmra.mrb[0].mxu0 %v1887
    %v2071 = vpop.f32.mrb[0].mxu0
    %v2072 = vadd.f32 %v1958, %v2071
    %v2073 = vpop.f32.mrb[0].mxu0
    %v2074 = vadd.f32 %v1962, %v2073
    %2075 = vmatprep.mubr.f32.mxu0 0.0
    %2076 = vmatmul.mubr.f32.gmra.mrb[0].mxu0 %v1888
    %v2077 = vpop.f32.mrb[0].mxu0
    %v2078 = vadd.f32 %v1958, %v2077
    %v2079 = vpop.f32.mrb[0].mxu0
    %v2080 = vadd.f32 %v1962, %v2079
    %2081 = vmatprep.mubr.f32.mxu0 0.0
    %2082 = vmatmul.mubr.f32.gmra.mrb[0].mxu0 %v1881
    %v2083 = vpop.f32.mrb[0].mxu0
    %v2084 = vadd.f32 %v1958, %v2083
    %v2085 = vpop.f32.mrb[0].mxu0
    %v2086 = vadd.f32 %v1962, %v2085
    %2087 = vdwg.mxu0
    %2088 = vmatprep.subr.mxu0 %v1892
    %2089 = vmatpush1.msra.mxu0 %v1891
    %2090 = vmatprep.subr.mxu0 %v1896
    %2091 = vmatpush1.msra.mxu0 %v1895
    %2092 = vmatprep.subr.mxu0 %v1900
    %2093 = vmatpush1.msra.mxu0 %v1899
    %2094 = vmatprep.subr.mxu0 %v1904
    %2095 = vmatpush1.msra.mxu0 %v1903
    %2096 = vmatprep.subr.mxu0 %v1908
    %2097 = vmatpush1.msra.mxu0 %v1907
    %2098 = vmatprep.subr.mxu0 %v1912
    %2099 = vmatpush1.msra.mxu0 %v1911
    %2100 = vmatprep.subr.mxu0 %v1916
    %2101 = vmatpush1.msra.mxu0 %v1915
    %2102 = vmatprep.subr.mxu0 %v1920
    %2103 = vmatpush1.msra.mxu0 %v1919
    %2104 = vmatprep.subr.mxu0 %v1924
    %2105 = vmatpush1.msra.mxu0 %v1923
    %2106 = vmatprep.subr.mxu0 %v1928
    %2107 = vmatpush1.msra.mxu0 %v1927
    %2108 = vmatprep.subr.mxu0 %v1932
    %2109 = vmatpush1.msra.mxu0 %v1931
    %2110 = vmatprep.subr.mxu0 %v1936
    %2111 = vmatpush1.msra.mxu0 %v1935
    %2112 = vmatprep.subr.mxu0 %v1940
    %2113 = vmatpush1.msra.mxu0 %v1939
    %2114 = vmatprep.subr.mxu0 %v1944
    %2115 = vmatpush1.msra.mxu0 %v1943
    %2116 = vmatprep.subr.mxu0 %v1948
    %2117 = vmatpush1.msra.mxu0 %v1947
    %2118 = vmatprep.subr.mxu0 %v1952
    %2119 = vmatpush1.msra.mxu0 %v1951
    %2120 = vmatprep.subr.mxu0 0.0
    %2121 = vmatpush1.msra.mxu0 0.0
    %2122 = vmatprep.subr.mxu0 0.0
    %2123 = vmatpush1.msra.mxu0 0.0
    %2124 = vmatprep.subr.mxu0 0.0
    %2125 = vmatpush1.msra.mxu0 0.0
    %2126 = vmatprep.subr.mxu0 0.0
    %2127 = vmatpush1.msra.mxu0 0.0
    %2128 = vmatprep.subr.mxu0 0.0
    %2129 = vmatpush1.msra.mxu0 0.0
    %2130 = vmatprep.subr.mxu0 0.0
    %2131 = vmatpush1.msra.mxu0 0.0
    %2132 = vmatprep.subr.mxu0 0.0
    %2133 = vmatpush1.msra.mxu0 0.0
    %2134 = vmatprep.subr.mxu0 0.0
    %2135 = vmatpush1.msra.mxu0 0.0
    %2136 = vmatprep.subr.mxu0 0.0
    %2137 = vmatpush1.msra.mxu0 0.0
    %2138 = vmatprep.subr.mxu0 0.0
    %2139 = vmatpush1.msra.mxu0 0.0
    %2140 = vmatprep.subr.mxu0 0.0
    %2141 = vmatpush1.msra.mxu0 0.0
    %2142 = vmatprep.subr.mxu0 0.0
    %2143 = vmatpush1.msra.mxu0 0.0
    %2144 = vmatprep.subr.mxu0 0.0
    %2145 = vmatpush1.msra.mxu0 0.0
    %2146 = vmatprep.subr.mxu0 0.0
    %2147 = vmatpush1.msra.mxu0 0.0
    %2148 = vmatprep.subr.mxu0 0.0
    %2149 = vmatpush1.msra.mxu0 0.0
    %2150 = vmatprep.subr.mxu0 0.0
    %2151 = vmatpush1.msra.mxu0 0.0
    %2152 = vmatprep.mubr.f32.mxu0 0.0
    %2153 = vmatmul.mubr.f32.gmra.mrb[0].mxu0 %v1882
    %v2154 = vpop.f32.mrb[0].mxu0
    %v2155 = vadd.f32 %v1966, %v2154
    %v2156 = vpop.f32.mrb[0].mxu0
    %v2157 = vadd.f32 %v1970, %v2156
    %2158 = vmatprep.mubr.f32.mxu0 0.0
    %2159 = vmatmul.mubr.f32.gmra.mrb[0].mxu0 %v1883
    %v2160 = vpop.f32.mrb[0].mxu0
    %v2161 = vadd.f32 %v1966, %v2160
    %v2162 = vpop.f32.mrb[0].mxu0
    %v2163 = vadd.f32 %v1970, %v2162
    %2164 = vmatprep.mubr.f32.mxu0 0.0
    %2165 = vmatmul.mubr.f32.gmra.mrb[0].mxu0 %v1884
    %v2166 = vpop.f32.mrb[0].mxu0
    %v2167 = vadd.f32 %v1966, %v2166
    %v2168 = vpop.f32.mrb[0].mxu0
    %v2169 = vadd.f32 %v1970, %v2168
    %2170 = vmatprep.mubr.f32.mxu0 0.0
    %2171 = vmatmul.mubr.f32.gmra.mrb[0].mxu0 %v1885
    %v2172 = vpop.f32.mrb[0].mxu0
    %v2173 = vadd.f32 %v1966, %v2172
    %v2174 = vpop.f32.mrb[0].mxu0
    %v2175 = vadd.f32 %v1970, %v2174
    %2176 = vmatprep.mubr.f32.mxu0 0.0
    %2177 = vmatmul.mubr.f32.gmra.mrb[0].mxu0 %v1886
    %v2178 = vpop.f32.mrb[0].mxu0
    %v2179 = vadd.f32 %v1966, %v2178
    %v2180 = vpop.f32.mrb[0].mxu0
    %v2181 = vadd.f32 %v1970, %v2180
    %2182 = vmatprep.mubr.f32.mxu0 0.0
    %2183 = vmatmul.mubr.f32.gmra.mrb[0].mxu0 %v1887
    %v2184 = vpop.f32.mrb[0].mxu0
    %v2185 = vadd.f32 %v1966, %v2184
    %v2186 = vpop.f32.mrb[0].mxu0
    %v2187 = vadd.f32 %v1970, %v2186
    %2188 = vmatprep.mubr.f32.mxu0 0.0
    %2189 = vmatmul.mubr.f32.gmra.mrb[0].mxu0 %v1888
    %v2190 = vpop.f32.mrb[0].mxu0
    %v2191 = vadd.f32 %v1966, %v2190
    %v2192 = vpop.f32.mrb[0].mxu0
    %v2193 = vadd.f32 %v1970, %v2192
    %2194 = vmatprep.mubr.f32.mxu0 0.0
    %2195 = vmatmul.mubr.f32.gmra.mrb[0].mxu0 %v1881
    %v2196 = vpop.f32.mrb[0].mxu0
    %v2197 = vadd.f32 %v1966, %v2196
    %v2198 = vpop.f32.mrb[0].mxu0
    %v2199 = vadd.f32 %v1970, %v2198
    %2200 = vdwg.mxu0
    %v2201 = vsel %vm132, %v2042, %v2084
    %v2202 = vsel %vm133, %v2044, %v2086
    %v2203 = vsel %vm134, %v2155, %v2197
    %v2204 = vsel %vm135, %v2157, %v2199
    %v2205 = vld [vmem:[#allocation7] sm:$0xff]
    %v2206 = vld [vmem:[#allocation7 + $0x8] sm:$0xff]
    %v2207 = vld [vmem:[#allocation7 + $0x10] sm:$0xff]
    %v2208 = vld [vmem:[#allocation7 + $0x18] sm:$0xff]
    %v2209 = vld [vmem:[#allocation7 + $0x20] sm:$0xff]
    %v2210 = vld [vmem:[#allocation7 + $0x28] sm:$0xff]
    %v2211 = vld [vmem:[#allocation7 + $0x30] sm:$0xff]
    %v2212 = vld [vmem:[#allocation7 + $0x38] sm:$0xff]
    %v2213 = vld [vmem:[#allocation7 + $0x40] sm:$0xff]
    %v2214 = vld [vmem:[#allocation7 + $0x48] sm:$0xff]
    %v2215 = vld [vmem:[#allocation7 + $0x50] sm:$0xff]
    %v2216 = vld [vmem:[#allocation7 + $0x58] sm:$0xff]
    %v2217 = vld [vmem:[#allocation7 + $0x60] sm:$0xff]
    %v2218 = vld [vmem:[#allocation7 + $0x68] sm:$0xff]
    %v2219 = vld [vmem:[#allocation7 + $0x70] sm:$0xff]
    %v2220 = vld [vmem:[#allocation7 + $0x78] sm:$0xff]
    %v2221 = vld [vmem:[#allocation7 + $0x80] sm:$0xff]
    %v2222 = vld [vmem:[#allocation7 + $0x88] sm:$0xff]
    %v2223 = vld [vmem:[#allocation7 + $0x90] sm:$0xff]
    %v2224 = vld [vmem:[#allocation7 + $0x98] sm:$0xff]
    %v2225 = vld [vmem:[#allocation7 + $0xa0] sm:$0xff]
    %v2226 = vld [vmem:[#allocation7 + $0xa8] sm:$0xff]
    %v2227 = vld [vmem:[#allocation7 + $0xb0] sm:$0xff]
    %v2228 = vld [vmem:[#allocation7 + $0xb8] sm:$0xff]
    %v2229 = vld [vmem:[#allocation7 + $0xc0] sm:$0xff]
    %v2230 = vld [vmem:[#allocation7 + $0xc8] sm:$0xff]
    %v2231 = vld [vmem:[#allocation7 + $0xd0] sm:$0xff]
    %v2232 = vld [vmem:[#allocation7 + $0xd8] sm:$0xff]
    %v2233 = vld [vmem:[#allocation7 + $0xe0] sm:$0xff]
    %v2234 = vld [vmem:[#allocation7 + $0xe8] sm:$0xff]
    %v2235 = vld [vmem:[#allocation7 + $0xf0] sm:$0xff]
    %v2236 = vld [vmem:[#allocation7 + $0xf8] sm:$0xff]
    %v2237 = vld [vmem:[#allocation7 + $0x100] sm:$0xff]
    %v2238 = vld [vmem:[#allocation7 + $0x108] sm:$0xff]
    %v2239 = vld [vmem:[#allocation7 + $0x110] sm:$0xff]
    %v2240 = vld [vmem:[#allocation7 + $0x118] sm:$0xff]
    %v2241 = vld [vmem:[#allocation7 + $0x120] sm:$0xff]
    %v2242 = vld [vmem:[#allocation7 + $0x128] sm:$0xff]
    %v2243 = vld [vmem:[#allocation7 + $0x130] sm:$0xff]
    %v2244 = vld [vmem:[#allocation7 + $0x138] sm:$0xff]
    %v2245 = vld [vmem:[#allocation7 + $0x140] sm:$0xff]
    %v2246 = vld [vmem:[#allocation7 + $0x148] sm:$0xff]
    %v2247 = vld [vmem:[#allocation7 + $0x150] sm:$0xff]
    %v2248 = vld [vmem:[#allocation7 + $0x158] sm:$0xff]
    %v2249 = vld [vmem:[#allocation7 + $0x160] sm:$0xff]
    %v2250 = vld [vmem:[#allocation7 + $0x168] sm:$0xff]
    %v2251 = vld [vmem:[#allocation7 + $0x170] sm:$0xff]
    %v2252 = vld [vmem:[#allocation7 + $0x178] sm:$0xff]
    %v2253 = vld [vmem:[#allocation7 + $0x180] sm:$0xff]
    %v2254 = vld [vmem:[#allocation7 + $0x188] sm:$0xff]
    %v2255 = vld [vmem:[#allocation7 + $0x190] sm:$0xff]
    %v2256 = vld [vmem:[#allocation7 + $0x198] sm:$0xff]
    %v2257 = vld [vmem:[#allocation7 + $0x1a0] sm:$0xff]
    %v2258 = vld [vmem:[#allocation7 + $0x1a8] sm:$0xff]
    %v2259 = vld [vmem:[#allocation7 + $0x1b0] sm:$0xff]
    %v2260 = vld [vmem:[#allocation7 + $0x1b8] sm:$0xff]
    %v2261 = vld [vmem:[#allocation7 + $0x1c0] sm:$0xff]
    %v2262 = vld [vmem:[#allocation7 + $0x1c8] sm:$0xff]
    %v2263 = vld [vmem:[#allocation7 + $0x1d0] sm:$0xff]
    %v2264 = vld [vmem:[#allocation7 + $0x1d8] sm:$0xff]
    %v2265 = vld [vmem:[#allocation7 + $0x1e0] sm:$0xff]
    %v2266 = vld [vmem:[#allocation7 + $0x1e8] sm:$0xff]
    %v2267 = vld [vmem:[#allocation7 + $0x1f0] sm:$0xff]
    %v2268 = vld [vmem:[#allocation7 + $0x1f8] sm:$0xff]
    %2269 = vmatprep.subr.mxu0 %v2206
    %2270 = vmatpush1.msra.mxu0 %v2205
    %2271 = vmatprep.subr.mxu0 %v2210
    %2272 = vmatpush1.msra.mxu0 %v2209
    %2273 = vmatprep.subr.mxu0 %v2214
    %2274 = vmatpush1.msra.mxu0 %v2213
    %2275 = vmatprep.subr.mxu0 %v2218
    %2276 = vmatpush1.msra.mxu0 %v2217
    %2277 = vmatprep.subr.mxu0 %v2222
    %2278 = vmatpush1.msra.mxu0 %v2221
    %2279 = vmatprep.subr.mxu0 %v2226
    %2280 = vmatpush1.msra.mxu0 %v2225
    %2281 = vmatprep.subr.mxu0 %v2230
    %2282 = vmatpush1.msra.mxu0 %v2229
    %2283 = vmatprep.subr.mxu0 %v2234
    %2284 = vmatpush1.msra.mxu0 %v2233
    %2285 = vmatprep.subr.mxu0 %v2238
    %2286 = vmatpush1.msra.mxu0 %v2237
    %2287 = vmatprep.subr.mxu0 %v2242
    %2288 = vmatpush1.msra.mxu0 %v2241
    %2289 = vmatprep.subr.mxu0 %v2246
    %2290 = vmatpush1.msra.mxu0 %v2245
    %2291 = vmatprep.subr.mxu0 %v2250
    %2292 = vmatpush1.msra.mxu0 %v2249
    %2293 = vmatprep.subr.mxu0 %v2254
    %2294 = vmatpush1.msra.mxu0 %v2253
    %2295 = vmatprep.subr.mxu0 %v2258
    %2296 = vmatpush1.msra.mxu0 %v2257
    %2297 = vmatprep.subr.mxu0 %v2262
    %2298 = vmatpush1.msra.mxu0 %v2261
    %2299 = vmatprep.subr.mxu0 %v2266
    %2300 = vmatpush1.msra.mxu0 %v2265
    %2301 = vmatprep.subr.mxu0 0.0
    %2302 = vmatpush1.msra.mxu0 0.0
    %2303 = vmatprep.subr.mxu0 0.0
    %2304 = vmatpush1.msra.mxu0 0.0
    %2305 = vmatprep.subr.mxu0 0.0
    %2306 = vmatpush1.msra.mxu0 0.0
    %2307 = vmatprep.subr.mxu0 0.0
    %2308 = vmatpush1.msra.mxu0 0.0
    %2309 = vmatprep.subr.mxu0 0.0
    %2310 = vmatpush1.msra.mxu0 0.0
    %2311 = vmatprep.subr.mxu0 0.0
    %2312 = vmatpush1.msra.mxu0 0.0
    %2313 = vmatprep.subr.mxu0 0.0
    %2314 = vmatpush1.msra.mxu0 0.0
    %2315 = vmatprep.subr.mxu0 0.0
    %2316 = vmatpush1.msra.mxu0 0.0
    %2317 = vmatprep.subr.mxu0 0.0
    %2318 = vmatpush1.msra.mxu0 0.0
    %2319 = vmatprep.subr.mxu0 0.0
    %2320 = vmatpush1.msra.mxu0 0.0
    %2321 = vmatprep.subr.mxu0 0.0
    %2322 = vmatpush1.msra.mxu0 0.0
    %2323 = vmatprep.subr.mxu0 0.0
    %2324 = vmatpush1.msra.mxu0 0.0
    %2325 = vmatprep.subr.mxu0 0.0
    %2326 = vmatpush1.msra.mxu0 0.0
    %2327 = vmatprep.subr.mxu0 0.0
    %2328 = vmatpush1.msra.mxu0 0.0
    %2329 = vmatprep.subr.mxu0 0.0
    %2330 = vmatpush1.msra.mxu0 0.0
    %2331 = vmatprep.subr.mxu0 0.0
    %2332 = vmatpush1.msra.mxu0 0.0
    %2333 = vmatprep.mubr.f32.mxu0 0.0
    %2334 = vmatmul.mubr.f32.gmra.mrb[0].mxu0 0.0
    %v2335 = vpop.f32.mrb[0].mxu0
    %v2336 = vadd.f32 %v2201, %v2335
    %v2337 = vpop.f32.mrb[0].mxu0
    %v2338 = vadd.f32 %v2202, %v2337
    %2339 = vdwg.mxu0
    %2340 = vmatprep.subr.mxu0 %v2208
    %2341 = vmatpush1.msra.mxu0 %v2207
    %2342 = vmatprep.subr.mxu0 %v2212
    %2343 = vmatpush1.msra.mxu0 %v2211
    %2344 = vmatprep.subr.mxu0 %v2216
    %2345 = vmatpush1.msra.mxu0 %v2215
    %2346 = vmatprep.subr.mxu0 %v2220
    %2347 = vmatpush1.msra.mxu0 %v2219
    %2348 = vmatprep.subr.mxu0 %v2224
    %2349 = vmatpush1.msra.mxu0 %v2223
    %2350 = vmatprep.subr.mxu0 %v2228
    %2351 = vmatpush1.msra.mxu0 %v2227
    %2352 = vmatprep.subr.mxu0 %v2232
    %2353 = vmatpush1.msra.mxu0 %v2231
    %2354 = vmatprep.subr.mxu0 %v2236
    %2355 = vmatpush1.msra.mxu0 %v2235
    %2356 = vmatprep.subr.mxu0 %v2240
    %2357 = vmatpush1.msra.mxu0 %v2239
    %2358 = vmatprep.subr.mxu0 %v2244
    %2359 = vmatpush1.msra.mxu0 %v2243
    %2360 = vmatprep.subr.mxu0 %v2248
    %2361 = vmatpush1.msra.mxu0 %v2247
    %2362 = vmatprep.subr.mxu0 %v2252
    %2363 = vmatpush1.msra.mxu0 %v2251
    %2364 = vmatprep.subr.mxu0 %v2256
    %2365 = vmatpush1.msra.mxu0 %v2255
    %2366 = vmatprep.subr.mxu0 %v2260
    %2367 = vmatpush1.msra.mxu0 %v2259
    %2368 = vmatprep.subr.mxu0 %v2264
    %2369 = vmatpush1.msra.mxu0 %v2263
    %2370 = vmatprep.subr.mxu0 %v2268
    %2371 = vmatpush1.msra.mxu0 %v2267
    %2372 = vmatprep.subr.mxu0 0.0
    %2373 = vmatpush1.msra.mxu0 0.0
    %2374 = vmatprep.subr.mxu0 0.0
    %2375 = vmatpush1.msra.mxu0 0.0
    %2376 = vmatprep.subr.mxu0 0.0
    %2377 = vmatpush1.msra.mxu0 0.0
    %2378 = vmatprep.subr.mxu0 0.0
    %2379 = vmatpush1.msra.mxu0 0.0
    %2380 = vmatprep.subr.mxu0 0.0
    %2381 = vmatpush1.msra.mxu0 0.0
    %2382 = vmatprep.subr.mxu0 0.0
    %2383 = vmatpush1.msra.mxu0 0.0
    %2384 = vmatprep.subr.mxu0 0.0
    %2385 = vmatpush1.msra.mxu0 0.0
    %2386 = vmatprep.subr.mxu0 0.0
    %2387 = vmatpush1.msra.mxu0 0.0
    %2388 = vmatprep.subr.mxu0 0.0
    %2389 = vmatpush1.msra.mxu0 0.0
    %2390 = vmatprep.subr.mxu0 0.0
    %2391 = vmatpush1.msra.mxu0 0.0
    %2392 = vmatprep.subr.mxu0 0.0
    %2393 = vmatpush1.msra.mxu0 0.0
    %2394 = vmatprep.subr.mxu0 0.0
    %2395 = vmatpush1.msra.mxu0 0.0
    %2396 = vmatprep.subr.mxu0 0.0
    %2397 = vmatpush1.msra.mxu0 0.0
    %2398 = vmatprep.subr.mxu0 0.0
    %2399 = vmatpush1.msra.mxu0 0.0
    %2400 = vmatprep.subr.mxu0 0.0
    %2401 = vmatpush1.msra.mxu0 0.0
    %2402 = vmatprep.subr.mxu0 0.0
    %2403 = vmatpush1.msra.mxu0 0.0
    %2404 = vmatprep.mubr.f32.mxu0 0.0
    %2405 = vmatmul.mubr.f32.gmra.mrb[0].mxu0 0.0
    %v2406 = vpop.f32.mrb[0].mxu0
    %v2407 = vadd.f32 %v2203, %v2406
    %v2408 = vpop.f32.mrb[0].mxu0
    %v2409 = vadd.f32 %v2204, %v2408
    %2410 = vdwg.mxu0
    %v2411 = vxor.u32 %v2336, 2147483648
    %v2412 = vxor.u32 %v2338, 2147483648
    %v2413 = vxor.u32 %v2407, 2147483648
    %v2414 = vmul.f32 %v2411, 1.442695
    %v2415 = vpow.pop %v2414
    %v2416 = vmul.f32 %v2412, 1.442695
    %v2417 = vpow.pop %v2416
    %v2418 = vmul.f32 %v2413, 1.442695
    %v2419 = vpow.pop %v2418
    %v2420 = vadd.f32 %v2415, 1.0
    %v2421 = vadd.f32 %v2417, 1.0
    %v2422 = vadd.f32 %v2419, 1.0
    %v2423 = vrcp.pop %v2420
    %v2424 = vmul.f32 1.0, %v2423
    %v2425 = vrcp.pop %v2421
    %v2426 = vmul.f32 1.0, %v2425
    %v2427 = vrcp.pop %v2422
    %v2428 = vmul.f32 1.0, %v2427
    %v2429 = vtanh.pop %v2409
    %v2430 = vmul.f32 %v2426, 0.0
    %v2431 = vmul.f32 %v2424, %v2429
    %v2432 = vadd.f32 %v2430, %v2431
    %v2433 = vtanh.pop %v2432
    %v2434 = vmul.f32 %v2428, %v2433
    %v2435 = vsel %vm132, %v2048, %v2078
    %v2436 = vsel %vm133, %v2050, %v2080
    %v2437 = vsel %vm134, %v2161, %v2191
    %v2438 = vsel %vm135, %v2163, %v2193
    %2439 = vmatprep.subr.mxu0 %v2206
    %2440 = vmatpush1.msra.mxu0 %v2205
    %2441 = vmatprep.subr.mxu0 %v2210
    %2442 = vmatpush1.msra.mxu0 %v2209
    %2443 = vmatprep.subr.mxu0 %v2214
    %2444 = vmatpush1.msra.mxu0 %v2213
    %2445 = vmatprep.subr.mxu0 %v2218
    %2446 = vmatpush1.msra.mxu0 %v2217
    %2447 = vmatprep.subr.mxu0 %v2222
    %2448 = vmatpush1.msra.mxu0 %v2221
    %2449 = vmatprep.subr.mxu0 %v2226
    %2450 = vmatpush1.msra.mxu0 %v2225
    %2451 = vmatprep.subr.mxu0 %v2230
    %2452 = vmatpush1.msra.mxu0 %v2229
    %2453 = vmatprep.subr.mxu0 %v2234
    %2454 = vmatpush1.msra.mxu0 %v2233
    %2455 = vmatprep.subr.mxu0 %v2238
    %2456 = vmatpush1.msra.mxu0 %v2237
    %2457 = vmatprep.subr.mxu0 %v2242
    %2458 = vmatpush1.msra.mxu0 %v2241
    %2459 = vmatprep.subr.mxu0 %v2246
    %2460 = vmatpush1.msra.mxu0 %v2245
    %2461 = vmatprep.subr.mxu0 %v2250
    %2462 = vmatpush1.msra.mxu0 %v2249
    %2463 = vmatprep.subr.mxu0 %v2254
    %2464 = vmatpush1.msra.mxu0 %v2253
    %2465 = vmatprep.subr.mxu0 %v2258
    %2466 = vmatpush1.msra.mxu0 %v2257
    %2467 = vmatprep.subr.mxu0 %v2262
    %2468 = vmatpush1.msra.mxu0 %v2261
    %2469 = vmatprep.subr.mxu0 %v2266
    %2470 = vmatpush1.msra.mxu0 %v2265
    %2471 = vmatprep.subr.mxu0 0.0
    %2472 = vmatpush1.msra.mxu0 0.0
    %2473 = vmatprep.subr.mxu0 0.0
    %2474 = vmatpush1.msra.mxu0 0.0
    %2475 = vmatprep.subr.mxu0 0.0
    %2476 = vmatpush1.msra.mxu0 0.0
    %2477 = vmatprep.subr.mxu0 0.0
    %2478 = vmatpush1.msra.mxu0 0.0
    %2479 = vmatprep.subr.mxu0 0.0
    %2480 = vmatpush1.msra.mxu0 0.0
    %2481 = vmatprep.subr.mxu0 0.0
    %2482 = vmatpush1.msra.mxu0 0.0
    %2483 = vmatprep.subr.mxu0 0.0
    %2484 = vmatpush1.msra.mxu0 0.0
    %2485 = vmatprep.subr.mxu0 0.0
    %2486 = vmatpush1.msra.mxu0 0.0
    %2487 = vmatprep.subr.mxu0 0.0
    %2488 = vmatpush1.msra.mxu0 0.0
    %2489 = vmatprep.subr.mxu0 0.0
    %2490 = vmatpush1.msra.mxu0 0.0
    %2491 = vmatprep.subr.mxu0 0.0
    %2492 = vmatpush1.msra.mxu0 0.0
    %2493 = vmatprep.subr.mxu0 0.0
    %2494 = vmatpush1.msra.mxu0 0.0
    %2495 = vmatprep.subr.mxu0 0.0
    %2496 = vmatpush1.msra.mxu0 0.0
    %2497 = vmatprep.subr.mxu0 0.0
    %2498 = vmatpush1.msra.mxu0 0.0
    %2499 = vmatprep.subr.mxu0 0.0
    %2500 = vmatpush1.msra.mxu0 0.0
    %2501 = vmatprep.subr.mxu0 0.0
    %2502 = vmatpush1.msra.mxu0 0.0
    %2503 = vmatprep.mubr.f32.mxu0 0.0
    %2504 = vmatmul.mubr.f32.gmra.mrb[0].mxu0 %v2434
    %v2505 = vpop.f32.mrb[0].mxu0
    %v2506 = vadd.f32 %v2435, %v2505
    %v2507 = vpop.f32.mrb[0].mxu0
    %v2508 = vadd.f32 %v2436, %v2507
    %2509 = vdwg.mxu0
    %2510 = vmatprep.subr.mxu0 %v2208
    %2511 = vmatpush1.msra.mxu0 %v2207
    %2512 = vmatprep.subr.mxu0 %v2212
    %2513 = vmatpush1.msra.mxu0 %v2211
    %2514 = vmatprep.subr.mxu0 %v2216
    %2515 = vmatpush1.msra.mxu0 %v2215
    %2516 = vmatprep.subr.mxu0 %v2220
    %2517 = vmatpush1.msra.mxu0 %v2219
    %2518 = vmatprep.subr.mxu0 %v2224
    %2519 = vmatpush1.msra.mxu0 %v2223
    %2520 = vmatprep.subr.mxu0 %v2228
    %2521 = vmatpush1.msra.mxu0 %v2227
    %2522 = vmatprep.subr.mxu0 %v2232
    %2523 = vmatpush1.msra.mxu0 %v2231
    %2524 = vmatprep.subr.mxu0 %v2236
    %2525 = vmatpush1.msra.mxu0 %v2235
    %2526 = vmatprep.subr.mxu0 %v2240
    %2527 = vmatpush1.msra.mxu0 %v2239
    %2528 = vmatprep.subr.mxu0 %v2244
    %2529 = vmatpush1.msra.mxu0 %v2243
    %2530 = vmatprep.subr.mxu0 %v2248
    %2531 = vmatpush1.msra.mxu0 %v2247
    %2532 = vmatprep.subr.mxu0 %v2252
    %2533 = vmatpush1.msra.mxu0 %v2251
    %2534 = vmatprep.subr.mxu0 %v2256
    %2535 = vmatpush1.msra.mxu0 %v2255
    %2536 = vmatprep.subr.mxu0 %v2260
    %2537 = vmatpush1.msra.mxu0 %v2259
    %2538 = vmatprep.subr.mxu0 %v2264
    %2539 = vmatpush1.msra.mxu0 %v2263
    %2540 = vmatprep.subr.mxu0 %v2268
    %2541 = vmatpush1.msra.mxu0 %v2267
    %2542 = vmatprep.subr.mxu0 0.0
    %2543 = vmatpush1.msra.mxu0 0.0
    %2544 = vmatprep.subr.mxu0 0.0
    %2545 = vmatpush1.msra.mxu0 0.0
    %2546 = vmatprep.subr.mxu0 0.0
    %2547 = vmatpush1.msra.mxu0 0.0
    %2548 = vmatprep.subr.mxu0 0.0
    %2549 = vmatpush1.msra.mxu0 0.0
    %2550 = vmatprep.subr.mxu0 0.0
    %2551 = vmatpush1.msra.mxu0 0.0
    %2552 = vmatprep.subr.mxu0 0.0
    %2553 = vmatpush1.msra.mxu0 0.0
    %2554 = vmatprep.subr.mxu0 0.0
    %2555 = vmatpush1.msra.mxu0 0.0
    %2556 = vmatprep.subr.mxu0 0.0
    %2557 = vmatpush1.msra.mxu0 0.0
    %2558 = vmatprep.subr.mxu0 0.0
    %2559 = vmatpush1.msra.mxu0 0.0
    %2560 = vmatprep.subr.mxu0 0.0
    %2561 = vmatpush1.msra.mxu0 0.0
    %2562 = vmatprep.subr.mxu0 0.0
    %2563 = vmatpush1.msra.mxu0 0.0
    %2564 = vmatprep.subr.mxu0 0.0
    %2565 = vmatpush1.msra.mxu0 0.0
    %2566 = vmatprep.subr.mxu0 0.0
    %2567 = vmatpush1.msra.mxu0 0.0
    %2568 = vmatprep.subr.mxu0 0.0
    %2569 = vmatpush1.msra.mxu0 0.0
    %2570 = vmatprep.subr.mxu0 0.0
    %2571 = vmatpush1.msra.mxu0 0.0
    %2572 = vmatprep.subr.mxu0 0.0
    %2573 = vmatpush1.msra.mxu0 0.0
    %2574 = vmatprep.mubr.f32.mxu0 0.0
    %2575 = vmatmul.mubr.f32.gmra.mrb[0].mxu0 %v2434
    %v2576 = vpop.f32.mrb[0].mxu0
    %v2577 = vadd.f32 %v2437, %v2576
    %v2578 = vpop.f32.mrb[0].mxu0
    %v2579 = vadd.f32 %v2438, %v2578
    %2580 = vdwg.mxu0
    %v2581 = vxor.u32 %v2506, 2147483648
    %v2582 = vxor.u32 %v2508, 2147483648
    %v2583 = vxor.u32 %v2577, 2147483648
    %v2584 = vmul.f32 %v2581, 1.442695
    %v2585 = vpow.pop %v2584
    %v2586 = vmul.f32 %v2582, 1.442695
    %v2587 = vpow.pop %v2586
    %v2588 = vmul.f32 %v2583, 1.442695
    %v2589 = vpow.pop %v2588
    %v2590 = vadd.f32 %v2585, 1.0
    %v2591 = vadd.f32 %v2587, 1.0
    %v2592 = vadd.f32 %v2589, 1.0
    %v2593 = vrcp.pop %v2590
    %v2594 = vmul.f32 1.0, %v2593
    %v2595 = vrcp.pop %v2591
    %v2596 = vmul.f32 1.0, %v2595
    %v2597 = vrcp.pop %v2592
    %v2598 = vmul.f32 1.0, %v2597
    %v2599 = vtanh.pop %v2579
    %v2600 = vmul.f32 %v2596, %v2432
    %v2601 = vmul.f32 %v2594, %v2599
    %v2602 = vadd.f32 %v2600, %v2601
    %v2603 = vtanh.pop %v2602
    %v2604 = vmul.f32 %v2598, %v2603
    %v2605 = vsel %vm132, %v2054, %v2072
    %v2606 = vsel %vm133, %v2056, %v2074
    %v2607 = vsel %vm134, %v2167, %v2185
    %v2608 = vsel %vm135, %v2169, %v2187
    %2609 = vmatprep.subr.mxu0 %v2206
    %2610 = vmatpush1.msra.mxu0 %v2205
    %2611 = vmatprep.subr.mxu0 %v2210
    %2612 = vmatpush1.msra.mxu0 %v2209
    %2613 = vmatprep.subr.mxu0 %v2214
    %2614 = vmatpush1.msra.mxu0 %v2213
    %2615 = vmatprep.subr.mxu0 %v2218
    %2616 = vmatpush1.msra.mxu0 %v2217
    %2617 = vmatprep.subr.mxu0 %v2222
    %2618 = vmatpush1.msra.mxu0 %v2221
    %2619 = vmatprep.subr.mxu0 %v2226
    %2620 = vmatpush1.msra.mxu0 %v2225
    %2621 = vmatprep.subr.mxu0 %v2230
    %2622 = vmatpush1.msra.mxu0 %v2229
    %2623 = vmatprep.subr.mxu0 %v2234
    %2624 = vmatpush1.msra.mxu0 %v2233
    %2625 = vmatprep.subr.mxu0 %v2238
    %2626 = vmatpush1.msra.mxu0 %v2237
    %2627 = vmatprep.subr.mxu0 %v2242
    %2628 = vmatpush1.msra.mxu0 %v2241
    %2629 = vmatprep.subr.mxu0 %v2246
    %2630 = vmatpush1.msra.mxu0 %v2245
    %2631 = vmatprep.subr.mxu0 %v2250
    %2632 = vmatpush1.msra.mxu0 %v2249
    %2633 = vmatprep.subr.mxu0 %v2254
    %2634 = vmatpush1.msra.mxu0 %v2253
    %2635 = vmatprep.subr.mxu0 %v2258
    %2636 = vmatpush1.msra.mxu0 %v2257
    %2637 = vmatprep.subr.mxu0 %v2262
    %2638 = vmatpush1.msra.mxu0 %v2261
    %2639 = vmatprep.subr.mxu0 %v2266
    %2640 = vmatpush1.msra.mxu0 %v2265
    %2641 = vmatprep.subr.mxu0 0.0
    %2642 = vmatpush1.msra.mxu0 0.0
    %2643 = vmatprep.subr.mxu0 0.0
    %2644 = vmatpush1.msra.mxu0 0.0
    %2645 = vmatprep.subr.mxu0 0.0
    %2646 = vmatpush1.msra.mxu0 0.0
    %2647 = vmatprep.subr.mxu0 0.0
    %2648 = vmatpush1.msra.mxu0 0.0
    %2649 = vmatprep.subr.mxu0 0.0
    %2650 = vmatpush1.msra.mxu0 0.0
    %2651 = vmatprep.subr.mxu0 0.0
    %2652 = vmatpush1.msra.mxu0 0.0
    %2653 = vmatprep.subr.mxu0 0.0
    %2654 = vmatpush1.msra.mxu0 0.0
    %2655 = vmatprep.subr.mxu0 0.0
    %2656 = vmatpush1.msra.mxu0 0.0
    %2657 = vmatprep.subr.mxu0 0.0
    %2658 = vmatpush1.msra.mxu0 0.0
    %2659 = vmatprep.subr.mxu0 0.0
    %2660 = vmatpush1.msra.mxu0 0.0
    %2661 = vmatprep.subr.mxu0 0.0
    %2662 = vmatpush1.msra.mxu0 0.0
    %2663 = vmatprep.subr.mxu0 0.0
    %2664 = vmatpush1.msra.mxu0 0.0
    %2665 = vmatprep.subr.mxu0 0.0
    %2666 = vmatpush1.msra.mxu0 0.0
    %2667 = vmatprep.subr.mxu0 0.0
    %2668 = vmatpush1.msra.mxu0 0.0
    %2669 = vmatprep.subr.mxu0 0.0
    %2670 = vmatpush1.msra.mxu0 0.0
    %2671 = vmatprep.subr.mxu0 0.0
    %2672 = vmatpush1.msra.mxu0 0.0
    %2673 = vmatprep.mubr.f32.mxu0 0.0
    %2674 = vmatmul.mubr.f32.gmra.mrb[0].mxu0 %v2604
    %v2675 = vpop.f32.mrb[0].mxu0
    %v2676 = vadd.f32 %v2605, %v2675
    %v2677 = vpop.f32.mrb[0].mxu0
    %v2678 = vadd.f32 %v2606, %v2677
    %2679 = vdwg.mxu0
    %2680 = vmatprep.subr.mxu0 %v2208
    %2681 = vmatpush1.msra.mxu0 %v2207
    %2682 = vmatprep.subr.mxu0 %v2212
    %2683 = vmatpush1.msra.mxu0 %v2211
    %2684 = vmatprep.subr.mxu0 %v2216
    %2685 = vmatpush1.msra.mxu0 %v2215
    %2686 = vmatprep.subr.mxu0 %v2220
    %2687 = vmatpush1.msra.mxu0 %v2219
    %2688 = vmatprep.subr.mxu0 %v2224
    %2689 = vmatpush1.msra.mxu0 %v2223
    %2690 = vmatprep.subr.mxu0 %v2228
    %2691 = vmatpush1.msra.mxu0 %v2227
    %2692 = vmatprep.subr.mxu0 %v2232
    %2693 = vmatpush1.msra.mxu0 %v2231
    %2694 = vmatprep.subr.mxu0 %v2236
    %2695 = vmatpush1.msra.mxu0 %v2235
    %2696 = vmatprep.subr.mxu0 %v2240
    %2697 = vmatpush1.msra.mxu0 %v2239
    %2698 = vmatprep.subr.mxu0 %v2244
    %2699 = vmatpush1.msra.mxu0 %v2243
    %2700 = vmatprep.subr.mxu0 %v2248
    %2701 = vmatpush1.msra.mxu0 %v2247
    %2702 = vmatprep.subr.mxu0 %v2252
    %2703 = vmatpush1.msra.mxu0 %v2251
    %2704 = vmatprep.subr.mxu0 %v2256
    %2705 = vmatpush1.msra.mxu0 %v2255
    %2706 = vmatprep.subr.mxu0 %v2260
    %2707 = vmatpush1.msra.mxu0 %v2259
    %2708 = vmatprep.subr.mxu0 %v2264
    %2709 = vmatpush1.msra.mxu0 %v2263
    %2710 = vmatprep.subr.mxu0 %v2268
    %2711 = vmatpush1.msra.mxu0 %v2267
    %2712 = vmatprep.subr.mxu0 0.0
    %2713 = vmatpush1.msra.mxu0 0.0
    %2714 = vmatprep.subr.mxu0 0.0
    %2715 = vmatpush1.msra.mxu0 0.0
    %2716 = vmatprep.subr.mxu0 0.0
    %2717 = vmatpush1.msra.mxu0 0.0
    %2718 = vmatprep.subr.mxu0 0.0
    %2719 = vmatpush1.msra.mxu0 0.0
    %2720 = vmatprep.subr.mxu0 0.0
    %2721 = vmatpush1.msra.mxu0 0.0
    %2722 = vmatprep.subr.mxu0 0.0
    %2723 = vmatpush1.msra.mxu0 0.0
    %2724 = vmatprep.subr.mxu0 0.0
    %2725 = vmatpush1.msra.mxu0 0.0
    %2726 = vmatprep.subr.mxu0 0.0
    %2727 = vmatpush1.msra.mxu0 0.0
    %2728 = vmatprep.subr.mxu0 0.0
    %2729 = vmatpush1.msra.mxu0 0.0
    %2730 = vmatprep.subr.mxu0 0.0
    %2731 = vmatpush1.msra.mxu0 0.0
    %2732 = vmatprep.subr.mxu0 0.0
    %2733 = vmatpush1.msra.mxu0 0.0
    %2734 = vmatprep.subr.mxu0 0.0
    %2735 = vmatpush1.msra.mxu0 0.0
    %2736 = vmatprep.subr.mxu0 0.0
    %2737 = vmatpush1.msra.mxu0 0.0
    %2738 = vmatprep.subr.mxu0 0.0
    %2739 = vmatpush1.msra.mxu0 0.0
    %2740 = vmatprep.subr.mxu0 0.0
    %2741 = vmatpush1.msra.mxu0 0.0
    %2742 = vmatprep.subr.mxu0 0.0
    %2743 = vmatpush1.msra.mxu0 0.0
    %2744 = vmatprep.mubr.f32.mxu0 0.0
    %2745 = vmatmul.mubr.f32.gmra.mrb[0].mxu0 %v2604
    %v2746 = vpop.f32.mrb[0].mxu0
    %v2747 = vadd.f32 %v2607, %v2746
    %v2748 = vpop.f32.mrb[0].mxu0
    %v2749 = vadd.f32 %v2608, %v2748
    %2750 = vdwg.mxu0
    %v2751 = vxor.u32 %v2676, 2147483648
    %v2752 = vxor.u32 %v2678, 2147483648
    %v2753 = vxor.u32 %v2747, 2147483648
    %v2754 = vmul.f32 %v2751, 1.442695
    %v2755 = vpow.pop %v2754
    %v2756 = vmul.f32 %v2752, 1.442695
    %v2757 = vpow.pop %v2756
    %v2758 = vmul.f32 %v2753, 1.442695
    %v2759 = vpow.pop %v2758
    %v2760 = vadd.f32 %v2755, 1.0
    %v2761 = vadd.f32 %v2757, 1.0
    %v2762 = vadd.f32 %v2759, 1.0
    %v2763 = vrcp.pop %v2760
    %v2764 = vmul.f32 1.0, %v2763
    %v2765 = vrcp.pop %v2761
    %v2766 = vmul.f32 1.0, %v2765
    %v2767 = vrcp.pop %v2762
    %v2768 = vmul.f32 1.0, %v2767
    %v2769 = vtanh.pop %v2749
    %v2770 = vmul.f32 %v2766, %v2602
    %v2771 = vmul.f32 %v2764, %v2769
    %v2772 = vadd.f32 %v2770, %v2771
    %v2773 = vtanh.pop %v2772
    %v2774 = vmul.f32 %v2768, %v2773
    %v2775 = vsel %vm132, %v2060, %v2066
    %v2776 = vsel %vm133, %v2062, %v2068
    %v2777 = vsel %vm134, %v2173, %v2179
    %v2778 = vsel %vm135, %v2175, %v2181
    %2779 = vmatprep.subr.mxu0 %v2206
    %2780 = vmatpush1.msra.mxu0 %v2205
    %2781 = vmatprep.subr.mxu0 %v2210
    %2782 = vmatpush1.msra.mxu0 %v2209
    %2783 = vmatprep.subr.mxu0 %v2214
    %2784 = vmatpush1.msra.mxu0 %v2213
    %2785 = vmatprep.subr.mxu0 %v2218
    %2786 = vmatpush1.msra.mxu0 %v2217
    %2787 = vmatprep.subr.mxu0 %v2222
    %2788 = vmatpush1.msra.mxu0 %v2221
    %2789 = vmatprep.subr.mxu0 %v2226
    %2790 = vmatpush1.msra.mxu0 %v2225
    %2791 = vmatprep.subr.mxu0 %v2230
    %2792 = vmatpush1.msra.mxu0 %v2229
    %2793 = vmatprep.subr.mxu0 %v2234
    %2794 = vmatpush1.msra.mxu0 %v2233
    %2795 = vmatprep.subr.mxu0 %v2238
    %2796 = vmatpush1.msra.mxu0 %v2237
    %2797 = vmatprep.subr.mxu0 %v2242
    %2798 = vmatpush1.msra.mxu0 %v2241
    %2799 = vmatprep.subr.mxu0 %v2246
    %2800 = vmatpush1.msra.mxu0 %v2245
    %2801 = vmatprep.subr.mxu0 %v2250
    %2802 = vmatpush1.msra.mxu0 %v2249
    %2803 = vmatprep.subr.mxu0 %v2254
    %2804 = vmatpush1.msra.mxu0 %v2253
    %2805 = vmatprep.subr.mxu0 %v2258
    %2806 = vmatpush1.msra.mxu0 %v2257
    %2807 = vmatprep.subr.mxu0 %v2262
    %2808 = vmatpush1.msra.mxu0 %v2261
    %2809 = vmatprep.subr.mxu0 %v2266
    %2810 = vmatpush1.msra.mxu0 %v2265
    %2811 = vmatprep.subr.mxu0 0.0
    %2812 = vmatpush1.msra.mxu0 0.0
    %2813 = vmatprep.subr.mxu0 0.0
    %2814 = vmatpush1.msra.mxu0 0.0
    %2815 = vmatprep.subr.mxu0 0.0
    %2816 = vmatpush1.msra.mxu0 0.0
    %2817 = vmatprep.subr.mxu0 0.0
    %2818 = vmatpush1.msra.mxu0 0.0
    %2819 = vmatprep.subr.mxu0 0.0
    %2820 = vmatpush1.msra.mxu0 0.0
    %2821 = vmatprep.subr.mxu0 0.0
    %2822 = vmatpush1.msra.mxu0 0.0
    %2823 = vmatprep.subr.mxu0 0.0
    %2824 = vmatpush1.msra.mxu0 0.0
    %2825 = vmatprep.subr.mxu0 0.0
    %2826 = vmatpush1.msra.mxu0 0.0
    %2827 = vmatprep.subr.mxu0 0.0
    %2828 = vmatpush1.msra.mxu0 0.0
    %2829 = vmatprep.subr.mxu0 0.0
    %2830 = vmatpush1.msra.mxu0 0.0
    %2831 = vmatprep.subr.mxu0 0.0
    %2832 = vmatpush1.msra.mxu0 0.0
    %2833 = vmatprep.subr.mxu0 0.0
    %2834 = vmatpush1.msra.mxu0 0.0
    %2835 = vmatprep.subr.mxu0 0.0
    %2836 = vmatpush1.msra.mxu0 0.0
    %2837 = vmatprep.subr.mxu0 0.0
    %2838 = vmatpush1.msra.mxu0 0.0
    %2839 = vmatprep.subr.mxu0 0.0
    %2840 = vmatpush1.msra.mxu0 0.0
    %2841 = vmatprep.subr.mxu0 0.0
    %2842 = vmatpush1.msra.mxu0 0.0
    %2843 = vmatprep.mubr.f32.mxu0 0.0
    %2844 = vmatmul.mubr.f32.gmra.mrb[0].mxu0 %v2774
    %v2845 = vpop.f32.mrb[0].mxu0
    %v2846 = vadd.f32 %v2775, %v2845
    %v2847 = vpop.f32.mrb[0].mxu0
    %v2848 = vadd.f32 %v2776, %v2847
    %2849 = vdwg.mxu0
    %2850 = vmatprep.subr.mxu0 %v2208
    %2851 = vmatpush1.msra.mxu0 %v2207
    %2852 = vmatprep.subr.mxu0 %v2212
    %2853 = vmatpush1.msra.mxu0 %v2211
    %2854 = vmatprep.subr.mxu0 %v2216
    %2855 = vmatpush1.msra.mxu0 %v2215
    %2856 = vmatprep.subr.mxu0 %v2220
    %2857 = vmatpush1.msra.mxu0 %v2219
    %2858 = vmatprep.subr.mxu0 %v2224
    %2859 = vmatpush1.msra.mxu0 %v2223
    %2860 = vmatprep.subr.mxu0 %v2228
    %2861 = vmatpush1.msra.mxu0 %v2227
    %2862 = vmatprep.subr.mxu0 %v2232
    %2863 = vmatpush1.msra.mxu0 %v2231
    %2864 = vmatprep.subr.mxu0 %v2236
    %2865 = vmatpush1.msra.mxu0 %v2235
    %2866 = vmatprep.subr.mxu0 %v2240
    %2867 = vmatpush1.msra.mxu0 %v2239
    %2868 = vmatprep.subr.mxu0 %v2244
    %2869 = vmatpush1.msra.mxu0 %v2243
    %2870 = vmatprep.subr.mxu0 %v2248
    %2871 = vmatpush1.msra.mxu0 %v2247
    %2872 = vmatprep.subr.mxu0 %v2252
    %2873 = vmatpush1.msra.mxu0 %v2251
    %2874 = vmatprep.subr.mxu0 %v2256
    %2875 = vmatpush1.msra.mxu0 %v2255
    %2876 = vmatprep.subr.mxu0 %v2260
    %2877 = vmatpush1.msra.mxu0 %v2259
    %2878 = vmatprep.subr.mxu0 %v2264
    %2879 = vmatpush1.msra.mxu0 %v2263
    %2880 = vmatprep.subr.mxu0 %v2268
    %2881 = vmatpush1.msra.mxu0 %v2267
    %2882 = vmatprep.subr.mxu0 0.0
    %2883 = vmatpush1.msra.mxu0 0.0
    %2884 = vmatprep.subr.mxu0 0.0
    %2885 = vmatpush1.msra.mxu0 0.0
    %2886 = vmatprep.subr.mxu0 0.0
    %2887 = vmatpush1.msra.mxu0 0.0
    %2888 = vmatprep.subr.mxu0 0.0
    %2889 = vmatpush1.msra.mxu0 0.0
    %2890 = vmatprep.subr.mxu0 0.0
    %2891 = vmatpush1.msra.mxu0 0.0
    %2892 = vmatprep.subr.mxu0 0.0
    %2893 = vmatpush1.msra.mxu0 0.0
    %2894 = vmatprep.subr.mxu0 0.0
    %2895 = vmatpush1.msra.mxu0 0.0
    %2896 = vmatprep.subr.mxu0 0.0
    %2897 = vmatpush1.msra.mxu0 0.0
    %2898 = vmatprep.subr.mxu0 0.0
    %2899 = vmatpush1.msra.mxu0 0.0
    %2900 = vmatprep.subr.mxu0 0.0
    %2901 = vmatpush1.msra.mxu0 0.0
    %2902 = vmatprep.subr.mxu0 0.0
    %2903 = vmatpush1.msra.mxu0 0.0
    %2904 = vmatprep.subr.mxu0 0.0
    %2905 = vmatpush1.msra.mxu0 0.0
    %2906 = vmatprep.subr.mxu0 0.0
    %2907 = vmatpush1.msra.mxu0 0.0
    %2908 = vmatprep.subr.mxu0 0.0
    %2909 = vmatpush1.msra.mxu0 0.0
    %2910 = vmatprep.subr.mxu0 0.0
    %2911 = vmatpush1.msra.mxu0 0.0
    %2912 = vmatprep.subr.mxu0 0.0
    %2913 = vmatpush1.msra.mxu0 0.0
    %2914 = vmatprep.mubr.f32.mxu0 0.0
    %2915 = vmatmul.mubr.f32.gmra.mrb[0].mxu0 %v2774
    %v2916 = vpop.f32.mrb[0].mxu0
    %v2917 = vadd.f32 %v2777, %v2916
    %v2918 = vpop.f32.mrb[0].mxu0
    %v2919 = vadd.f32 %v2778, %v2918
    %2920 = vdwg.mxu0
    %v2921 = vxor.u32 %v2846, 2147483648
    %v2922 = vxor.u32 %v2848, 2147483648
    %v2923 = vxor.u32 %v2917, 2147483648
    %v2924 = vmul.f32 %v2921, 1.442695
    %v2925 = vpow.pop %v2924
    %v2926 = vmul.f32 %v2922, 1.442695
    %v2927 = vpow.pop %v2926
    %v2928 = vmul.f32 %v2923, 1.442695
    %v2929 = vpow.pop %v2928
    %v2930 = vadd.f32 %v2925, 1.0
    %v2931 = vadd.f32 %v2927, 1.0
    %v2932 = vadd.f32 %v2929, 1.0
    %v2933 = vrcp.pop %v2930
    %v2934 = vmul.f32 1.0, %v2933
    %v2935 = vrcp.pop %v2931
    %v2936 = vmul.f32 1.0, %v2935
    %v2937 = vrcp.pop %v2932
    %v2938 = vmul.f32 1.0, %v2937
    %v2939 = vtanh.pop %v2919
    %v2940 = vmul.f32 %v2936, %v2772
    %v2941 = vmul.f32 %v2934, %v2939
    %v2942 = vadd.f32 %v2940, %v2941
    %v2943 = vtanh.pop %v2942
    %v2944 = vmul.f32 %v2938, %v2943
    %v2945 = vsel %vm132, %v2066, %v2060
    %v2946 = vsel %vm133, %v2068, %v2062
    %v2947 = vsel %vm134, %v2179, %v2173
    %v2948 = vsel %vm135, %v2181, %v2175
    %2949 = vmatprep.subr.mxu0 %v2206
    %2950 = vmatpush1.msra.mxu0 %v2205
    %2951 = vmatprep.subr.mxu0 %v2210
    %2952 = vmatpush1.msra.mxu0 %v2209
    %2953 = vmatprep.subr.mxu0 %v2214
    %2954 = vmatpush1.msra.mxu0 %v2213
    %2955 = vmatprep.subr.mxu0 %v2218
    %2956 = vmatpush1.msra.mxu0 %v2217
    %2957 = vmatprep.subr.mxu0 %v2222
    %2958 = vmatpush1.msra.mxu0 %v2221
    %2959 = vmatprep.subr.mxu0 %v2226
    %2960 = vmatpush1.msra.mxu0 %v2225
    %2961 = vmatprep.subr.mxu0 %v2230
    %2962 = vmatpush1.msra.mxu0 %v2229
    %2963 = vmatprep.subr.mxu0 %v2234
    %2964 = vmatpush1.msra.mxu0 %v2233
    %2965 = vmatprep.subr.mxu0 %v2238
    %2966 = vmatpush1.msra.mxu0 %v2237
    %2967 = vmatprep.subr.mxu0 %v2242
    %2968 = vmatpush1.msra.mxu0 %v2241
    %2969 = vmatprep.subr.mxu0 %v2246
    %2970 = vmatpush1.msra.mxu0 %v2245
    %2971 = vmatprep.subr.mxu0 %v2250
    %2972 = vmatpush1.msra.mxu0 %v2249
    %2973 = vmatprep.subr.mxu0 %v2254
    %2974 = vmatpush1.msra.mxu0 %v2253
    %2975 = vmatprep.subr.mxu0 %v2258
    %2976 = vmatpush1.msra.mxu0 %v2257
    %2977 = vmatprep.subr.mxu0 %v2262
    %2978 = vmatpush1.msra.mxu0 %v2261
    %2979 = vmatprep.subr.mxu0 %v2266
    %2980 = vmatpush1.msra.mxu0 %v2265
    %2981 = vmatprep.subr.mxu0 0.0
    %2982 = vmatpush1.msra.mxu0 0.0
    %2983 = vmatprep.subr.mxu0 0.0
    %2984 = vmatpush1.msra.mxu0 0.0
    %2985 = vmatprep.subr.mxu0 0.0
    %2986 = vmatpush1.msra.mxu0 0.0
    %2987 = vmatprep.subr.mxu0 0.0
    %2988 = vmatpush1.msra.mxu0 0.0
    %2989 = vmatprep.subr.mxu0 0.0
    %2990 = vmatpush1.msra.mxu0 0.0
    %2991 = vmatprep.subr.mxu0 0.0
    %2992 = vmatpush1.msra.mxu0 0.0
    %2993 = vmatprep.subr.mxu0 0.0
    %2994 = vmatpush1.msra.mxu0 0.0
    %2995 = vmatprep.subr.mxu0 0.0
    %2996 = vmatpush1.msra.mxu0 0.0
    %2997 = vmatprep.subr.mxu0 0.0
    %2998 = vmatpush1.msra.mxu0 0.0
    %2999 = vmatprep.subr.mxu0 0.0
    %3000 = vmatpush1.msra.mxu0 0.0
    %3001 = vmatprep.subr.mxu0 0.0
    %3002 = vmatpush1.msra.mxu0 0.0
    %3003 = vmatprep.subr.mxu0 0.0
    %3004 = vmatpush1.msra.mxu0 0.0
    %3005 = vmatprep.subr.mxu0 0.0
    %3006 = vmatpush1.msra.mxu0 0.0
    %3007 = vmatprep.subr.mxu0 0.0
    %3008 = vmatpush1.msra.mxu0 0.0
    %3009 = vmatprep.subr.mxu0 0.0
    %3010 = vmatpush1.msra.mxu0 0.0
    %3011 = vmatprep.subr.mxu0 0.0
    %3012 = vmatpush1.msra.mxu0 0.0
    %3013 = vmatprep.mubr.f32.mxu0 0.0
    %3014 = vmatmul.mubr.f32.gmra.mrb[0].mxu0 %v2944
    %v3015 = vpop.f32.mrb[0].mxu0
    %v3016 = vadd.f32 %v2945, %v3015
    %v3017 = vpop.f32.mrb[0].mxu0
    %v3018 = vadd.f32 %v2946, %v3017
    %3019 = vdwg.mxu0
    %3020 = vmatprep.subr.mxu0 %v2208
    %3021 = vmatpush1.msra.mxu0 %v2207
    %3022 = vmatprep.subr.mxu0 %v2212
    %3023 = vmatpush1.msra.mxu0 %v2211
    %3024 = vmatprep.subr.mxu0 %v2216
    %3025 = vmatpush1.msra.mxu0 %v2215
    %3026 = vmatprep.subr.mxu0 %v2220
    %3027 = vmatpush1.msra.mxu0 %v2219
    %3028 = vmatprep.subr.mxu0 %v2224
    %3029 = vmatpush1.msra.mxu0 %v2223
    %3030 = vmatprep.subr.mxu0 %v2228
    %3031 = vmatpush1.msra.mxu0 %v2227
    %3032 = vmatprep.subr.mxu0 %v2232
    %3033 = vmatpush1.msra.mxu0 %v2231
    %3034 = vmatprep.subr.mxu0 %v2236
    %3035 = vmatpush1.msra.mxu0 %v2235
    %3036 = vmatprep.subr.mxu0 %v2240
    %3037 = vmatpush1.msra.mxu0 %v2239
    %3038 = vmatprep.subr.mxu0 %v2244
    %3039 = vmatpush1.msra.mxu0 %v2243
    %3040 = vmatprep.subr.mxu0 %v2248
    %3041 = vmatpush1.msra.mxu0 %v2247
    %3042 = vmatprep.subr.mxu0 %v2252
    %3043 = vmatpush1.msra.mxu0 %v2251
    %3044 = vmatprep.subr.mxu0 %v2256
    %3045 = vmatpush1.msra.mxu0 %v2255
    %3046 = vmatprep.subr.mxu0 %v2260
    %3047 = vmatpush1.msra.mxu0 %v2259
    %3048 = vmatprep.subr.mxu0 %v2264
    %3049 = vmatpush1.msra.mxu0 %v2263
    %3050 = vmatprep.subr.mxu0 %v2268
    %3051 = vmatpush1.msra.mxu0 %v2267
    %3052 = vmatprep.subr.mxu0 0.0
    %3053 = vmatpush1.msra.mxu0 0.0
    %3054 = vmatprep.subr.mxu0 0.0
    %3055 = vmatpush1.msra.mxu0 0.0
    %3056 = vmatprep.subr.mxu0 0.0
    %3057 = vmatpush1.msra.mxu0 0.0
    %3058 = vmatprep.subr.mxu0 0.0
    %3059 = vmatpush1.msra.mxu0 0.0
    %3060 = vmatprep.subr.mxu0 0.0
    %3061 = vmatpush1.msra.mxu0 0.0
    %3062 = vmatprep.subr.mxu0 0.0
    %3063 = vmatpush1.msra.mxu0 0.0
    %3064 = vmatprep.subr.mxu0 0.0
    %3065 = vmatpush1.msra.mxu0 0.0
    %3066 = vmatprep.subr.mxu0 0.0
    %3067 = vmatpush1.msra.mxu0 0.0
    %3068 = vmatprep.subr.mxu0 0.0
    %3069 = vmatpush1.msra.mxu0 0.0
    %3070 = vmatprep.subr.mxu0 0.0
    %3071 = vmatpush1.msra.mxu0 0.0
    %3072 = vmatprep.subr.mxu0 0.0
    %3073 = vmatpush1.msra.mxu0 0.0
    %3074 = vmatprep.subr.mxu0 0.0
    %3075 = vmatpush1.msra.mxu0 0.0
    %3076 = vmatprep.subr.mxu0 0.0
    %3077 = vmatpush1.msra.mxu0 0.0
    %3078 = vmatprep.subr.mxu0 0.0
    %3079 = vmatpush1.msra.mxu0 0.0
    %3080 = vmatprep.subr.mxu0 0.0
    %3081 = vmatpush1.msra.mxu0 0.0
    %3082 = vmatprep.subr.mxu0 0.0
    %3083 = vmatpush1.msra.mxu0 0.0
    %3084 = vmatprep.mubr.f32.mxu0 0.0
    %3085 = vmatmul.mubr.f32.gmra.mrb[0].mxu0 %v2944
    %v3086 = vpop.f32.mrb[0].mxu0
    %v3087 = vadd.f32 %v2947, %v3086
    %v3088 = vpop.f32.mrb[0].mxu0
    %v3089 = vadd.f32 %v2948, %v3088
    %3090 = vdwg.mxu0
    %v3091 = vxor.u32 %v3016, 2147483648
    %v3092 = vxor.u32 %v3018, 2147483648
    %v3093 = vxor.u32 %v3087, 2147483648
    %v3094 = vmul.f32 %v3091, 1.442695
    %v3095 = vpow.pop %v3094
    %v3096 = vmul.f32 %v3092, 1.442695
    %v3097 = vpow.pop %v3096
    %v3098 = vmul.f32 %v3093, 1.442695
    %v3099 = vpow.pop %v3098
    %v3100 = vadd.f32 %v3095, 1.0
    %v3101 = vadd.f32 %v3097, 1.0
    %v3102 = vadd.f32 %v3099, 1.0
    %v3103 = vrcp.pop %v3100
    %v3104 = vmul.f32 1.0, %v3103
    %v3105 = vrcp.pop %v3101
    %v3106 = vmul.f32 1.0, %v3105
    %v3107 = vrcp.pop %v3102
    %v3108 = vmul.f32 1.0, %v3107
    %v3109 = vtanh.pop %v3089
    %v3110 = vmul.f32 %v3106, %v2942
    %v3111 = vmul.f32 %v3104, %v3109
    %v3112 = vadd.f32 %v3110, %v3111
    %v3113 = vtanh.pop %v3112
    %v3114 = vmul.f32 %v3108, %v3113
    %v3115 = vsel %vm132, %v2072, %v2054
    %v3116 = vsel %vm133, %v2074, %v2056
    %v3117 = vsel %vm134, %v2185, %v2167
    %v3118 = vsel %vm135, %v2187, %v2169
    %3119 = vmatprep.subr.mxu0 %v2206
    %3120 = vmatpush1.msra.mxu0 %v2205
    %3121 = vmatprep.subr.mxu0 %v2210
    %3122 = vmatpush1.msra.mxu0 %v2209
    %3123 = vmatprep.subr.mxu0 %v2214
    %3124 = vmatpush1.msra.mxu0 %v2213
    %3125 = vmatprep.subr.mxu0 %v2218
    %3126 = vmatpush1.msra.mxu0 %v2217
    %3127 = vmatprep.subr.mxu0 %v2222
    %3128 = vmatpush1.msra.mxu0 %v2221
    %3129 = vmatprep.subr.mxu0 %v2226
    %3130 = vmatpush1.msra.mxu0 %v2225
    %3131 = vmatprep.subr.mxu0 %v2230
    %3132 = vmatpush1.msra.mxu0 %v2229
    %3133 = vmatprep.subr.mxu0 %v2234
    %3134 = vmatpush1.msra.mxu0 %v2233
    %3135 = vmatprep.subr.mxu0 %v2238
    %3136 = vmatpush1.msra.mxu0 %v2237
    %3137 = vmatprep.subr.mxu0 %v2242
    %3138 = vmatpush1.msra.mxu0 %v2241
    %3139 = vmatprep.subr.mxu0 %v2246
    %3140 = vmatpush1.msra.mxu0 %v2245
    %3141 = vmatprep.subr.mxu0 %v2250
    %3142 = vmatpush1.msra.mxu0 %v2249
    %3143 = vmatprep.subr.mxu0 %v2254
    %3144 = vmatpush1.msra.mxu0 %v2253
    %3145 = vmatprep.subr.mxu0 %v2258
    %3146 = vmatpush1.msra.mxu0 %v2257
    %3147 = vmatprep.subr.mxu0 %v2262
    %3148 = vmatpush1.msra.mxu0 %v2261
    %3149 = vmatprep.subr.mxu0 %v2266
    %3150 = vmatpush1.msra.mxu0 %v2265
    %3151 = vmatprep.subr.mxu0 0.0
    %3152 = vmatpush1.msra.mxu0 0.0
    %3153 = vmatprep.subr.mxu0 0.0
    %3154 = vmatpush1.msra.mxu0 0.0
    %3155 = vmatprep.subr.mxu0 0.0
    %3156 = vmatpush1.msra.mxu0 0.0
    %3157 = vmatprep.subr.mxu0 0.0
    %3158 = vmatpush1.msra.mxu0 0.0
    %3159 = vmatprep.subr.mxu0 0.0
    %3160 = vmatpush1.msra.mxu0 0.0
    %3161 = vmatprep.subr.mxu0 0.0
    %3162 = vmatpush1.msra.mxu0 0.0
    %3163 = vmatprep.subr.mxu0 0.0
    %3164 = vmatpush1.msra.mxu0 0.0
    %3165 = vmatprep.subr.mxu0 0.0
    %3166 = vmatpush1.msra.mxu0 0.0
    %3167 = vmatprep.subr.mxu0 0.0
    %3168 = vmatpush1.msra.mxu0 0.0
    %3169 = vmatprep.subr.mxu0 0.0
    %3170 = vmatpush1.msra.mxu0 0.0
    %3171 = vmatprep.subr.mxu0 0.0
    %3172 = vmatpush1.msra.mxu0 0.0
    %3173 = vmatprep.subr.mxu0 0.0
    %3174 = vmatpush1.msra.mxu0 0.0
    %3175 = vmatprep.subr.mxu0 0.0
    %3176 = vmatpush1.msra.mxu0 0.0
    %3177 = vmatprep.subr.mxu0 0.0
    %3178 = vmatpush1.msra.mxu0 0.0
    %3179 = vmatprep.subr.mxu0 0.0
    %3180 = vmatpush1.msra.mxu0 0.0
    %3181 = vmatprep.subr.mxu0 0.0
    %3182 = vmatpush1.msra.mxu0 0.0
    %3183 = vmatprep.mubr.f32.mxu0 0.0
    %3184 = vmatmul.mubr.f32.gmra.mrb[0].mxu0 %v3114
    %v3185 = vpop.f32.mrb[0].mxu0
    %v3186 = vadd.f32 %v3115, %v3185
    %v3187 = vpop.f32.mrb[0].mxu0
    %v3188 = vadd.f32 %v3116, %v3187
    %3189 = vdwg.mxu0
    %3190 = vmatprep.subr.mxu0 %v2208
    %3191 = vmatpush1.msra.mxu0 %v2207
    %3192 = vmatprep.subr.mxu0 %v2212
    %3193 = vmatpush1.msra.mxu0 %v2211
    %3194 = vmatprep.subr.mxu0 %v2216
    %3195 = vmatpush1.msra.mxu0 %v2215
    %3196 = vmatprep.subr.mxu0 %v2220
    %3197 = vmatpush1.msra.mxu0 %v2219
    %3198 = vmatprep.subr.mxu0 %v2224
    %3199 = vmatpush1.msra.mxu0 %v2223
    %3200 = vmatprep.subr.mxu0 %v2228
    %3201 = vmatpush1.msra.mxu0 %v2227
    %3202 = vmatprep.subr.mxu0 %v2232
    %3203 = vmatpush1.msra.mxu0 %v2231
    %3204 = vmatprep.subr.mxu0 %v2236
    %3205 = vmatpush1.msra.mxu0 %v2235
    %3206 = vmatprep.subr.mxu0 %v2240
    %3207 = vmatpush1.msra.mxu0 %v2239
    %3208 = vmatprep.subr.mxu0 %v2244
    %3209 = vmatpush1.msra.mxu0 %v2243
    %3210 = vmatprep.subr.mxu0 %v2248
    %3211 = vmatpush1.msra.mxu0 %v2247
    %3212 = vmatprep.subr.mxu0 %v2252
    %3213 = vmatpush1.msra.mxu0 %v2251
    %3214 = vmatprep.subr.mxu0 %v2256
    %3215 = vmatpush1.msra.mxu0 %v2255
    %3216 = vmatprep.subr.mxu0 %v2260
    %3217 = vmatpush1.msra.mxu0 %v2259
    %3218 = vmatprep.subr.mxu0 %v2264
    %3219 = vmatpush1.msra.mxu0 %v2263
    %3220 = vmatprep.subr.mxu0 %v2268
    %3221 = vmatpush1.msra.mxu0 %v2267
    %3222 = vmatprep.subr.mxu0 0.0
    %3223 = vmatpush1.msra.mxu0 0.0
    %3224 = vmatprep.subr.mxu0 0.0
    %3225 = vmatpush1.msra.mxu0 0.0
    %3226 = vmatprep.subr.mxu0 0.0
    %3227 = vmatpush1.msra.mxu0 0.0
    %3228 = vmatprep.subr.mxu0 0.0
    %3229 = vmatpush1.msra.mxu0 0.0
    %3230 = vmatprep.subr.mxu0 0.0
    %3231 = vmatpush1.msra.mxu0 0.0
    %3232 = vmatprep.subr.mxu0 0.0
    %3233 = vmatpush1.msra.mxu0 0.0
    %3234 = vmatprep.subr.mxu0 0.0
    %3235 = vmatpush1.msra.mxu0 0.0
    %3236 = vmatprep.subr.mxu0 0.0
    %3237 = vmatpush1.msra.mxu0 0.0
    %3238 = vmatprep.subr.mxu0 0.0
    %3239 = vmatpush1.msra.mxu0 0.0
    %3240 = vmatprep.subr.mxu0 0.0
    %3241 = vmatpush1.msra.mxu0 0.0
    %3242 = vmatprep.subr.mxu0 0.0
    %3243 = vmatpush1.msra.mxu0 0.0
    %3244 = vmatprep.subr.mxu0 0.0
    %3245 = vmatpush1.msra.mxu0 0.0
    %3246 = vmatprep.subr.mxu0 0.0
    %3247 = vmatpush1.msra.mxu0 0.0
    %3248 = vmatprep.subr.mxu0 0.0
    %3249 = vmatpush1.msra.mxu0 0.0
    %3250 = vmatprep.subr.mxu0 0.0
    %3251 = vmatpush1.msra.mxu0 0.0
    %3252 = vmatprep.subr.mxu0 0.0
    %3253 = vmatpush1.msra.mxu0 0.0
    %3254 = vmatprep.mubr.f32.mxu0 0.0
    %3255 = vmatmul.mubr.f32.gmra.mrb[0].mxu0 %v3114
    %v3256 = vpop.f32.mrb[0].mxu0
    %v3257 = vadd.f32 %v3117, %v3256
    %v3258 = vpop.f32.mrb[0].mxu0
    %v3259 = vadd.f32 %v3118, %v3258
    %3260 = vdwg.mxu0
    %v3261 = vxor.u32 %v3186, 2147483648
    %v3262 = vxor.u32 %v3188, 2147483648
    %v3263 = vxor.u32 %v3257, 2147483648
    %v3264 = vmul.f32 %v3261, 1.442695
    %v3265 = vpow.pop %v3264
    %v3266 = vmul.f32 %v3262, 1.442695
    %v3267 = vpow.pop %v3266
    %v3268 = vmul.f32 %v3263, 1.442695
    %v3269 = vpow.pop %v3268
    %v3270 = vadd.f32 %v3265, 1.0
    %v3271 = vadd.f32 %v3267, 1.0
    %v3272 = vadd.f32 %v3269, 1.0
    %v3273 = vrcp.pop %v3270
    %v3274 = vmul.f32 1.0, %v3273
    %v3275 = vrcp.pop %v3271
    %v3276 = vmul.f32 1.0, %v3275
    %v3277 = vrcp.pop %v3272
    %v3278 = vmul.f32 1.0, %v3277
    %v3279 = vtanh.pop %v3259
    %v3280 = vmul.f32 %v3276, %v3112
    %v3281 = vmul.f32 %v3274, %v3279
    %v3282 = vadd.f32 %v3280, %v3281
    %v3283 = vtanh.pop %v3282
    %v3284 = vmul.f32 %v3278, %v3283
    %v3285 = vsel %vm132, %v2078, %v2048
    %v3286 = vsel %vm133, %v2080, %v2050
    %v3287 = vsel %vm134, %v2191, %v2161
    %v3288 = vsel %vm135, %v2193, %v2163
    %3289 = vmatprep.subr.mxu0 %v2206
    %3290 = vmatpush1.msra.mxu0 %v2205
    %3291 = vmatprep.subr.mxu0 %v2210
    %3292 = vmatpush1.msra.mxu0 %v2209
    %3293 = vmatprep.subr.mxu0 %v2214
    %3294 = vmatpush1.msra.mxu0 %v2213
    %3295 = vmatprep.subr.mxu0 %v2218
    %3296 = vmatpush1.msra.mxu0 %v2217
    %3297 = vmatprep.subr.mxu0 %v2222
    %3298 = vmatpush1.msra.mxu0 %v2221
    %3299 = vmatprep.subr.mxu0 %v2226
    %3300 = vmatpush1.msra.mxu0 %v2225
    %3301 = vmatprep.subr.mxu0 %v2230
    %3302 = vmatpush1.msra.mxu0 %v2229
    %3303 = vmatprep.subr.mxu0 %v2234
    %3304 = vmatpush1.msra.mxu0 %v2233
    %3305 = vmatprep.subr.mxu0 %v2238
    %3306 = vmatpush1.msra.mxu0 %v2237
    %3307 = vmatprep.subr.mxu0 %v2242
    %3308 = vmatpush1.msra.mxu0 %v2241
    %3309 = vmatprep.subr.mxu0 %v2246
    %3310 = vmatpush1.msra.mxu0 %v2245
    %3311 = vmatprep.subr.mxu0 %v2250
    %3312 = vmatpush1.msra.mxu0 %v2249
    %3313 = vmatprep.subr.mxu0 %v2254
    %3314 = vmatpush1.msra.mxu0 %v2253
    %3315 = vmatprep.subr.mxu0 %v2258
    %3316 = vmatpush1.msra.mxu0 %v2257
    %3317 = vmatprep.subr.mxu0 %v2262
    %3318 = vmatpush1.msra.mxu0 %v2261
    %3319 = vmatprep.subr.mxu0 %v2266
    %3320 = vmatpush1.msra.mxu0 %v2265
    %3321 = vmatprep.subr.mxu0 0.0
    %3322 = vmatpush1.msra.mxu0 0.0
    %3323 = vmatprep.subr.mxu0 0.0
    %3324 = vmatpush1.msra.mxu0 0.0
    %3325 = vmatprep.subr.mxu0 0.0
    %3326 = vmatpush1.msra.mxu0 0.0
    %3327 = vmatprep.subr.mxu0 0.0
    %3328 = vmatpush1.msra.mxu0 0.0
    %3329 = vmatprep.subr.mxu0 0.0
    %3330 = vmatpush1.msra.mxu0 0.0
    %3331 = vmatprep.subr.mxu0 0.0
    %3332 = vmatpush1.msra.mxu0 0.0
    %3333 = vmatprep.subr.mxu0 0.0
    %3334 = vmatpush1.msra.mxu0 0.0
    %3335 = vmatprep.subr.mxu0 0.0
    %3336 = vmatpush1.msra.mxu0 0.0
    %3337 = vmatprep.subr.mxu0 0.0
    %3338 = vmatpush1.msra.mxu0 0.0
    %3339 = vmatprep.subr.mxu0 0.0
    %3340 = vmatpush1.msra.mxu0 0.0
    %3341 = vmatprep.subr.mxu0 0.0
    %3342 = vmatpush1.msra.mxu0 0.0
    %3343 = vmatprep.subr.mxu0 0.0
    %3344 = vmatpush1.msra.mxu0 0.0
    %3345 = vmatprep.subr.mxu0 0.0
    %3346 = vmatpush1.msra.mxu0 0.0
    %3347 = vmatprep.subr.mxu0 0.0
    %3348 = vmatpush1.msra.mxu0 0.0
    %3349 = vmatprep.subr.mxu0 0.0
    %3350 = vmatpush1.msra.mxu0 0.0
    %3351 = vmatprep.subr.mxu0 0.0
    %3352 = vmatpush1.msra.mxu0 0.0
    %3353 = vmatprep.mubr.f32.mxu0 0.0
    %3354 = vmatmul.mubr.f32.gmra.mrb[0].mxu0 %v3284
    %v3355 = vpop.f32.mrb[0].mxu0
    %v3356 = vadd.f32 %v3285, %v3355
    %v3357 = vpop.f32.mrb[0].mxu0
    %v3358 = vadd.f32 %v3286, %v3357
    %3359 = vdwg.mxu0
    %3360 = vmatprep.subr.mxu0 %v2208
    %3361 = vmatpush1.msra.mxu0 %v2207
    %3362 = vmatprep.subr.mxu0 %v2212
    %3363 = vmatpush1.msra.mxu0 %v2211
    %3364 = vmatprep.subr.mxu0 %v2216
    %3365 = vmatpush1.msra.mxu0 %v2215
    %3366 = vmatprep.subr.mxu0 %v2220
    %3367 = vmatpush1.msra.mxu0 %v2219
    %3368 = vmatprep.subr.mxu0 %v2224
    %3369 = vmatpush1.msra.mxu0 %v2223
    %3370 = vmatprep.subr.mxu0 %v2228
    %3371 = vmatpush1.msra.mxu0 %v2227
    %3372 = vmatprep.subr.mxu0 %v2232
    %3373 = vmatpush1.msra.mxu0 %v2231
    %3374 = vmatprep.subr.mxu0 %v2236
    %3375 = vmatpush1.msra.mxu0 %v2235
    %3376 = vmatprep.subr.mxu0 %v2240
    %3377 = vmatpush1.msra.mxu0 %v2239
    %3378 = vmatprep.subr.mxu0 %v2244
    %3379 = vmatpush1.msra.mxu0 %v2243
    %3380 = vmatprep.subr.mxu0 %v2248
    %3381 = vmatpush1.msra.mxu0 %v2247
    %3382 = vmatprep.subr.mxu0 %v2252
    %3383 = vmatpush1.msra.mxu0 %v2251
    %3384 = vmatprep.subr.mxu0 %v2256
    %3385 = vmatpush1.msra.mxu0 %v2255
    %3386 = vmatprep.subr.mxu0 %v2260
    %3387 = vmatpush1.msra.mxu0 %v2259
    %3388 = vmatprep.subr.mxu0 %v2264
    %3389 = vmatpush1.msra.mxu0 %v2263
    %3390 = vmatprep.subr.mxu0 %v2268
    %3391 = vmatpush1.msra.mxu0 %v2267
    %3392 = vmatprep.subr.mxu0 0.0
    %3393 = vmatpush1.msra.mxu0 0.0
    %3394 = vmatprep.subr.mxu0 0.0
    %3395 = vmatpush1.msra.mxu0 0.0
    %3396 = vmatprep.subr.mxu0 0.0
    %3397 = vmatpush1.msra.mxu0 0.0
    %3398 = vmatprep.subr.mxu0 0.0
    %3399 = vmatpush1.msra.mxu0 0.0
    %3400 = vmatprep.subr.mxu0 0.0
    %3401 = vmatpush1.msra.mxu0 0.0
    %3402 = vmatprep.subr.mxu0 0.0
    %3403 = vmatpush1.msra.mxu0 0.0
    %3404 = vmatprep.subr.mxu0 0.0
    %3405 = vmatpush1.msra.mxu0 0.0
    %3406 = vmatprep.subr.mxu0 0.0
    %3407 = vmatpush1.msra.mxu0 0.0
    %3408 = vmatprep.subr.mxu0 0.0
    %3409 = vmatpush1.msra.mxu0 0.0
    %3410 = vmatprep.subr.mxu0 0.0
    %3411 = vmatpush1.msra.mxu0 0.0
    %3412 = vmatprep.subr.mxu0 0.0
    %3413 = vmatpush1.msra.mxu0 0.0
    %3414 = vmatprep.subr.mxu0 0.0
    %3415 = vmatpush1.msra.mxu0 0.0
    %3416 = vmatprep.subr.mxu0 0.0
    %3417 = vmatpush1.msra.mxu0 0.0
    %3418 = vmatprep.subr.mxu0 0.0
    %3419 = vmatpush1.msra.mxu0 0.0
    %3420 = vmatprep.subr.mxu0 0.0
    %3421 = vmatpush1.msra.mxu0 0.0
    %3422 = vmatprep.subr.mxu0 0.0
    %3423 = vmatpush1.msra.mxu0 0.0
    %3424 = vmatprep.mubr.f32.mxu0 0.0
    %3425 = vmatmul.mubr.f32.gmra.mrb[0].mxu0 %v3284
    %v3426 = vpop.f32.mrb[0].mxu0
    %v3427 = vadd.f32 %v3287, %v3426
    %v3428 = vpop.f32.mrb[0].mxu0
    %v3429 = vadd.f32 %v3288, %v3428
    %3430 = vdwg.mxu0
    %v3431 = vxor.u32 %v3356, 2147483648
    %v3432 = vxor.u32 %v3358, 2147483648
    %v3433 = vxor.u32 %v3427, 2147483648
    %v3434 = vmul.f32 %v3431, 1.442695
    %v3435 = vpow.pop %v3434
    %v3436 = vmul.f32 %v3432, 1.442695
    %v3437 = vpow.pop %v3436
    %v3438 = vmul.f32 %v3433, 1.442695
    %v3439 = vpow.pop %v3438
    %v3440 = vadd.f32 %v3435, 1.0
    %v3441 = vadd.f32 %v3437, 1.0
    %v3442 = vadd.f32 %v3439, 1.0
    %v3443 = vrcp.pop %v3440
    %v3444 = vmul.f32 1.0, %v3443
    %v3445 = vrcp.pop %v3441
    %v3446 = vmul.f32 1.0, %v3445
    %v3447 = vrcp.pop %v3442
    %v3448 = vmul.f32 1.0, %v3447
    %v3449 = vtanh.pop %v3429
    %v3450 = vmul.f32 %v3446, %v3282
    %v3451 = vmul.f32 %v3444, %v3449
    %v3452 = vadd.f32 %v3450, %v3451
    %v3453 = vtanh.pop %v3452
    %v3454 = vmul.f32 %v3448, %v3453
    %v3455 = vsel %vm132, %v2084, %v2042
    %v3456 = vsel %vm133, %v2086, %v2044
    %v3457 = vsel %vm134, %v2197, %v2155
    %v3458 = vsel %vm135, %v2199, %v2157
    %3459 = vmatprep.subr.mxu0 %v2206
    %3460 = vmatpush1.msra.mxu0 %v2205
    %3461 = vmatprep.subr.mxu0 %v2210
    %3462 = vmatpush1.msra.mxu0 %v2209
    %3463 = vmatprep.subr.mxu0 %v2214
    %3464 = vmatpush1.msra.mxu0 %v2213
    %3465 = vmatprep.subr.mxu0 %v2218
    %3466 = vmatpush1.msra.mxu0 %v2217
    %3467 = vmatprep.subr.mxu0 %v2222
    %3468 = vmatpush1.msra.mxu0 %v2221
    %3469 = vmatprep.subr.mxu0 %v2226
    %3470 = vmatpush1.msra.mxu0 %v2225
    %3471 = vmatprep.subr.mxu0 %v2230
    %3472 = vmatpush1.msra.mxu0 %v2229
    %3473 = vmatprep.subr.mxu0 %v2234
    %3474 = vmatpush1.msra.mxu0 %v2233
    %3475 = vmatprep.subr.mxu0 %v2238
    %3476 = vmatpush1.msra.mxu0 %v2237
    %3477 = vmatprep.subr.mxu0 %v2242
    %3478 = vmatpush1.msra.mxu0 %v2241
    %3479 = vmatprep.subr.mxu0 %v2246
    %3480 = vmatpush1.msra.mxu0 %v2245
    %3481 = vmatprep.subr.mxu0 %v2250
    %3482 = vmatpush1.msra.mxu0 %v2249
    %3483 = vmatprep.subr.mxu0 %v2254
    %3484 = vmatpush1.msra.mxu0 %v2253
    %3485 = vmatprep.subr.mxu0 %v2258
    %3486 = vmatpush1.msra.mxu0 %v2257
    %3487 = vmatprep.subr.mxu0 %v2262
    %3488 = vmatpush1.msra.mxu0 %v2261
    %3489 = vmatprep.subr.mxu0 %v2266
    %3490 = vmatpush1.msra.mxu0 %v2265
    %3491 = vmatprep.subr.mxu0 0.0
    %3492 = vmatpush1.msra.mxu0 0.0
    %3493 = vmatprep.subr.mxu0 0.0
    %3494 = vmatpush1.msra.mxu0 0.0
    %3495 = vmatprep.subr.mxu0 0.0
    %3496 = vmatpush1.msra.mxu0 0.0
    %3497 = vmatprep.subr.mxu0 0.0
    %3498 = vmatpush1.msra.mxu0 0.0
    %3499 = vmatprep.subr.mxu0 0.0
    %3500 = vmatpush1.msra.mxu0 0.0
    %3501 = vmatprep.subr.mxu0 0.0
    %3502 = vmatpush1.msra.mxu0 0.0
    %3503 = vmatprep.subr.mxu0 0.0
    %3504 = vmatpush1.msra.mxu0 0.0
    %3505 = vmatprep.subr.mxu0 0.0
    %3506 = vmatpush1.msra.mxu0 0.0
    %3507 = vmatprep.subr.mxu0 0.0
    %3508 = vmatpush1.msra.mxu0 0.0
    %3509 = vmatprep.subr.mxu0 0.0
    %3510 = vmatpush1.msra.mxu0 0.0
    %3511 = vmatprep.subr.mxu0 0.0
    %3512 = vmatpush1.msra.mxu0 0.0
    %3513 = vmatprep.subr.mxu0 0.0
    %3514 = vmatpush1.msra.mxu0 0.0
    %3515 = vmatprep.subr.mxu0 0.0
    %3516 = vmatpush1.msra.mxu0 0.0
    %3517 = vmatprep.subr.mxu0 0.0
    %3518 = vmatpush1.msra.mxu0 0.0
    %3519 = vmatprep.subr.mxu0 0.0
    %3520 = vmatpush1.msra.mxu0 0.0
    %3521 = vmatprep.subr.mxu0 0.0
    %3522 = vmatpush1.msra.mxu0 0.0
    %3523 = vmatprep.mubr.f32.mxu0 0.0
    %3524 = vmatmul.mubr.f32.gmra.mrb[0].mxu0 %v3454
    %v3525 = vpop.f32.mrb[0].mxu0
    %v3526 = vadd.f32 %v3455, %v3525
    %v3527 = vpop.f32.mrb[0].mxu0
    %v3528 = vadd.f32 %v3456, %v3527
    %3529 = vdwg.mxu0
    %3530 = vmatprep.subr.mxu0 %v2208
    %3531 = vmatpush1.msra.mxu0 %v2207
    %3532 = vmatprep.subr.mxu0 %v2212
    %3533 = vmatpush1.msra.mxu0 %v2211
    %3534 = vmatprep.subr.mxu0 %v2216
    %3535 = vmatpush1.msra.mxu0 %v2215
    %3536 = vmatprep.subr.mxu0 %v2220
    %3537 = vmatpush1.msra.mxu0 %v2219
    %3538 = vmatprep.subr.mxu0 %v2224
    %3539 = vmatpush1.msra.mxu0 %v2223
    %3540 = vmatprep.subr.mxu0 %v2228
    %3541 = vmatpush1.msra.mxu0 %v2227
    %3542 = vmatprep.subr.mxu0 %v2232
    %3543 = vmatpush1.msra.mxu0 %v2231
    %3544 = vmatprep.subr.mxu0 %v2236
    %3545 = vmatpush1.msra.mxu0 %v2235
    %3546 = vmatprep.subr.mxu0 %v2240
    %3547 = vmatpush1.msra.mxu0 %v2239
    %3548 = vmatprep.subr.mxu0 %v2244
    %3549 = vmatpush1.msra.mxu0 %v2243
    %3550 = vmatprep.subr.mxu0 %v2248
    %3551 = vmatpush1.msra.mxu0 %v2247
    %3552 = vmatprep.subr.mxu0 %v2252
    %3553 = vmatpush1.msra.mxu0 %v2251
    %3554 = vmatprep.subr.mxu0 %v2256
    %3555 = vmatpush1.msra.mxu0 %v2255
    %3556 = vmatprep.subr.mxu0 %v2260
    %3557 = vmatpush1.msra.mxu0 %v2259
    %3558 = vmatprep.subr.mxu0 %v2264
    %3559 = vmatpush1.msra.mxu0 %v2263
    %3560 = vmatprep.subr.mxu0 %v2268
    %3561 = vmatpush1.msra.mxu0 %v2267
    %3562 = vmatprep.subr.mxu0 0.0
    %3563 = vmatpush1.msra.mxu0 0.0
    %3564 = vmatprep.subr.mxu0 0.0
    %3565 = vmatpush1.msra.mxu0 0.0
    %3566 = vmatprep.subr.mxu0 0.0
    %3567 = vmatpush1.msra.mxu0 0.0
    %3568 = vmatprep.subr.mxu0 0.0
    %3569 = vmatpush1.msra.mxu0 0.0
    %3570 = vmatprep.subr.mxu0 0.0
    %3571 = vmatpush1.msra.mxu0 0.0
    %3572 = vmatprep.subr.mxu0 0.0
    %3573 = vmatpush1.msra.mxu0 0.0
    %3574 = vmatprep.subr.mxu0 0.0
    %3575 = vmatpush1.msra.mxu0 0.0
    %3576 = vmatprep.subr.mxu0 0.0
    %3577 = vmatpush1.msra.mxu0 0.0
    %3578 = vmatprep.subr.mxu0 0.0
    %3579 = vmatpush1.msra.mxu0 0.0
    %3580 = vmatprep.subr.mxu0 0.0
    %3581 = vmatpush1.msra.mxu0 0.0
    %3582 = vmatprep.subr.mxu0 0.0
    %3583 = vmatpush1.msra.mxu0 0.0
    %3584 = vmatprep.subr.mxu0 0.0
    %3585 = vmatpush1.msra.mxu0 0.0
    %3586 = vmatprep.subr.mxu0 0.0
    %3587 = vmatpush1.msra.mxu0 0.0
    %3588 = vmatprep.subr.mxu0 0.0
    %3589 = vmatpush1.msra.mxu0 0.0
    %3590 = vmatprep.subr.mxu0 0.0
    %3591 = vmatpush1.msra.mxu0 0.0
    %3592 = vmatprep.subr.mxu0 0.0
    %3593 = vmatpush1.msra.mxu0 0.0
    %3594 = vmatprep.mubr.f32.mxu0 0.0
    %3595 = vmatmul.mubr.f32.gmra.mrb[0].mxu0 %v3454
    %v3596 = vpop.f32.mrb[0].mxu0
    %v3597 = vadd.f32 %v3457, %v3596
    %v3598 = vpop.f32.mrb[0].mxu0
    %v3599 = vadd.f32 %v3458, %v3598
    %3600 = vdwg.mxu0
    %v3601 = vxor.u32 %v3526, 2147483648
    %v3602 = vxor.u32 %v3528, 2147483648
    %v3603 = vxor.u32 %v3597, 2147483648
    %v3604 = vmul.f32 %v3601, 1.442695
    %v3605 = vpow.pop %v3604
    %v3606 = vmul.f32 %v3602, 1.442695
    %v3607 = vpow.pop %v3606
    %v3608 = vmul.f32 %v3603, 1.442695
    %v3609 = vpow.pop %v3608
    %v3610 = vadd.f32 %v3605, 1.0
    %v3611 = vadd.f32 %v3607, 1.0
    %v3612 = vadd.f32 %v3609, 1.0
    %v3613 = vrcp.pop %v3610
    %v3614 = vmul.f32 1.0, %v3613
    %v3615 = vrcp.pop %v3611
    %v3616 = vmul.f32 1.0, %v3615
    %v3617 = vrcp.pop %v3612
    %v3618 = vmul.f32 1.0, %v3617
    %v3619 = vtanh.pop %v3599
    %v3620 = vmul.f32 %v3616, %v3452
    %v3621 = vmul.f32 %v3614, %v3619
    %v3622 = vadd.f32 %v3620, %v3621
    %v3623 = vtanh.pop %v3622
    %v3624 = vmul.f32 %v3618, %v3623
    %v3625 = vsel %vm136, %v3624, %v2434
    %v3626 = vsel %vm136, %v2434, %v3624
    %v3627 = vsel %vm136, %v2604, %v3454
    %v3628 = vsel %vm136, %v2774, %v3284
    %v3629 = vsel %vm136, %v2944, %v3114
    %v3630 = vsel %vm136, %v3114, %v2944
    %v3631 = vsel %vm136, %v3284, %v2774
    %v3632 = vsel %vm136, %v3454, %v2604
    %v3633 = vld [vmem:[#allocation9] sm:$0xff]
    %v3634 = vld [vmem:[#allocation9 + $0x8] sm:$0xff]
    %v3635 = vld [vmem:[#allocation9 + $0x10] sm:$0xff]
    %v3636 = vld [vmem:[#allocation9 + $0x18] sm:$0xff]
    %v3637 = vld [vmem:[#allocation9 + $0x20] sm:$0xff]
    %v3638 = vld [vmem:[#allocation9 + $0x28] sm:$0xff]
    %v3639 = vld [vmem:[#allocation9 + $0x30] sm:$0xff]
    %v3640 = vld [vmem:[#allocation9 + $0x38] sm:$0xff]
    %v3641 = vld [vmem:[#allocation9 + $0x40] sm:$0xff]
    %v3642 = vld [vmem:[#allocation9 + $0x48] sm:$0xff]
    %v3643 = vld [vmem:[#allocation9 + $0x50] sm:$0xff]
    %v3644 = vld [vmem:[#allocation9 + $0x58] sm:$0xff]
    %v3645 = vld [vmem:[#allocation9 + $0x60] sm:$0xff]
    %v3646 = vld [vmem:[#allocation9 + $0x68] sm:$0xff]
    %v3647 = vld [vmem:[#allocation9 + $0x70] sm:$0xff]
    %v3648 = vld [vmem:[#allocation9 + $0x78] sm:$0xff]
    %v3649 = vld [vmem:[#allocation9 + $0x80] sm:$0xff]
    %v3650 = vld [vmem:[#allocation9 + $0x88] sm:$0xff]
    %v3651 = vld [vmem:[#allocation9 + $0x90] sm:$0xff]
    %v3652 = vld [vmem:[#allocation9 + $0x98] sm:$0xff]
    %v3653 = vld [vmem:[#allocation9 + $0xa0] sm:$0xff]
    %v3654 = vld [vmem:[#allocation9 + $0xa8] sm:$0xff]
    %v3655 = vld [vmem:[#allocation9 + $0xb0] sm:$0xff]
    %v3656 = vld [vmem:[#allocation9 + $0xb8] sm:$0xff]
    %v3657 = vld [vmem:[#allocation9 + $0xc0] sm:$0xff]
    %v3658 = vld [vmem:[#allocation9 + $0xc8] sm:$0xff]
    %v3659 = vld [vmem:[#allocation9 + $0xd0] sm:$0xff]
    %v3660 = vld [vmem:[#allocation9 + $0xd8] sm:$0xff]
    %v3661 = vld [vmem:[#allocation9 + $0xe0] sm:$0xff]
    %v3662 = vld [vmem:[#allocation9 + $0xe8] sm:$0xff]
    %v3663 = vld [vmem:[#allocation9 + $0xf0] sm:$0xff]
    %v3664 = vld [vmem:[#allocation9 + $0xf8] sm:$0xff]
    %v3665 = vld [vmem:[#allocation9 + $0x100] sm:$0xff]
    %v3666 = vld [vmem:[#allocation9 + $0x108] sm:$0xff]
    %v3667 = vld [vmem:[#allocation9 + $0x110] sm:$0xff]
    %v3668 = vld [vmem:[#allocation9 + $0x118] sm:$0xff]
    %v3669 = vld [vmem:[#allocation9 + $0x120] sm:$0xff]
    %v3670 = vld [vmem:[#allocation9 + $0x128] sm:$0xff]
    %v3671 = vld [vmem:[#allocation9 + $0x130] sm:$0xff]
    %v3672 = vld [vmem:[#allocation9 + $0x138] sm:$0xff]
    %v3673 = vld [vmem:[#allocation9 + $0x140] sm:$0xff]
    %v3674 = vld [vmem:[#allocation9 + $0x148] sm:$0xff]
    %v3675 = vld [vmem:[#allocation9 + $0x150] sm:$0xff]
    %v3676 = vld [vmem:[#allocation9 + $0x158] sm:$0xff]
    %v3677 = vld [vmem:[#allocation9 + $0x160] sm:$0xff]
    %v3678 = vld [vmem:[#allocation9 + $0x168] sm:$0xff]
    %v3679 = vld [vmem:[#allocation9 + $0x170] sm:$0xff]
    %v3680 = vld [vmem:[#allocation9 + $0x178] sm:$0xff]
    %v3681 = vld [vmem:[#allocation9 + $0x180] sm:$0xff]
    %v3682 = vld [vmem:[#allocation9 + $0x188] sm:$0xff]
    %v3683 = vld [vmem:[#allocation9 + $0x190] sm:$0xff]
    %v3684 = vld [vmem:[#allocation9 + $0x198] sm:$0xff]
    %v3685 = vld [vmem:[#allocation9 + $0x1a0] sm:$0xff]
    %v3686 = vld [vmem:[#allocation9 + $0x1a8] sm:$0xff]
    %v3687 = vld [vmem:[#allocation9 + $0x1b0] sm:$0xff]
    %v3688 = vld [vmem:[#allocation9 + $0x1b8] sm:$0xff]
    %v3689 = vld [vmem:[#allocation9 + $0x1c0] sm:$0xff]
    %v3690 = vld [vmem:[#allocation9 + $0x1c8] sm:$0xff]
    %v3691 = vld [vmem:[#allocation9 + $0x1d0] sm:$0xff]
    %v3692 = vld [vmem:[#allocation9 + $0x1d8] sm:$0xff]
    %v3693 = vld [vmem:[#allocation9 + $0x1e0] sm:$0xff]
    %v3694 = vld [vmem:[#allocation9 + $0x1e8] sm:$0xff]
    %v3695 = vld [vmem:[#allocation9 + $0x1f0] sm:$0xff]
    %v3696 = vld [vmem:[#allocation9 + $0x1f8] sm:$0xff]
    %v3697 = vld [vmem:[%s9] sm:$0xf]
    %v3699 = vlaneseq
    %v3700 = vshrl.u32 %v3699, 7
    %v3701 = vsub.s32 0, %v3700
    %v3702 = vrot.slane %v3697, %v3701
    %v3703 = vlaneseq
    %v3704 = vshrl.u32 %v3703, 7
    %v3705 = vsub.s32 1, %v3704
    %v3706 = vrot.slane %v3697, %v3705
    %v3707 = vlaneseq
    %v3708 = vshrl.u32 %v3707, 7
    %v3709 = vsub.s32 2, %v3708
    %v3710 = vrot.slane %v3697, %v3709
    %v3711 = vlaneseq
    %v3712 = vshrl.u32 %v3711, 7
    %v3713 = vsub.s32 3, %v3712
    %v3714 = vrot.slane %v3697, %v3713
    %3719 = vmatprep.subr.mxu0 %v3634
    %3720 = vmatpush1.msra.mxu0 %v3633
    %3721 = vmatprep.subr.mxu0 %v3638
    %3722 = vmatpush1.msra.mxu0 %v3637
    %3723 = vmatprep.subr.mxu0 %v3642
    %3724 = vmatpush1.msra.mxu0 %v3641
    %3725 = vmatprep.subr.mxu0 %v3646
    %3726 = vmatpush1.msra.mxu0 %v3645
    %3727 = vmatprep.subr.mxu0 %v3650
    %3728 = vmatpush1.msra.mxu0 %v3649
    %3729 = vmatprep.subr.mxu0 %v3654
    %3730 = vmatpush1.msra.mxu0 %v3653
    %3731 = vmatprep.subr.mxu0 %v3658
    %3732 = vmatpush1.msra.mxu0 %v3657
    %3733 = vmatprep.subr.mxu0 %v3662
    %3734 = vmatpush1.msra.mxu0 %v3661
    %3735 = vmatprep.subr.mxu0 %v3666
    %3736 = vmatpush1.msra.mxu0 %v3665
    %3737 = vmatprep.subr.mxu0 %v3670
    %3738 = vmatpush1.msra.mxu0 %v3669
    %3739 = vmatprep.subr.mxu0 %v3674
    %3740 = vmatpush1.msra.mxu0 %v3673
    %3741 = vmatprep.subr.mxu0 %v3678
    %3742 = vmatpush1.msra.mxu0 %v3677
    %3743 = vmatprep.subr.mxu0 %v3682
    %3744 = vmatpush1.msra.mxu0 %v3681
    %3745 = vmatprep.subr.mxu0 %v3686
    %3746 = vmatpush1.msra.mxu0 %v3685
    %3747 = vmatprep.subr.mxu0 %v3690
    %3748 = vmatpush1.msra.mxu0 %v3689
    %3749 = vmatprep.subr.mxu0 %v3694
    %3750 = vmatpush1.msra.mxu0 %v3693
    %3751 = vmatprep.subr.mxu0 0.0
    %3752 = vmatpush1.msra.mxu0 0.0
    %3753 = vmatprep.subr.mxu0 0.0
    %3754 = vmatpush1.msra.mxu0 0.0
    %3755 = vmatprep.subr.mxu0 0.0
    %3756 = vmatpush1.msra.mxu0 0.0
    %3757 = vmatprep.subr.mxu0 0.0
    %3758 = vmatpush1.msra.mxu0 0.0
    %3759 = vmatprep.subr.mxu0 0.0
    %3760 = vmatpush1.msra.mxu0 0.0
    %3761 = vmatprep.subr.mxu0 0.0
    %3762 = vmatpush1.msra.mxu0 0.0
    %3763 = vmatprep.subr.mxu0 0.0
    %3764 = vmatpush1.msra.mxu0 0.0
    %3765 = vmatprep.subr.mxu0 0.0
    %3766 = vmatpush1.msra.mxu0 0.0
    %3767 = vmatprep.subr.mxu0 0.0
    %3768 = vmatpush1.msra.mxu0 0.0
    %3769 = vmatprep.subr.mxu0 0.0
    %3770 = vmatpush1.msra.mxu0 0.0
    %3771 = vmatprep.subr.mxu0 0.0
    %3772 = vmatpush1.msra.mxu0 0.0
    %3773 = vmatprep.subr.mxu0 0.0
    %3774 = vmatpush1.msra.mxu0 0.0
    %3775 = vmatprep.subr.mxu0 0.0
    %3776 = vmatpush1.msra.mxu0 0.0
    %3777 = vmatprep.subr.mxu0 0.0
    %3778 = vmatpush1.msra.mxu0 0.0
    %3779 = vmatprep.subr.mxu0 0.0
    %3780 = vmatpush1.msra.mxu0 0.0
    %3781 = vmatprep.subr.mxu0 0.0
    %3782 = vmatpush1.msra.mxu0 0.0
    %3783 = vmatprep.mubr.f32.mxu0 0.0
    %3784 = vmatmul.mubr.f32.gmra.mrb[0].mxu0 %v3626
    %v3785 = vpop.f32.mrb[0].mxu0
    %v3786 = vadd.f32 %v3702, %v3785
    %v3787 = vpop.f32.mrb[0].mxu0
    %v3788 = vadd.f32 %v3706, %v3787
    %3789 = vmatprep.mubr.f32.mxu0 0.0
    %3790 = vmatmul.mubr.f32.gmra.mrb[0].mxu0 %v3627
    %v3791 = vpop.f32.mrb[0].mxu0
    %v3792 = vadd.f32 %v3702, %v3791
    %v3793 = vpop.f32.mrb[0].mxu0
    %v3794 = vadd.f32 %v3706, %v3793
    %3795 = vmatprep.mubr.f32.mxu0 0.0
    %3796 = vmatmul.mubr.f32.gmra.mrb[0].mxu0 %v3628
    %v3797 = vpop.f32.mrb[0].mxu0
    %v3798 = vadd.f32 %v3702, %v3797
    %v3799 = vpop.f32.mrb[0].mxu0
    %v3800 = vadd.f32 %v3706, %v3799
    %3801 = vmatprep.mubr.f32.mxu0 0.0
    %3802 = vmatmul.mubr.f32.gmra.mrb[0].mxu0 %v3629
    %v3803 = vpop.f32.mrb[0].mxu0
    %v3804 = vadd.f32 %v3702, %v3803
    %v3805 = vpop.f32.mrb[0].mxu0
    %v3806 = vadd.f32 %v3706, %v3805
    %3807 = vmatprep.mubr.f32.mxu0 0.0
    %3808 = vmatmul.mubr.f32.gmra.mrb[0].mxu0 %v3630
    %v3809 = vpop.f32.mrb[0].mxu0
    %v3810 = vadd.f32 %v3702, %v3809
    %v3811 = vpop.f32.mrb[0].mxu0
    %v3812 = vadd.f32 %v3706, %v3811
    %3813 = vmatprep.mubr.f32.mxu0 0.0
    %3814 = vmatmul.mubr.f32.gmra.mrb[0].mxu0 %v3631
    %v3815 = vpop.f32.mrb[0].mxu0
    %v3816 = vadd.f32 %v3702, %v3815
    %v3817 = vpop.f32.mrb[0].mxu0
    %v3818 = vadd.f32 %v3706, %v3817
    %3819 = vmatprep.mubr.f32.mxu0 0.0
    %3820 = vmatmul.mubr.f32.gmra.mrb[0].mxu0 %v3632
    %v3821 = vpop.f32.mrb[0].mxu0
    %v3822 = vadd.f32 %v3702, %v3821
    %v3823 = vpop.f32.mrb[0].mxu0
    %v3824 = vadd.f32 %v3706, %v3823
    %3825 = vmatprep.mubr.f32.mxu0 0.0
    %3826 = vmatmul.mubr.f32.gmra.mrb[0].mxu0 %v3625
    %v3827 = vpop.f32.mrb[0].mxu0
    %v3828 = vadd.f32 %v3702, %v3827
    %v3829 = vpop.f32.mrb[0].mxu0
    %v3830 = vadd.f32 %v3706, %v3829
    %3831 = vdwg.mxu0
    %3832 = vmatprep.subr.mxu0 %v3636
    %3833 = vmatpush1.msra.mxu0 %v3635
    %3834 = vmatprep.subr.mxu0 %v3640
    %3835 = vmatpush1.msra.mxu0 %v3639
    %3836 = vmatprep.subr.mxu0 %v3644
    %3837 = vmatpush1.msra.mxu0 %v3643
    %3838 = vmatprep.subr.mxu0 %v3648
    %3839 = vmatpush1.msra.mxu0 %v3647
    %3840 = vmatprep.subr.mxu0 %v3652
    %3841 = vmatpush1.msra.mxu0 %v3651
    %3842 = vmatprep.subr.mxu0 %v3656
    %3843 = vmatpush1.msra.mxu0 %v3655
    %3844 = vmatprep.subr.mxu0 %v3660
    %3845 = vmatpush1.msra.mxu0 %v3659
    %3846 = vmatprep.subr.mxu0 %v3664
    %3847 = vmatpush1.msra.mxu0 %v3663
    %3848 = vmatprep.subr.mxu0 %v3668
    %3849 = vmatpush1.msra.mxu0 %v3667
    %3850 = vmatprep.subr.mxu0 %v3672
    %3851 = vmatpush1.msra.mxu0 %v3671
    %3852 = vmatprep.subr.mxu0 %v3676
    %3853 = vmatpush1.msra.mxu0 %v3675
    %3854 = vmatprep.subr.mxu0 %v3680
    %3855 = vmatpush1.msra.mxu0 %v3679
    %3856 = vmatprep.subr.mxu0 %v3684
    %3857 = vmatpush1.msra.mxu0 %v3683
    %3858 = vmatprep.subr.mxu0 %v3688
    %3859 = vmatpush1.msra.mxu0 %v3687
    %3860 = vmatprep.subr.mxu0 %v3692
    %3861 = vmatpush1.msra.mxu0 %v3691
    %3862 = vmatprep.subr.mxu0 %v3696
    %3863 = vmatpush1.msra.mxu0 %v3695
    %3864 = vmatprep.subr.mxu0 0.0
    %3865 = vmatpush1.msra.mxu0 0.0
    %3866 = vmatprep.subr.mxu0 0.0
    %3867 = vmatpush1.msra.mxu0 0.0
    %3868 = vmatprep.subr.mxu0 0.0
    %3869 = vmatpush1.msra.mxu0 0.0
    %3870 = vmatprep.subr.mxu0 0.0
    %3871 = vmatpush1.msra.mxu0 0.0
    %3872 = vmatprep.subr.mxu0 0.0
    %3873 = vmatpush1.msra.mxu0 0.0
    %3874 = vmatprep.subr.mxu0 0.0
    %3875 = vmatpush1.msra.mxu0 0.0
    %3876 = vmatprep.subr.mxu0 0.0
    %3877 = vmatpush1.msra.mxu0 0.0
    %3878 = vmatprep.subr.mxu0 0.0
    %3879 = vmatpush1.msra.mxu0 0.0
    %3880 = vmatprep.subr.mxu0 0.0
    %3881 = vmatpush1.msra.mxu0 0.0
    %3882 = vmatprep.subr.mxu0 0.0
    %3883 = vmatpush1.msra.mxu0 0.0
    %3884 = vmatprep.subr.mxu0 0.0
    %3885 = vmatpush1.msra.mxu0 0.0
    %3886 = vmatprep.subr.mxu0 0.0
    %3887 = vmatpush1.msra.mxu0 0.0
    %3888 = vmatprep.subr.mxu0 0.0
    %3889 = vmatpush1.msra.mxu0 0.0
    %3890 = vmatprep.subr.mxu0 0.0
    %3891 = vmatpush1.msra.mxu0 0.0
    %3892 = vmatprep.subr.mxu0 0.0
    %3893 = vmatpush1.msra.mxu0 0.0
    %3894 = vmatprep.subr.mxu0 0.0
    %3895 = vmatpush1.msra.mxu0 0.0
    %3896 = vmatprep.mubr.f32.mxu0 0.0
    %3897 = vmatmul.mubr.f32.gmra.mrb[0].mxu0 %v3626
    %v3898 = vpop.f32.mrb[0].mxu0
    %v3899 = vadd.f32 %v3710, %v3898
    %v3900 = vpop.f32.mrb[0].mxu0
    %v3901 = vadd.f32 %v3714, %v3900
    %3902 = vmatprep.mubr.f32.mxu0 0.0
    %3903 = vmatmul.mubr.f32.gmra.mrb[0].mxu0 %v3627
    %v3904 = vpop.f32.mrb[0].mxu0
    %v3905 = vadd.f32 %v3710, %v3904
    %v3906 = vpop.f32.mrb[0].mxu0
    %v3907 = vadd.f32 %v3714, %v3906
    %3908 = vmatprep.mubr.f32.mxu0 0.0
    %3909 = vmatmul.mubr.f32.gmra.mrb[0].mxu0 %v3628
    %v3910 = vpop.f32.mrb[0].mxu0
    %v3911 = vadd.f32 %v3710, %v3910
    %v3912 = vpop.f32.mrb[0].mxu0
    %v3913 = vadd.f32 %v3714, %v3912
    %3914 = vmatprep.mubr.f32.mxu0 0.0
    %3915 = vmatmul.mubr.f32.gmra.mrb[0].mxu0 %v3629
    %v3916 = vpop.f32.mrb[0].mxu0
    %v3917 = vadd.f32 %v3710, %v3916
    %v3918 = vpop.f32.mrb[0].mxu0
    %v3919 = vadd.f32 %v3714, %v3918
    %3920 = vmatprep.mubr.f32.mxu0 0.0
    %3921 = vmatmul.mubr.f32.gmra.mrb[0].mxu0 %v3630
    %v3922 = vpop.f32.mrb[0].mxu0
    %v3923 = vadd.f32 %v3710, %v3922
    %v3924 = vpop.f32.mrb[0].mxu0
    %v3925 = vadd.f32 %v3714, %v3924
    %3926 = vmatprep.mubr.f32.mxu0 0.0
    %3927 = vmatmul.mubr.f32.gmra.mrb[0].mxu0 %v3631
    %v3928 = vpop.f32.mrb[0].mxu0
    %v3929 = vadd.f32 %v3710, %v3928
    %v3930 = vpop.f32.mrb[0].mxu0
    %v3931 = vadd.f32 %v3714, %v3930
    %3932 = vmatprep.mubr.f32.mxu0 0.0
    %3933 = vmatmul.mubr.f32.gmra.mrb[0].mxu0 %v3632
    %v3934 = vpop.f32.mrb[0].mxu0
    %v3935 = vadd.f32 %v3710, %v3934
    %v3936 = vpop.f32.mrb[0].mxu0
    %v3937 = vadd.f32 %v3714, %v3936
    %3938 = vmatprep.mubr.f32.mxu0 0.0
    %3939 = vmatmul.mubr.f32.gmra.mrb[0].mxu0 %v3625
    %v3940 = vpop.f32.mrb[0].mxu0
    %v3941 = vadd.f32 %v3710, %v3940
    %v3942 = vpop.f32.mrb[0].mxu0
    %v3943 = vadd.f32 %v3714, %v3942
    %3944 = vdwg.mxu0
    %v3945 = vsel %vm132, %v3786, %v3828
    %v3946 = vsel %vm133, %v3788, %v3830
    %v3947 = vsel %vm134, %v3899, %v3941
    %v3948 = vsel %vm135, %v3901, %v3943
    %v3949 = vld [vmem:[#allocation10] sm:$0xff]
    %v3950 = vld [vmem:[#allocation10 + $0x8] sm:$0xff]
    %v3951 = vld [vmem:[#allocation10 + $0x10] sm:$0xff]
    %v3952 = vld [vmem:[#allocation10 + $0x18] sm:$0xff]
    %v3953 = vld [vmem:[#allocation10 + $0x20] sm:$0xff]
    %v3954 = vld [vmem:[#allocation10 + $0x28] sm:$0xff]
    %v3955 = vld [vmem:[#allocation10 + $0x30] sm:$0xff]
    %v3956 = vld [vmem:[#allocation10 + $0x38] sm:$0xff]
    %v3957 = vld [vmem:[#allocation10 + $0x40] sm:$0xff]
    %v3958 = vld [vmem:[#allocation10 + $0x48] sm:$0xff]
    %v3959 = vld [vmem:[#allocation10 + $0x50] sm:$0xff]
    %v3960 = vld [vmem:[#allocation10 + $0x58] sm:$0xff]
    %v3961 = vld [vmem:[#allocation10 + $0x60] sm:$0xff]
    %v3962 = vld [vmem:[#allocation10 + $0x68] sm:$0xff]
    %v3963 = vld [vmem:[#allocation10 + $0x70] sm:$0xff]
    %v3964 = vld [vmem:[#allocation10 + $0x78] sm:$0xff]
    %v3965 = vld [vmem:[#allocation10 + $0x80] sm:$0xff]
    %v3966 = vld [vmem:[#allocation10 + $0x88] sm:$0xff]
    %v3967 = vld [vmem:[#allocation10 + $0x90] sm:$0xff]
    %v3968 = vld [vmem:[#allocation10 + $0x98] sm:$0xff]
    %v3969 = vld [vmem:[#allocation10 + $0xa0] sm:$0xff]
    %v3970 = vld [vmem:[#allocation10 + $0xa8] sm:$0xff]
    %v3971 = vld [vmem:[#allocation10 + $0xb0] sm:$0xff]
    %v3972 = vld [vmem:[#allocation10 + $0xb8] sm:$0xff]
    %v3973 = vld [vmem:[#allocation10 + $0xc0] sm:$0xff]
    %v3974 = vld [vmem:[#allocation10 + $0xc8] sm:$0xff]
    %v3975 = vld [vmem:[#allocation10 + $0xd0] sm:$0xff]
    %v3976 = vld [vmem:[#allocation10 + $0xd8] sm:$0xff]
    %v3977 = vld [vmem:[#allocation10 + $0xe0] sm:$0xff]
    %v3978 = vld [vmem:[#allocation10 + $0xe8] sm:$0xff]
    %v3979 = vld [vmem:[#allocation10 + $0xf0] sm:$0xff]
    %v3980 = vld [vmem:[#allocation10 + $0xf8] sm:$0xff]
    %v3981 = vld [vmem:[#allocation10 + $0x100] sm:$0xff]
    %v3982 = vld [vmem:[#allocation10 + $0x108] sm:$0xff]
    %v3983 = vld [vmem:[#allocation10 + $0x110] sm:$0xff]
    %v3984 = vld [vmem:[#allocation10 + $0x118] sm:$0xff]
    %v3985 = vld [vmem:[#allocation10 + $0x120] sm:$0xff]
    %v3986 = vld [vmem:[#allocation10 + $0x128] sm:$0xff]
    %v3987 = vld [vmem:[#allocation10 + $0x130] sm:$0xff]
    %v3988 = vld [vmem:[#allocation10 + $0x138] sm:$0xff]
    %v3989 = vld [vmem:[#allocation10 + $0x140] sm:$0xff]
    %v3990 = vld [vmem:[#allocation10 + $0x148] sm:$0xff]
    %v3991 = vld [vmem:[#allocation10 + $0x150] sm:$0xff]
    %v3992 = vld [vmem:[#allocation10 + $0x158] sm:$0xff]
    %v3993 = vld [vmem:[#allocation10 + $0x160] sm:$0xff]
    %v3994 = vld [vmem:[#allocation10 + $0x168] sm:$0xff]
    %v3995 = vld [vmem:[#allocation10 + $0x170] sm:$0xff]
    %v3996 = vld [vmem:[#allocation10 + $0x178] sm:$0xff]
    %v3997 = vld [vmem:[#allocation10 + $0x180] sm:$0xff]
    %v3998 = vld [vmem:[#allocation10 + $0x188] sm:$0xff]
    %v3999 = vld [vmem:[#allocation10 + $0x190] sm:$0xff]
    %v4000 = vld [vmem:[#allocation10 + $0x198] sm:$0xff]
    %v4001 = vld [vmem:[#allocation10 + $0x1a0] sm:$0xff]
    %v4002 = vld [vmem:[#allocation10 + $0x1a8] sm:$0xff]
    %v4003 = vld [vmem:[#allocation10 + $0x1b0] sm:$0xff]
    %v4004 = vld [vmem:[#allocation10 + $0x1b8] sm:$0xff]
    %v4005 = vld [vmem:[#allocation10 + $0x1c0] sm:$0xff]
    %v4006 = vld [vmem:[#allocation10 + $0x1c8] sm:$0xff]
    %v4007 = vld [vmem:[#allocation10 + $0x1d0] sm:$0xff]
    %v4008 = vld [vmem:[#allocation10 + $0x1d8] sm:$0xff]
    %v4009 = vld [vmem:[#allocation10 + $0x1e0] sm:$0xff]
    %v4010 = vld [vmem:[#allocation10 + $0x1e8] sm:$0xff]
    %v4011 = vld [vmem:[#allocation10 + $0x1f0] sm:$0xff]
    %v4012 = vld [vmem:[#allocation10 + $0x1f8] sm:$0xff]
    %4013 = vmatprep.subr.mxu0 %v3950
    %4014 = vmatpush1.msra.mxu0 %v3949
    %4015 = vmatprep.subr.mxu0 %v3954
    %4016 = vmatpush1.msra.mxu0 %v3953
    %4017 = vmatprep.subr.mxu0 %v3958
    %4018 = vmatpush1.msra.mxu0 %v3957
    %4019 = vmatprep.subr.mxu0 %v3962
    %4020 = vmatpush1.msra.mxu0 %v3961
    %4021 = vmatprep.subr.mxu0 %v3966
    %4022 = vmatpush1.msra.mxu0 %v3965
    %4023 = vmatprep.subr.mxu0 %v3970
    %4024 = vmatpush1.msra.mxu0 %v3969
    %4025 = vmatprep.subr.mxu0 %v3974
    %4026 = vmatpush1.msra.mxu0 %v3973
    %4027 = vmatprep.subr.mxu0 %v3978
    %4028 = vmatpush1.msra.mxu0 %v3977
    %4029 = vmatprep.subr.mxu0 %v3982
    %4030 = vmatpush1.msra.mxu0 %v3981
    %4031 = vmatprep.subr.mxu0 %v3986
    %4032 = vmatpush1.msra.mxu0 %v3985
    %4033 = vmatprep.subr.mxu0 %v3990
    %4034 = vmatpush1.msra.mxu0 %v3989
    %4035 = vmatprep.subr.mxu0 %v3994
    %4036 = vmatpush1.msra.mxu0 %v3993
    %4037 = vmatprep.subr.mxu0 %v3998
    %4038 = vmatpush1.msra.mxu0 %v3997
    %4039 = vmatprep.subr.mxu0 %v4002
    %4040 = vmatpush1.msra.mxu0 %v4001
    %4041 = vmatprep.subr.mxu0 %v4006
    %4042 = vmatpush1.msra.mxu0 %v4005
    %4043 = vmatprep.subr.mxu0 %v4010
    %4044 = vmatpush1.msra.mxu0 %v4009
    %4045 = vmatprep.subr.mxu0 0.0
    %4046 = vmatpush1.msra.mxu0 0.0
    %4047 = vmatprep.subr.mxu0 0.0
    %4048 = vmatpush1.msra.mxu0 0.0
    %4049 = vmatprep.subr.mxu0 0.0
    %4050 = vmatpush1.msra.mxu0 0.0
    %4051 = vmatprep.subr.mxu0 0.0
    %4052 = vmatpush1.msra.mxu0 0.0
    %4053 = vmatprep.subr.mxu0 0.0
    %4054 = vmatpush1.msra.mxu0 0.0
    %4055 = vmatprep.subr.mxu0 0.0
    %4056 = vmatpush1.msra.mxu0 0.0
    %4057 = vmatprep.subr.mxu0 0.0
    %4058 = vmatpush1.msra.mxu0 0.0
    %4059 = vmatprep.subr.mxu0 0.0
    %4060 = vmatpush1.msra.mxu0 0.0
    %4061 = vmatprep.subr.mxu0 0.0
    %4062 = vmatpush1.msra.mxu0 0.0
    %4063 = vmatprep.subr.mxu0 0.0
    %4064 = vmatpush1.msra.mxu0 0.0
    %4065 = vmatprep.subr.mxu0 0.0
    %4066 = vmatpush1.msra.mxu0 0.0
    %4067 = vmatprep.subr.mxu0 0.0
    %4068 = vmatpush1.msra.mxu0 0.0
    %4069 = vmatprep.subr.mxu0 0.0
    %4070 = vmatpush1.msra.mxu0 0.0
    %4071 = vmatprep.subr.mxu0 0.0
    %4072 = vmatpush1.msra.mxu0 0.0
    %4073 = vmatprep.subr.mxu0 0.0
    %4074 = vmatpush1.msra.mxu0 0.0
    %4075 = vmatprep.subr.mxu0 0.0
    %4076 = vmatpush1.msra.mxu0 0.0
    %4077 = vmatprep.mubr.f32.mxu0 0.0
    %4078 = vmatmul.mubr.f32.gmra.mrb[0].mxu0 0.0
    %v4079 = vpop.f32.mrb[0].mxu0
    %v4080 = vadd.f32 %v3945, %v4079
    %v4081 = vpop.f32.mrb[0].mxu0
    %v4082 = vadd.f32 %v3946, %v4081
    %4083 = vdwg.mxu0
    %4084 = vmatprep.subr.mxu0 %v3952
    %4085 = vmatpush1.msra.mxu0 %v3951
    %4086 = vmatprep.subr.mxu0 %v3956
    %4087 = vmatpush1.msra.mxu0 %v3955
    %4088 = vmatprep.subr.mxu0 %v3960
    %4089 = vmatpush1.msra.mxu0 %v3959
    %4090 = vmatprep.subr.mxu0 %v3964
    %4091 = vmatpush1.msra.mxu0 %v3963
    %4092 = vmatprep.subr.mxu0 %v3968
    %4093 = vmatpush1.msra.mxu0 %v3967
    %4094 = vmatprep.subr.mxu0 %v3972
    %4095 = vmatpush1.msra.mxu0 %v3971
    %4096 = vmatprep.subr.mxu0 %v3976
    %4097 = vmatpush1.msra.mxu0 %v3975
    %4098 = vmatprep.subr.mxu0 %v3980
    %4099 = vmatpush1.msra.mxu0 %v3979
    %4100 = vmatprep.subr.mxu0 %v3984
    %4101 = vmatpush1.msra.mxu0 %v3983
    %4102 = vmatprep.subr.mxu0 %v3988
    %4103 = vmatpush1.msra.mxu0 %v3987
    %4104 = vmatprep.subr.mxu0 %v3992
    %4105 = vmatpush1.msra.mxu0 %v3991
    %4106 = vmatprep.subr.mxu0 %v3996
    %4107 = vmatpush1.msra.mxu0 %v3995
    %4108 = vmatprep.subr.mxu0 %v4000
    %4109 = vmatpush1.msra.mxu0 %v3999
    %4110 = vmatprep.subr.mxu0 %v4004
    %4111 = vmatpush1.msra.mxu0 %v4003
    %4112 = vmatprep.subr.mxu0 %v4008
    %4113 = vmatpush1.msra.mxu0 %v4007
    %4114 = vmatprep.subr.mxu0 %v4012
    %4115 = vmatpush1.msra.mxu0 %v4011
    %4116 = vmatprep.subr.mxu0 0.0
    %4117 = vmatpush1.msra.mxu0 0.0
    %4118 = vmatprep.subr.mxu0 0.0
    %4119 = vmatpush1.msra.mxu0 0.0
    %4120 = vmatprep.subr.mxu0 0.0
    %4121 = vmatpush1.msra.mxu0 0.0
    %4122 = vmatprep.subr.mxu0 0.0
    %4123 = vmatpush1.msra.mxu0 0.0
    %4124 = vmatprep.subr.mxu0 0.0
    %4125 = vmatpush1.msra.mxu0 0.0
    %4126 = vmatprep.subr.mxu0 0.0
    %4127 = vmatpush1.msra.mxu0 0.0
    %4128 = vmatprep.subr.mxu0 0.0
    %4129 = vmatpush1.msra.mxu0 0.0
    %4130 = vmatprep.subr.mxu0 0.0
    %4131 = vmatpush1.msra.mxu0 0.0
    %4132 = vmatprep.subr.mxu0 0.0
    %4133 = vmatpush1.msra.mxu0 0.0
    %4134 = vmatprep.subr.mxu0 0.0
    %4135 = vmatpush1.msra.mxu0 0.0
    %4136 = vmatprep.subr.mxu0 0.0
    %4137 = vmatpush1.msra.mxu0 0.0
    %4138 = vmatprep.subr.mxu0 0.0
    %4139 = vmatpush1.msra.mxu0 0.0
    %4140 = vmatprep.subr.mxu0 0.0
    %4141 = vmatpush1.msra.mxu0 0.0
    %4142 = vmatprep.subr.mxu0 0.0
    %4143 = vmatpush1.msra.mxu0 0.0
    %4144 = vmatprep.subr.mxu0 0.0
    %4145 = vmatpush1.msra.mxu0 0.0
    %4146 = vmatprep.subr.mxu0 0.0
    %4147 = vmatpush1.msra.mxu0 0.0
    %4148 = vmatprep.mubr.f32.mxu0 0.0
    %4149 = vmatmul.mubr.f32.gmra.mrb[0].mxu0 0.0
    %v4150 = vpop.f32.mrb[0].mxu0
    %v4151 = vadd.f32 %v3947, %v4150
    %v4152 = vpop.f32.mrb[0].mxu0
    %v4153 = vadd.f32 %v3948, %v4152
    %4154 = vdwg.mxu0
    %v4155 = vxor.u32 %v4080, 2147483648
    %v4156 = vxor.u32 %v4082, 2147483648
    %v4157 = vxor.u32 %v4151, 2147483648
    %v4158 = vmul.f32 %v4155, 1.442695
    %v4159 = vpow.pop %v4158
    %v4160 = vmul.f32 %v4156, 1.442695
    %v4161 = vpow.pop %v4160
    %v4162 = vmul.f32 %v4157, 1.442695
    %v4163 = vpow.pop %v4162
    %v4164 = vadd.f32 %v4159, 1.0
    %v4165 = vadd.f32 %v4161, 1.0
    %v4166 = vadd.f32 %v4163, 1.0
    %v4167 = vrcp.pop %v4164
    %v4168 = vmul.f32 1.0, %v4167
    %v4169 = vrcp.pop %v4165
    %v4170 = vmul.f32 1.0, %v4169
    %v4171 = vrcp.pop %v4166
    %v4172 = vmul.f32 1.0, %v4171
    %v4173 = vtanh.pop %v4153
    %v4174 = vmul.f32 %v4170, 0.0
    %v4175 = vmul.f32 %v4168, %v4173
    %v4176 = vadd.f32 %v4174, %v4175
    %v4177 = vtanh.pop %v4176
    %v4178 = vmul.f32 %v4172, %v4177
    %v4179 = vsel %vm132, %v3792, %v3822
    %v4180 = vsel %vm133, %v3794, %v3824
    %v4181 = vsel %vm134, %v3905, %v3935
    %v4182 = vsel %vm135, %v3907, %v3937
    %4183 = vmatprep.subr.mxu0 %v3950
    %4184 = vmatpush1.msra.mxu0 %v3949
    %4185 = vmatprep.subr.mxu0 %v3954
    %4186 = vmatpush1.msra.mxu0 %v3953
    %4187 = vmatprep.subr.mxu0 %v3958
    %4188 = vmatpush1.msra.mxu0 %v3957
    %4189 = vmatprep.subr.mxu0 %v3962
    %4190 = vmatpush1.msra.mxu0 %v3961
    %4191 = vmatprep.subr.mxu0 %v3966
    %4192 = vmatpush1.msra.mxu0 %v3965
    %4193 = vmatprep.subr.mxu0 %v3970
    %4194 = vmatpush1.msra.mxu0 %v3969
    %4195 = vmatprep.subr.mxu0 %v3974
    %4196 = vmatpush1.msra.mxu0 %v3973
    %4197 = vmatprep.subr.mxu0 %v3978
    %4198 = vmatpush1.msra.mxu0 %v3977
    %4199 = vmatprep.subr.mxu0 %v3982
    %4200 = vmatpush1.msra.mxu0 %v3981
    %4201 = vmatprep.subr.mxu0 %v3986
    %4202 = vmatpush1.msra.mxu0 %v3985
    %4203 = vmatprep.subr.mxu0 %v3990
    %4204 = vmatpush1.msra.mxu0 %v3989
    %4205 = vmatprep.subr.mxu0 %v3994
    %4206 = vmatpush1.msra.mxu0 %v3993
    %4207 = vmatprep.subr.mxu0 %v3998
    %4208 = vmatpush1.msra.mxu0 %v3997
    %4209 = vmatprep.subr.mxu0 %v4002
    %4210 = vmatpush1.msra.mxu0 %v4001
    %4211 = vmatprep.subr.mxu0 %v4006
    %4212 = vmatpush1.msra.mxu0 %v4005
    %4213 = vmatprep.subr.mxu0 %v4010
    %4214 = vmatpush1.msra.mxu0 %v4009
    %4215 = vmatprep.subr.mxu0 0.0
    %4216 = vmatpush1.msra.mxu0 0.0
    %4217 = vmatprep.subr.mxu0 0.0
    %4218 = vmatpush1.msra.mxu0 0.0
    %4219 = vmatprep.subr.mxu0 0.0
    %4220 = vmatpush1.msra.mxu0 0.0
    %4221 = vmatprep.subr.mxu0 0.0
    %4222 = vmatpush1.msra.mxu0 0.0
    %4223 = vmatprep.subr.mxu0 0.0
    %4224 = vmatpush1.msra.mxu0 0.0
    %4225 = vmatprep.subr.mxu0 0.0
    %4226 = vmatpush1.msra.mxu0 0.0
    %4227 = vmatprep.subr.mxu0 0.0
    %4228 = vmatpush1.msra.mxu0 0.0
    %4229 = vmatprep.subr.mxu0 0.0
    %4230 = vmatpush1.msra.mxu0 0.0
    %4231 = vmatprep.subr.mxu0 0.0
    %4232 = vmatpush1.msra.mxu0 0.0
    %4233 = vmatprep.subr.mxu0 0.0
    %4234 = vmatpush1.msra.mxu0 0.0
    %4235 = vmatprep.subr.mxu0 0.0
    %4236 = vmatpush1.msra.mxu0 0.0
    %4237 = vmatprep.subr.mxu0 0.0
    %4238 = vmatpush1.msra.mxu0 0.0
    %4239 = vmatprep.subr.mxu0 0.0
    %4240 = vmatpush1.msra.mxu0 0.0
    %4241 = vmatprep.subr.mxu0 0.0
    %4242 = vmatpush1.msra.mxu0 0.0
    %4243 = vmatprep.subr.mxu0 0.0
    %4244 = vmatpush1.msra.mxu0 0.0
    %4245 = vmatprep.subr.mxu0 0.0
    %4246 = vmatpush1.msra.mxu0 0.0
    %4247 = vmatprep.mubr.f32.mxu0 0.0
    %4248 = vmatmul.mubr.f32.gmra.mrb[0].mxu0 %v4178
    %v4249 = vpop.f32.mrb[0].mxu0
    %v4250 = vadd.f32 %v4179, %v4249
    %v4251 = vpop.f32.mrb[0].mxu0
    %v4252 = vadd.f32 %v4180, %v4251
    %4253 = vdwg.mxu0
    %4254 = vmatprep.subr.mxu0 %v3952
    %4255 = vmatpush1.msra.mxu0 %v3951
    %4256 = vmatprep.subr.mxu0 %v3956
    %4257 = vmatpush1.msra.mxu0 %v3955
    %4258 = vmatprep.subr.mxu0 %v3960
    %4259 = vmatpush1.msra.mxu0 %v3959
    %4260 = vmatprep.subr.mxu0 %v3964
    %4261 = vmatpush1.msra.mxu0 %v3963
    %4262 = vmatprep.subr.mxu0 %v3968
    %4263 = vmatpush1.msra.mxu0 %v3967
    %4264 = vmatprep.subr.mxu0 %v3972
    %4265 = vmatpush1.msra.mxu0 %v3971
    %4266 = vmatprep.subr.mxu0 %v3976
    %4267 = vmatpush1.msra.mxu0 %v3975
    %4268 = vmatprep.subr.mxu0 %v3980
    %4269 = vmatpush1.msra.mxu0 %v3979
    %4270 = vmatprep.subr.mxu0 %v3984
    %4271 = vmatpush1.msra.mxu0 %v3983
    %4272 = vmatprep.subr.mxu0 %v3988
    %4273 = vmatpush1.msra.mxu0 %v3987
    %4274 = vmatprep.subr.mxu0 %v3992
    %4275 = vmatpush1.msra.mxu0 %v3991
    %4276 = vmatprep.subr.mxu0 %v3996
    %4277 = vmatpush1.msra.mxu0 %v3995
    %4278 = vmatprep.subr.mxu0 %v4000
    %4279 = vmatpush1.msra.mxu0 %v3999
    %4280 = vmatprep.subr.mxu0 %v4004
    %4281 = vmatpush1.msra.mxu0 %v4003
    %4282 = vmatprep.subr.mxu0 %v4008
    %4283 = vmatpush1.msra.mxu0 %v4007
    %4284 = vmatprep.subr.mxu0 %v4012
    %4285 = vmatpush1.msra.mxu0 %v4011
    %4286 = vmatprep.subr.mxu0 0.0
    %4287 = vmatpush1.msra.mxu0 0.0
    %4288 = vmatprep.subr.mxu0 0.0
    %4289 = vmatpush1.msra.mxu0 0.0
    %4290 = vmatprep.subr.mxu0 0.0
    %4291 = vmatpush1.msra.mxu0 0.0
    %4292 = vmatprep.subr.mxu0 0.0
    %4293 = vmatpush1.msra.mxu0 0.0
    %4294 = vmatprep.subr.mxu0 0.0
    %4295 = vmatpush1.msra.mxu0 0.0
    %4296 = vmatprep.subr.mxu0 0.0
    %4297 = vmatpush1.msra.mxu0 0.0
    %4298 = vmatprep.subr.mxu0 0.0
    %4299 = vmatpush1.msra.mxu0 0.0
    %4300 = vmatprep.subr.mxu0 0.0
    %4301 = vmatpush1.msra.mxu0 0.0
    %4302 = vmatprep.subr.mxu0 0.0
    %4303 = vmatpush1.msra.mxu0 0.0
    %4304 = vmatprep.subr.mxu0 0.0
    %4305 = vmatpush1.msra.mxu0 0.0
    %4306 = vmatprep.subr.mxu0 0.0
    %4307 = vmatpush1.msra.mxu0 0.0
    %4308 = vmatprep.subr.mxu0 0.0
    %4309 = vmatpush1.msra.mxu0 0.0
    %4310 = vmatprep.subr.mxu0 0.0
    %4311 = vmatpush1.msra.mxu0 0.0
    %4312 = vmatprep.subr.mxu0 0.0
    %4313 = vmatpush1.msra.mxu0 0.0
    %4314 = vmatprep.subr.mxu0 0.0
    %4315 = vmatpush1.msra.mxu0 0.0
    %4316 = vmatprep.subr.mxu0 0.0
    %4317 = vmatpush1.msra.mxu0 0.0
    %4318 = vmatprep.mubr.f32.mxu0 0.0
    %4319 = vmatmul.mubr.f32.gmra.mrb[0].mxu0 %v4178
    %v4320 = vpop.f32.mrb[0].mxu0
    %v4321 = vadd.f32 %v4181, %v4320
    %v4322 = vpop.f32.mrb[0].mxu0
    %v4323 = vadd.f32 %v4182, %v4322
    %4324 = vdwg.mxu0
    %v4325 = vxor.u32 %v4250, 2147483648
    %v4326 = vxor.u32 %v4252, 2147483648
    %v4327 = vxor.u32 %v4321, 2147483648
    %v4328 = vmul.f32 %v4325, 1.442695
    %v4329 = vpow.pop %v4328
    %v4330 = vmul.f32 %v4326, 1.442695
    %v4331 = vpow.pop %v4330
    %v4332 = vmul.f32 %v4327, 1.442695
    %v4333 = vpow.pop %v4332
    %v4334 = vadd.f32 %v4329, 1.0
    %v4335 = vadd.f32 %v4331, 1.0
    %v4336 = vadd.f32 %v4333, 1.0
    %v4337 = vrcp.pop %v4334
    %v4338 = vmul.f32 1.0, %v4337
    %v4339 = vrcp.pop %v4335
    %v4340 = vmul.f32 1.0, %v4339
    %v4341 = vrcp.pop %v4336
    %v4342 = vmul.f32 1.0, %v4341
    %v4343 = vtanh.pop %v4323
    %v4344 = vmul.f32 %v4340, %v4176
    %v4345 = vmul.f32 %v4338, %v4343
    %v4346 = vadd.f32 %v4344, %v4345
    %v4347 = vtanh.pop %v4346
    %v4348 = vmul.f32 %v4342, %v4347
    %v4349 = vsel %vm132, %v3798, %v3816
    %v4350 = vsel %vm133, %v3800, %v3818
    %v4351 = vsel %vm134, %v3911, %v3929
    %v4352 = vsel %vm135, %v3913, %v3931
    %4353 = vmatprep.subr.mxu0 %v3950
    %4354 = vmatpush1.msra.mxu0 %v3949
    %4355 = vmatprep.subr.mxu0 %v3954
    %4356 = vmatpush1.msra.mxu0 %v3953
    %4357 = vmatprep.subr.mxu0 %v3958
    %4358 = vmatpush1.msra.mxu0 %v3957
    %4359 = vmatprep.subr.mxu0 %v3962
    %4360 = vmatpush1.msra.mxu0 %v3961
    %4361 = vmatprep.subr.mxu0 %v3966
    %4362 = vmatpush1.msra.mxu0 %v3965
    %4363 = vmatprep.subr.mxu0 %v3970
    %4364 = vmatpush1.msra.mxu0 %v3969
    %4365 = vmatprep.subr.mxu0 %v3974
    %4366 = vmatpush1.msra.mxu0 %v3973
    %4367 = vmatprep.subr.mxu0 %v3978
    %4368 = vmatpush1.msra.mxu0 %v3977
    %4369 = vmatprep.subr.mxu0 %v3982
    %4370 = vmatpush1.msra.mxu0 %v3981
    %4371 = vmatprep.subr.mxu0 %v3986
    %4372 = vmatpush1.msra.mxu0 %v3985
    %4373 = vmatprep.subr.mxu0 %v3990
    %4374 = vmatpush1.msra.mxu0 %v3989
    %4375 = vmatprep.subr.mxu0 %v3994
    %4376 = vmatpush1.msra.mxu0 %v3993
    %4377 = vmatprep.subr.mxu0 %v3998
    %4378 = vmatpush1.msra.mxu0 %v3997
    %4379 = vmatprep.subr.mxu0 %v4002
    %4380 = vmatpush1.msra.mxu0 %v4001
    %4381 = vmatprep.subr.mxu0 %v4006
    %4382 = vmatpush1.msra.mxu0 %v4005
    %4383 = vmatprep.subr.mxu0 %v4010
    %4384 = vmatpush1.msra.mxu0 %v4009
    %4385 = vmatprep.subr.mxu0 0.0
    %4386 = vmatpush1.msra.mxu0 0.0
    %4387 = vmatprep.subr.mxu0 0.0
    %4388 = vmatpush1.msra.mxu0 0.0
    %4389 = vmatprep.subr.mxu0 0.0
    %4390 = vmatpush1.msra.mxu0 0.0
    %4391 = vmatprep.subr.mxu0 0.0
    %4392 = vmatpush1.msra.mxu0 0.0
    %4393 = vmatprep.subr.mxu0 0.0
    %4394 = vmatpush1.msra.mxu0 0.0
    %4395 = vmatprep.subr.mxu0 0.0
    %4396 = vmatpush1.msra.mxu0 0.0
    %4397 = vmatprep.subr.mxu0 0.0
    %4398 = vmatpush1.msra.mxu0 0.0
    %4399 = vmatprep.subr.mxu0 0.0
    %4400 = vmatpush1.msra.mxu0 0.0
    %4401 = vmatprep.subr.mxu0 0.0
    %4402 = vmatpush1.msra.mxu0 0.0
    %4403 = vmatprep.subr.mxu0 0.0
    %4404 = vmatpush1.msra.mxu0 0.0
    %4405 = vmatprep.subr.mxu0 0.0
    %4406 = vmatpush1.msra.mxu0 0.0
    %4407 = vmatprep.subr.mxu0 0.0
    %4408 = vmatpush1.msra.mxu0 0.0
    %4409 = vmatprep.subr.mxu0 0.0
    %4410 = vmatpush1.msra.mxu0 0.0
    %4411 = vmatprep.subr.mxu0 0.0
    %4412 = vmatpush1.msra.mxu0 0.0
    %4413 = vmatprep.subr.mxu0 0.0
    %4414 = vmatpush1.msra.mxu0 0.0
    %4415 = vmatprep.subr.mxu0 0.0
    %4416 = vmatpush1.msra.mxu0 0.0
    %4417 = vmatprep.mubr.f32.mxu0 0.0
    %4418 = vmatmul.mubr.f32.gmra.mrb[0].mxu0 %v4348
    %v4419 = vpop.f32.mrb[0].mxu0
    %v4420 = vadd.f32 %v4349, %v4419
    %v4421 = vpop.f32.mrb[0].mxu0
    %v4422 = vadd.f32 %v4350, %v4421
    %4423 = vdwg.mxu0
    %4424 = vmatprep.subr.mxu0 %v3952
    %4425 = vmatpush1.msra.mxu0 %v3951
    %4426 = vmatprep.subr.mxu0 %v3956
    %4427 = vmatpush1.msra.mxu0 %v3955
    %4428 = vmatprep.subr.mxu0 %v3960
    %4429 = vmatpush1.msra.mxu0 %v3959
    %4430 = vmatprep.subr.mxu0 %v3964
    %4431 = vmatpush1.msra.mxu0 %v3963
    %4432 = vmatprep.subr.mxu0 %v3968
    %4433 = vmatpush1.msra.mxu0 %v3967
    %4434 = vmatprep.subr.mxu0 %v3972
    %4435 = vmatpush1.msra.mxu0 %v3971
    %4436 = vmatprep.subr.mxu0 %v3976
    %4437 = vmatpush1.msra.mxu0 %v3975
    %4438 = vmatprep.subr.mxu0 %v3980
    %4439 = vmatpush1.msra.mxu0 %v3979
    %4440 = vmatprep.subr.mxu0 %v3984
    %4441 = vmatpush1.msra.mxu0 %v3983
    %4442 = vmatprep.subr.mxu0 %v3988
    %4443 = vmatpush1.msra.mxu0 %v3987
    %4444 = vmatprep.subr.mxu0 %v3992
    %4445 = vmatpush1.msra.mxu0 %v3991
    %4446 = vmatprep.subr.mxu0 %v3996
    %4447 = vmatpush1.msra.mxu0 %v3995
    %4448 = vmatprep.subr.mxu0 %v4000
    %4449 = vmatpush1.msra.mxu0 %v3999
    %4450 = vmatprep.subr.mxu0 %v4004
    %4451 = vmatpush1.msra.mxu0 %v4003
    %4452 = vmatprep.subr.mxu0 %v4008
    %4453 = vmatpush1.msra.mxu0 %v4007
    %4454 = vmatprep.subr.mxu0 %v4012
    %4455 = vmatpush1.msra.mxu0 %v4011
    %4456 = vmatprep.subr.mxu0 0.0
    %4457 = vmatpush1.msra.mxu0 0.0
    %4458 = vmatprep.subr.mxu0 0.0
    %4459 = vmatpush1.msra.mxu0 0.0
    %4460 = vmatprep.subr.mxu0 0.0
    %4461 = vmatpush1.msra.mxu0 0.0
    %4462 = vmatprep.subr.mxu0 0.0
    %4463 = vmatpush1.msra.mxu0 0.0
    %4464 = vmatprep.subr.mxu0 0.0
    %4465 = vmatpush1.msra.mxu0 0.0
    %4466 = vmatprep.subr.mxu0 0.0
    %4467 = vmatpush1.msra.mxu0 0.0
    %4468 = vmatprep.subr.mxu0 0.0
    %4469 = vmatpush1.msra.mxu0 0.0
    %4470 = vmatprep.subr.mxu0 0.0
    %4471 = vmatpush1.msra.mxu0 0.0
    %4472 = vmatprep.subr.mxu0 0.0
    %4473 = vmatpush1.msra.mxu0 0.0
    %4474 = vmatprep.subr.mxu0 0.0
    %4475 = vmatpush1.msra.mxu0 0.0
    %4476 = vmatprep.subr.mxu0 0.0
    %4477 = vmatpush1.msra.mxu0 0.0
    %4478 = vmatprep.subr.mxu0 0.0
    %4479 = vmatpush1.msra.mxu0 0.0
    %4480 = vmatprep.subr.mxu0 0.0
    %4481 = vmatpush1.msra.mxu0 0.0
    %4482 = vmatprep.subr.mxu0 0.0
    %4483 = vmatpush1.msra.mxu0 0.0
    %4484 = vmatprep.subr.mxu0 0.0
    %4485 = vmatpush1.msra.mxu0 0.0
    %4486 = vmatprep.subr.mxu0 0.0
    %4487 = vmatpush1.msra.mxu0 0.0
    %4488 = vmatprep.mubr.f32.mxu0 0.0
    %4489 = vmatmul.mubr.f32.gmra.mrb[0].mxu0 %v4348
    %v4490 = vpop.f32.mrb[0].mxu0
    %v4491 = vadd.f32 %v4351, %v4490
    %v4492 = vpop.f32.mrb[0].mxu0
    %v4493 = vadd.f32 %v4352, %v4492
    %4494 = vdwg.mxu0
    %v4495 = vxor.u32 %v4420, 2147483648
    %v4496 = vxor.u32 %v4422, 2147483648
    %v4497 = vxor.u32 %v4491, 2147483648
    %v4498 = vmul.f32 %v4495, 1.442695
    %v4499 = vpow.pop %v4498
    %v4500 = vmul.f32 %v4496, 1.442695
    %v4501 = vpow.pop %v4500
    %v4502 = vmul.f32 %v4497, 1.442695
    %v4503 = vpow.pop %v4502
    %v4504 = vadd.f32 %v4499, 1.0
    %v4505 = vadd.f32 %v4501, 1.0
    %v4506 = vadd.f32 %v4503, 1.0
    %v4507 = vrcp.pop %v4504
    %v4508 = vmul.f32 1.0, %v4507
    %v4509 = vrcp.pop %v4505
    %v4510 = vmul.f32 1.0, %v4509
    %v4511 = vrcp.pop %v4506
    %v4512 = vmul.f32 1.0, %v4511
    %v4513 = vtanh.pop %v4493
    %v4514 = vmul.f32 %v4510, %v4346
    %v4515 = vmul.f32 %v4508, %v4513
    %v4516 = vadd.f32 %v4514, %v4515
    %v4517 = vtanh.pop %v4516
    %v4518 = vmul.f32 %v4512, %v4517
    %v4519 = vsel %vm132, %v3804, %v3810
    %v4520 = vsel %vm133, %v3806, %v3812
    %v4521 = vsel %vm134, %v3917, %v3923
    %v4522 = vsel %vm135, %v3919, %v3925
    %4523 = vmatprep.subr.mxu0 %v3950
    %4524 = vmatpush1.msra.mxu0 %v3949
    %4525 = vmatprep.subr.mxu0 %v3954
    %4526 = vmatpush1.msra.mxu0 %v3953
    %4527 = vmatprep.subr.mxu0 %v3958
    %4528 = vmatpush1.msra.mxu0 %v3957
    %4529 = vmatprep.subr.mxu0 %v3962
    %4530 = vmatpush1.msra.mxu0 %v3961
    %4531 = vmatprep.subr.mxu0 %v3966
    %4532 = vmatpush1.msra.mxu0 %v3965
    %4533 = vmatprep.subr.mxu0 %v3970
    %4534 = vmatpush1.msra.mxu0 %v3969
    %4535 = vmatprep.subr.mxu0 %v3974
    %4536 = vmatpush1.msra.mxu0 %v3973
    %4537 = vmatprep.subr.mxu0 %v3978
    %4538 = vmatpush1.msra.mxu0 %v3977
    %4539 = vmatprep.subr.mxu0 %v3982
    %4540 = vmatpush1.msra.mxu0 %v3981
    %4541 = vmatprep.subr.mxu0 %v3986
    %4542 = vmatpush1.msra.mxu0 %v3985
    %4543 = vmatprep.subr.mxu0 %v3990
    %4544 = vmatpush1.msra.mxu0 %v3989
    %4545 = vmatprep.subr.mxu0 %v3994
    %4546 = vmatpush1.msra.mxu0 %v3993
    %4547 = vmatprep.subr.mxu0 %v3998
    %4548 = vmatpush1.msra.mxu0 %v3997
    %4549 = vmatprep.subr.mxu0 %v4002
    %4550 = vmatpush1.msra.mxu0 %v4001
    %4551 = vmatprep.subr.mxu0 %v4006
    %4552 = vmatpush1.msra.mxu0 %v4005
    %4553 = vmatprep.subr.mxu0 %v4010
    %4554 = vmatpush1.msra.mxu0 %v4009
    %4555 = vmatprep.subr.mxu0 0.0
    %4556 = vmatpush1.msra.mxu0 0.0
    %4557 = vmatprep.subr.mxu0 0.0
    %4558 = vmatpush1.msra.mxu0 0.0
    %4559 = vmatprep.subr.mxu0 0.0
    %4560 = vmatpush1.msra.mxu0 0.0
    %4561 = vmatprep.subr.mxu0 0.0
    %4562 = vmatpush1.msra.mxu0 0.0
    %4563 = vmatprep.subr.mxu0 0.0
    %4564 = vmatpush1.msra.mxu0 0.0
    %4565 = vmatprep.subr.mxu0 0.0
    %4566 = vmatpush1.msra.mxu0 0.0
    %4567 = vmatprep.subr.mxu0 0.0
    %4568 = vmatpush1.msra.mxu0 0.0
    %4569 = vmatprep.subr.mxu0 0.0
    %4570 = vmatpush1.msra.mxu0 0.0
    %4571 = vmatprep.subr.mxu0 0.0
    %4572 = vmatpush1.msra.mxu0 0.0
    %4573 = vmatprep.subr.mxu0 0.0
    %4574 = vmatpush1.msra.mxu0 0.0
    %4575 = vmatprep.subr.mxu0 0.0
    %4576 = vmatpush1.msra.mxu0 0.0
    %4577 = vmatprep.subr.mxu0 0.0
    %4578 = vmatpush1.msra.mxu0 0.0
    %4579 = vmatprep.subr.mxu0 0.0
    %4580 = vmatpush1.msra.mxu0 0.0
    %4581 = vmatprep.subr.mxu0 0.0
    %4582 = vmatpush1.msra.mxu0 0.0
    %4583 = vmatprep.subr.mxu0 0.0
    %4584 = vmatpush1.msra.mxu0 0.0
    %4585 = vmatprep.subr.mxu0 0.0
    %4586 = vmatpush1.msra.mxu0 0.0
    %4587 = vmatprep.mubr.f32.mxu0 0.0
    %4588 = vmatmul.mubr.f32.gmra.mrb[0].mxu0 %v4518
    %v4589 = vpop.f32.mrb[0].mxu0
    %v4590 = vadd.f32 %v4519, %v4589
    %v4591 = vpop.f32.mrb[0].mxu0
    %v4592 = vadd.f32 %v4520, %v4591
    %4593 = vdwg.mxu0
    %4594 = vmatprep.subr.mxu0 %v3952
    %4595 = vmatpush1.msra.mxu0 %v3951
    %4596 = vmatprep.subr.mxu0 %v3956
    %4597 = vmatpush1.msra.mxu0 %v3955
    %4598 = vmatprep.subr.mxu0 %v3960
    %4599 = vmatpush1.msra.mxu0 %v3959
    %4600 = vmatprep.subr.mxu0 %v3964
    %4601 = vmatpush1.msra.mxu0 %v3963
    %4602 = vmatprep.subr.mxu0 %v3968
    %4603 = vmatpush1.msra.mxu0 %v3967
    %4604 = vmatprep.subr.mxu0 %v3972
    %4605 = vmatpush1.msra.mxu0 %v3971
    %4606 = vmatprep.subr.mxu0 %v3976
    %4607 = vmatpush1.msra.mxu0 %v3975
    %4608 = vmatprep.subr.mxu0 %v3980
    %4609 = vmatpush1.msra.mxu0 %v3979
    %4610 = vmatprep.subr.mxu0 %v3984
    %4611 = vmatpush1.msra.mxu0 %v3983
    %4612 = vmatprep.subr.mxu0 %v3988
    %4613 = vmatpush1.msra.mxu0 %v3987
    %4614 = vmatprep.subr.mxu0 %v3992
    %4615 = vmatpush1.msra.mxu0 %v3991
    %4616 = vmatprep.subr.mxu0 %v3996
    %4617 = vmatpush1.msra.mxu0 %v3995
    %4618 = vmatprep.subr.mxu0 %v4000
    %4619 = vmatpush1.msra.mxu0 %v3999
    %4620 = vmatprep.subr.mxu0 %v4004
    %4621 = vmatpush1.msra.mxu0 %v4003
    %4622 = vmatprep.subr.mxu0 %v4008
    %4623 = vmatpush1.msra.mxu0 %v4007
    %4624 = vmatprep.subr.mxu0 %v4012
    %4625 = vmatpush1.msra.mxu0 %v4011
    %4626 = vmatprep.subr.mxu0 0.0
    %4627 = vmatpush1.msra.mxu0 0.0
    %4628 = vmatprep.subr.mxu0 0.0
    %4629 = vmatpush1.msra.mxu0 0.0
    %4630 = vmatprep.subr.mxu0 0.0
    %4631 = vmatpush1.msra.mxu0 0.0
    %4632 = vmatprep.subr.mxu0 0.0
    %4633 = vmatpush1.msra.mxu0 0.0
    %4634 = vmatprep.subr.mxu0 0.0
    %4635 = vmatpush1.msra.mxu0 0.0
    %4636 = vmatprep.subr.mxu0 0.0
    %4637 = vmatpush1.msra.mxu0 0.0
    %4638 = vmatprep.subr.mxu0 0.0
    %4639 = vmatpush1.msra.mxu0 0.0
    %4640 = vmatprep.subr.mxu0 0.0
    %4641 = vmatpush1.msra.mxu0 0.0
    %4642 = vmatprep.subr.mxu0 0.0
    %4643 = vmatpush1.msra.mxu0 0.0
    %4644 = vmatprep.subr.mxu0 0.0
    %4645 = vmatpush1.msra.mxu0 0.0
    %4646 = vmatprep.subr.mxu0 0.0
    %4647 = vmatpush1.msra.mxu0 0.0
    %4648 = vmatprep.subr.mxu0 0.0
    %4649 = vmatpush1.msra.mxu0 0.0
    %4650 = vmatprep.subr.mxu0 0.0
    %4651 = vmatpush1.msra.mxu0 0.0
    %4652 = vmatprep.subr.mxu0 0.0
    %4653 = vmatpush1.msra.mxu0 0.0
    %4654 = vmatprep.subr.mxu0 0.0
    %4655 = vmatpush1.msra.mxu0 0.0
    %4656 = vmatprep.subr.mxu0 0.0
    %4657 = vmatpush1.msra.mxu0 0.0
    %4658 = vmatprep.mubr.f32.mxu0 0.0
    %4659 = vmatmul.mubr.f32.gmra.mrb[0].mxu0 %v4518
    %v4660 = vpop.f32.mrb[0].mxu0
    %v4661 = vadd.f32 %v4521, %v4660
    %v4662 = vpop.f32.mrb[0].mxu0
    %v4663 = vadd.f32 %v4522, %v4662
    %4664 = vdwg.mxu0
    %v4665 = vxor.u32 %v4590, 2147483648
    %v4666 = vxor.u32 %v4592, 2147483648
    %v4667 = vxor.u32 %v4661, 2147483648
    %v4668 = vmul.f32 %v4665, 1.442695
    %v4669 = vpow.pop %v4668
    %v4670 = vmul.f32 %v4666, 1.442695
    %v4671 = vpow.pop %v4670
    %v4672 = vmul.f32 %v4667, 1.442695
    %v4673 = vpow.pop %v4672
    %v4674 = vadd.f32 %v4669, 1.0
    %v4675 = vadd.f32 %v4671, 1.0
    %v4676 = vadd.f32 %v4673, 1.0
    %v4677 = vrcp.pop %v4674
    %v4678 = vmul.f32 1.0, %v4677
    %v4679 = vrcp.pop %v4675
    %v4680 = vmul.f32 1.0, %v4679
    %v4681 = vrcp.pop %v4676
    %v4682 = vmul.f32 1.0, %v4681
    %v4683 = vtanh.pop %v4663
    %v4684 = vmul.f32 %v4680, %v4516
    %v4685 = vmul.f32 %v4678, %v4683
    %v4686 = vadd.f32 %v4684, %v4685
    %v4687 = vtanh.pop %v4686
    %v4688 = vmul.f32 %v4682, %v4687
    %v4689 = vsel %vm132, %v3810, %v3804
    %v4690 = vsel %vm133, %v3812, %v3806
    %v4691 = vsel %vm134, %v3923, %v3917
    %v4692 = vsel %vm135, %v3925, %v3919
    %4693 = vmatprep.subr.mxu0 %v3950
    %4694 = vmatpush1.msra.mxu0 %v3949
    %4695 = vmatprep.subr.mxu0 %v3954
    %4696 = vmatpush1.msra.mxu0 %v3953
    %4697 = vmatprep.subr.mxu0 %v3958
    %4698 = vmatpush1.msra.mxu0 %v3957
    %4699 = vmatprep.subr.mxu0 %v3962
    %4700 = vmatpush1.msra.mxu0 %v3961
    %4701 = vmatprep.subr.mxu0 %v3966
    %4702 = vmatpush1.msra.mxu0 %v3965
    %4703 = vmatprep.subr.mxu0 %v3970
    %4704 = vmatpush1.msra.mxu0 %v3969
    %4705 = vmatprep.subr.mxu0 %v3974
    %4706 = vmatpush1.msra.mxu0 %v3973
    %4707 = vmatprep.subr.mxu0 %v3978
    %4708 = vmatpush1.msra.mxu0 %v3977
    %4709 = vmatprep.subr.mxu0 %v3982
    %4710 = vmatpush1.msra.mxu0 %v3981
    %4711 = vmatprep.subr.mxu0 %v3986
    %4712 = vmatpush1.msra.mxu0 %v3985
    %4713 = vmatprep.subr.mxu0 %v3990
    %4714 = vmatpush1.msra.mxu0 %v3989
    %4715 = vmatprep.subr.mxu0 %v3994
    %4716 = vmatpush1.msra.mxu0 %v3993
    %4717 = vmatprep.subr.mxu0 %v3998
    %4718 = vmatpush1.msra.mxu0 %v3997
    %4719 = vmatprep.subr.mxu0 %v4002
    %4720 = vmatpush1.msra.mxu0 %v4001
    %4721 = vmatprep.subr.mxu0 %v4006
    %4722 = vmatpush1.msra.mxu0 %v4005
    %4723 = vmatprep.subr.mxu0 %v4010
    %4724 = vmatpush1.msra.mxu0 %v4009
    %4725 = vmatprep.subr.mxu0 0.0
    %4726 = vmatpush1.msra.mxu0 0.0
    %4727 = vmatprep.subr.mxu0 0.0
    %4728 = vmatpush1.msra.mxu0 0.0
    %4729 = vmatprep.subr.mxu0 0.0
    %4730 = vmatpush1.msra.mxu0 0.0
    %4731 = vmatprep.subr.mxu0 0.0
    %4732 = vmatpush1.msra.mxu0 0.0
    %4733 = vmatprep.subr.mxu0 0.0
    %4734 = vmatpush1.msra.mxu0 0.0
    %4735 = vmatprep.subr.mxu0 0.0
    %4736 = vmatpush1.msra.mxu0 0.0
    %4737 = vmatprep.subr.mxu0 0.0
    %4738 = vmatpush1.msra.mxu0 0.0
    %4739 = vmatprep.subr.mxu0 0.0
    %4740 = vmatpush1.msra.mxu0 0.0
    %4741 = vmatprep.subr.mxu0 0.0
    %4742 = vmatpush1.msra.mxu0 0.0
    %4743 = vmatprep.subr.mxu0 0.0
    %4744 = vmatpush1.msra.mxu0 0.0
    %4745 = vmatprep.subr.mxu0 0.0
    %4746 = vmatpush1.msra.mxu0 0.0
    %4747 = vmatprep.subr.mxu0 0.0
    %4748 = vmatpush1.msra.mxu0 0.0
    %4749 = vmatprep.subr.mxu0 0.0
    %4750 = vmatpush1.msra.mxu0 0.0
    %4751 = vmatprep.subr.mxu0 0.0
    %4752 = vmatpush1.msra.mxu0 0.0
    %4753 = vmatprep.subr.mxu0 0.0
    %4754 = vmatpush1.msra.mxu0 0.0
    %4755 = vmatprep.subr.mxu0 0.0
    %4756 = vmatpush1.msra.mxu0 0.0
    %4757 = vmatprep.mubr.f32.mxu0 0.0
    %4758 = vmatmul.mubr.f32.gmra.mrb[0].mxu0 %v4688
    %v4759 = vpop.f32.mrb[0].mxu0
    %v4760 = vadd.f32 %v4689, %v4759
    %v4761 = vpop.f32.mrb[0].mxu0
    %v4762 = vadd.f32 %v4690, %v4761
    %4763 = vdwg.mxu0
    %4764 = vmatprep.subr.mxu0 %v3952
    %4765 = vmatpush1.msra.mxu0 %v3951
    %4766 = vmatprep.subr.mxu0 %v3956
    %4767 = vmatpush1.msra.mxu0 %v3955
    %4768 = vmatprep.subr.mxu0 %v3960
    %4769 = vmatpush1.msra.mxu0 %v3959
    %4770 = vmatprep.subr.mxu0 %v3964
    %4771 = vmatpush1.msra.mxu0 %v3963
    %4772 = vmatprep.subr.mxu0 %v3968
    %4773 = vmatpush1.msra.mxu0 %v3967
    %4774 = vmatprep.subr.mxu0 %v3972
    %4775 = vmatpush1.msra.mxu0 %v3971
    %4776 = vmatprep.subr.mxu0 %v3976
    %4777 = vmatpush1.msra.mxu0 %v3975
    %4778 = vmatprep.subr.mxu0 %v3980
    %4779 = vmatpush1.msra.mxu0 %v3979
    %4780 = vmatprep.subr.mxu0 %v3984
    %4781 = vmatpush1.msra.mxu0 %v3983
    %4782 = vmatprep.subr.mxu0 %v3988
    %4783 = vmatpush1.msra.mxu0 %v3987
    %4784 = vmatprep.subr.mxu0 %v3992
    %4785 = vmatpush1.msra.mxu0 %v3991
    %4786 = vmatprep.subr.mxu0 %v3996
    %4787 = vmatpush1.msra.mxu0 %v3995
    %4788 = vmatprep.subr.mxu0 %v4000
    %4789 = vmatpush1.msra.mxu0 %v3999
    %4790 = vmatprep.subr.mxu0 %v4004
    %4791 = vmatpush1.msra.mxu0 %v4003
    %4792 = vmatprep.subr.mxu0 %v4008
    %4793 = vmatpush1.msra.mxu0 %v4007
    %4794 = vmatprep.subr.mxu0 %v4012
    %4795 = vmatpush1.msra.mxu0 %v4011
    %4796 = vmatprep.subr.mxu0 0.0
    %4797 = vmatpush1.msra.mxu0 0.0
    %4798 = vmatprep.subr.mxu0 0.0
    %4799 = vmatpush1.msra.mxu0 0.0
    %4800 = vmatprep.subr.mxu0 0.0
    %4801 = vmatpush1.msra.mxu0 0.0
    %4802 = vmatprep.subr.mxu0 0.0
    %4803 = vmatpush1.msra.mxu0 0.0
    %4804 = vmatprep.subr.mxu0 0.0
    %4805 = vmatpush1.msra.mxu0 0.0
    %4806 = vmatprep.subr.mxu0 0.0
    %4807 = vmatpush1.msra.mxu0 0.0
    %4808 = vmatprep.subr.mxu0 0.0
    %4809 = vmatpush1.msra.mxu0 0.0
    %4810 = vmatprep.subr.mxu0 0.0
    %4811 = vmatpush1.msra.mxu0 0.0
    %4812 = vmatprep.subr.mxu0 0.0
    %4813 = vmatpush1.msra.mxu0 0.0
    %4814 = vmatprep.subr.mxu0 0.0
    %4815 = vmatpush1.msra.mxu0 0.0
    %4816 = vmatprep.subr.mxu0 0.0
    %4817 = vmatpush1.msra.mxu0 0.0
    %4818 = vmatprep.subr.mxu0 0.0
    %4819 = vmatpush1.msra.mxu0 0.0
    %4820 = vmatprep.subr.mxu0 0.0
    %4821 = vmatpush1.msra.mxu0 0.0
    %4822 = vmatprep.subr.mxu0 0.0
    %4823 = vmatpush1.msra.mxu0 0.0
    %4824 = vmatprep.subr.mxu0 0.0
    %4825 = vmatpush1.msra.mxu0 0.0
    %4826 = vmatprep.subr.mxu0 0.0
    %4827 = vmatpush1.msra.mxu0 0.0
    %4828 = vmatprep.mubr.f32.mxu0 0.0
    %4829 = vmatmul.mubr.f32.gmra.mrb[0].mxu0 %v4688
    %v4830 = vpop.f32.mrb[0].mxu0
    %v4831 = vadd.f32 %v4691, %v4830
    %v4832 = vpop.f32.mrb[0].mxu0
    %v4833 = vadd.f32 %v4692, %v4832
    %4834 = vdwg.mxu0
    %v4835 = vxor.u32 %v4760, 2147483648
    %v4836 = vxor.u32 %v4762, 2147483648
    %v4837 = vxor.u32 %v4831, 2147483648
    %v4838 = vmul.f32 %v4835, 1.442695
    %v4839 = vpow.pop %v4838
    %v4840 = vmul.f32 %v4836, 1.442695
    %v4841 = vpow.pop %v4840
    %v4842 = vmul.f32 %v4837, 1.442695
    %v4843 = vpow.pop %v4842
    %v4844 = vadd.f32 %v4839, 1.0
    %v4845 = vadd.f32 %v4841, 1.0
    %v4846 = vadd.f32 %v4843, 1.0
    %v4847 = vrcp.pop %v4844
    %v4848 = vmul.f32 1.0, %v4847
    %v4849 = vrcp.pop %v4845
    %v4850 = vmul.f32 1.0, %v4849
    %v4851 = vrcp.pop %v4846
    %v4852 = vmul.f32 1.0, %v4851
    %v4853 = vtanh.pop %v4833
    %v4854 = vmul.f32 %v4850, %v4686
    %v4855 = vmul.f32 %v4848, %v4853
    %v4856 = vadd.f32 %v4854, %v4855
    %v4857 = vtanh.pop %v4856
    %v4858 = vmul.f32 %v4852, %v4857
    %v4859 = vsel %vm132, %v3816, %v3798
    %v4860 = vsel %vm133, %v3818, %v3800
    %v4861 = vsel %vm134, %v3929, %v3911
    %v4862 = vsel %vm135, %v3931, %v3913
    %4863 = vmatprep.subr.mxu0 %v3950
    %4864 = vmatpush1.msra.mxu0 %v3949
    %4865 = vmatprep.subr.mxu0 %v3954
    %4866 = vmatpush1.msra.mxu0 %v3953
    %4867 = vmatprep.subr.mxu0 %v3958
    %4868 = vmatpush1.msra.mxu0 %v3957
    %4869 = vmatprep.subr.mxu0 %v3962
    %4870 = vmatpush1.msra.mxu0 %v3961
    %4871 = vmatprep.subr.mxu0 %v3966
    %4872 = vmatpush1.msra.mxu0 %v3965
    %4873 = vmatprep.subr.mxu0 %v3970
    %4874 = vmatpush1.msra.mxu0 %v3969
    %4875 = vmatprep.subr.mxu0 %v3974
    %4876 = vmatpush1.msra.mxu0 %v3973
    %4877 = vmatprep.subr.mxu0 %v3978
    %4878 = vmatpush1.msra.mxu0 %v3977
    %4879 = vmatprep.subr.mxu0 %v3982
    %4880 = vmatpush1.msra.mxu0 %v3981
    %4881 = vmatprep.subr.mxu0 %v3986
    %4882 = vmatpush1.msra.mxu0 %v3985
    %4883 = vmatprep.subr.mxu0 %v3990
    %4884 = vmatpush1.msra.mxu0 %v3989
    %4885 = vmatprep.subr.mxu0 %v3994
    %4886 = vmatpush1.msra.mxu0 %v3993
    %4887 = vmatprep.subr.mxu0 %v3998
    %4888 = vmatpush1.msra.mxu0 %v3997
    %4889 = vmatprep.subr.mxu0 %v4002
    %4890 = vmatpush1.msra.mxu0 %v4001
    %4891 = vmatprep.subr.mxu0 %v4006
    %4892 = vmatpush1.msra.mxu0 %v4005
    %4893 = vmatprep.subr.mxu0 %v4010
    %4894 = vmatpush1.msra.mxu0 %v4009
    %4895 = vmatprep.subr.mxu0 0.0
    %4896 = vmatpush1.msra.mxu0 0.0
    %4897 = vmatprep.subr.mxu0 0.0
    %4898 = vmatpush1.msra.mxu0 0.0
    %4899 = vmatprep.subr.mxu0 0.0
    %4900 = vmatpush1.msra.mxu0 0.0
    %4901 = vmatprep.subr.mxu0 0.0
    %4902 = vmatpush1.msra.mxu0 0.0
    %4903 = vmatprep.subr.mxu0 0.0
    %4904 = vmatpush1.msra.mxu0 0.0
    %4905 = vmatprep.subr.mxu0 0.0
    %4906 = vmatpush1.msra.mxu0 0.0
    %4907 = vmatprep.subr.mxu0 0.0
    %4908 = vmatpush1.msra.mxu0 0.0
    %4909 = vmatprep.subr.mxu0 0.0
    %4910 = vmatpush1.msra.mxu0 0.0
    %4911 = vmatprep.subr.mxu0 0.0
    %4912 = vmatpush1.msra.mxu0 0.0
    %4913 = vmatprep.subr.mxu0 0.0
    %4914 = vmatpush1.msra.mxu0 0.0
    %4915 = vmatprep.subr.mxu0 0.0
    %4916 = vmatpush1.msra.mxu0 0.0
    %4917 = vmatprep.subr.mxu0 0.0
    %4918 = vmatpush1.msra.mxu0 0.0
    %4919 = vmatprep.subr.mxu0 0.0
    %4920 = vmatpush1.msra.mxu0 0.0
    %4921 = vmatprep.subr.mxu0 0.0
    %4922 = vmatpush1.msra.mxu0 0.0
    %4923 = vmatprep.subr.mxu0 0.0
    %4924 = vmatpush1.msra.mxu0 0.0
    %4925 = vmatprep.subr.mxu0 0.0
    %4926 = vmatpush1.msra.mxu0 0.0
    %4927 = vmatprep.mubr.f32.mxu0 0.0
    %4928 = vmatmul.mubr.f32.gmra.mrb[0].mxu0 %v4858
    %v4929 = vpop.f32.mrb[0].mxu0
    %v4930 = vadd.f32 %v4859, %v4929
    %v4931 = vpop.f32.mrb[0].mxu0
    %v4932 = vadd.f32 %v4860, %v4931
    %4933 = vdwg.mxu0
    %4934 = vmatprep.subr.mxu0 %v3952
    %4935 = vmatpush1.msra.mxu0 %v3951
    %4936 = vmatprep.subr.mxu0 %v3956
    %4937 = vmatpush1.msra.mxu0 %v3955
    %4938 = vmatprep.subr.mxu0 %v3960
    %4939 = vmatpush1.msra.mxu0 %v3959
    %4940 = vmatprep.subr.mxu0 %v3964
    %4941 = vmatpush1.msra.mxu0 %v3963
    %4942 = vmatprep.subr.mxu0 %v3968
    %4943 = vmatpush1.msra.mxu0 %v3967
    %4944 = vmatprep.subr.mxu0 %v3972
    %4945 = vmatpush1.msra.mxu0 %v3971
    %4946 = vmatprep.subr.mxu0 %v3976
    %4947 = vmatpush1.msra.mxu0 %v3975
    %4948 = vmatprep.subr.mxu0 %v3980
    %4949 = vmatpush1.msra.mxu0 %v3979
    %4950 = vmatprep.subr.mxu0 %v3984
    %4951 = vmatpush1.msra.mxu0 %v3983
    %4952 = vmatprep.subr.mxu0 %v3988
    %4953 = vmatpush1.msra.mxu0 %v3987
    %4954 = vmatprep.subr.mxu0 %v3992
    %4955 = vmatpush1.msra.mxu0 %v3991
    %4956 = vmatprep.subr.mxu0 %v3996
    %4957 = vmatpush1.msra.mxu0 %v3995
    %4958 = vmatprep.subr.mxu0 %v4000
    %4959 = vmatpush1.msra.mxu0 %v3999
    %4960 = vmatprep.subr.mxu0 %v4004
    %4961 = vmatpush1.msra.mxu0 %v4003
    %4962 = vmatprep.subr.mxu0 %v4008
    %4963 = vmatpush1.msra.mxu0 %v4007
    %4964 = vmatprep.subr.mxu0 %v4012
    %4965 = vmatpush1.msra.mxu0 %v4011
    %4966 = vmatprep.subr.mxu0 0.0
    %4967 = vmatpush1.msra.mxu0 0.0
    %4968 = vmatprep.subr.mxu0 0.0
    %4969 = vmatpush1.msra.mxu0 0.0
    %4970 = vmatprep.subr.mxu0 0.0
    %4971 = vmatpush1.msra.mxu0 0.0
    %4972 = vmatprep.subr.mxu0 0.0
    %4973 = vmatpush1.msra.mxu0 0.0
    %4974 = vmatprep.subr.mxu0 0.0
    %4975 = vmatpush1.msra.mxu0 0.0
    %4976 = vmatprep.subr.mxu0 0.0
    %4977 = vmatpush1.msra.mxu0 0.0
    %4978 = vmatprep.subr.mxu0 0.0
    %4979 = vmatpush1.msra.mxu0 0.0
    %4980 = vmatprep.subr.mxu0 0.0
    %4981 = vmatpush1.msra.mxu0 0.0
    %4982 = vmatprep.subr.mxu0 0.0
    %4983 = vmatpush1.msra.mxu0 0.0
    %4984 = vmatprep.subr.mxu0 0.0
    %4985 = vmatpush1.msra.mxu0 0.0
    %4986 = vmatprep.subr.mxu0 0.0
    %4987 = vmatpush1.msra.mxu0 0.0
    %4988 = vmatprep.subr.mxu0 0.0
    %4989 = vmatpush1.msra.mxu0 0.0
    %4990 = vmatprep.subr.mxu0 0.0
    %4991 = vmatpush1.msra.mxu0 0.0
    %4992 = vmatprep.subr.mxu0 0.0
    %4993 = vmatpush1.msra.mxu0 0.0
    %4994 = vmatprep.subr.mxu0 0.0
    %4995 = vmatpush1.msra.mxu0 0.0
    %4996 = vmatprep.subr.mxu0 0.0
    %4997 = vmatpush1.msra.mxu0 0.0
    %4998 = vmatprep.mubr.f32.mxu0 0.0
    %4999 = vmatmul.mubr.f32.gmra.mrb[0].mxu0 %v4858
    %v5000 = vpop.f32.mrb[0].mxu0
    %v5001 = vadd.f32 %v4861, %v5000
    %v5002 = vpop.f32.mrb[0].mxu0
    %v5003 = vadd.f32 %v4862, %v5002
    %5004 = vdwg.mxu0
    %v5005 = vxor.u32 %v4930, 2147483648
    %v5006 = vxor.u32 %v4932, 2147483648
    %v5007 = vxor.u32 %v5001, 2147483648
    %v5008 = vmul.f32 %v5005, 1.442695
    %v5009 = vpow.pop %v5008
    %v5010 = vmul.f32 %v5006, 1.442695
    %v5011 = vpow.pop %v5010
    %v5012 = vmul.f32 %v5007, 1.442695
    %v5013 = vpow.pop %v5012
    %v5014 = vadd.f32 %v5009, 1.0
    %v5015 = vadd.f32 %v5011, 1.0
    %v5016 = vadd.f32 %v5013, 1.0
    %v5017 = vrcp.pop %v5014
    %v5018 = vmul.f32 1.0, %v5017
    %v5019 = vrcp.pop %v5015
    %v5020 = vmul.f32 1.0, %v5019
    %v5021 = vrcp.pop %v5016
    %v5022 = vmul.f32 1.0, %v5021
    %v5023 = vtanh.pop %v5003
    %v5024 = vmul.f32 %v5020, %v4856
    %v5025 = vmul.f32 %v5018, %v5023
    %v5026 = vadd.f32 %v5024, %v5025
    %v5027 = vtanh.pop %v5026
    %v5028 = vmul.f32 %v5022, %v5027
    %v5029 = vsel %vm132, %v3822, %v3792
    %v5030 = vsel %vm133, %v3824, %v3794
    %v5031 = vsel %vm134, %v3935, %v3905
    %v5032 = vsel %vm135, %v3937, %v3907
    %5033 = vmatprep.subr.mxu0 %v3950
    %5034 = vmatpush1.msra.mxu0 %v3949
    %5035 = vmatprep.subr.mxu0 %v3954
    %5036 = vmatpush1.msra.mxu0 %v3953
    %5037 = vmatprep.subr.mxu0 %v3958
    %5038 = vmatpush1.msra.mxu0 %v3957
    %5039 = vmatprep.subr.mxu0 %v3962
    %5040 = vmatpush1.msra.mxu0 %v3961
    %5041 = vmatprep.subr.mxu0 %v3966
    %5042 = vmatpush1.msra.mxu0 %v3965
    %5043 = vmatprep.subr.mxu0 %v3970
    %5044 = vmatpush1.msra.mxu0 %v3969
    %5045 = vmatprep.subr.mxu0 %v3974
    %5046 = vmatpush1.msra.mxu0 %v3973
    %5047 = vmatprep.subr.mxu0 %v3978
    %5048 = vmatpush1.msra.mxu0 %v3977
    %5049 = vmatprep.subr.mxu0 %v3982
    %5050 = vmatpush1.msra.mxu0 %v3981
    %5051 = vmatprep.subr.mxu0 %v3986
    %5052 = vmatpush1.msra.mxu0 %v3985
    %5053 = vmatprep.subr.mxu0 %v3990
    %5054 = vmatpush1.msra.mxu0 %v3989
    %5055 = vmatprep.subr.mxu0 %v3994
    %5056 = vmatpush1.msra.mxu0 %v3993
    %5057 = vmatprep.subr.mxu0 %v3998
    %5058 = vmatpush1.msra.mxu0 %v3997
    %5059 = vmatprep.subr.mxu0 %v4002
    %5060 = vmatpush1.msra.mxu0 %v4001
    %5061 = vmatprep.subr.mxu0 %v4006
    %5062 = vmatpush1.msra.mxu0 %v4005
    %5063 = vmatprep.subr.mxu0 %v4010
    %5064 = vmatpush1.msra.mxu0 %v4009
    %5065 = vmatprep.subr.mxu0 0.0
    %5066 = vmatpush1.msra.mxu0 0.0
    %5067 = vmatprep.subr.mxu0 0.0
    %5068 = vmatpush1.msra.mxu0 0.0
    %5069 = vmatprep.subr.mxu0 0.0
    %5070 = vmatpush1.msra.mxu0 0.0
    %5071 = vmatprep.subr.mxu0 0.0
    %5072 = vmatpush1.msra.mxu0 0.0
    %5073 = vmatprep.subr.mxu0 0.0
    %5074 = vmatpush1.msra.mxu0 0.0
    %5075 = vmatprep.subr.mxu0 0.0
    %5076 = vmatpush1.msra.mxu0 0.0
    %5077 = vmatprep.subr.mxu0 0.0
    %5078 = vmatpush1.msra.mxu0 0.0
    %5079 = vmatprep.subr.mxu0 0.0
    %5080 = vmatpush1.msra.mxu0 0.0
    %5081 = vmatprep.subr.mxu0 0.0
    %5082 = vmatpush1.msra.mxu0 0.0
    %5083 = vmatprep.subr.mxu0 0.0
    %5084 = vmatpush1.msra.mxu0 0.0
    %5085 = vmatprep.subr.mxu0 0.0
    %5086 = vmatpush1.msra.mxu0 0.0
    %5087 = vmatprep.subr.mxu0 0.0
    %5088 = vmatpush1.msra.mxu0 0.0
    %5089 = vmatprep.subr.mxu0 0.0
    %5090 = vmatpush1.msra.mxu0 0.0
    %5091 = vmatprep.subr.mxu0 0.0
    %5092 = vmatpush1.msra.mxu0 0.0
    %5093 = vmatprep.subr.mxu0 0.0
    %5094 = vmatpush1.msra.mxu0 0.0
    %5095 = vmatprep.subr.mxu0 0.0
    %5096 = vmatpush1.msra.mxu0 0.0
    %5097 = vmatprep.mubr.f32.mxu0 0.0
    %5098 = vmatmul.mubr.f32.gmra.mrb[0].mxu0 %v5028
    %v5099 = vpop.f32.mrb[0].mxu0
    %v5100 = vadd.f32 %v5029, %v5099
    %v5101 = vpop.f32.mrb[0].mxu0
    %v5102 = vadd.f32 %v5030, %v5101
    %5103 = vdwg.mxu0
    %5104 = vmatprep.subr.mxu0 %v3952
    %5105 = vmatpush1.msra.mxu0 %v3951
    %5106 = vmatprep.subr.mxu0 %v3956
    %5107 = vmatpush1.msra.mxu0 %v3955
    %5108 = vmatprep.subr.mxu0 %v3960
    %5109 = vmatpush1.msra.mxu0 %v3959
    %5110 = vmatprep.subr.mxu0 %v3964
    %5111 = vmatpush1.msra.mxu0 %v3963
    %5112 = vmatprep.subr.mxu0 %v3968
    %5113 = vmatpush1.msra.mxu0 %v3967
    %5114 = vmatprep.subr.mxu0 %v3972
    %5115 = vmatpush1.msra.mxu0 %v3971
    %5116 = vmatprep.subr.mxu0 %v3976
    %5117 = vmatpush1.msra.mxu0 %v3975
    %5118 = vmatprep.subr.mxu0 %v3980
    %5119 = vmatpush1.msra.mxu0 %v3979
    %5120 = vmatprep.subr.mxu0 %v3984
    %5121 = vmatpush1.msra.mxu0 %v3983
    %5122 = vmatprep.subr.mxu0 %v3988
    %5123 = vmatpush1.msra.mxu0 %v3987
    %5124 = vmatprep.subr.mxu0 %v3992
    %5125 = vmatpush1.msra.mxu0 %v3991
    %5126 = vmatprep.subr.mxu0 %v3996
    %5127 = vmatpush1.msra.mxu0 %v3995
    %5128 = vmatprep.subr.mxu0 %v4000
    %5129 = vmatpush1.msra.mxu0 %v3999
    %5130 = vmatprep.subr.mxu0 %v4004
    %5131 = vmatpush1.msra.mxu0 %v4003
    %5132 = vmatprep.subr.mxu0 %v4008
    %5133 = vmatpush1.msra.mxu0 %v4007
    %5134 = vmatprep.subr.mxu0 %v4012
    %5135 = vmatpush1.msra.mxu0 %v4011
    %5136 = vmatprep.subr.mxu0 0.0
    %5137 = vmatpush1.msra.mxu0 0.0
    %5138 = vmatprep.subr.mxu0 0.0
    %5139 = vmatpush1.msra.mxu0 0.0
    %5140 = vmatprep.subr.mxu0 0.0
    %5141 = vmatpush1.msra.mxu0 0.0
    %5142 = vmatprep.subr.mxu0 0.0
    %5143 = vmatpush1.msra.mxu0 0.0
    %5144 = vmatprep.subr.mxu0 0.0
    %5145 = vmatpush1.msra.mxu0 0.0
    %5146 = vmatprep.subr.mxu0 0.0
    %5147 = vmatpush1.msra.mxu0 0.0
    %5148 = vmatprep.subr.mxu0 0.0
    %5149 = vmatpush1.msra.mxu0 0.0
    %5150 = vmatprep.subr.mxu0 0.0
    %5151 = vmatpush1.msra.mxu0 0.0
    %5152 = vmatprep.subr.mxu0 0.0
    %5153 = vmatpush1.msra.mxu0 0.0
    %5154 = vmatprep.subr.mxu0 0.0
    %5155 = vmatpush1.msra.mxu0 0.0
    %5156 = vmatprep.subr.mxu0 0.0
    %5157 = vmatpush1.msra.mxu0 0.0
    %5158 = vmatprep.subr.mxu0 0.0
    %5159 = vmatpush1.msra.mxu0 0.0
    %5160 = vmatprep.subr.mxu0 0.0
    %5161 = vmatpush1.msra.mxu0 0.0
    %5162 = vmatprep.subr.mxu0 0.0
    %5163 = vmatpush1.msra.mxu0 0.0
    %5164 = vmatprep.subr.mxu0 0.0
    %5165 = vmatpush1.msra.mxu0 0.0
    %5166 = vmatprep.subr.mxu0 0.0
    %5167 = vmatpush1.msra.mxu0 0.0
    %5168 = vmatprep.mubr.f32.mxu0 0.0
    %5169 = vmatmul.mubr.f32.gmra.mrb[0].mxu0 %v5028
    %v5170 = vpop.f32.mrb[0].mxu0
    %v5171 = vadd.f32 %v5031, %v5170
    %v5172 = vpop.f32.mrb[0].mxu0
    %v5173 = vadd.f32 %v5032, %v5172
    %5174 = vdwg.mxu0
    %v5175 = vxor.u32 %v5100, 2147483648
    %v5176 = vxor.u32 %v5102, 2147483648
    %v5177 = vxor.u32 %v5171, 2147483648
    %v5178 = vmul.f32 %v5175, 1.442695
    %v5179 = vpow.pop %v5178
    %v5180 = vmul.f32 %v5176, 1.442695
    %v5181 = vpow.pop %v5180
    %v5182 = vmul.f32 %v5177, 1.442695
    %v5183 = vpow.pop %v5182
    %v5184 = vadd.f32 %v5179, 1.0
    %v5185 = vadd.f32 %v5181, 1.0
    %v5186 = vadd.f32 %v5183, 1.0
    %v5187 = vrcp.pop %v5184
    %v5188 = vmul.f32 1.0, %v5187
    %v5189 = vrcp.pop %v5185
    %v5190 = vmul.f32 1.0, %v5189
    %v5191 = vrcp.pop %v5186
    %v5192 = vmul.f32 1.0, %v5191
    %v5193 = vtanh.pop %v5173
    %v5194 = vmul.f32 %v5190, %v5026
    %v5195 = vmul.f32 %v5188, %v5193
    %v5196 = vadd.f32 %v5194, %v5195
    %v5197 = vtanh.pop %v5196
    %v5198 = vmul.f32 %v5192, %v5197
    %v5199 = vsel %vm132, %v3828, %v3786
    %v5200 = vsel %vm133, %v3830, %v3788
    %v5201 = vsel %vm134, %v3941, %v3899
    %v5202 = vsel %vm135, %v3943, %v3901
    %5203 = vmatprep.subr.mxu0 %v3950
    %5204 = vmatpush1.msra.mxu0 %v3949
    %5205 = vmatprep.subr.mxu0 %v3954
    %5206 = vmatpush1.msra.mxu0 %v3953
    %5207 = vmatprep.subr.mxu0 %v3958
    %5208 = vmatpush1.msra.mxu0 %v3957
    %5209 = vmatprep.subr.mxu0 %v3962
    %5210 = vmatpush1.msra.mxu0 %v3961
    %5211 = vmatprep.subr.mxu0 %v3966
    %5212 = vmatpush1.msra.mxu0 %v3965
    %5213 = vmatprep.subr.mxu0 %v3970
    %5214 = vmatpush1.msra.mxu0 %v3969
    %5215 = vmatprep.subr.mxu0 %v3974
    %5216 = vmatpush1.msra.mxu0 %v3973
    %5217 = vmatprep.subr.mxu0 %v3978
    %5218 = vmatpush1.msra.mxu0 %v3977
    %5219 = vmatprep.subr.mxu0 %v3982
    %5220 = vmatpush1.msra.mxu0 %v3981
    %5221 = vmatprep.subr.mxu0 %v3986
    %5222 = vmatpush1.msra.mxu0 %v3985
    %5223 = vmatprep.subr.mxu0 %v3990
    %5224 = vmatpush1.msra.mxu0 %v3989
    %5225 = vmatprep.subr.mxu0 %v3994
    %5226 = vmatpush1.msra.mxu0 %v3993
    %5227 = vmatprep.subr.mxu0 %v3998
    %5228 = vmatpush1.msra.mxu0 %v3997
    %5229 = vmatprep.subr.mxu0 %v4002
    %5230 = vmatpush1.msra.mxu0 %v4001
    %5231 = vmatprep.subr.mxu0 %v4006
    %5232 = vmatpush1.msra.mxu0 %v4005
    %5233 = vmatprep.subr.mxu0 %v4010
    %5234 = vmatpush1.msra.mxu0 %v4009
    %5235 = vmatprep.subr.mxu0 0.0
    %5236 = vmatpush1.msra.mxu0 0.0
    %5237 = vmatprep.subr.mxu0 0.0
    %5238 = vmatpush1.msra.mxu0 0.0
    %5239 = vmatprep.subr.mxu0 0.0
    %5240 = vmatpush1.msra.mxu0 0.0
    %5241 = vmatprep.subr.mxu0 0.0
    %5242 = vmatpush1.msra.mxu0 0.0
    %5243 = vmatprep.subr.mxu0 0.0
    %5244 = vmatpush1.msra.mxu0 0.0
    %5245 = vmatprep.subr.mxu0 0.0
    %5246 = vmatpush1.msra.mxu0 0.0
    %5247 = vmatprep.subr.mxu0 0.0
    %5248 = vmatpush1.msra.mxu0 0.0
    %5249 = vmatprep.subr.mxu0 0.0
    %5250 = vmatpush1.msra.mxu0 0.0
    %5251 = vmatprep.subr.mxu0 0.0
    %5252 = vmatpush1.msra.mxu0 0.0
    %5253 = vmatprep.subr.mxu0 0.0
    %5254 = vmatpush1.msra.mxu0 0.0
    %5255 = vmatprep.subr.mxu0 0.0
    %5256 = vmatpush1.msra.mxu0 0.0
    %5257 = vmatprep.subr.mxu0 0.0
    %5258 = vmatpush1.msra.mxu0 0.0
    %5259 = vmatprep.subr.mxu0 0.0
    %5260 = vmatpush1.msra.mxu0 0.0
    %5261 = vmatprep.subr.mxu0 0.0
    %5262 = vmatpush1.msra.mxu0 0.0
    %5263 = vmatprep.subr.mxu0 0.0
    %5264 = vmatpush1.msra.mxu0 0.0
    %5265 = vmatprep.subr.mxu0 0.0
    %5266 = vmatpush1.msra.mxu0 0.0
    %5267 = vmatprep.mubr.f32.mxu0 0.0
    %5268 = vmatmul.mubr.f32.gmra.mrb[0].mxu0 %v5198
    %v5269 = vpop.f32.mrb[0].mxu0
    %v5270 = vadd.f32 %v5199, %v5269
    %v5271 = vpop.f32.mrb[0].mxu0
    %v5272 = vadd.f32 %v5200, %v5271
    %5273 = vdwg.mxu0
    %5274 = vmatprep.subr.mxu0 %v3952
    %5275 = vmatpush1.msra.mxu0 %v3951
    %5276 = vmatprep.subr.mxu0 %v3956
    %5277 = vmatpush1.msra.mxu0 %v3955
    %5278 = vmatprep.subr.mxu0 %v3960
    %5279 = vmatpush1.msra.mxu0 %v3959
    %5280 = vmatprep.subr.mxu0 %v3964
    %5281 = vmatpush1.msra.mxu0 %v3963
    %5282 = vmatprep.subr.mxu0 %v3968
    %5283 = vmatpush1.msra.mxu0 %v3967
    %5284 = vmatprep.subr.mxu0 %v3972
    %5285 = vmatpush1.msra.mxu0 %v3971
    %5286 = vmatprep.subr.mxu0 %v3976
    %5287 = vmatpush1.msra.mxu0 %v3975
    %5288 = vmatprep.subr.mxu0 %v3980
    %5289 = vmatpush1.msra.mxu0 %v3979
    %5290 = vmatprep.subr.mxu0 %v3984
    %5291 = vmatpush1.msra.mxu0 %v3983
    %5292 = vmatprep.subr.mxu0 %v3988
    %5293 = vmatpush1.msra.mxu0 %v3987
    %5294 = vmatprep.subr.mxu0 %v3992
    %5295 = vmatpush1.msra.mxu0 %v3991
    %5296 = vmatprep.subr.mxu0 %v3996
    %5297 = vmatpush1.msra.mxu0 %v3995
    %5298 = vmatprep.subr.mxu0 %v4000
    %5299 = vmatpush1.msra.mxu0 %v3999
    %5300 = vmatprep.subr.mxu0 %v4004
    %5301 = vmatpush1.msra.mxu0 %v4003
    %5302 = vmatprep.subr.mxu0 %v4008
    %5303 = vmatpush1.msra.mxu0 %v4007
    %5304 = vmatprep.subr.mxu0 %v4012
    %5305 = vmatpush1.msra.mxu0 %v4011
    %5306 = vmatprep.subr.mxu0 0.0
    %5307 = vmatpush1.msra.mxu0 0.0
    %5308 = vmatprep.subr.mxu0 0.0
    %5309 = vmatpush1.msra.mxu0 0.0
    %5310 = vmatprep.subr.mxu0 0.0
    %5311 = vmatpush1.msra.mxu0 0.0
    %5312 = vmatprep.subr.mxu0 0.0
    %5313 = vmatpush1.msra.mxu0 0.0
    %5314 = vmatprep.subr.mxu0 0.0
    %5315 = vmatpush1.msra.mxu0 0.0
    %5316 = vmatprep.subr.mxu0 0.0
    %5317 = vmatpush1.msra.mxu0 0.0
    %5318 = vmatprep.subr.mxu0 0.0
    %5319 = vmatpush1.msra.mxu0 0.0
    %5320 = vmatprep.subr.mxu0 0.0
    %5321 = vmatpush1.msra.mxu0 0.0
    %5322 = vmatprep.subr.mxu0 0.0
    %5323 = vmatpush1.msra.mxu0 0.0
    %5324 = vmatprep.subr.mxu0 0.0
    %5325 = vmatpush1.msra.mxu0 0.0
    %5326 = vmatprep.subr.mxu0 0.0
    %5327 = vmatpush1.msra.mxu0 0.0
    %5328 = vmatprep.subr.mxu0 0.0
    %5329 = vmatpush1.msra.mxu0 0.0
    %5330 = vmatprep.subr.mxu0 0.0
    %5331 = vmatpush1.msra.mxu0 0.0
    %5332 = vmatprep.subr.mxu0 0.0
    %5333 = vmatpush1.msra.mxu0 0.0
    %5334 = vmatprep.subr.mxu0 0.0
    %5335 = vmatpush1.msra.mxu0 0.0
    %5336 = vmatprep.subr.mxu0 0.0
    %5337 = vmatpush1.msra.mxu0 0.0
    %5338 = vmatprep.mubr.f32.mxu0 0.0
    %5339 = vmatmul.mubr.f32.gmra.mrb[0].mxu0 %v5198
    %v5340 = vpop.f32.mrb[0].mxu0
    %v5341 = vadd.f32 %v5201, %v5340
    %v5342 = vpop.f32.mrb[0].mxu0
    %v5343 = vadd.f32 %v5202, %v5342
    %5344 = vdwg.mxu0
    %v5345 = vxor.u32 %v5270, 2147483648
    %v5346 = vxor.u32 %v5272, 2147483648
    %v5347 = vxor.u32 %v5341, 2147483648
    %v5348 = vmul.f32 %v5345, 1.442695
    %v5349 = vpow.pop %v5348
    %v5350 = vmul.f32 %v5346, 1.442695
    %v5351 = vpow.pop %v5350
    %v5352 = vmul.f32 %v5347, 1.442695
    %v5353 = vpow.pop %v5352
    %v5354 = vadd.f32 %v5349, 1.0
    %v5355 = vadd.f32 %v5351, 1.0
    %v5356 = vadd.f32 %v5353, 1.0
    %v5357 = vrcp.pop %v5354
    %v5358 = vmul.f32 1.0, %v5357
    %v5359 = vrcp.pop %v5355
    %v5360 = vmul.f32 1.0, %v5359
    %v5361 = vrcp.pop %v5356
    %v5362 = vmul.f32 1.0, %v5361
    %v5363 = vtanh.pop %v5343
    %v5364 = vmul.f32 %v5360, %v5196
    %v5365 = vmul.f32 %v5358, %v5363
    %v5366 = vadd.f32 %v5364, %v5365
    %v5367 = vtanh.pop %v5366
    %v5368 = vmul.f32 %v5362, %v5367
    %v5369 = vsel %vm136, %v5368, %v4178
    %v5370 = vld [vmem:[%s10] sm:$0xff]
    %v5371 = vld [vmem:[%s10 + $0x8] sm:$0xff]
    %v5372 = vld [vmem:[%s10 + $0x10] sm:$0xff]
    %v5373 = vld [vmem:[%s10 + $0x18] sm:$0xff]
    %v5374 = vld [vmem:[%s10 + $0x20] sm:$0xff]
    %v5375 = vld [vmem:[%s10 + $0x28] sm:$0xff]
    %v5376 = vld [vmem:[%s10 + $0x30] sm:$0xff]
    %v5377 = vld [vmem:[%s10 + $0x38] sm:$0xff]
    %v5378 = vld [vmem:[%s10 + $0x40] sm:$0xff]
    %v5379 = vld [vmem:[%s10 + $0x48] sm:$0xff]
    %v5380 = vld [vmem:[%s10 + $0x50] sm:$0xff]
    %v5381 = vld [vmem:[%s10 + $0x58] sm:$0xff]
    %v5382 = vld [vmem:[%s10 + $0x60] sm:$0xff]
    %v5383 = vld [vmem:[%s10 + $0x68] sm:$0xff]
    %v5384 = vld [vmem:[%s10 + $0x70] sm:$0xff]
    %v5385 = vld [vmem:[%s10 + $0x78] sm:$0xff]
    %v5386 = vld [vmem:[%s11] sm:$0x1]
    %v5388 = vlaneseq
    %v5389 = vshrl.u32 %v5388, 7
    %v5390 = vsub.s32 0, %v5389
    %v5391 = vrot.slane %v5386, %v5390
    %5393 = vmatprep.subr.mxu0 0.0
    %5394 = vmatpush1.msra.mxu0 %v5370
    %5395 = vmatprep.subr.mxu0 0.0
    %5396 = vmatpush1.msra.mxu0 %v5371
    %5397 = vmatprep.subr.mxu0 0.0
    %5398 = vmatpush1.msra.mxu0 %v5372
    %5399 = vmatprep.subr.mxu0 0.0
    %5400 = vmatpush1.msra.mxu0 %v5373
    %5401 = vmatprep.subr.mxu0 0.0
    %5402 = vmatpush1.msra.mxu0 %v5374
    %5403 = vmatprep.subr.mxu0 0.0
    %5404 = vmatpush1.msra.mxu0 %v5375
    %5405 = vmatprep.subr.mxu0 0.0
    %5406 = vmatpush1.msra.mxu0 %v5376
    %5407 = vmatprep.subr.mxu0 0.0
    %5408 = vmatpush1.msra.mxu0 %v5377
    %5409 = vmatprep.subr.mxu0 0.0
    %5410 = vmatpush1.msra.mxu0 %v5378
    %5411 = vmatprep.subr.mxu0 0.0
    %5412 = vmatpush1.msra.mxu0 %v5379
    %5413 = vmatprep.subr.mxu0 0.0
    %5414 = vmatpush1.msra.mxu0 %v5380
    %5415 = vmatprep.subr.mxu0 0.0
    %5416 = vmatpush1.msra.mxu0 %v5381
    %5417 = vmatprep.subr.mxu0 0.0
    %5418 = vmatpush1.msra.mxu0 %v5382
    %5419 = vmatprep.subr.mxu0 0.0
    %5420 = vmatpush1.msra.mxu0 %v5383
    %5421 = vmatprep.subr.mxu0 0.0
    %5422 = vmatpush1.msra.mxu0 %v5384
    %5423 = vmatprep.subr.mxu0 0.0
    %5424 = vmatpush1.msra.mxu0 %v5385
    %5425 = vmatprep.subr.mxu0 0.0
    %5426 = vmatpush1.msra.mxu0 0.0
    %5427 = vmatprep.subr.mxu0 0.0
    %5428 = vmatpush1.msra.mxu0 0.0
    %5429 = vmatprep.subr.mxu0 0.0
    %5430 = vmatpush1.msra.mxu0 0.0
    %5431 = vmatprep.subr.mxu0 0.0
    %5432 = vmatpush1.msra.mxu0 0.0
    %5433 = vmatprep.subr.mxu0 0.0
    %5434 = vmatpush1.msra.mxu0 0.0
    %5435 = vmatprep.subr.mxu0 0.0
    %5436 = vmatpush1.msra.mxu0 0.0
    %5437 = vmatprep.subr.mxu0 0.0
    %5438 = vmatpush1.msra.mxu0 0.0
    %5439 = vmatprep.subr.mxu0 0.0
    %5440 = vmatpush1.msra.mxu0 0.0
    %5441 = vmatprep.subr.mxu0 0.0
    %5442 = vmatpush1.msra.mxu0 0.0
    %5443 = vmatprep.subr.mxu0 0.0
    %5444 = vmatpush1.msra.mxu0 0.0
    %5445 = vmatprep.subr.mxu0 0.0
    %5446 = vmatpush1.msra.mxu0 0.0
    %5447 = vmatprep.subr.mxu0 0.0
    %5448 = vmatpush1.msra.mxu0 0.0
    %5449 = vmatprep.subr.mxu0 0.0
    %5450 = vmatpush1.msra.mxu0 0.0
    %5451 = vmatprep.subr.mxu0 0.0
    %5452 = vmatpush1.msra.mxu0 0.0
    %5453 = vmatprep.subr.mxu0 0.0
    %5454 = vmatpush1.msra.mxu0 0.0
    %5455 = vmatprep.subr.mxu0 0.0
    %5456 = vmatpush1.msra.mxu0 0.0
    %5457 = vmatprep.mubr.f32.mxu0 0.0
    %5458 = vmatmul.mubr.f32.gmra.mrb[0].mxu0 %v5369
    %v5459 = vpop.f32.mrb[0].mxu0
    %v5460 = vadd.f32 %v5391, %v5459
    %v5461 = vpop.f32.mrb[0].mxu0
    %5462 = vdwg.mxu0
    %5463 = vst [vmem:[%s12] sm:$0xff] %v5460
    // Predicated region
    $region74: #{rnn_forward.1} parent=1 // pred_check
      _
    $region75: #{rnn_forward.1} parent=1 // pred_check_branch
      %5465 = sbr.rel (0) target = $region77
    $region76: #{rnn_forward.1} parent=1 // pred_region
      _
    $region77: #{rnn_forward.1} parent=1 // pred_fallthru
      _
    // Predicated region
    $region78: #{rnn_forward.1} parent=1 // pred_check
      _
    $region79: #{rnn_forward.1} parent=1 // pred_check_branch
      %5467 = sbr.rel (0) target = $region81
    $region80: #{rnn_forward.1} parent=1 // pred_region
      _
    $region81: #{rnn_forward.1} parent=1 // pred_fallthru
      _
    %5468 = vsyncpa [#allocation3], 1
    %5469 = vsyncpa [#allocation5], 1
    %5470 = vsyncpa [#allocation8], 1
    %5471 = vsyncpa [#allocation11], 1

</llo_original>
